<compile_context>
chip_gen: v5e
topology: v5e:2x2
jax: 0.10.0
libtpu: 0.0.40
codegen_flags: <defaults>
</compile_context>

<pallas_src>
import functools

import jax
import jax.numpy as jnp
from jax.experimental import pallas as pl
from jax.experimental.pallas import tpu as pltpu


_CIN_ALIGN = 16   # bf16 sublane tile -> tap concat stays vreg-aligned in bf16
_COUT_ALIGN = 8   # f32 sublane tile for the accumulator / output rows


def _round_up(x, m):
    return (x + m - 1) // m * m


# ----------------------------- Pallas kernels ------------------------------ #

def _conv_core(x_ref, w_ref, b_ref, *, kh, kw, wp, act):
    """Shared lane-dense conv body.

    x_ref: (Cin_pad, Hp*Wp + kw-1)   bf16, spatially padded, flattened input
    w_ref: (Cout_pad, kh*kw*Cin_pad) bf16 combined tap/weight matrix
    b_ref: (Cout_pad, 1)             f32 bias
    Returns (Cout_pad, Lo) f32 with Lo = (Hp-kh+1)*Wp; the kw-1 trailing columns of
    every output row are wrap-around garbage that the wrapper slices off.
    """
    x = x_ref[...]                               # bf16; tap build is pure data movement
    l = x.shape[1] - (kw - 1)
    lo = l - (kh - 1) * wp
    # Shifted-tap views of the single padded buffer (static lane-offset slices).
    # Each piece is Cin_pad = 16 rows = one full bf16 sublane tile, so the concat is
    # tile-aligned (no packing fixups).
    taps = [x[:, dy * wp + dx: dy * wp + dx + lo]
            for dy in range(kh) for dx in range(kw)]
    p = jnp.concatenate(taps, axis=0)            # (kh*kw*Cin_pad, Lo) bf16
    # Single MXU matmul, K = taps*Cin_pad, output lane-dense (Cout x HW), f32 acc.
    acc = jnp.dot(w_ref[...], p, preferred_element_type=jnp.float32)
    acc = acc + b_ref[...]
    if act == "relu":
        acc = jnp.maximum(acc, 0.0)
    elif act == "sigmoid":
        acc = jax.nn.sigmoid(acc)
    return acc


def _conv_kernel(x_ref, w_ref, b_ref, o_ref, *, kh, kw, wp, act):
    o_ref[...] = _conv_core(x_ref, w_ref, b_ref, kh=kh, kw=kw, wp=wp,
                            act=act).astype(o_ref.dtype)


def _conv_relu_bn_kernel(x_ref, w_ref, b_ref, g_ref, be_ref, o_ref, *,
                         kh, kw, wp, wout, eps):
    """Conv -> ReLU per batch element, then train-mode BatchNorm (batch statistics)
    over the whole VMEM-resident output at the last grid step."""
    i = pl.program_id(0)
    o_ref[i] = _conv_core(x_ref, w_ref, b_ref, kh=kh, kw=kw, wp=wp, act="relu")

    @pl.when(i == pl.num_programs(0) - 1)
    def _():
        y = o_ref[...]                                       # (N, Cout_pad, Lo) post-ReLU, f32
        n, _, lo = y.shape
        col = jax.lax.broadcasted_iota(jnp.int32, (1, 1, lo), 2) % wp
        m = (col < wout).astype(jnp.float32)                 # mask wrap-around garbage cols
        inv_cnt = 1.0 / float(n * (lo // wp) * wout)
        ysum = jnp.sum(jnp.sum(y * m, axis=2, keepdims=True), axis=0, keepdims=True)
        mean = ysum * inv_cnt
        d = (y - mean) * m
        var = jnp.sum(jnp.sum(d * d, axis=2, keepdims=True), axis=0,
                      keepdims=True) * inv_cnt               # biased, as PyTorch uses fwd
        scale = jax.lax.rsqrt(var + eps) * g_ref[...][None]
        o_ref[...] = (y - mean) * scale + be_ref[...][None]
        # TODO(synk): BatchNorm running-stat updates (training side effect) are not
        # modeled; only the forward normalization with batch statistics is reproduced.


# ------------------------------ Pallas wrappers ----------------------------- #

def _conv_lane_dense(xp_nchw, w2, bias, *, kh, kw, act="none", bn=None, eps=1e-5,
                     out_dtype=jnp.float32):
    """kh x kw stride-1 conv of the spatially pre-padded NCHW input, lane-dense."""
    n, cin, hp, wp = xp_nchw.shape
    cin_pad = _round_up(cin, _CIN_ALIGN)
    cout_pad, kdim = w2.shape
    cout = bias.shape[0]
    hout, wout = hp - kh + 1, wp - kw + 1
    l, lo = hp * wp, (hp - kh + 1) * wp

    # Cast to bf16 first (halves input DMA bytes; epilogue stays f32), channel-pad to a
    # full bf16 sublane tile, flatten spatial, tail-pad so every tap slice stays in
    # bounds.
    x = jnp.pad(xp_nchw.astype(jnp.bfloat16),
                ((0, 0), (0, cin_pad - cin), (0, 0), (0, 0)))
    x = jnp.pad(x.reshape(n, cin_pad, l), ((0, 0), (0, 0), (0, kw - 1)))
    b2 = jnp.pad(bias, (0, cout_pad - cout)).reshape(cout_pad, 1).astype(jnp.float32)

    x_spec = pl.BlockSpec((pl.Squeezed(), cin_pad, l + kw - 1), lambda i: (i, 0, 0))
    w_spec = pl.BlockSpec((cout_pad, kdim), lambda i: (0, 0))
    v_spec = pl.BlockSpec((cout_pad, 1), lambda i: (0, 0))

    if bn is None:
        out = pl.pallas_call(
            functools.partial(_conv_kernel, kh=kh, kw=kw, wp=wp, act=act),
            out_shape=jax.ShapeDtypeStruct((n, cout_pad, lo), out_dtype),
            grid=(n,),
            in_specs=[x_spec, w_spec, v_spec],
            out_specs=pl.BlockSpec((pl.Squeezed(), cout_pad, lo), lambda i: (i, 0, 0)),
            compiler_params=pltpu.CompilerParams(
                dimension_semantics=("parallel",)),   # batch sharded across TCs on v7x
        )(x, w2, b2)
    else:
        gamma, beta = bn
        g2 = jnp.pad(gamma, (0, cout_pad - cout)).reshape(cout_pad, 1).astype(jnp.float32)
        be2 = jnp.pad(beta, (0, cout_pad - cout)).reshape(cout_pad, 1).astype(jnp.float32)
        out = pl.pallas_call(
            functools.partial(_conv_relu_bn_kernel, kh=kh, kw=kw, wp=wp,
                              wout=wout, eps=eps),
            out_shape=jax.ShapeDtypeStruct((n, cout_pad, lo), jnp.float32),
            grid=(n,),
            in_specs=[x_spec, w_spec, v_spec, v_spec, v_spec],
            out_specs=pl.BlockSpec((n, cout_pad, lo), lambda i: (0, 0, 0)),  # resident
            compiler_params=pltpu.CompilerParams(
                dimension_semantics=("arbitrary",)),  # BN couples batch elements
        )(x, w2, b2, g2, be2)

    # Drop channel padding and the wrap-around garbage columns.
    return out.reshape(n, cout_pad, hout, wp)[:, :cout, :, :wout]


# ------------------------------- JAX glue ----------------------------------- #

def _conv_weight_matrix(w_oihw):
    """PyTorch Conv2d weight (Cout, Cin, KH, KW) -> (Cout_pad, KH*KW*Cin_pad) bf16,
    matching the in-kernel tap layout (tap-major, channel-minor)."""
    co, ci, kh, kw = w_oihw.shape
    cop, cip = _round_up(co, _COUT_ALIGN), _round_up(ci, _CIN_ALIGN)
    w = jnp.pad(w_oihw, ((0, cop - co), (0, cip - ci), (0, 0), (0, 0)))
    w = jnp.transpose(w, (0, 2, 3, 1)).reshape(cop, kh * kw * cip)
    return w.astype(jnp.bfloat16)


def _convT_as_conv2x2(w_iohw, bias):
    """Exact rewrite of ConvTranspose2d(3x3, stride=2, padding=1, output_padding=1) as:
    zero-pad bottom/right by 1 -> 2x2 stride-1 conv to 4*Cout channels at the input
    resolution -> PixelShuffle(2).

    Output pixel (2y+i, 2x+j): only kernel rows ky with 2y' - 1 + ky = 2y + i contribute,
    i.e. ky = 1 for even rows and ky in {2, 0} (input offsets a = 0, 1) for odd rows
    (same for columns), so each of the 4 phases is a small conv over offsets {0,1}^2.
    """
    ci, co = w_iohw.shape[0], w_iohw.shape[1]
    kmap = {(0, 0): 1, (1, 0): 2, (1, 1): 0}      # (phase, input offset) -> kernel index
    wd = jnp.zeros((4 * co, ci, 2, 2), jnp.float32)
    for i in range(2):
        for j in range(2):
            for a in range(2):
                for b in range(2):
                    if (i, a) in kmap and (j, b) in kmap:
                        tap = jnp.transpose(
                            w_iohw[:, :, kmap[(i, a)], kmap[(j, b)]], (1, 0))  # (Cout, Cin)
                        wd = wd.at[i * 2 + j::4, :, a, b].set(tap)
    bd = jnp.repeat(bias, 4)                      # stacked channel order c*4 + i*2 + j
    return wd, bd


def _pixel_shuffle_nchw(x, r):
    # PyTorch PixelShuffle: out[n, c, h*r+i, w*r+j] = in[n, c*r*r + i*r + j, h, w]
    n, c, h, w = x.shape
    co = c // (r * r)
    x = x.reshape(n, co, r, r, h, w)
    x = jnp.transpose(x, (0, 1, 4, 2, 5, 3))
    return x.reshape(n, co, h * r, w * r)


# ------------------------------ Model ---------------------------------------- #

def init_params(key, dec_kernel):
    """Deterministic synthetic parameters (PyTorch layouts)."""
    ks = jax.random.split(key, 16)
    nrm = lambda k, s: 0.1 * jax.random.normal(k, s, jnp.float32)
    p, i = {}, 0
    for k in range(2):
        cin, cout = dec_kernel[k], dec_kernel[k + 1]
        p[f"convT{k}_w"] = nrm(ks[i], (cin, cout, 3, 3)); i += 1
        p[f"convT{k}_b"] = nrm(ks[i], (cout,)); i += 1
        p[f"conv{k}_w"] = nrm(ks[i], (cout, cout, 3, 3)); i += 1
        p[f"conv{k}_b"] = nrm(ks[i], (cout,)); i += 1
        p[f"bn{k}_g"] = 1.0 + nrm(ks[i], (cout,)); i += 1
        p[f"bn{k}_b"] = nrm(ks[i], (cout,)); i += 1
    cin, cout = dec_kernel[-2], dec_kernel[-1] * 2 * 2
    p["convF_w"] = nrm(ks[i], (cout, cin, 3, 3)); i += 1
    p["convF_b"] = nrm(ks[i], (cout,))
    return p


@jax.jit
def dec_subpix_branch_forward(x_nchw, params):
    h = x_nchw.astype(jnp.float32)
    for k in range(2):
        # ConvTranspose2d(3x3, stride 2, pad 1, out_pad 1): 4-phase subpixel rewrite.
        # Output kept in bf16 (it is re-cast to bf16 for the next MXU matmul anyway),
        # halving its writeback and the PixelShuffle / reflect-pad glue traffic.
        wd, bd = _convT_as_conv2x2(params[f"convT{k}_w"], params[f"convT{k}_b"])
        xp = jnp.pad(h, ((0, 0), (0, 0), (0, 1), (0, 1)))
        y = _conv_lane_dense(xp, _conv_weight_matrix(wd), bd, kh=2, kw=2, act="none",
                             out_dtype=jnp.bfloat16)
        h = _pixel_shuffle_nchw(y, 2)
        # Conv2d(3x3, reflect pad) + ReLU + BatchNorm2d, fused in one pallas_call.
        xp = jnp.pad(h, ((0, 0), (0, 0), (1, 1), (1, 1)), mode="reflect")
        h = _conv_lane_dense(xp, _conv_weight_matrix(params[f"conv{k}_w"]),
                             params[f"conv{k}_b"], kh=3, kw=3,
                             bn=(params[f"bn{k}_g"], params[f"bn{k}_b"]))
    # Conv2d(3x3, 'same') with fused Sigmoid (commutes with PixelShuffle), PixelShuffle(2).
    xp = jnp.pad(h, ((0, 0), (0, 0), (1, 1), (1, 1)))
    y = _conv_lane_dense(xp, _conv_weight_matrix(params["convF_w"]),
                         params["convF_b"], kh=3, kw=3, act="sigmoid",
                         out_dtype=jnp.float32)
    return _pixel_shuffle_nchw(y, 2)


if __name__ == "__main__":
    dec_kernel = [4, 8, 8, 2]        # [Cin, C1, C2, Cout]
    batch, height, width = 2, 16, 16

    key = jax.random.PRNGKey(0)
    kx, kp = jax.random.split(key)
    x = jax.random.normal(kx, (batch, dec_kernel[0], height, width), jnp.float32)
    params = init_params(kp, dec_kernel)

    out = jax.block_until_ready(dec_subpix_branch_forward(x, params))

    # 2x ConvT doubling + PixelShuffle(2): 16 -> 32 -> 64 -> 128
    assert out.shape == (batch, dec_kernel[-1], height * 8, width * 8), out.shape
    assert out.dtype == jnp.float32
    assert bool(jnp.all(jnp.isfinite(out)))
    assert bool(jnp.all((out >= 0.0) & (out <= 1.0)))   # sigmoid output range
    print("KERNEL_OK")
</pallas_src>

<mosaic_0001>
module attributes {stable_mosaic.version = 11 : i64} {
  func.func @_conv_kernel(%arg0: i32, %arg1: memref<1x16x290xbf16, #tpu.memory_space<vmem>>, %arg2: memref<32x64xbf16, #tpu.memory_space<vmem>>, %arg3: memref<32x1xf32, #tpu.memory_space<vmem>>, %arg4: memref<1x32x272xbf16, #tpu.memory_space<vmem>>) attributes {dimension_semantics = [#tpu.dimension_semantics<parallel>], iteration_bounds = array<i64: 2>, scalar_prefetch = 0 : i64, scratch_operands = 0 : i64, tpu.core_type = #tpu.core_type<tc>, window_params = [{transform_indices = @transform_0, window_bounds = array<i64: 1, 16, 290>}, {pipeline_mode = #tpu.pipeline_mode<synchronous>, transform_indices = @transform_1, window_bounds = array<i64: 32, 64>}, {pipeline_mode = #tpu.pipeline_mode<synchronous>, transform_indices = @transform_2, window_bounds = array<i64: 32, 1>}, {transform_indices = @transform_3, window_bounds = array<i64: 1, 32, 272>}]} {
    %c0 = arith.constant 0 : index
    %c0_0 = arith.constant 0 : index
    %c0_1 = arith.constant 0 : index
    %0 = vector.load %arg1[%c0, %c0_0, %c0_1] : memref<1x16x290xbf16, #tpu.memory_space<vmem>>, vector<1x16x290xbf16>
    %1 = vector.shape_cast %0 : vector<1x16x290xbf16> to vector<16x290xbf16>
    %2 = vector.extract_strided_slice %1 {offsets = [0, 0], sizes = [16, 272], strides = [1, 1]} : vector<16x290xbf16> to vector<16x272xbf16>
    %3 = vector.extract_strided_slice %1 {offsets = [0, 1], sizes = [16, 272], strides = [1, 1]} : vector<16x290xbf16> to vector<16x272xbf16>
    %4 = vector.extract_strided_slice %1 {offsets = [0, 17], sizes = [16, 272], strides = [1, 1]} : vector<16x290xbf16> to vector<16x272xbf16>
    %5 = vector.extract_strided_slice %1 {offsets = [0, 18], sizes = [16, 272], strides = [1, 1]} : vector<16x290xbf16> to vector<16x272xbf16>
    %6 = tpu.concatenate %2, %3, %4, %5 in 0 : vector<16x272xbf16>, vector<16x272xbf16>, vector<16x272xbf16>, vector<16x272xbf16> -> vector<64x272xbf16>
    %c0_2 = arith.constant 0 : index
    %c0_3 = arith.constant 0 : index
    %7 = vector.load %arg2[%c0_2, %c0_3] : memref<32x64xbf16, #tpu.memory_space<vmem>>, vector<32x64xbf16>
    %cst = arith.constant dense<0.000000e+00> : vector<32x272xf32>
    %8 = tpu.matmul %7, %6, %cst {dimension_numbers = #tpu.dot_dimension_numbers<[1], [0], [0], [1], [0, 0, 1, 1], [], []>} : vector<32x64xbf16>, vector<64x272xbf16>, vector<32x272xf32> -> vector<32x272xf32>
    %c0_4 = arith.constant 0 : index
    %c0_5 = arith.constant 0 : index
    %9 = vector.load %arg3[%c0_4, %c0_5] : memref<32x1xf32, #tpu.memory_space<vmem>>, vector<32x1xf32>
    %10 = vector.broadcast %9 : vector<32x1xf32> to vector<32x272xf32>
    %11 = arith.addf %8, %10 : vector<32x272xf32>
    %12 = arith.truncf %11 : vector<32x272xf32> to vector<32x272xbf16>
    %c0_6 = arith.constant 0 : index
    %c0_7 = arith.constant 0 : index
    %c0_8 = arith.constant 0 : index
    %13 = vector.load %arg4[%c0_6, %c0_7, %c0_8] : memref<1x32x272xbf16, #tpu.memory_space<vmem>>, vector<1x32x272xbf16>
    %14 = vector.shape_cast %13 : vector<1x32x272xbf16> to vector<32x272xbf16>
    %15 = vector.shape_cast %12 : vector<32x272xbf16> to vector<1x32x272xbf16>
    tpu.vector_store %arg4[%c0_6, %c0_7, %c0_8], %15 {strides = array<i32>} : memref<1x32x272xbf16, #tpu.memory_space<vmem>>, vector<1x32x272xbf16>,
    return
  }
  func.func @transform_0(%arg0: i32) -> (i32, i32, i32) {
    %c0_i32 = arith.constant 0 : i32
    %c0_i32_0 = arith.constant 0 : i32
    %c0_i32_1 = arith.constant 0 : i32
    return %arg0, %c0_i32, %c0_i32_0 : i32, i32, i32
  }
  func.func @transform_1(%arg0: i32) -> (i32, i32) {
    %c0_i32 = arith.constant 0 : i32
    %c0_i32_0 = arith.constant 0 : i32
    %c0_i32_1 = arith.constant 0 : i32
    return %c0_i32, %c0_i32_0 : i32, i32
  }
  func.func @transform_2(%arg0: i32) -> (i32, i32) {
    %c0_i32 = arith.constant 0 : i32
    %c0_i32_0 = arith.constant 0 : i32
    %c0_i32_1 = arith.constant 0 : i32
    return %c0_i32, %c0_i32_0 : i32, i32
  }
  func.func @transform_3(%arg0: i32) -> (i32, i32, i32) {
    %c0_i32 = arith.constant 0 : i32
    %c0_i32_0 = arith.constant 0 : i32
    %c0_i32_1 = arith.constant 0 : i32
    return %arg0, %c0_i32, %c0_i32_0 : i32, i32, i32
  }
}

module attributes {stable_mosaic.version = 11 : i64} {
  func.func @_conv_relu_bn_kernel(%arg0: i32, %arg1: memref<1x16x1158xbf16, #tpu.memory_space<vmem>>, %arg2: memref<8x144xbf16, #tpu.memory_space<vmem>>, %arg3: memref<8x1xf32, #tpu.memory_space<vmem>>, %arg4: memref<8x1xf32, #tpu.memory_space<vmem>>, %arg5: memref<8x1xf32, #tpu.memory_space<vmem>>, %arg6: memref<2x8x1088xf32, #tpu.memory_space<vmem>>) attributes {dimension_semantics = [#tpu.dimension_semantics<arbitrary>], iteration_bounds = array<i64: 2>, scalar_prefetch = 0 : i64, scratch_operands = 0 : i64, tpu.core_type = #tpu.core_type<tc>, window_params = [{transform_indices = @transform_0, window_bounds = array<i64: 1, 16, 1158>}, {pipeline_mode = #tpu.pipeline_mode<synchronous>, transform_indices = @transform_1, window_bounds = array<i64: 8, 144>}, {pipeline_mode = #tpu.pipeline_mode<synchronous>, transform_indices = @transform_2, window_bounds = array<i64: 8, 1>}, {pipeline_mode = #tpu.pipeline_mode<synchronous>, transform_indices = @transform_3, window_bounds = array<i64: 8, 1>}, {pipeline_mode = #tpu.pipeline_mode<synchronous>, transform_indices = @transform_4, window_bounds = array<i64: 8, 1>}, {pipeline_mode = #tpu.pipeline_mode<synchronous>, transform_indices = @transform_5, window_bounds = array<i64: 2, 8, 1088>}]} {
    %c0 = arith.constant 0 : index
    %c0_0 = arith.constant 0 : index
    %c0_1 = arith.constant 0 : index
    %0 = vector.load %arg1[%c0, %c0_0, %c0_1] : memref<1x16x1158xbf16, #tpu.memory_space<vmem>>, vector<1x16x1158xbf16>
    %1 = vector.shape_cast %0 : vector<1x16x1158xbf16> to vector<16x1158xbf16>
    %2 = vector.extract_strided_slice %1 {offsets = [0, 0], sizes = [16, 1088], strides = [1, 1]} : vector<16x1158xbf16> to vector<16x1088xbf16>
    %3 = vector.extract_strided_slice %1 {offsets = [0, 1], sizes = [16, 1088], strides = [1, 1]} : vector<16x1158xbf16> to vector<16x1088xbf16>
    %4 = vector.extract_strided_slice %1 {offsets = [0, 2], sizes = [16, 1088], strides = [1, 1]} : vector<16x1158xbf16> to vector<16x1088xbf16>
    %5 = vector.extract_strided_slice %1 {offsets = [0, 34], sizes = [16, 1088], strides = [1, 1]} : vector<16x1158xbf16> to vector<16x1088xbf16>
    %6 = vector.extract_strided_slice %1 {offsets = [0, 35], sizes = [16, 1088], strides = [1, 1]} : vector<16x1158xbf16> to vector<16x1088xbf16>
    %7 = vector.extract_strided_slice %1 {offsets = [0, 36], sizes = [16, 1088], strides = [1, 1]} : vector<16x1158xbf16> to vector<16x1088xbf16>
    %8 = vector.extract_strided_slice %1 {offsets = [0, 68], sizes = [16, 1088], strides = [1, 1]} : vector<16x1158xbf16> to vector<16x1088xbf16>
    %9 = vector.extract_strided_slice %1 {offsets = [0, 69], sizes = [16, 1088], strides = [1, 1]} : vector<16x1158xbf16> to vector<16x1088xbf16>
    %10 = vector.extract_strided_slice %1 {offsets = [0, 70], sizes = [16, 1088], strides = [1, 1]} : vector<16x1158xbf16> to vector<16x1088xbf16>
    %11 = tpu.concatenate %2, %3, %4, %5, %6, %7, %8, %9, %10 in 0 : vector<16x1088xbf16>, vector<16x1088xbf16>, vector<16x1088xbf16>, vector<16x1088xbf16>, vector<16x1088xbf16>, vector<16x1088xbf16>, vector<16x1088xbf16>, vector<16x1088xbf16>, vector<16x1088xbf16> -> vector<144x1088xbf16>
    %c0_2 = arith.constant 0 : index
    %c0_3 = arith.constant 0 : index
    %12 = vector.load %arg2[%c0_2, %c0_3] : memref<8x144xbf16, #tpu.memory_space<vmem>>, vector<8x144xbf16>
    %cst = arith.constant dense<0.000000e+00> : vector<8x1088xf32>
    %13 = tpu.matmul %12, %11, %cst {dimension_numbers = #tpu.dot_dimension_numbers<[1], [0], [0], [1], [0, 0, 1, 1], [], []>} : vector<8x144xbf16>, vector<144x1088xbf16>, vector<8x1088xf32> -> vector<8x1088xf32>
    %c0_4 = arith.constant 0 : index
    %c0_5 = arith.constant 0 : index
    %14 = vector.load %arg3[%c0_4, %c0_5] : memref<8x1xf32, #tpu.memory_space<vmem>>, vector<8x1xf32>
    %15 = vector.broadcast %14 : vector<8x1xf32> to vector<8x1088xf32>
    %16 = arith.addf %13, %15 : vector<8x1088xf32>
    %cst_6 = arith.constant 0.000000e+00 : f32
    %17 = vector.broadcast %cst_6 : f32 to vector<8x1088xf32>
    %18 = arith.maximumf %16, %17 : vector<8x1088xf32>
    %19 = arith.index_cast %arg0 : i32 to index
    %c0_7 = arith.constant 0 : index
    %c0_8 = arith.constant 0 : index
    %20 = vector.load %arg6[%19, %c0_7, %c0_8] : memref<2x8x1088xf32, #tpu.memory_space<vmem>>, vector<1x8x1088xf32>
    %21 = vector.shape_cast %20 : vector<1x8x1088xf32> to vector<8x1088xf32>
    %22 = vector.shape_cast %18 : vector<8x1088xf32> to vector<1x8x1088xf32>
    tpu.vector_store %arg6[%19, %c0_7, %c0_8], %22 {strides = array<i32>} : memref<2x8x1088xf32, #tpu.memory_space<vmem>>, vector<1x8x1088xf32>,
    %c1_i32 = arith.constant 1 : i32
    %23 = arith.cmpi eq, %arg0, %c1_i32 : i32
    %24 = arith.extui %23 : i1 to i32
    %c0_i32 = arith.constant 0 : i32
    %25 = arith.cmpi ne, %24, %c0_i32 : i32
    scf.if %25 {
      %c0_9 = arith.constant 0 : index
      %c0_10 = arith.constant 0 : index
      %c0_11 = arith.constant 0 : index
      %26 = vector.load %arg6[%c0_9, %c0_10, %c0_11] : memref<2x8x1088xf32, #tpu.memory_space<vmem>>, vector<2x8x1088xf32>
      %27 = tpu.iota {dimensions = array<i32: 2>} : vector<1x1x1088xi32>
      %c34_i32 = arith.constant 34 : i32
      %c0_i32_12 = arith.constant 0 : i32
      %28 = arith.cmpi eq, %c34_i32, %c0_i32_12 : i32
      %c1_i32_13 = arith.constant 1 : i32
      %29 = arith.select %28, %c1_i32_13, %c34_i32 : i32
      %30 = vector.broadcast %29 : i32 to vector<1x1x1088xi32>
      %31 = arith.remsi %27, %30 : vector<1x1x1088xi32>
      %c0_i32_14 = arith.constant 0 : i32
      %32 = vector.broadcast %c0_i32_14 : i32 to vector<1x1x1088xi32>
      %33 = arith.cmpi ne, %31, %32 : vector<1x1x1088xi32>
      %c0_i32_15 = arith.constant 0 : i32
      %34 = vector.broadcast %c0_i32_15 : i32 to vector<1x1x1088xi32>
      %35 = arith.cmpi slt, %31, %34 : vector<1x1x1088xi32>
      %c0_i32_16 = arith.constant 0 : i32
      %36 = arith.cmpi slt, %29, %c0_i32_16 : i32
      %37 = vector.broadcast %36 : i1 to vector<1x1x1088xi1>
      %38 = vector.broadcast %37 : vector<1x1x1088xi1> to vector<1x1x1088xi1>
      %39 = arith.xori %35, %38 : vector<1x1x1088xi1>
      %40 = arith.andi %39, %33 : vector<1x1x1088xi1>
      %41 = vector.broadcast %29 : i32 to vector<1x1x1088xi32>
      %42 = arith.addi %31, %41 : vector<1x1x1088xi32>
      %43 = arith.select %40, %42, %31 : vector<1x1x1088xi1>, vector<1x1x1088xi32>
      %c32_i32 = arith.constant 32 : i32
      %44 = vector.broadcast %c32_i32 : i32 to vector<1x1x1088xi32>
      %45 = arith.cmpi slt, %43, %44 : vector<1x1x1088xi32>
      %46 = arith.extui %45 : vector<1x1x1088xi1> to vector<1x1x1088xi32>
      %47 = arith.sitofp %46 : vector<1x1x1088xi32> to vector<1x1x1088xf32>
      %48 = vector.broadcast %47 : vector<1x1x1088xf32> to vector<2x8x1088xf32>
      %49 = arith.mulf %26, %48 : vector<2x8x1088xf32>
      %cst_17 = arith.constant dense<0.000000e+00> : vector<2x8xf32>
      %50 = vector.multi_reduction <add>, %49, %cst_17 [2] : vector<2x8x1088xf32> to vector<2x8xf32>
      %51 = vector.shape_cast %50 : vector<2x8xf32> to vector<2x8x1xf32>
      %cst_18 = arith.constant dense<0.000000e+00> : vector<8x1xf32>
      %52 = vector.multi_reduction <add>, %51, %cst_18 [0] : vector<2x8x1xf32> to vector<8x1xf32>
      %53 = vector.shape_cast %52 : vector<8x1xf32> to vector<1x8x1xf32>
      %cst_19 = arith.constant 4.8828125E-4 : f32
      %54 = vector.broadcast %cst_19 : f32 to vector<1x8x1xf32>
      %55 = arith.mulf %53, %54 : vector<1x8x1xf32>
      %56 = vector.broadcast %55 : vector<1x8x1xf32> to vector<2x8x1088xf32>
      %57 = arith.subf %26, %56 : vector<2x8x1088xf32>
      %58 = vector.broadcast %47 : vector<1x1x1088xf32> to vector<2x8x1088xf32>
      %59 = arith.mulf %57, %58 : vector<2x8x1088xf32>
      %60 = arith.mulf %59, %59 : vector<2x8x1088xf32>
      %cst_20 = arith.constant dense<0.000000e+00> : vector<2x8xf32>
      %61 = vector.multi_reduction <add>, %60, %cst_20 [2] : vector<2x8x1088xf32> to vector<2x8xf32>
      %62 = vector.shape_cast %61 : vector<2x8xf32> to vector<2x8x1xf32>
      %cst_21 = arith.constant dense<0.000000e+00> : vector<8x1xf32>
      %63 = vector.multi_reduction <add>, %62, %cst_21 [0] : vector<2x8x1xf32> to vector<8x1xf32>
      %64 = vector.shape_cast %63 : vector<8x1xf32> to vector<1x8x1xf32>
      %cst_22 = arith.constant 4.8828125E-4 : f32
      %65 = vector.broadcast %cst_22 : f32 to vector<1x8x1xf32>
      %66 = arith.mulf %64, %65 : vector<1x8x1xf32>
      %cst_23 = arith.constant 9.99999974E-6 : f32
      %67 = vector.broadcast %cst_23 : f32 to vector<1x8x1xf32>
      %68 = arith.addf %66, %67 : vector<1x8x1xf32>
      %69 = math.rsqrt %68 : vector<1x8x1xf32>
      %c0_24 = arith.constant 0 : index
      %c0_25 = arith.constant 0 : index
      %70 = vector.load %arg4[%c0_24, %c0_25] : memref<8x1xf32, #tpu.memory_space<vmem>>, vector<8x1xf32>
      %71 = vector.shape_cast %70 : vector<8x1xf32> to vector<1x8x1xf32>
      %72 = arith.mulf %69, %71 : vector<1x8x1xf32>
      %73 = vector.broadcast %55 : vector<1x8x1xf32> to vector<2x8x1088xf32>
      %74 = arith.subf %26, %73 : vector<2x8x1088xf32>
      %75 = vector.broadcast %72 : vector<1x8x1xf32> to vector<2x8x1088xf32>
      %76 = arith.mulf %74, %75 : vector<2x8x1088xf32>
      %c0_26 = arith.constant 0 : index
      %c0_27 = arith.constant 0 : index
      %77 = vector.load %arg5[%c0_26, %c0_27] : memref<8x1xf32, #tpu.memory_space<vmem>>, vector<8x1xf32>
      %78 = vector.shape_cast %77 : vector<8x1xf32> to vector<1x8x1xf32>
      %79 = vector.broadcast %78 : vector<1x8x1xf32> to vector<2x8x1088xf32>
      %80 = arith.addf %76, %79 : vector<2x8x1088xf32>
      %c0_28 = arith.constant 0 : index
      %c0_29 = arith.constant 0 : index
      %c0_30 = arith.constant 0 : index
      %81 = vector.load %arg6[%c0_28, %c0_29, %c0_30] : memref<2x8x1088xf32, #tpu.memory_space<vmem>>, vector<2x8x1088xf32>
      tpu.vector_store %arg6[%c0_28, %c0_29, %c0_30], %80 {strides = array<i32>} : memref<2x8x1088xf32, #tpu.memory_space<vmem>>, vector<2x8x1088xf32>,
    } else {
    }
    return
  }
  func.func @transform_0(%arg0: i32) -> (i32, i32, i32) {
    %c0_i32 = arith.constant 0 : i32
    %c0_i32_0 = arith.constant 0 : i32
    %c0_i32_1 = arith.constant 0 : i32
    return %arg0, %c0_i32, %c0_i32_0 : i32, i32, i32
  }
  func.func @transform_1(%arg0: i32) -> (i32, i32) {
    %c0_i32 = arith.constant 0 : i32
    %c0_i32_0 = arith.constant 0 : i32
    %c0_i32_1 = arith.constant 0 : i32
    return %c0_i32, %c0_i32_0 : i32, i32
  }
  func.func @transform_2(%arg0: i32) -> (i32, i32) {
    %c0_i32 = arith.constant 0 : i32
    %c0_i32_0 = arith.constant 0 : i32
    %c0_i32_1 = arith.constant 0 : i32
    return %c0_i32, %c0_i32_0 : i32, i32
  }
  func.func @transform_3(%arg0: i32) -> (i32, i32) {
    %c0_i32 = arith.constant 0 : i32
    %c0_i32_0 = arith.constant 0 : i32
    %c0_i32_1 = arith.constant 0 : i32
    return %c0_i32, %c0_i32_0 : i32, i32
  }
  func.func @transform_4(%arg0: i32) -> (i32, i32) {
    %c0_i32 = arith.constant 0 : i32
    %c0_i32_0 = arith.constant 0 : i32
    %c0_i32_1 = arith.constant 0 : i32
    return %c0_i32, %c0_i32_0 : i32, i32
  }
  func.func @transform_5(%arg0: i32) -> (i32, i32, i32) {
    %c0_i32 = arith.constant 0 : i32
    %c0_i32_0 = arith.constant 0 : i32
    %c0_i32_1 = arith.constant 0 : i32
    %c0_i32_2 = arith.constant 0 : i32
    return %c0_i32, %c0_i32_0, %c0_i32_1 : i32, i32, i32
  }
}

module attributes {stable_mosaic.version = 11 : i64} {
  func.func @_conv_kernel(%arg0: i32, %arg1: memref<1x16x1090xbf16, #tpu.memory_space<vmem>>, %arg2: memref<32x64xbf16, #tpu.memory_space<vmem>>, %arg3: memref<32x1xf32, #tpu.memory_space<vmem>>, %arg4: memref<1x32x1056xbf16, #tpu.memory_space<vmem>>) attributes {dimension_semantics = [#tpu.dimension_semantics<parallel>], iteration_bounds = array<i64: 2>, scalar_prefetch = 0 : i64, scratch_operands = 0 : i64, tpu.core_type = #tpu.core_type<tc>, window_params = [{transform_indices = @transform_0, window_bounds = array<i64: 1, 16, 1090>}, {pipeline_mode = #tpu.pipeline_mode<synchronous>, transform_indices = @transform_1, window_bounds = array<i64: 32, 64>}, {pipeline_mode = #tpu.pipeline_mode<synchronous>, transform_indices = @transform_2, window_bounds = array<i64: 32, 1>}, {transform_indices = @transform_3, window_bounds = array<i64: 1, 32, 1056>}]} {
    %c0 = arith.constant 0 : index
    %c0_0 = arith.constant 0 : index
    %c0_1 = arith.constant 0 : index
    %0 = vector.load %arg1[%c0, %c0_0, %c0_1] : memref<1x16x1090xbf16, #tpu.memory_space<vmem>>, vector<1x16x1090xbf16>
    %1 = vector.shape_cast %0 : vector<1x16x1090xbf16> to vector<16x1090xbf16>
    %2 = vector.extract_strided_slice %1 {offsets = [0, 0], sizes = [16, 1056], strides = [1, 1]} : vector<16x1090xbf16> to vector<16x1056xbf16>
    %3 = vector.extract_strided_slice %1 {offsets = [0, 1], sizes = [16, 1056], strides = [1, 1]} : vector<16x1090xbf16> to vector<16x1056xbf16>
    %4 = vector.extract_strided_slice %1 {offsets = [0, 33], sizes = [16, 1056], strides = [1, 1]} : vector<16x1090xbf16> to vector<16x1056xbf16>
    %5 = vector.extract_strided_slice %1 {offsets = [0, 34], sizes = [16, 1056], strides = [1, 1]} : vector<16x1090xbf16> to vector<16x1056xbf16>
    %6 = tpu.concatenate %2, %3, %4, %5 in 0 : vector<16x1056xbf16>, vector<16x1056xbf16>, vector<16x1056xbf16>, vector<16x1056xbf16> -> vector<64x1056xbf16>
    %c0_2 = arith.constant 0 : index
    %c0_3 = arith.constant 0 : index
    %7 = vector.load %arg2[%c0_2, %c0_3] : memref<32x64xbf16, #tpu.memory_space<vmem>>, vector<32x64xbf16>
    %cst = arith.constant dense<0.000000e+00> : vector<32x1056xf32>
    %8 = tpu.matmul %7, %6, %cst {dimension_numbers = #tpu.dot_dimension_numbers<[1], [0], [0], [1], [0, 0, 1, 1], [], []>} : vector<32x64xbf16>, vector<64x1056xbf16>, vector<32x1056xf32> -> vector<32x1056xf32>
    %c0_4 = arith.constant 0 : index
    %c0_5 = arith.constant 0 : index
    %9 = vector.load %arg3[%c0_4, %c0_5] : memref<32x1xf32, #tpu.memory_space<vmem>>, vector<32x1xf32>
    %10 = vector.broadcast %9 : vector<32x1xf32> to vector<32x1056xf32>
    %11 = arith.addf %8, %10 : vector<32x1056xf32>
    %12 = arith.truncf %11 : vector<32x1056xf32> to vector<32x1056xbf16>
    %c0_6 = arith.constant 0 : index
    %c0_7 = arith.constant 0 : index
    %c0_8 = arith.constant 0 : index
    %13 = vector.load %arg4[%c0_6, %c0_7, %c0_8] : memref<1x32x1056xbf16, #tpu.memory_space<vmem>>, vector<1x32x1056xbf16>
    %14 = vector.shape_cast %13 : vector<1x32x1056xbf16> to vector<32x1056xbf16>
    %15 = vector.shape_cast %12 : vector<32x1056xbf16> to vector<1x32x1056xbf16>
    tpu.vector_store %arg4[%c0_6, %c0_7, %c0_8], %15 {strides = array<i32>} : memref<1x32x1056xbf16, #tpu.memory_space<vmem>>, vector<1x32x1056xbf16>,
    return
  }
  func.func @transform_0(%arg0: i32) -> (i32, i32, i32) {
    %c0_i32 = arith.constant 0 : i32
    %c0_i32_0 = arith.constant 0 : i32
    %c0_i32_1 = arith.constant 0 : i32
    return %arg0, %c0_i32, %c0_i32_0 : i32, i32, i32
  }
  func.func @transform_1(%arg0: i32) -> (i32, i32) {
    %c0_i32 = arith.constant 0 : i32
    %c0_i32_0 = arith.constant 0 : i32
    %c0_i32_1 = arith.constant 0 : i32
    return %c0_i32, %c0_i32_0 : i32, i32
  }
  func.func @transform_2(%arg0: i32) -> (i32, i32) {
    %c0_i32 = arith.constant 0 : i32
    %c0_i32_0 = arith.constant 0 : i32
    %c0_i32_1 = arith.constant 0 : i32
    return %c0_i32, %c0_i32_0 : i32, i32
  }
  func.func @transform_3(%arg0: i32) -> (i32, i32, i32) {
    %c0_i32 = arith.constant 0 : i32
    %c0_i32_0 = arith.constant 0 : i32
    %c0_i32_1 = arith.constant 0 : i32
    return %arg0, %c0_i32, %c0_i32_0 : i32, i32, i32
  }
}

module attributes {stable_mosaic.version = 11 : i64} {
  func.func @_conv_relu_bn_kernel(%arg0: i32, %arg1: memref<1x16x4358xbf16, #tpu.memory_space<vmem>>, %arg2: memref<8x144xbf16, #tpu.memory_space<vmem>>, %arg3: memref<8x1xf32, #tpu.memory_space<vmem>>, %arg4: memref<8x1xf32, #tpu.memory_space<vmem>>, %arg5: memref<8x1xf32, #tpu.memory_space<vmem>>, %arg6: memref<2x8x4224xf32, #tpu.memory_space<vmem>>) attributes {dimension_semantics = [#tpu.dimension_semantics<arbitrary>], iteration_bounds = array<i64: 2>, scalar_prefetch = 0 : i64, scratch_operands = 0 : i64, tpu.core_type = #tpu.core_type<tc>, window_params = [{transform_indices = @transform_0, window_bounds = array<i64: 1, 16, 4358>}, {pipeline_mode = #tpu.pipeline_mode<synchronous>, transform_indices = @transform_1, window_bounds = array<i64: 8, 144>}, {pipeline_mode = #tpu.pipeline_mode<synchronous>, transform_indices = @transform_2, window_bounds = array<i64: 8, 1>}, {pipeline_mode = #tpu.pipeline_mode<synchronous>, transform_indices = @transform_3, window_bounds = array<i64: 8, 1>}, {pipeline_mode = #tpu.pipeline_mode<synchronous>, transform_indices = @transform_4, window_bounds = array<i64: 8, 1>}, {pipeline_mode = #tpu.pipeline_mode<synchronous>, transform_indices = @transform_5, window_bounds = array<i64: 2, 8, 4224>}]} {
    %c0 = arith.constant 0 : index
    %c0_0 = arith.constant 0 : index
    %c0_1 = arith.constant 0 : index
    %0 = vector.load %arg1[%c0, %c0_0, %c0_1] : memref<1x16x4358xbf16, #tpu.memory_space<vmem>>, vector<1x16x4358xbf16>
    %1 = vector.shape_cast %0 : vector<1x16x4358xbf16> to vector<16x4358xbf16>
    %2 = vector.extract_strided_slice %1 {offsets = [0, 0], sizes = [16, 4224], strides = [1, 1]} : vector<16x4358xbf16> to vector<16x4224xbf16>
    %3 = vector.extract_strided_slice %1 {offsets = [0, 1], sizes = [16, 4224], strides = [1, 1]} : vector<16x4358xbf16> to vector<16x4224xbf16>
    %4 = vector.extract_strided_slice %1 {offsets = [0, 2], sizes = [16, 4224], strides = [1, 1]} : vector<16x4358xbf16> to vector<16x4224xbf16>
    %5 = vector.extract_strided_slice %1 {offsets = [0, 66], sizes = [16, 4224], strides = [1, 1]} : vector<16x4358xbf16> to vector<16x4224xbf16>
    %6 = vector.extract_strided_slice %1 {offsets = [0, 67], sizes = [16, 4224], strides = [1, 1]} : vector<16x4358xbf16> to vector<16x4224xbf16>
    %7 = vector.extract_strided_slice %1 {offsets = [0, 68], sizes = [16, 4224], strides = [1, 1]} : vector<16x4358xbf16> to vector<16x4224xbf16>
    %8 = vector.extract_strided_slice %1 {offsets = [0, 132], sizes = [16, 4224], strides = [1, 1]} : vector<16x4358xbf16> to vector<16x4224xbf16>
    %9 = vector.extract_strided_slice %1 {offsets = [0, 133], sizes = [16, 4224], strides = [1, 1]} : vector<16x4358xbf16> to vector<16x4224xbf16>
    %10 = vector.extract_strided_slice %1 {offsets = [0, 134], sizes = [16, 4224], strides = [1, 1]} : vector<16x4358xbf16> to vector<16x4224xbf16>
    %11 = tpu.concatenate %2, %3, %4, %5, %6, %7, %8, %9, %10 in 0 : vector<16x4224xbf16>, vector<16x4224xbf16>, vector<16x4224xbf16>, vector<16x4224xbf16>, vector<16x4224xbf16>, vector<16x4224xbf16>, vector<16x4224xbf16>, vector<16x4224xbf16>, vector<16x4224xbf16> -> vector<144x4224xbf16>
    %c0_2 = arith.constant 0 : index
    %c0_3 = arith.constant 0 : index
    %12 = vector.load %arg2[%c0_2, %c0_3] : memref<8x144xbf16, #tpu.memory_space<vmem>>, vector<8x144xbf16>
    %cst = arith.constant dense<0.000000e+00> : vector<8x4224xf32>
    %13 = tpu.matmul %12, %11, %cst {dimension_numbers = #tpu.dot_dimension_numbers<[1], [0], [0], [1], [0, 0, 1, 1], [], []>} : vector<8x144xbf16>, vector<144x4224xbf16>, vector<8x4224xf32> -> vector<8x4224xf32>
    %c0_4 = arith.constant 0 : index
    %c0_5 = arith.constant 0 : index
    %14 = vector.load %arg3[%c0_4, %c0_5] : memref<8x1xf32, #tpu.memory_space<vmem>>, vector<8x1xf32>
    %15 = vector.broadcast %14 : vector<8x1xf32> to vector<8x4224xf32>
    %16 = arith.addf %13, %15 : vector<8x4224xf32>
    %cst_6 = arith.constant 0.000000e+00 : f32
    %17 = vector.broadcast %cst_6 : f32 to vector<8x4224xf32>
    %18 = arith.maximumf %16, %17 : vector<8x4224xf32>
    %19 = arith.index_cast %arg0 : i32 to index
    %c0_7 = arith.constant 0 : index
    %c0_8 = arith.constant 0 : index
    %20 = vector.load %arg6[%19, %c0_7, %c0_8] : memref<2x8x4224xf32, #tpu.memory_space<vmem>>, vector<1x8x4224xf32>
    %21 = vector.shape_cast %20 : vector<1x8x4224xf32> to vector<8x4224xf32>
    %22 = vector.shape_cast %18 : vector<8x4224xf32> to vector<1x8x4224xf32>
    tpu.vector_store %arg6[%19, %c0_7, %c0_8], %22 {strides = array<i32>} : memref<2x8x4224xf32, #tpu.memory_space<vmem>>, vector<1x8x4224xf32>,
    %c1_i32 = arith.constant 1 : i32
    %23 = arith.cmpi eq, %arg0, %c1_i32 : i32
    %24 = arith.extui %23 : i1 to i32
    %c0_i32 = arith.constant 0 : i32
    %25 = arith.cmpi ne, %24, %c0_i32 : i32
    scf.if %25 {
      %c0_9 = arith.constant 0 : index
      %c0_10 = arith.constant 0 : index
      %c0_11 = arith.constant 0 : index
      %26 = vector.load %arg6[%c0_9, %c0_10, %c0_11] : memref<2x8x4224xf32, #tpu.memory_space<vmem>>, vector<2x8x4224xf32>
      %27 = tpu.iota {dimensions = array<i32: 2>} : vector<1x1x4224xi32>
      %c66_i32 = arith.constant 66 : i32
      %c0_i32_12 = arith.constant 0 : i32
      %28 = arith.cmpi eq, %c66_i32, %c0_i32_12 : i32
      %c1_i32_13 = arith.constant 1 : i32
      %29 = arith.select %28, %c1_i32_13, %c66_i32 : i32
      %30 = vector.broadcast %29 : i32 to vector<1x1x4224xi32>
      %31 = arith.remsi %27, %30 : vector<1x1x4224xi32>
      %c0_i32_14 = arith.constant 0 : i32
      %32 = vector.broadcast %c0_i32_14 : i32 to vector<1x1x4224xi32>
      %33 = arith.cmpi ne, %31, %32 : vector<1x1x4224xi32>
      %c0_i32_15 = arith.constant 0 : i32
      %34 = vector.broadcast %c0_i32_15 : i32 to vector<1x1x4224xi32>
      %35 = arith.cmpi slt, %31, %34 : vector<1x1x4224xi32>
      %c0_i32_16 = arith.constant 0 : i32
      %36 = arith.cmpi slt, %29, %c0_i32_16 : i32
      %37 = vector.broadcast %36 : i1 to vector<1x1x4224xi1>
      %38 = vector.broadcast %37 : vector<1x1x4224xi1> to vector<1x1x4224xi1>
      %39 = arith.xori %35, %38 : vector<1x1x4224xi1>
      %40 = arith.andi %39, %33 : vector<1x1x4224xi1>
      %41 = vector.broadcast %29 : i32 to vector<1x1x4224xi32>
      %42 = arith.addi %31, %41 : vector<1x1x4224xi32>
      %43 = arith.select %40, %42, %31 : vector<1x1x4224xi1>, vector<1x1x4224xi32>
      %c64_i32 = arith.constant 64 : i32
      %44 = vector.broadcast %c64_i32 : i32 to vector<1x1x4224xi32>
      %45 = arith.cmpi slt, %43, %44 : vector<1x1x4224xi32>
      %46 = arith.extui %45 : vector<1x1x4224xi1> to vector<1x1x4224xi32>
      %47 = arith.sitofp %46 : vector<1x1x4224xi32> to vector<1x1x4224xf32>
      %48 = vector.broadcast %47 : vector<1x1x4224xf32> to vector<2x8x4224xf32>
      %49 = arith.mulf %26, %48 : vector<2x8x4224xf32>
      %cst_17 = arith.constant dense<0.000000e+00> : vector<2x8xf32>
      %50 = vector.multi_reduction <add>, %49, %cst_17 [2] : vector<2x8x4224xf32> to vector<2x8xf32>
      %51 = vector.shape_cast %50 : vector<2x8xf32> to vector<2x8x1xf32>
      %cst_18 = arith.constant dense<0.000000e+00> : vector<8x1xf32>
      %52 = vector.multi_reduction <add>, %51, %cst_18 [0] : vector<2x8x1xf32> to vector<8x1xf32>
      %53 = vector.shape_cast %52 : vector<8x1xf32> to vector<1x8x1xf32>
      %cst_19 = arith.constant 1.22070313E-4 : f32
      %54 = vector.broadcast %cst_19 : f32 to vector<1x8x1xf32>
      %55 = arith.mulf %53, %54 : vector<1x8x1xf32>
      %56 = vector.broadcast %55 : vector<1x8x1xf32> to vector<2x8x4224xf32>
      %57 = arith.subf %26, %56 : vector<2x8x4224xf32>
      %58 = vector.broadcast %47 : vector<1x1x4224xf32> to vector<2x8x4224xf32>
      %59 = arith.mulf %57, %58 : vector<2x8x4224xf32>
      %60 = arith.mulf %59, %59 : vector<2x8x4224xf32>
      %cst_20 = arith.constant dense<0.000000e+00> : vector<2x8xf32>
      %61 = vector.multi_reduction <add>, %60, %cst_20 [2] : vector<2x8x4224xf32> to vector<2x8xf32>
      %62 = vector.shape_cast %61 : vector<2x8xf32> to vector<2x8x1xf32>
      %cst_21 = arith.constant dense<0.000000e+00> : vector<8x1xf32>
      %63 = vector.multi_reduction <add>, %62, %cst_21 [0] : vector<2x8x1xf32> to vector<8x1xf32>
      %64 = vector.shape_cast %63 : vector<8x1xf32> to vector<1x8x1xf32>
      %cst_22 = arith.constant 1.22070313E-4 : f32
      %65 = vector.broadcast %cst_22 : f32 to vector<1x8x1xf32>
      %66 = arith.mulf %64, %65 : vector<1x8x1xf32>
      %cst_23 = arith.constant 9.99999974E-6 : f32
      %67 = vector.broadcast %cst_23 : f32 to vector<1x8x1xf32>
      %68 = arith.addf %66, %67 : vector<1x8x1xf32>
      %69 = math.rsqrt %68 : vector<1x8x1xf32>
      %c0_24 = arith.constant 0 : index
      %c0_25 = arith.constant 0 : index
      %70 = vector.load %arg4[%c0_24, %c0_25] : memref<8x1xf32, #tpu.memory_space<vmem>>, vector<8x1xf32>
      %71 = vector.shape_cast %70 : vector<8x1xf32> to vector<1x8x1xf32>
      %72 = arith.mulf %69, %71 : vector<1x8x1xf32>
      %73 = vector.broadcast %55 : vector<1x8x1xf32> to vector<2x8x4224xf32>
      %74 = arith.subf %26, %73 : vector<2x8x4224xf32>
      %75 = vector.broadcast %72 : vector<1x8x1xf32> to vector<2x8x4224xf32>
      %76 = arith.mulf %74, %75 : vector<2x8x4224xf32>
      %c0_26 = arith.constant 0 : index
      %c0_27 = arith.constant 0 : index
      %77 = vector.load %arg5[%c0_26, %c0_27] : memref<8x1xf32, #tpu.memory_space<vmem>>, vector<8x1xf32>
      %78 = vector.shape_cast %77 : vector<8x1xf32> to vector<1x8x1xf32>
      %79 = vector.broadcast %78 : vector<1x8x1xf32> to vector<2x8x4224xf32>
      %80 = arith.addf %76, %79 : vector<2x8x4224xf32>
      %c0_28 = arith.constant 0 : index
      %c0_29 = arith.constant 0 : index
      %c0_30 = arith.constant 0 : index
      %81 = vector.load %arg6[%c0_28, %c0_29, %c0_30] : memref<2x8x4224xf32, #tpu.memory_space<vmem>>, vector<2x8x4224xf32>
      tpu.vector_store %arg6[%c0_28, %c0_29, %c0_30], %80 {strides = array<i32>} : memref<2x8x4224xf32, #tpu.memory_space<vmem>>, vector<2x8x4224xf32>,
    } else {
    }
    return
  }
  func.func @transform_0(%arg0: i32) -> (i32, i32, i32) {
    %c0_i32 = arith.constant 0 : i32
    %c0_i32_0 = arith.constant 0 : i32
    %c0_i32_1 = arith.constant 0 : i32
    return %arg0, %c0_i32, %c0_i32_0 : i32, i32, i32
  }
  func.func @transform_1(%arg0: i32) -> (i32, i32) {
    %c0_i32 = arith.constant 0 : i32
    %c0_i32_0 = arith.constant 0 : i32
    %c0_i32_1 = arith.constant 0 : i32
    return %c0_i32, %c0_i32_0 : i32, i32
  }
  func.func @transform_2(%arg0: i32) -> (i32, i32) {
    %c0_i32 = arith.constant 0 : i32
    %c0_i32_0 = arith.constant 0 : i32
    %c0_i32_1 = arith.constant 0 : i32
    return %c0_i32, %c0_i32_0 : i32, i32
  }
  func.func @transform_3(%arg0: i32) -> (i32, i32) {
    %c0_i32 = arith.constant 0 : i32
    %c0_i32_0 = arith.constant 0 : i32
    %c0_i32_1 = arith.constant 0 : i32
    return %c0_i32, %c0_i32_0 : i32, i32
  }
  func.func @transform_4(%arg0: i32) -> (i32, i32) {
    %c0_i32 = arith.constant 0 : i32
    %c0_i32_0 = arith.constant 0 : i32
    %c0_i32_1 = arith.constant 0 : i32
    return %c0_i32, %c0_i32_0 : i32, i32
  }
  func.func @transform_5(%arg0: i32) -> (i32, i32, i32) {
    %c0_i32 = arith.constant 0 : i32
    %c0_i32_0 = arith.constant 0 : i32
    %c0_i32_1 = arith.constant 0 : i32
    %c0_i32_2 = arith.constant 0 : i32
    return %c0_i32, %c0_i32_0, %c0_i32_1 : i32, i32, i32
  }
}

module attributes {stable_mosaic.version = 11 : i64} {
  func.func @_conv_kernel(%arg0: i32, %arg1: memref<1x16x4358xbf16, #tpu.memory_space<vmem>>, %arg2: memref<8x144xbf16, #tpu.memory_space<vmem>>, %arg3: memref<8x1xf32, #tpu.memory_space<vmem>>, %arg4: memref<1x8x4224xf32, #tpu.memory_space<vmem>>) attributes {dimension_semantics = [#tpu.dimension_semantics<parallel>], iteration_bounds = array<i64: 2>, scalar_prefetch = 0 : i64, scratch_operands = 0 : i64, tpu.core_type = #tpu.core_type<tc>, window_params = [{transform_indices = @transform_0, window_bounds = array<i64: 1, 16, 4358>}, {pipeline_mode = #tpu.pipeline_mode<synchronous>, transform_indices = @transform_1, window_bounds = array<i64: 8, 144>}, {pipeline_mode = #tpu.pipeline_mode<synchronous>, transform_indices = @transform_2, window_bounds = array<i64: 8, 1>}, {transform_indices = @transform_3, window_bounds = array<i64: 1, 8, 4224>}]} {
    %c0 = arith.constant 0 : index
    %c0_0 = arith.constant 0 : index
    %c0_1 = arith.constant 0 : index
    %0 = vector.load %arg1[%c0, %c0_0, %c0_1] : memref<1x16x4358xbf16, #tpu.memory_space<vmem>>, vector<1x16x4358xbf16>
    %1 = vector.shape_cast %0 : vector<1x16x4358xbf16> to vector<16x4358xbf16>
    %2 = vector.extract_strided_slice %1 {offsets = [0, 0], sizes = [16, 4224], strides = [1, 1]} : vector<16x4358xbf16> to vector<16x4224xbf16>
    %3 = vector.extract_strided_slice %1 {offsets = [0, 1], sizes = [16, 4224], strides = [1, 1]} : vector<16x4358xbf16> to vector<16x4224xbf16>
    %4 = vector.extract_strided_slice %1 {offsets = [0, 2], sizes = [16, 4224], strides = [1, 1]} : vector<16x4358xbf16> to vector<16x4224xbf16>
    %5 = vector.extract_strided_slice %1 {offsets = [0, 66], sizes = [16, 4224], strides = [1, 1]} : vector<16x4358xbf16> to vector<16x4224xbf16>
    %6 = vector.extract_strided_slice %1 {offsets = [0, 67], sizes = [16, 4224], strides = [1, 1]} : vector<16x4358xbf16> to vector<16x4224xbf16>
    %7 = vector.extract_strided_slice %1 {offsets = [0, 68], sizes = [16, 4224], strides = [1, 1]} : vector<16x4358xbf16> to vector<16x4224xbf16>
    %8 = vector.extract_strided_slice %1 {offsets = [0, 132], sizes = [16, 4224], strides = [1, 1]} : vector<16x4358xbf16> to vector<16x4224xbf16>
    %9 = vector.extract_strided_slice %1 {offsets = [0, 133], sizes = [16, 4224], strides = [1, 1]} : vector<16x4358xbf16> to vector<16x4224xbf16>
    %10 = vector.extract_strided_slice %1 {offsets = [0, 134], sizes = [16, 4224], strides = [1, 1]} : vector<16x4358xbf16> to vector<16x4224xbf16>
    %11 = tpu.concatenate %2, %3, %4, %5, %6, %7, %8, %9, %10 in 0 : vector<16x4224xbf16>, vector<16x4224xbf16>, vector<16x4224xbf16>, vector<16x4224xbf16>, vector<16x4224xbf16>, vector<16x4224xbf16>, vector<16x4224xbf16>, vector<16x4224xbf16>, vector<16x4224xbf16> -> vector<144x4224xbf16>
    %c0_2 = arith.constant 0 : index
    %c0_3 = arith.constant 0 : index
    %12 = vector.load %arg2[%c0_2, %c0_3] : memref<8x144xbf16, #tpu.memory_space<vmem>>, vector<8x144xbf16>
    %cst = arith.constant dense<0.000000e+00> : vector<8x4224xf32>
    %13 = tpu.matmul %12, %11, %cst {dimension_numbers = #tpu.dot_dimension_numbers<[1], [0], [0], [1], [0, 0, 1, 1], [], []>} : vector<8x144xbf16>, vector<144x4224xbf16>, vector<8x4224xf32> -> vector<8x4224xf32>
    %c0_4 = arith.constant 0 : index
    %c0_5 = arith.constant 0 : index
    %14 = vector.load %arg3[%c0_4, %c0_5] : memref<8x1xf32, #tpu.memory_space<vmem>>, vector<8x1xf32>
    %15 = vector.broadcast %14 : vector<8x1xf32> to vector<8x4224xf32>
    %16 = arith.addf %13, %15 : vector<8x4224xf32>
    %17 = arith.negf %16 : vector<8x4224xf32>
    %18 = math.exp %17 : vector<8x4224xf32>
    %cst_6 = arith.constant 1.000000e+00 : f32
    %19 = vector.broadcast %cst_6 : f32 to vector<8x4224xf32>
    %20 = arith.addf %19, %18 : vector<8x4224xf32>
    %21 = arith.divf %19, %20 : vector<8x4224xf32>
    %c0_7 = arith.constant 0 : index
    %c0_8 = arith.constant 0 : index
    %c0_9 = arith.constant 0 : index
    %22 = vector.load %arg4[%c0_7, %c0_8, %c0_9] : memref<1x8x4224xf32, #tpu.memory_space<vmem>>, vector<1x8x4224xf32>
    %23 = vector.shape_cast %22 : vector<1x8x4224xf32> to vector<8x4224xf32>
    %24 = vector.shape_cast %21 : vector<8x4224xf32> to vector<1x8x4224xf32>
    tpu.vector_store %arg4[%c0_7, %c0_8, %c0_9], %24 {strides = array<i32>} : memref<1x8x4224xf32, #tpu.memory_space<vmem>>, vector<1x8x4224xf32>,
    return
  }
  func.func @transform_0(%arg0: i32) -> (i32, i32, i32) {
    %c0_i32 = arith.constant 0 : i32
    %c0_i32_0 = arith.constant 0 : i32
    %c0_i32_1 = arith.constant 0 : i32
    return %arg0, %c0_i32, %c0_i32_0 : i32, i32, i32
  }
  func.func @transform_1(%arg0: i32) -> (i32, i32) {
    %c0_i32 = arith.constant 0 : i32
    %c0_i32_0 = arith.constant 0 : i32
    %c0_i32_1 = arith.constant 0 : i32
    return %c0_i32, %c0_i32_0 : i32, i32
  }
  func.func @transform_2(%arg0: i32) -> (i32, i32) {
    %c0_i32 = arith.constant 0 : i32
    %c0_i32_0 = arith.constant 0 : i32
    %c0_i32_1 = arith.constant 0 : i32
    return %c0_i32, %c0_i32_0 : i32, i32
  }
  func.func @transform_3(%arg0: i32) -> (i32, i32, i32) {
    %c0_i32 = arith.constant 0 : i32
    %c0_i32_0 = arith.constant 0 : i32
    %c0_i32_1 = arith.constant 0 : i32
    return %arg0, %c0_i32, %c0_i32_0 : i32, i32, i32
  }
}

</mosaic_0001>

<llo_original>
// kernel: dec_subpix_branch_forward.5
$region0: #{dec_subpix_branch_forward.5}
  #allocation0 [shape = 'u32[]', space=smem, size = 0x4, offset = 0x4, fixed_abs, tag = 'smem constant byte address 0x4 - core index']
  #allocation1 [shape = 'u32[72,128]{1,0:T(1,128)}', space=vmem, size = 0x9000, scoped, tag = 'internal scratch']
  %s0 = inlined_call_operand.vmem [shape: bf16[2,16,290], index: 0, kind: input, shape index: {}]
  %s1 = inlined_call_operand.vmem [shape: bf16[32,64], index: 1, kind: input, shape index: {}]
  %s2 = inlined_call_operand.vmem [shape: f32[32,1], index: 2, kind: input, shape index: {}]
  %s3 = inlined_call_operand.vmem [shape: bf16[2,32,272], index: 3, kind: output, shape index: {}]
  %s4 = sld [smem:[#allocation0]]
  $region45: #{dec_subpix_branch_forward.5} parent=0
    _
  %s6 = ssub.s32 1, %s4
  %s7 = scalar_select 0, %s6, %s4
  loop: start=0, step=1, limit=4
  $region2: #{dec_subpix_branch_forward.5} parent=0 // loop_pre_header
    _
  $region3: #{dec_subpix_branch_forward.5} parent=0 // loop_header
    %s9 = sphi 0, %s13
    %p10 = scmp.ge.s32.totalorder %s9, 4
    %s19 = sphi 0, %s21
    %s22 = sphi 0, %s19
    %s23 = sphi 0, %s22
    %s39 = sphi 0, %s23
    %s43 = sphi 0, %s43
    %s45 = sphi 0, %s43
    %s46 = sphi 0, %s45
    %s60 = sphi 0, %s46
    %s64 = sphi 0, %s64
    %s66 = sphi 0, %s64
    %s67 = sphi 0, %s66
    %s81 = sphi 0, %s67
    %s87 = sphi 0, %s89
    %s90 = sphi 0, %s87
    %s91 = sphi 0, %s90
    %s107 = sphi 0, %s91
  $region4: #{dec_subpix_branch_forward.5} parent=0 // loop_header_branch
    %12 = sbr.rel (%p10) target = $region8
  $region5: #{dec_subpix_branch_forward.5} parent=0 // loop_body
    %s14 = ssub.s32 %s9, 1
    %s15 = ssub.s32 %s9, 2
    %s16 = sadd.s32 %s9, 1
    %s17 = ssub.s32 %s9, %s16
    %p18 = scmp.eq.s32.totalorder %s17, 0
    %s20 = sadd.s32 %s19, 1
    %s21 = scalar_select %p18, %s19, %s20
    %p24 = pneg %p18
    %p25 = scmp.eq.s32.totalorder %s9, 1
    %p26 = por %p24, %p25
    %p27 = scmp.ne.s32.totalorder %s19, %s22
    %p28 = scmp.eq.s32.totalorder %s9, 0
    %p29 = por %p27, %p28
    %p30 = scmp.ne.s32.totalorder %s19, %s22
    %p31 = scmp.eq.s32.totalorder %s14, 1
    %p32 = por %p30, %p31
    %p33 = scmp.ne.s32.totalorder %s22, %s23
    %p34 = scmp.eq.s32.totalorder %s14, 0
    %p35 = por %p33, %p34
    %p36 = scmp.ne.s32.totalorder %s22, %s23
    %p37 = scmp.eq.s32.totalorder %s15, 1
    %p38 = por %p36, %p37
    %p40 = scmp.ne.s32.totalorder %s23, %s39
    %p41 = scmp.eq.s32.totalorder %s15, 0
    %p42 = por %p40, %p41
    %s44 = sadd.s32 %s43, 1
    %p47 = scmp.eq.s32.totalorder %s9, 1
    %p48 = scmp.ne.s32.totalorder %s43, %s45
    %p49 = scmp.eq.s32.totalorder %s9, 0
    %p50 = por %p48, %p49
    %p51 = scmp.ne.s32.totalorder %s43, %s45
    %p52 = scmp.eq.s32.totalorder %s14, 1
    %p53 = por %p51, %p52
    %p54 = scmp.ne.s32.totalorder %s45, %s46
    %p55 = scmp.eq.s32.totalorder %s14, 0
    %p56 = por %p54, %p55
    %p57 = scmp.ne.s32.totalorder %s45, %s46
    %p58 = scmp.eq.s32.totalorder %s15, 1
    %p59 = por %p57, %p58
    %p61 = scmp.ne.s32.totalorder %s46, %s60
    %p62 = scmp.eq.s32.totalorder %s15, 0
    %p63 = por %p61, %p62
    %s65 = sadd.s32 %s64, 1
    %p68 = scmp.eq.s32.totalorder %s9, 1
    %p69 = scmp.ne.s32.totalorder %s64, %s66
    %p70 = scmp.eq.s32.totalorder %s9, 0
    %p71 = por %p69, %p70
    %p72 = scmp.ne.s32.totalorder %s64, %s66
    %p73 = scmp.eq.s32.totalorder %s14, 1
    %p74 = por %p72, %p73
    %p75 = scmp.ne.s32.totalorder %s66, %s67
    %p76 = scmp.eq.s32.totalorder %s14, 0
    %p77 = por %p75, %p76
    %p78 = scmp.ne.s32.totalorder %s66, %s67
    %p79 = scmp.eq.s32.totalorder %s15, 1
    %p80 = por %p78, %p79
    %p82 = scmp.ne.s32.totalorder %s67, %s81
    %p83 = scmp.eq.s32.totalorder %s15, 0
    %p84 = por %p82, %p83
    %s85 = ssub.s32 %s9, %s16
    %p86 = scmp.eq.s32.totalorder %s85, 0
    %s88 = sadd.s32 %s87, 1
    %s89 = scalar_select %p86, %s87, %s88
    %p92 = pneg %p86
    %p93 = scmp.eq.s32.totalorder %s9, 1
    %p94 = por %p92, %p93
    %p95 = scmp.ne.s32.totalorder %s87, %s90
    %p96 = scmp.eq.s32.totalorder %s9, 0
    %p97 = por %p95, %p96
    %p98 = scmp.ne.s32.totalorder %s87, %s90
    %p99 = scmp.eq.s32.totalorder %s14, 1
    %p100 = por %p98, %p99
    %p101 = scmp.ne.s32.totalorder %s90, %s91
    %p102 = scmp.eq.s32.totalorder %s14, 0
    %p103 = por %p101, %p102
    %p104 = scmp.ne.s32.totalorder %s90, %s91
    %p105 = scmp.eq.s32.totalorder %s15, 1
    %p106 = por %p104, %p105
    %p108 = scmp.ne.s32.totalorder %s91, %s107
    %p109 = scmp.eq.s32.totalorder %s15, 0
    %p110 = por %p108, %p109
    %p111 = scmp.le.s32.totalorder 1, %s9
    %p112 = scmp.lt.s32.totalorder %s9, 3
    %p113 = pnand %p111, %p112
    %p114 = pneg %p113
    // Predicated region
    $region9: #{dec_subpix_branch_forward.5} parent=5 // pred_check
      _
    $region10: #{dec_subpix_branch_forward.5} parent=5 // pred_check_branch
      %116 = sbr.rel (%p113) target = $region12
    $region11: #{dec_subpix_branch_forward.5} parent=5 // pred_region
      %s117 = ssub.s32 %s9, 1
      // Predicated region
      $region13: #{dec_subpix_branch_forward.5} parent=11 // pred_check
        %p118 = pneg %p56
      $region14: #{dec_subpix_branch_forward.5} parent=11 // pred_check_branch
        %120 = sbr.rel (%p118) target = $region16
      $region15: #{dec_subpix_branch_forward.5} parent=11 // pred_region
        _
      $region16: #{dec_subpix_branch_forward.5} parent=11 // pred_fallthru
        _
      // Predicated region
      $region17: #{dec_subpix_branch_forward.5} parent=11 // pred_check
        %p121 = pneg %p77
      $region18: #{dec_subpix_branch_forward.5} parent=11 // pred_check_branch
        %123 = sbr.rel (%p121) target = $region20
      $region19: #{dec_subpix_branch_forward.5} parent=11 // pred_region
        _
      $region20: #{dec_subpix_branch_forward.5} parent=11 // pred_fallthru
        _
    $region12: #{dec_subpix_branch_forward.5} parent=5 // pred_fallthru
      _
    %p124 = scmp.lt.s32.totalorder %s9, 2
    // Predicated region
    $region21: #{dec_subpix_branch_forward.5} parent=5 // pred_check
      %p125 = pneg %p124
    $region22: #{dec_subpix_branch_forward.5} parent=5 // pred_check_branch
      %127 = sbr.rel (%p125) target = $region24
    $region23: #{dec_subpix_branch_forward.5} parent=5 // pred_region
      // Predicated region
      $region25: #{dec_subpix_branch_forward.5} parent=23 // pred_check
        %p128 = pneg %p29
      $region26: #{dec_subpix_branch_forward.5} parent=23 // pred_check_branch
        %130 = sbr.rel (%p128) target = $region28
      $region27: #{dec_subpix_branch_forward.5} parent=23 // pred_region
        %p131 = scmp.lt.s32.totalorder %s9, 1
        %s132 = scalar_select %p131, %s9, 1
        %s133 = smul.addr %s132, 6
        %s134 = smul.addr %s133, 4
        %s135 = scalar_lea.vmem %s0, %s134
      $region28: #{dec_subpix_branch_forward.5} parent=23 // pred_fallthru
        _
    $region24: #{dec_subpix_branch_forward.5} parent=5 // pred_fallthru
      _
    %p136 = scmp.le.s32.totalorder 1, %s9
    %p137 = scmp.lt.s32.totalorder %s9, 3
    %p138 = pnand %p136, %p137
    %p139 = pneg %p138
    // Predicated region
    $region29: #{dec_subpix_branch_forward.5} parent=5 // pred_check
      _
    $region30: #{dec_subpix_branch_forward.5} parent=5 // pred_check_branch
      %141 = sbr.rel (%p138) target = $region32
    $region31: #{dec_subpix_branch_forward.5} parent=5 // pred_region
      %s142 = ssub.s32 %s9, 1
      %p143 = scmp.lt.s32.totalorder %s14, 1
      %s144 = scalar_select %p143, %s14, 1
      %s145 = smul.addr %s144, 6
      %s146 = smul.addr %s145, 4
      %s147 = scalar_lea.vmem %s0, %s146
      %p148 = pneg %p35
      %p149 = pneg %p32
      %p150 = pneg %p56
      %p151 = pneg %p53
      %p152 = pneg %p77
      %p153 = pneg %p74
      %p154 = pneg %p103
      %p155 = pneg %p100
      %p156 = scmp.lt.s32.totalorder %s14, 1
      %s157 = scalar_select %p156, %s14, 1
      %s158 = smul.addr %s157, 12
      %s159 = smul.addr %s158, 4
      %s160 = scalar_lea.vmem %s3, %s159
      %p161 = scmp.lt.s32.totalorder %s14, 1
      %s162 = scalar_select %p161, %s14, 1
      %s163 = smul.addr %s162, 6
      %s164 = smul.addr %s163, 4
      %s165 = scalar_lea.vmem %s0, %s164
      %p166 = scmp.lt.s32.totalorder %s14, 1
      %s167 = scalar_select %p166, %s14, 1
      %s168 = smul.addr %s167, 12
      %s169 = smul.addr %s168, 4
      %s170 = scalar_lea.vmem %s3, %s169
      %v172 = vld [vmem:[%s165] sm:$0xff]
      %v173 = vld [vmem:[%s165 + $0x8] sm:$0xf]
      %v174 = vld [vmem:[%s165 + $0xc] sm:$0xff]
      %v175 = vld [vmem:[%s165 + $0x14] sm:$0xf]
      %v180 = vunpack.c.l.b16 %v172
      %v181 = vunpack.c.h.b16 %v172
      %v182 = vunpack.c.l.b16 %v173
      %v183 = vunpack.c.l.b16 %v174
      %v184 = vunpack.c.h.b16 %v174
      %v185 = vunpack.c.l.b16 %v175
      %v186 = vpack.c.b16 %v183, %v180
      %v187 = vpack.c.b16 %v184, %v181
      %v188 = vpack.c.b16 %v185, %v182
      %192 = vrot.lane.b32.xlu0 %v186, 127
      %v193 = vpop.permute.xlu0 %192
      %194 = vrot.lane.b32.xlu0 %v187, 127
      %v195 = vpop.permute.xlu0 %194
      %196 = vrot.lane.b32.xlu0 %v188, 127
      %v197 = vpop.permute.xlu0 %196
      %vm198 = vcmask 1039360
      %v199 = vsel %vm198, %v193, %v195
      %v200 = vsel %vm198, %v195, %v197
      %204 = vrot.lane.b32.xlu0 %v186, 111
      %v205 = vpop.permute.xlu0 %204
      %206 = vrot.lane.b32.xlu0 %v187, 111
      %v207 = vpop.permute.xlu0 %206
      %208 = vrot.lane.b32.xlu0 %v188, 111
      %v209 = vpop.permute.xlu0 %208
      %vm210 = vcmask 908288
      %v211 = vsel %vm210, %v205, %v207
      %v212 = vsel %vm210, %v207, %v209
      %216 = vrot.lane.b32.xlu0 %v186, 110
      %v217 = vpop.permute.xlu0 %216
      %218 = vrot.lane.b32.xlu0 %v187, 110
      %v219 = vpop.permute.xlu0 %218
      %220 = vrot.lane.b32.xlu0 %v188, 110
      %v221 = vpop.permute.xlu0 %220
      %vm222 = vcmask 900096
      %v223 = vsel %vm222, %v217, %v219
      %v224 = vsel %vm222, %v219, %v221
      %v228 = vld [vmem:[%s1] sm:$0xf]
      %v229 = vld [vmem:[%s1 + $0x4] sm:$0xf]
      %v230 = vld [vmem:[%s1 + $0x8] sm:$0xf]
      %v231 = vld [vmem:[%s1 + $0xc] sm:$0xf]
      %v232 = vld [vmem:[%s2] sm:$0xff]
      %v233 = vld [vmem:[%s2 + $0x8] sm:$0xff]
      %v234 = vld [vmem:[%s2 + $0x10] sm:$0xff]
      %v235 = vld [vmem:[%s2 + $0x18] sm:$0xff]
      %237 = vset.pattern.permute.xlu0 0
      %238 = vperm.xlu0 %237, %v232
      %v239 = vpop.permute.xlu0 %238
      %242 = vset.pattern.permute.xlu0 0
      %243 = vperm.xlu0 %242, %v233
      %v244 = vpop.permute.xlu0 %243
      %247 = vset.pattern.permute.xlu0 0
      %248 = vperm.xlu0 %247, %v234
      %v249 = vpop.permute.xlu0 %248
      %252 = vset.pattern.permute.xlu0 0
      %253 = vperm.xlu0 %252, %v235
      %v254 = vpop.permute.xlu0 %253
      %v260 = vunpack.c.l.b16 %v228
      %v261 = vunpack.c.l.b16 %v229
      %v262 = vunpack.c.l.b16 %v230
      %v263 = vunpack.c.l.b16 %v231
      %v264 = vpack.c.b16 %v261, %v260
      %v265 = vpack.c.b16 %v263, %v262
      %vm266 = vcmask 523264
      %v268 = vsel %vm266, %v264, 0
      %v271 = vsel %vm266, %v265, 0
      %273 = vmatpush.bf16.msra.mxu0 0
      %274 = vmatpush.bf16.msra.mxu0 0
      %275 = vmatpush.bf16.msra.mxu0 0
      %276 = vmatpush.bf16.msra.mxu0 0
      %277 = vmatpush.bf16.msra.mxu0 %v223
      %278 = vmatpush.bf16.msra.mxu0 %v211
      %279 = vmatpush.bf16.msra.mxu0 %v199
      %280 = vmatpush.bf16.msra.mxu0 %v186
      %281 = vmatmul.bf16.gmra.mxu0 %v268
      %v282 = vpop.f32.mrf.mxu0
      %v283 = vadd.f32 %v239, %v282
      %v284 = vpop.f32.mrf.mxu0
      %v285 = vadd.f32 %v244, %v284
      %286 = vmatmul.bf16.gmra.mxu0 %v271
      %v287 = vpop.f32.mrf.mxu0
      %v288 = vadd.f32 %v249, %v287
      %v289 = vpop.f32.mrf.mxu0
      %v290 = vadd.f32 %v254, %v289
      %291 = vdwg.mxu0
      %292 = vmatpush.bf16.msra.mxu0 0
      %293 = vmatpush.bf16.msra.mxu0 0
      %294 = vmatpush.bf16.msra.mxu0 0
      %295 = vmatpush.bf16.msra.mxu0 0
      %296 = vmatpush.bf16.msra.mxu0 %v224
      %297 = vmatpush.bf16.msra.mxu0 %v212
      %298 = vmatpush.bf16.msra.mxu0 %v200
      %299 = vmatpush.bf16.msra.mxu0 %v187
      %300 = vmatmul.bf16.gmra.mxu0 %v268
      %v301 = vpop.f32.mrf.mxu0
      %v302 = vadd.f32 %v239, %v301
      %v303 = vpop.f32.mrf.mxu0
      %v304 = vadd.f32 %v244, %v303
      %305 = vmatmul.bf16.gmra.mxu0 %v271
      %v306 = vpop.f32.mrf.mxu0
      %v307 = vadd.f32 %v249, %v306
      %v308 = vpop.f32.mrf.mxu0
      %v309 = vadd.f32 %v254, %v308
      %310 = vdwg.mxu0
      %311 = vmatpush.bf16.msra.mxu0 0
      %312 = vmatpush.bf16.msra.mxu0 0
      %313 = vmatpush.bf16.msra.mxu0 0
      %314 = vmatpush.bf16.msra.mxu0 0
      %315 = vmatpush.bf16.msra.mxu0 %v221
      %316 = vmatpush.bf16.msra.mxu0 %v209
      %317 = vmatpush.bf16.msra.mxu0 %v197
      %318 = vmatpush.bf16.msra.mxu0 %v188
      %319 = vmatmul.bf16.gmra.mxu0 %v268
      %v320 = vpop.f32.mrf.mxu0
      %v321 = vadd.f32 %v239, %v320
      %v322 = vpop.f32.mrf.mxu0
      %v323 = vadd.f32 %v244, %v322
      %324 = vmatmul.bf16.gmra.mxu0 %v271
      %v325 = vpop.f32.mrf.mxu0
      %v326 = vadd.f32 %v249, %v325
      %v327 = vpop.f32.mrf.mxu0
      %v328 = vadd.f32 %v254, %v327
      %329 = vdwg.mxu0
      %v330 = vpack.c.bf16 %v302, %v283
      %v331 = vpack.c.bf16 %v321, %v321
      %v332 = vpack.c.bf16 %v304, %v285
      %v333 = vpack.c.bf16 %v323, %v323
      %v334 = vpack.c.bf16 %v307, %v288
      %v335 = vpack.c.bf16 %v326, %v326
      %v336 = vpack.c.bf16 %v309, %v290
      %v337 = vpack.c.bf16 %v328, %v328
      %338 = vst [vmem:[%s170] sm:$0xff] %v330
      %vm339 = vcmask 125952
      %340 = vst.msk [vmem:[%s170 + $0x8] sm:$0xf] %vm339, %v331
      %341 = vst [vmem:[%s170 + $0xc] sm:$0xff] %v332
      %342 = vst.msk [vmem:[%s170 + $0x14] sm:$0xf] %vm339, %v333
      %343 = vst [vmem:[%s170 + $0x18] sm:$0xff] %v334
      %344 = vst.msk [vmem:[%s170 + $0x20] sm:$0xf] %vm339, %v335
      %345 = vst [vmem:[%s170 + $0x24] sm:$0xff] %v336
      %346 = vst.msk [vmem:[%s170 + $0x2c] sm:$0xf] %vm339, %v337
      %p347 = scmp.lt.s32.totalorder %s14, 1
      %s348 = scalar_select %p347, %s14, 1
      %s349 = smul.addr %s348, 12
      %s350 = smul.addr %s349, 4
      %s351 = scalar_lea.vmem %s3, %s350
      // Predicated region
      $region33: #{dec_subpix_branch_forward.5} parent=31 // pred_check
        %p352 = pneg %p100
      $region34: #{dec_subpix_branch_forward.5} parent=31 // pred_check_branch
        %354 = sbr.rel (%p352) target = $region36
      $region35: #{dec_subpix_branch_forward.5} parent=31 // pred_region
        _
      $region36: #{dec_subpix_branch_forward.5} parent=31 // pred_fallthru
        _
    $region32: #{dec_subpix_branch_forward.5} parent=5 // pred_fallthru
      _
    %p355 = scmp.le.s32.totalorder 2, %s9
    // Predicated region
    $region37: #{dec_subpix_branch_forward.5} parent=5 // pred_check
      %p356 = pneg %p355
    $region38: #{dec_subpix_branch_forward.5} parent=5 // pred_check_branch
      %358 = sbr.rel (%p356) target = $region40
    $region39: #{dec_subpix_branch_forward.5} parent=5 // pred_region
      %s359 = ssub.s32 %s9, 2
      // Predicated region
      $region41: #{dec_subpix_branch_forward.5} parent=39 // pred_check
        %p360 = pneg %p106
      $region42: #{dec_subpix_branch_forward.5} parent=39 // pred_check_branch
        %362 = sbr.rel (%p360) target = $region44
      $region43: #{dec_subpix_branch_forward.5} parent=39 // pred_region
        %p363 = scmp.lt.s32.totalorder %s15, 1
        %s364 = scalar_select %p363, %s15, 1
        %s365 = smul.addr %s364, 12
        %s366 = smul.addr %s365, 4
        %s367 = scalar_lea.vmem %s3, %s366
      $region44: #{dec_subpix_branch_forward.5} parent=39 // pred_fallthru
        _
    $region40: #{dec_subpix_branch_forward.5} parent=5 // pred_fallthru
      _
  $region6: #{dec_subpix_branch_forward.5} parent=0 // loop_footer
    %s13 = sadd.s32 1, %s9
  $region7: #{dec_subpix_branch_forward.5} parent=0 // loop_footer_branch
    %8 = sbr.rel target = $region3
  $region8: #{dec_subpix_branch_forward.5} parent=0 // loop_exit
    _

// kernel: dec_subpix_branch_forward.6
$region0: #{dec_subpix_branch_forward.6}
  #allocation0 [shape = 'u32[]', space=smem, size = 0x4, offset = 0x4, fixed_abs, tag = 'smem constant byte address 0x4 - core index']
  #allocation1 [shape = 'u32[72,128]{1,0:T(1,128)}', space=vmem, size = 0x9000, scoped, tag = 'internal scratch']
  %s0 = inlined_call_operand.vmem [shape: bf16[2,16,1158], index: 0, kind: input, shape index: {}]
  %s1 = inlined_call_operand.vmem [shape: bf16[8,144], index: 1, kind: input, shape index: {}]
  %s2 = inlined_call_operand.vmem [shape: f32[8,1], index: 2, kind: input, shape index: {}]
  %s3 = inlined_call_operand.vmem [shape: f32[8,1], index: 3, kind: input, shape index: {}]
  %s4 = inlined_call_operand.vmem [shape: f32[8,1], index: 4, kind: input, shape index: {}]
  %s5 = inlined_call_operand.vmem [shape: f32[2,8,1088], index: 5, kind: output, shape index: {}]
  %s6 = sld [smem:[#allocation0]]
  $region57: #{dec_subpix_branch_forward.6} parent=0
    _
  %s8 = ssub.s32 1, %s6
  %s9 = scalar_select 0, %s8, %s6
  loop: start=0, step=1, limit=4
  $region2: #{dec_subpix_branch_forward.6} parent=0 // loop_pre_header
    _
  $region3: #{dec_subpix_branch_forward.6} parent=0 // loop_header
    %s11 = sphi 0, %s15
    %p12 = scmp.ge.s32.totalorder %s11, 4
    %s21 = sphi 0, %s23
    %s24 = sphi 0, %s21
    %s25 = sphi 0, %s24
    %s41 = sphi 0, %s25
    %s45 = sphi 0, %s45
    %s47 = sphi 0, %s45
    %s48 = sphi 0, %s47
    %s62 = sphi 0, %s48
    %s66 = sphi 0, %s66
    %s68 = sphi 0, %s66
    %s69 = sphi 0, %s68
    %s83 = sphi 0, %s69
    %s87 = sphi 0, %s87
    %s89 = sphi 0, %s87
    %s90 = sphi 0, %s89
    %s104 = sphi 0, %s90
    %s108 = sphi 0, %s108
    %s110 = sphi 0, %s108
    %s111 = sphi 0, %s110
    %s125 = sphi 0, %s111
    %s129 = sphi 0, %s129
    %s131 = sphi 0, %s129
    %s132 = sphi 0, %s131
    %s146 = sphi 0, %s132
  $region4: #{dec_subpix_branch_forward.6} parent=0 // loop_header_branch
    %14 = sbr.rel (%p12) target = $region8
  $region5: #{dec_subpix_branch_forward.6} parent=0 // loop_body
    %s16 = ssub.s32 %s11, 1
    %s17 = ssub.s32 %s11, 2
    %s18 = sadd.s32 %s11, 1
    %s19 = ssub.s32 %s11, %s18
    %p20 = scmp.eq.s32.totalorder %s19, 0
    %s22 = sadd.s32 %s21, 1
    %s23 = scalar_select %p20, %s21, %s22
    %p26 = pneg %p20
    %p27 = scmp.eq.s32.totalorder %s11, 1
    %p28 = por %p26, %p27
    %p29 = scmp.ne.s32.totalorder %s21, %s24
    %p30 = scmp.eq.s32.totalorder %s11, 0
    %p31 = por %p29, %p30
    %p32 = scmp.ne.s32.totalorder %s21, %s24
    %p33 = scmp.eq.s32.totalorder %s16, 1
    %p34 = por %p32, %p33
    %p35 = scmp.ne.s32.totalorder %s24, %s25
    %p36 = scmp.eq.s32.totalorder %s16, 0
    %p37 = por %p35, %p36
    %p38 = scmp.ne.s32.totalorder %s24, %s25
    %p39 = scmp.eq.s32.totalorder %s17, 1
    %p40 = por %p38, %p39
    %p42 = scmp.ne.s32.totalorder %s25, %s41
    %p43 = scmp.eq.s32.totalorder %s17, 0
    %p44 = por %p42, %p43
    %s46 = sadd.s32 %s45, 1
    %p49 = scmp.eq.s32.totalorder %s11, 1
    %p50 = scmp.ne.s32.totalorder %s45, %s47
    %p51 = scmp.eq.s32.totalorder %s11, 0
    %p52 = por %p50, %p51
    %p53 = scmp.ne.s32.totalorder %s45, %s47
    %p54 = scmp.eq.s32.totalorder %s16, 1
    %p55 = por %p53, %p54
    %p56 = scmp.ne.s32.totalorder %s47, %s48
    %p57 = scmp.eq.s32.totalorder %s16, 0
    %p58 = por %p56, %p57
    %p59 = scmp.ne.s32.totalorder %s47, %s48
    %p60 = scmp.eq.s32.totalorder %s17, 1
    %p61 = por %p59, %p60
    %p63 = scmp.ne.s32.totalorder %s48, %s62
    %p64 = scmp.eq.s32.totalorder %s17, 0
    %p65 = por %p63, %p64
    %s67 = sadd.s32 %s66, 1
    %p70 = scmp.eq.s32.totalorder %s11, 1
    %p71 = scmp.ne.s32.totalorder %s66, %s68
    %p72 = scmp.eq.s32.totalorder %s11, 0
    %p73 = por %p71, %p72
    %p74 = scmp.ne.s32.totalorder %s66, %s68
    %p75 = scmp.eq.s32.totalorder %s16, 1
    %p76 = por %p74, %p75
    %p77 = scmp.ne.s32.totalorder %s68, %s69
    %p78 = scmp.eq.s32.totalorder %s16, 0
    %p79 = por %p77, %p78
    %p80 = scmp.ne.s32.totalorder %s68, %s69
    %p81 = scmp.eq.s32.totalorder %s17, 1
    %p82 = por %p80, %p81
    %p84 = scmp.ne.s32.totalorder %s69, %s83
    %p85 = scmp.eq.s32.totalorder %s17, 0
    %p86 = por %p84, %p85
    %s88 = sadd.s32 %s87, 1
    %p91 = scmp.eq.s32.totalorder %s11, 1
    %p92 = scmp.ne.s32.totalorder %s87, %s89
    %p93 = scmp.eq.s32.totalorder %s11, 0
    %p94 = por %p92, %p93
    %p95 = scmp.ne.s32.totalorder %s87, %s89
    %p96 = scmp.eq.s32.totalorder %s16, 1
    %p97 = por %p95, %p96
    %p98 = scmp.ne.s32.totalorder %s89, %s90
    %p99 = scmp.eq.s32.totalorder %s16, 0
    %p100 = por %p98, %p99
    %p101 = scmp.ne.s32.totalorder %s89, %s90
    %p102 = scmp.eq.s32.totalorder %s17, 1
    %p103 = por %p101, %p102
    %p105 = scmp.ne.s32.totalorder %s90, %s104
    %p106 = scmp.eq.s32.totalorder %s17, 0
    %p107 = por %p105, %p106
    %s109 = sadd.s32 %s108, 1
    %p112 = scmp.eq.s32.totalorder %s11, 1
    %p113 = scmp.ne.s32.totalorder %s108, %s110
    %p114 = scmp.eq.s32.totalorder %s11, 0
    %p115 = por %p113, %p114
    %p116 = scmp.ne.s32.totalorder %s108, %s110
    %p117 = scmp.eq.s32.totalorder %s16, 1
    %p118 = por %p116, %p117
    %p119 = scmp.ne.s32.totalorder %s110, %s111
    %p120 = scmp.eq.s32.totalorder %s16, 0
    %p121 = por %p119, %p120
    %p122 = scmp.ne.s32.totalorder %s110, %s111
    %p123 = scmp.eq.s32.totalorder %s17, 1
    %p124 = por %p122, %p123
    %p126 = scmp.ne.s32.totalorder %s111, %s125
    %p127 = scmp.eq.s32.totalorder %s17, 0
    %p128 = por %p126, %p127
    %s130 = sadd.s32 %s129, 1
    %p133 = scmp.eq.s32.totalorder %s11, 1
    %p134 = scmp.ne.s32.totalorder %s129, %s131
    %p135 = scmp.eq.s32.totalorder %s11, 0
    %p136 = por %p134, %p135
    %p137 = scmp.ne.s32.totalorder %s129, %s131
    %p138 = scmp.eq.s32.totalorder %s16, 1
    %p139 = por %p137, %p138
    %p140 = scmp.ne.s32.totalorder %s131, %s132
    %p141 = scmp.eq.s32.totalorder %s16, 0
    %p142 = por %p140, %p141
    %p143 = scmp.ne.s32.totalorder %s131, %s132
    %p144 = scmp.eq.s32.totalorder %s17, 1
    %p145 = por %p143, %p144
    %p147 = scmp.ne.s32.totalorder %s132, %s146
    %p148 = scmp.eq.s32.totalorder %s17, 0
    %p149 = por %p147, %p148
    %p150 = scmp.le.s32.totalorder 1, %s11
    %p151 = scmp.lt.s32.totalorder %s11, 3
    %p152 = pnand %p150, %p151
    %p153 = pneg %p152
    // Predicated region
    $region9: #{dec_subpix_branch_forward.6} parent=5 // pred_check
      _
    $region10: #{dec_subpix_branch_forward.6} parent=5 // pred_check_branch
      %155 = sbr.rel (%p152) target = $region12
    $region11: #{dec_subpix_branch_forward.6} parent=5 // pred_region
      %s156 = ssub.s32 %s11, 1
      // Predicated region
      $region13: #{dec_subpix_branch_forward.6} parent=11 // pred_check
        %p157 = pneg %p58
      $region14: #{dec_subpix_branch_forward.6} parent=11 // pred_check_branch
        %159 = sbr.rel (%p157) target = $region16
      $region15: #{dec_subpix_branch_forward.6} parent=11 // pred_region
        _
      $region16: #{dec_subpix_branch_forward.6} parent=11 // pred_fallthru
        _
      // Predicated region
      $region17: #{dec_subpix_branch_forward.6} parent=11 // pred_check
        %p160 = pneg %p79
      $region18: #{dec_subpix_branch_forward.6} parent=11 // pred_check_branch
        %162 = sbr.rel (%p160) target = $region20
      $region19: #{dec_subpix_branch_forward.6} parent=11 // pred_region
        _
      $region20: #{dec_subpix_branch_forward.6} parent=11 // pred_fallthru
        _
      // Predicated region
      $region21: #{dec_subpix_branch_forward.6} parent=11 // pred_check
        %p163 = pneg %p100
      $region22: #{dec_subpix_branch_forward.6} parent=11 // pred_check_branch
        %165 = sbr.rel (%p163) target = $region24
      $region23: #{dec_subpix_branch_forward.6} parent=11 // pred_region
        _
      $region24: #{dec_subpix_branch_forward.6} parent=11 // pred_fallthru
        _
      // Predicated region
      $region25: #{dec_subpix_branch_forward.6} parent=11 // pred_check
        %p166 = pneg %p121
      $region26: #{dec_subpix_branch_forward.6} parent=11 // pred_check_branch
        %168 = sbr.rel (%p166) target = $region28
      $region27: #{dec_subpix_branch_forward.6} parent=11 // pred_region
        _
      $region28: #{dec_subpix_branch_forward.6} parent=11 // pred_fallthru
        _
    $region12: #{dec_subpix_branch_forward.6} parent=5 // pred_fallthru
      _
    %p169 = scmp.lt.s32.totalorder %s11, 2
    // Predicated region
    $region29: #{dec_subpix_branch_forward.6} parent=5 // pred_check
      %p170 = pneg %p169
    $region30: #{dec_subpix_branch_forward.6} parent=5 // pred_check_branch
      %172 = sbr.rel (%p170) target = $region32
    $region31: #{dec_subpix_branch_forward.6} parent=5 // pred_region
      // Predicated region
      $region33: #{dec_subpix_branch_forward.6} parent=31 // pred_check
        %p173 = pneg %p31
      $region34: #{dec_subpix_branch_forward.6} parent=31 // pred_check_branch
        %175 = sbr.rel (%p173) target = $region36
      $region35: #{dec_subpix_branch_forward.6} parent=31 // pred_region
        %p176 = scmp.lt.s32.totalorder %s11, 1
        %s177 = scalar_select %p176, %s11, 1
        %s178 = smul.addr %s177, 20
        %s179 = smul.addr %s178, 4
        %s180 = scalar_lea.vmem %s0, %s179
      $region36: #{dec_subpix_branch_forward.6} parent=31 // pred_fallthru
        _
    $region32: #{dec_subpix_branch_forward.6} parent=5 // pred_fallthru
      _
    %p181 = scmp.le.s32.totalorder 1, %s11
    %p182 = scmp.lt.s32.totalorder %s11, 3
    %p183 = pnand %p181, %p182
    %p184 = pneg %p183
    // Predicated region
    $region37: #{dec_subpix_branch_forward.6} parent=5 // pred_check
      _
    $region38: #{dec_subpix_branch_forward.6} parent=5 // pred_check_branch
      %186 = sbr.rel (%p183) target = $region40
    $region39: #{dec_subpix_branch_forward.6} parent=5 // pred_region
      %s187 = ssub.s32 %s11, 1
      %p188 = scmp.lt.s32.totalorder %s16, 1
      %s189 = scalar_select %p188, %s16, 1
      %s190 = smul.addr %s189, 20
      %s191 = smul.addr %s190, 4
      %s192 = scalar_lea.vmem %s0, %s191
      %p193 = pneg %p37
      %p194 = pneg %p34
      %p195 = pneg %p58
      %p196 = pneg %p55
      %p197 = pneg %p79
      %p198 = pneg %p76
      %p199 = pneg %p100
      %p200 = pneg %p97
      %p201 = pneg %p121
      %p202 = pneg %p118
      %p203 = pneg %p142
      %p204 = pneg %p139
      %p205 = scmp.lt.s32.totalorder %s16, 1
      %s206 = scalar_select %p205, %s16, 1
      %s207 = smul.addr %s206, 20
      %s208 = smul.addr %s207, 4
      %s209 = scalar_lea.vmem %s0, %s208
      %v211 = vld [vmem:[%s209] sm:$0xff]
      %v212 = vld [vmem:[%s209 + $0x8] sm:$0xff]
      %v213 = vld [vmem:[%s209 + $0x10] sm:$0xff]
      %v214 = vld [vmem:[%s209 + $0x18] sm:$0xff]
      %v215 = vld [vmem:[%s209 + $0x20] sm:$0xff]
      %v216 = vld [vmem:[%s209 + $0x28] sm:$0xff]
      %v217 = vld [vmem:[%s209 + $0x30] sm:$0xff]
      %v218 = vld [vmem:[%s209 + $0x38] sm:$0xff]
      %v219 = vld [vmem:[%s209 + $0x40] sm:$0xff]
      %v220 = vld [vmem:[%s209 + $0x48] sm:$0xff]
      %v231 = vunpack.c.l.b16 %v211
      %v232 = vunpack.c.h.b16 %v211
      %v233 = vunpack.c.l.b16 %v212
      %v234 = vunpack.c.h.b16 %v212
      %v235 = vunpack.c.l.b16 %v213
      %v236 = vunpack.c.h.b16 %v213
      %v237 = vunpack.c.l.b16 %v214
      %v238 = vunpack.c.h.b16 %v214
      %v239 = vunpack.c.l.b16 %v215
      %v240 = vunpack.c.l.b16 %v216
      %v241 = vunpack.c.h.b16 %v216
      %v242 = vunpack.c.l.b16 %v217
      %v243 = vunpack.c.h.b16 %v217
      %v244 = vunpack.c.l.b16 %v218
      %v245 = vunpack.c.h.b16 %v218
      %v246 = vunpack.c.l.b16 %v219
      %v247 = vunpack.c.h.b16 %v219
      %v248 = vunpack.c.l.b16 %v220
      %v249 = vpack.c.b16 %v240, %v231
      %v250 = vpack.c.b16 %v241, %v232
      %v251 = vpack.c.b16 %v242, %v233
      %v252 = vpack.c.b16 %v243, %v234
      %v253 = vpack.c.b16 %v244, %v235
      %v254 = vpack.c.b16 %v245, %v236
      %v255 = vpack.c.b16 %v246, %v237
      %v256 = vpack.c.b16 %v247, %v238
      %v257 = vpack.c.b16 %v248, %v239
      %267 = vrot.lane.b32.xlu0 %v249, 127
      %v268 = vpop.permute.xlu0 %267
      %269 = vrot.lane.b32.xlu0 %v250, 127
      %v270 = vpop.permute.xlu0 %269
      %271 = vrot.lane.b32.xlu0 %v251, 127
      %v272 = vpop.permute.xlu0 %271
      %273 = vrot.lane.b32.xlu0 %v252, 127
      %v274 = vpop.permute.xlu0 %273
      %275 = vrot.lane.b32.xlu0 %v253, 127
      %v276 = vpop.permute.xlu0 %275
      %277 = vrot.lane.b32.xlu0 %v254, 127
      %v278 = vpop.permute.xlu0 %277
      %279 = vrot.lane.b32.xlu0 %v255, 127
      %v280 = vpop.permute.xlu0 %279
      %281 = vrot.lane.b32.xlu0 %v256, 127
      %v282 = vpop.permute.xlu0 %281
      %283 = vrot.lane.b32.xlu0 %v257, 127
      %v284 = vpop.permute.xlu0 %283
      %vm285 = vcmask 1039360
      %v286 = vsel %vm285, %v268, %v270
      %v287 = vsel %vm285, %v270, %v272
      %v288 = vsel %vm285, %v272, %v274
      %v289 = vsel %vm285, %v274, %v276
      %v290 = vsel %vm285, %v276, %v278
      %v291 = vsel %vm285, %v278, %v280
      %v292 = vsel %vm285, %v280, %v282
      %v293 = vsel %vm285, %v282, %v284
      %303 = vrot.lane.b32.xlu0 %v249, 126
      %v304 = vpop.permute.xlu0 %303
      %305 = vrot.lane.b32.xlu0 %v250, 126
      %v306 = vpop.permute.xlu0 %305
      %307 = vrot.lane.b32.xlu0 %v251, 126
      %v308 = vpop.permute.xlu0 %307
      %309 = vrot.lane.b32.xlu0 %v252, 126
      %v310 = vpop.permute.xlu0 %309
      %311 = vrot.lane.b32.xlu0 %v253, 126
      %v312 = vpop.permute.xlu0 %311
      %313 = vrot.lane.b32.xlu0 %v254, 126
      %v314 = vpop.permute.xlu0 %313
      %315 = vrot.lane.b32.xlu0 %v255, 126
      %v316 = vpop.permute.xlu0 %315
      %317 = vrot.lane.b32.xlu0 %v256, 126
      %v318 = vpop.permute.xlu0 %317
      %319 = vrot.lane.b32.xlu0 %v257, 126
      %v320 = vpop.permute.xlu0 %319
      %vm321 = vcmask 1031168
      %v322 = vsel %vm321, %v304, %v306
      %v323 = vsel %vm321, %v306, %v308
      %v324 = vsel %vm321, %v308, %v310
      %v325 = vsel %vm321, %v310, %v312
      %v326 = vsel %vm321, %v312, %v314
      %v327 = vsel %vm321, %v314, %v316
      %v328 = vsel %vm321, %v316, %v318
      %v329 = vsel %vm321, %v318, %v320
      %339 = vrot.lane.b32.xlu0 %v249, 94
      %v340 = vpop.permute.xlu0 %339
      %341 = vrot.lane.b32.xlu0 %v250, 94
      %v342 = vpop.permute.xlu0 %341
      %343 = vrot.lane.b32.xlu0 %v251, 94
      %v344 = vpop.permute.xlu0 %343
      %345 = vrot.lane.b32.xlu0 %v252, 94
      %v346 = vpop.permute.xlu0 %345
      %347 = vrot.lane.b32.xlu0 %v253, 94
      %v348 = vpop.permute.xlu0 %347
      %349 = vrot.lane.b32.xlu0 %v254, 94
      %v350 = vpop.permute.xlu0 %349
      %351 = vrot.lane.b32.xlu0 %v255, 94
      %v352 = vpop.permute.xlu0 %351
      %353 = vrot.lane.b32.xlu0 %v256, 94
      %v354 = vpop.permute.xlu0 %353
      %355 = vrot.lane.b32.xlu0 %v257, 94
      %v356 = vpop.permute.xlu0 %355
      %vm357 = vcmask 769024
      %v358 = vsel %vm357, %v340, %v342
      %v359 = vsel %vm357, %v342, %v344
      %v360 = vsel %vm357, %v344, %v346
      %v361 = vsel %vm357, %v346, %v348
      %v362 = vsel %vm357, %v348, %v350
      %v363 = vsel %vm357, %v350, %v352
      %v364 = vsel %vm357, %v352, %v354
      %v365 = vsel %vm357, %v354, %v356
      %375 = vrot.lane.b32.xlu0 %v249, 93
      %v376 = vpop.permute.xlu0 %375
      %377 = vrot.lane.b32.xlu0 %v250, 93
      %v378 = vpop.permute.xlu0 %377
      %379 = vrot.lane.b32.xlu0 %v251, 93
      %v380 = vpop.permute.xlu0 %379
      %381 = vrot.lane.b32.xlu0 %v252, 93
      %v382 = vpop.permute.xlu0 %381
      %383 = vrot.lane.b32.xlu0 %v253, 93
      %v384 = vpop.permute.xlu0 %383
      %385 = vrot.lane.b32.xlu0 %v254, 93
      %v386 = vpop.permute.xlu0 %385
      %387 = vrot.lane.b32.xlu0 %v255, 93
      %v388 = vpop.permute.xlu0 %387
      %389 = vrot.lane.b32.xlu0 %v256, 93
      %v390 = vpop.permute.xlu0 %389
      %391 = vrot.lane.b32.xlu0 %v257, 93
      %v392 = vpop.permute.xlu0 %391
      %vm393 = vcmask 760832
      %v394 = vsel %vm393, %v376, %v378
      %v395 = vsel %vm393, %v378, %v380
      %v396 = vsel %vm393, %v380, %v382
      %v397 = vsel %vm393, %v382, %v384
      %v398 = vsel %vm393, %v384, %v386
      %v399 = vsel %vm393, %v386, %v388
      %v400 = vsel %vm393, %v388, %v390
      %v401 = vsel %vm393, %v390, %v392
      %411 = vrot.lane.b32.xlu0 %v249, 92
      %v412 = vpop.permute.xlu0 %411
      %413 = vrot.lane.b32.xlu0 %v250, 92
      %v414 = vpop.permute.xlu0 %413
      %415 = vrot.lane.b32.xlu0 %v251, 92
      %v416 = vpop.permute.xlu0 %415
      %417 = vrot.lane.b32.xlu0 %v252, 92
      %v418 = vpop.permute.xlu0 %417
      %419 = vrot.lane.b32.xlu0 %v253, 92
      %v420 = vpop.permute.xlu0 %419
      %421 = vrot.lane.b32.xlu0 %v254, 92
      %v422 = vpop.permute.xlu0 %421
      %423 = vrot.lane.b32.xlu0 %v255, 92
      %v424 = vpop.permute.xlu0 %423
      %425 = vrot.lane.b32.xlu0 %v256, 92
      %v426 = vpop.permute.xlu0 %425
      %427 = vrot.lane.b32.xlu0 %v257, 92
      %v428 = vpop.permute.xlu0 %427
      %vm429 = vcmask 752640
      %v430 = vsel %vm429, %v412, %v414
      %v431 = vsel %vm429, %v414, %v416
      %v432 = vsel %vm429, %v416, %v418
      %v433 = vsel %vm429, %v418, %v420
      %v434 = vsel %vm429, %v420, %v422
      %v435 = vsel %vm429, %v422, %v424
      %v436 = vsel %vm429, %v424, %v426
      %v437 = vsel %vm429, %v426, %v428
      %v447 = vunpack.c.h.b16 %v215
      %v448 = vunpack.c.h.b16 %v220
      %v449 = vpack.c.b16 %v448, %v447
      %450 = vrot.lane.b32.xlu0 %v249, 60
      %v451 = vpop.permute.xlu0 %450
      %452 = vrot.lane.b32.xlu0 %v250, 60
      %v453 = vpop.permute.xlu0 %452
      %454 = vrot.lane.b32.xlu0 %v251, 60
      %v455 = vpop.permute.xlu0 %454
      %456 = vrot.lane.b32.xlu0 %v252, 60
      %v457 = vpop.permute.xlu0 %456
      %458 = vrot.lane.b32.xlu0 %v253, 60
      %v459 = vpop.permute.xlu0 %458
      %460 = vrot.lane.b32.xlu0 %v254, 60
      %v461 = vpop.permute.xlu0 %460
      %462 = vrot.lane.b32.xlu0 %v255, 60
      %v463 = vpop.permute.xlu0 %462
      %464 = vrot.lane.b32.xlu0 %v256, 60
      %v465 = vpop.permute.xlu0 %464
      %466 = vrot.lane.b32.xlu0 %v257, 60
      %v467 = vpop.permute.xlu0 %466
      %468 = vrot.lane.b32.xlu0 %v449, 60
      %v469 = vpop.permute.xlu0 %468
      %vm470 = vcmask 490496
      %v471 = vsel %vm470, %v451, %v453
      %v472 = vsel %vm470, %v453, %v455
      %v473 = vsel %vm470, %v455, %v457
      %v474 = vsel %vm470, %v457, %v459
      %v475 = vsel %vm470, %v459, %v461
      %v476 = vsel %vm470, %v461, %v463
      %v477 = vsel %vm470, %v463, %v465
      %v478 = vsel %vm470, %v465, %v467
      %v479 = vsel %vm470, %v467, %v469
      %489 = vrot.lane.b32.xlu0 %v249, 59
      %v490 = vpop.permute.xlu0 %489
      %491 = vrot.lane.b32.xlu0 %v250, 59
      %v492 = vpop.permute.xlu0 %491
      %493 = vrot.lane.b32.xlu0 %v251, 59
      %v494 = vpop.permute.xlu0 %493
      %495 = vrot.lane.b32.xlu0 %v252, 59
      %v496 = vpop.permute.xlu0 %495
      %497 = vrot.lane.b32.xlu0 %v253, 59
      %v498 = vpop.permute.xlu0 %497
      %499 = vrot.lane.b32.xlu0 %v254, 59
      %v500 = vpop.permute.xlu0 %499
      %501 = vrot.lane.b32.xlu0 %v255, 59
      %v502 = vpop.permute.xlu0 %501
      %503 = vrot.lane.b32.xlu0 %v256, 59
      %v504 = vpop.permute.xlu0 %503
      %505 = vrot.lane.b32.xlu0 %v257, 59
      %v506 = vpop.permute.xlu0 %505
      %507 = vrot.lane.b32.xlu0 %v449, 59
      %v508 = vpop.permute.xlu0 %507
      %vm509 = vcmask 482304
      %v510 = vsel %vm509, %v490, %v492
      %v511 = vsel %vm509, %v492, %v494
      %v512 = vsel %vm509, %v494, %v496
      %v513 = vsel %vm509, %v496, %v498
      %v514 = vsel %vm509, %v498, %v500
      %v515 = vsel %vm509, %v500, %v502
      %v516 = vsel %vm509, %v502, %v504
      %v517 = vsel %vm509, %v504, %v506
      %v518 = vsel %vm509, %v506, %v508
      %528 = vrot.lane.b32.xlu0 %v249, 58
      %v529 = vpop.permute.xlu0 %528
      %530 = vrot.lane.b32.xlu0 %v250, 58
      %v531 = vpop.permute.xlu0 %530
      %532 = vrot.lane.b32.xlu0 %v251, 58
      %v533 = vpop.permute.xlu0 %532
      %534 = vrot.lane.b32.xlu0 %v252, 58
      %v535 = vpop.permute.xlu0 %534
      %536 = vrot.lane.b32.xlu0 %v253, 58
      %v537 = vpop.permute.xlu0 %536
      %538 = vrot.lane.b32.xlu0 %v254, 58
      %v539 = vpop.permute.xlu0 %538
      %540 = vrot.lane.b32.xlu0 %v255, 58
      %v541 = vpop.permute.xlu0 %540
      %542 = vrot.lane.b32.xlu0 %v256, 58
      %v543 = vpop.permute.xlu0 %542
      %544 = vrot.lane.b32.xlu0 %v257, 58
      %v545 = vpop.permute.xlu0 %544
      %546 = vrot.lane.b32.xlu0 %v449, 58
      %v547 = vpop.permute.xlu0 %546
      %vm548 = vcmask 474112
      %v549 = vsel %vm548, %v529, %v531
      %v550 = vsel %vm548, %v531, %v533
      %v551 = vsel %vm548, %v533, %v535
      %v552 = vsel %vm548, %v535, %v537
      %v553 = vsel %vm548, %v537, %v539
      %v554 = vsel %vm548, %v539, %v541
      %v555 = vsel %vm548, %v541, %v543
      %v556 = vsel %vm548, %v543, %v545
      %v557 = vsel %vm548, %v545, %v547
      %v567 = vld [vmem:[%s1] sm:$0xff]
      %v568 = vld [vmem:[%s2] sm:$0xff]
      %570 = vset.pattern.permute.xlu0 0
      %571 = vperm.xlu0 %570, %v568
      %v572 = vpop.permute.xlu0 %571
      %v575 = vunpack.c.l.b16 %v567
      %v576 = vunpack.c.h.b16 %v567
      %v577 = vpack.c.b16 %v575, %v575
      %v578 = vpack.c.b16 %v576, %v576
      %vm580 = vcmask 130048
      %v582 = vsel %vm580, %v578, 0
      %584 = vmatpush.bf16.msra.mxu0 %v510
      %585 = vmatpush.bf16.msra.mxu0 %v471
      %586 = vmatpush.bf16.msra.mxu0 %v430
      %587 = vmatpush.bf16.msra.mxu0 %v394
      %588 = vmatpush.bf16.msra.mxu0 %v358
      %589 = vmatpush.bf16.msra.mxu0 %v322
      %590 = vmatpush.bf16.msra.mxu0 %v286
      %591 = vmatpush.bf16.msra.mxu0 %v249
      %592 = vmatmul.bf16.gmra.mxu0 %v577
      %v593 = vpop.f32.mrf.mxu0
      %v594 = vadd.f32 %v572, %v593
      %v595 = vpop.f32.mrf.mxu0
      %596 = vdwg.mxu0
      %597 = vmatpush.bf16.msra.mxu0 0
      %598 = vmatpush.bf16.msra.mxu0 0
      %599 = vmatpush.bf16.msra.mxu0 0
      %600 = vmatpush.bf16.msra.mxu0 0
      %601 = vmatpush.bf16.msra.mxu0 0
      %602 = vmatpush.bf16.msra.mxu0 0
      %603 = vmatpush.bf16.msra.mxu0 0
      %604 = vmatpush.bf16.msra.mxu0 %v549
      %605 = vmatmul.bf16.gmra.mxu0 %v582
      %v606 = vpop.f32.mrf.mxu0
      %v607 = vadd.f32 %v594, %v606
      %v608 = vpop.f32.mrf.mxu0
      %609 = vdwg.mxu0
      %610 = vmatpush.bf16.msra.mxu0 %v511
      %611 = vmatpush.bf16.msra.mxu0 %v472
      %612 = vmatpush.bf16.msra.mxu0 %v431
      %613 = vmatpush.bf16.msra.mxu0 %v395
      %614 = vmatpush.bf16.msra.mxu0 %v359
      %615 = vmatpush.bf16.msra.mxu0 %v323
      %616 = vmatpush.bf16.msra.mxu0 %v287
      %617 = vmatpush.bf16.msra.mxu0 %v250
      %618 = vmatmul.bf16.gmra.mxu0 %v577
      %v619 = vpop.f32.mrf.mxu0
      %v620 = vadd.f32 %v572, %v619
      %v621 = vpop.f32.mrf.mxu0
      %622 = vdwg.mxu0
      %623 = vmatpush.bf16.msra.mxu0 0
      %624 = vmatpush.bf16.msra.mxu0 0
      %625 = vmatpush.bf16.msra.mxu0 0
      %626 = vmatpush.bf16.msra.mxu0 0
      %627 = vmatpush.bf16.msra.mxu0 0
      %628 = vmatpush.bf16.msra.mxu0 0
      %629 = vmatpush.bf16.msra.mxu0 0
      %630 = vmatpush.bf16.msra.mxu0 %v550
      %631 = vmatmul.bf16.gmra.mxu0 %v582
      %v632 = vpop.f32.mrf.mxu0
      %v633 = vadd.f32 %v620, %v632
      %v634 = vpop.f32.mrf.mxu0
      %635 = vdwg.mxu0
      %636 = vmatpush.bf16.msra.mxu0 %v512
      %637 = vmatpush.bf16.msra.mxu0 %v473
      %638 = vmatpush.bf16.msra.mxu0 %v432
      %639 = vmatpush.bf16.msra.mxu0 %v396
      %640 = vmatpush.bf16.msra.mxu0 %v360
      %641 = vmatpush.bf16.msra.mxu0 %v324
      %642 = vmatpush.bf16.msra.mxu0 %v288
      %643 = vmatpush.bf16.msra.mxu0 %v251
      %644 = vmatmul.bf16.gmra.mxu0 %v577
      %v645 = vpop.f32.mrf.mxu0
      %v646 = vadd.f32 %v572, %v645
      %v647 = vpop.f32.mrf.mxu0
      %648 = vdwg.mxu0
      %649 = vmatpush.bf16.msra.mxu0 0
      %650 = vmatpush.bf16.msra.mxu0 0
      %651 = vmatpush.bf16.msra.mxu0 0
      %652 = vmatpush.bf16.msra.mxu0 0
      %653 = vmatpush.bf16.msra.mxu0 0
      %654 = vmatpush.bf16.msra.mxu0 0
      %655 = vmatpush.bf16.msra.mxu0 0
      %656 = vmatpush.bf16.msra.mxu0 %v551
      %657 = vmatmul.bf16.gmra.mxu0 %v582
      %v658 = vpop.f32.mrf.mxu0
      %v659 = vadd.f32 %v646, %v658
      %v660 = vpop.f32.mrf.mxu0
      %661 = vdwg.mxu0
      %662 = vmatpush.bf16.msra.mxu0 %v513
      %663 = vmatpush.bf16.msra.mxu0 %v474
      %664 = vmatpush.bf16.msra.mxu0 %v433
      %665 = vmatpush.bf16.msra.mxu0 %v397
      %666 = vmatpush.bf16.msra.mxu0 %v361
      %667 = vmatpush.bf16.msra.mxu0 %v325
      %668 = vmatpush.bf16.msra.mxu0 %v289
      %669 = vmatpush.bf16.msra.mxu0 %v252
      %670 = vmatmul.bf16.gmra.mxu0 %v577
      %v671 = vpop.f32.mrf.mxu0
      %v672 = vadd.f32 %v572, %v671
      %v673 = vpop.f32.mrf.mxu0
      %674 = vdwg.mxu0
      %675 = vmatpush.bf16.msra.mxu0 0
      %676 = vmatpush.bf16.msra.mxu0 0
      %677 = vmatpush.bf16.msra.mxu0 0
      %678 = vmatpush.bf16.msra.mxu0 0
      %679 = vmatpush.bf16.msra.mxu0 0
      %680 = vmatpush.bf16.msra.mxu0 0
      %681 = vmatpush.bf16.msra.mxu0 0
      %682 = vmatpush.bf16.msra.mxu0 %v552
      %683 = vmatmul.bf16.gmra.mxu0 %v582
      %v684 = vpop.f32.mrf.mxu0
      %v685 = vadd.f32 %v672, %v684
      %v686 = vpop.f32.mrf.mxu0
      %687 = vdwg.mxu0
      %688 = vmatpush.bf16.msra.mxu0 %v514
      %689 = vmatpush.bf16.msra.mxu0 %v475
      %690 = vmatpush.bf16.msra.mxu0 %v434
      %691 = vmatpush.bf16.msra.mxu0 %v398
      %692 = vmatpush.bf16.msra.mxu0 %v362
      %693 = vmatpush.bf16.msra.mxu0 %v326
      %694 = vmatpush.bf16.msra.mxu0 %v290
      %695 = vmatpush.bf16.msra.mxu0 %v253
      %696 = vmatmul.bf16.gmra.mxu0 %v577
      %v697 = vpop.f32.mrf.mxu0
      %v698 = vadd.f32 %v572, %v697
      %v699 = vpop.f32.mrf.mxu0
      %700 = vdwg.mxu0
      %701 = vmatpush.bf16.msra.mxu0 0
      %702 = vmatpush.bf16.msra.mxu0 0
      %703 = vmatpush.bf16.msra.mxu0 0
      %704 = vmatpush.bf16.msra.mxu0 0
      %705 = vmatpush.bf16.msra.mxu0 0
      %706 = vmatpush.bf16.msra.mxu0 0
      %707 = vmatpush.bf16.msra.mxu0 0
      %708 = vmatpush.bf16.msra.mxu0 %v553
      %709 = vmatmul.bf16.gmra.mxu0 %v582
      %v710 = vpop.f32.mrf.mxu0
      %v711 = vadd.f32 %v698, %v710
      %v712 = vpop.f32.mrf.mxu0
      %713 = vdwg.mxu0
      %714 = vmatpush.bf16.msra.mxu0 %v515
      %715 = vmatpush.bf16.msra.mxu0 %v476
      %716 = vmatpush.bf16.msra.mxu0 %v435
      %717 = vmatpush.bf16.msra.mxu0 %v399
      %718 = vmatpush.bf16.msra.mxu0 %v363
      %719 = vmatpush.bf16.msra.mxu0 %v327
      %720 = vmatpush.bf16.msra.mxu0 %v291
      %721 = vmatpush.bf16.msra.mxu0 %v254
      %722 = vmatmul.bf16.gmra.mxu0 %v577
      %v723 = vpop.f32.mrf.mxu0
      %v724 = vadd.f32 %v572, %v723
      %v725 = vpop.f32.mrf.mxu0
      %726 = vdwg.mxu0
      %727 = vmatpush.bf16.msra.mxu0 0
      %728 = vmatpush.bf16.msra.mxu0 0
      %729 = vmatpush.bf16.msra.mxu0 0
      %730 = vmatpush.bf16.msra.mxu0 0
      %731 = vmatpush.bf16.msra.mxu0 0
      %732 = vmatpush.bf16.msra.mxu0 0
      %733 = vmatpush.bf16.msra.mxu0 0
      %734 = vmatpush.bf16.msra.mxu0 %v554
      %735 = vmatmul.bf16.gmra.mxu0 %v582
      %v736 = vpop.f32.mrf.mxu0
      %v737 = vadd.f32 %v724, %v736
      %v738 = vpop.f32.mrf.mxu0
      %739 = vdwg.mxu0
      %740 = vmatpush.bf16.msra.mxu0 %v516
      %741 = vmatpush.bf16.msra.mxu0 %v477
      %742 = vmatpush.bf16.msra.mxu0 %v436
      %743 = vmatpush.bf16.msra.mxu0 %v400
      %744 = vmatpush.bf16.msra.mxu0 %v364
      %745 = vmatpush.bf16.msra.mxu0 %v328
      %746 = vmatpush.bf16.msra.mxu0 %v292
      %747 = vmatpush.bf16.msra.mxu0 %v255
      %748 = vmatmul.bf16.gmra.mxu0 %v577
      %v749 = vpop.f32.mrf.mxu0
      %v750 = vadd.f32 %v572, %v749
      %v751 = vpop.f32.mrf.mxu0
      %752 = vdwg.mxu0
      %753 = vmatpush.bf16.msra.mxu0 0
      %754 = vmatpush.bf16.msra.mxu0 0
      %755 = vmatpush.bf16.msra.mxu0 0
      %756 = vmatpush.bf16.msra.mxu0 0
      %757 = vmatpush.bf16.msra.mxu0 0
      %758 = vmatpush.bf16.msra.mxu0 0
      %759 = vmatpush.bf16.msra.mxu0 0
      %760 = vmatpush.bf16.msra.mxu0 %v555
      %761 = vmatmul.bf16.gmra.mxu0 %v582
      %v762 = vpop.f32.mrf.mxu0
      %v763 = vadd.f32 %v750, %v762
      %v764 = vpop.f32.mrf.mxu0
      %765 = vdwg.mxu0
      %766 = vmatpush.bf16.msra.mxu0 %v517
      %767 = vmatpush.bf16.msra.mxu0 %v478
      %768 = vmatpush.bf16.msra.mxu0 %v437
      %769 = vmatpush.bf16.msra.mxu0 %v401
      %770 = vmatpush.bf16.msra.mxu0 %v365
      %771 = vmatpush.bf16.msra.mxu0 %v329
      %772 = vmatpush.bf16.msra.mxu0 %v293
      %773 = vmatpush.bf16.msra.mxu0 %v256
      %774 = vmatmul.bf16.gmra.mxu0 %v577
      %v775 = vpop.f32.mrf.mxu0
      %v776 = vadd.f32 %v572, %v775
      %v777 = vpop.f32.mrf.mxu0
      %778 = vdwg.mxu0
      %779 = vmatpush.bf16.msra.mxu0 0
      %780 = vmatpush.bf16.msra.mxu0 0
      %781 = vmatpush.bf16.msra.mxu0 0
      %782 = vmatpush.bf16.msra.mxu0 0
      %783 = vmatpush.bf16.msra.mxu0 0
      %784 = vmatpush.bf16.msra.mxu0 0
      %785 = vmatpush.bf16.msra.mxu0 0
      %786 = vmatpush.bf16.msra.mxu0 %v556
      %787 = vmatmul.bf16.gmra.mxu0 %v582
      %v788 = vpop.f32.mrf.mxu0
      %v789 = vadd.f32 %v776, %v788
      %v790 = vpop.f32.mrf.mxu0
      %791 = vdwg.mxu0
      %792 = vmatpush.bf16.msra.mxu0 %v518
      %793 = vmatpush.bf16.msra.mxu0 %v479
      %794 = vmatpush.bf16.msra.mxu0 %v428
      %795 = vmatpush.bf16.msra.mxu0 %v392
      %796 = vmatpush.bf16.msra.mxu0 %v356
      %797 = vmatpush.bf16.msra.mxu0 %v320
      %798 = vmatpush.bf16.msra.mxu0 %v284
      %799 = vmatpush.bf16.msra.mxu0 %v257
      %800 = vmatmul.bf16.gmra.mxu0 %v577
      %v801 = vpop.f32.mrf.mxu0
      %v802 = vadd.f32 %v572, %v801
      %v803 = vpop.f32.mrf.mxu0
      %804 = vdwg.mxu0
      %805 = vmatpush.bf16.msra.mxu0 0
      %806 = vmatpush.bf16.msra.mxu0 0
      %807 = vmatpush.bf16.msra.mxu0 0
      %808 = vmatpush.bf16.msra.mxu0 0
      %809 = vmatpush.bf16.msra.mxu0 0
      %810 = vmatpush.bf16.msra.mxu0 0
      %811 = vmatpush.bf16.msra.mxu0 0
      %812 = vmatpush.bf16.msra.mxu0 %v557
      %813 = vmatmul.bf16.gmra.mxu0 %v582
      %v814 = vpop.f32.mrf.mxu0
      %v815 = vadd.f32 %v802, %v814
      %v816 = vpop.f32.mrf.mxu0
      %817 = vdwg.mxu0
      %v818 = vmax.f32 %v607, 0.0
      %v819 = vmax.f32 %v633, 0.0
      %v820 = vmax.f32 %v659, 0.0
      %v821 = vmax.f32 %v685, 0.0
      %v822 = vmax.f32 %v711, 0.0
      %v823 = vmax.f32 %v737, 0.0
      %v824 = vmax.f32 %v763, 0.0
      %v825 = vmax.f32 %v789, 0.0
      %v826 = vmax.f32 %v815, 0.0
      %s827 = smul.u32 %s16, 9
      %s828 = smul.addr %s827, 8
      %s829 = scalar_lea.vmem %s5, %s828
      %830 = vst [vmem:[%s829] sm:$0xff] %v818
      %831 = vst [vmem:[%s829 + $0x8] sm:$0xff] %v819
      %832 = vst [vmem:[%s829 + $0x10] sm:$0xff] %v820
      %833 = vst [vmem:[%s829 + $0x18] sm:$0xff] %v821
      %834 = vst [vmem:[%s829 + $0x20] sm:$0xff] %v822
      %835 = vst [vmem:[%s829 + $0x28] sm:$0xff] %v823
      %836 = vst [vmem:[%s829 + $0x30] sm:$0xff] %v824
      %837 = vst [vmem:[%s829 + $0x38] sm:$0xff] %v825
      %vm838 = vcmask 523264
      %839 = vst.msk [vmem:[%s829 + $0x40] sm:$0xff] %vm838, %v826
      %p840 = scmp.eq.s32.totalorder %s16, 1
      // Predicated region
      $region41: #{dec_subpix_branch_forward.6} parent=39 // pred_check
        %p841 = pneg %p840
      $region42: #{dec_subpix_branch_forward.6} parent=39 // pred_check_branch
        %843 = sbr.rel (%p841) target = $region44
      $region43: #{dec_subpix_branch_forward.6} parent=39 // pred_region
        %v844 = vld [vmem:[%s5] sm:$0xff]
        %v845 = vld [vmem:[%s5 + $0x8] sm:$0xff]
        %v846 = vld [vmem:[%s5 + $0x10] sm:$0xff]
        %v847 = vld [vmem:[%s5 + $0x18] sm:$0xff]
        %v848 = vld [vmem:[%s5 + $0x20] sm:$0xff]
        %v849 = vld [vmem:[%s5 + $0x28] sm:$0xff]
        %v850 = vld [vmem:[%s5 + $0x30] sm:$0xff]
        %v851 = vld [vmem:[%s5 + $0x38] sm:$0xff]
        %v852 = vld [vmem:[%s5 + $0x40] sm:$0xff]
        %v853 = vld [vmem:[%s5 + $0x48] sm:$0xff]
        %v854 = vld [vmem:[%s5 + $0x50] sm:$0xff]
        %v855 = vld [vmem:[%s5 + $0x58] sm:$0xff]
        %v856 = vld [vmem:[%s5 + $0x60] sm:$0xff]
        %v857 = vld [vmem:[%s5 + $0x68] sm:$0xff]
        %v858 = vld [vmem:[%s5 + $0x70] sm:$0xff]
        %v859 = vld [vmem:[%s5 + $0x78] sm:$0xff]
        %v860 = vld [vmem:[%s5 + $0x80] sm:$0xff]
        %v861 = vld [vmem:[%s5 + $0x88] sm:$0xff]
        %v862 = vlaneseq
        %v863 = vand.u32 %v862, 127
        %v864 = vadd.s32 %v863, 128
        %v865 = vadd.s32 %v863, 256
        %v866 = vadd.s32 %v863, 384
        %v867 = vadd.s32 %v863, 512
        %v868 = vadd.s32 %v863, 640
        %v869 = vadd.s32 %v863, 768
        %v870 = vadd.s32 %v863, 896
        %v871 = vadd.s32 %v863, 1024
        %vm872 = vcmp.lt.s32.totalorder %v863, 0
        %v873 = vsub.s32 0, %v863
        %v874 = vsel %vm872, %v873, %v863
        %v875 = vand.u32 %v874, 65535
        %v876 = vshrl.u32 %v874, 16
        %v878 = vmul.u32 %v875, 61681
        %v879 = vmul.u32 %v875, 61680
        %v880 = vmul.u32 %v876, 61681
        %v881 = vmul.u32 %v876, 61680
        %v882 = vshll.u32 %v879, 16
        %v883 = vshrl.u32 %v879, 16
        %v884 = vshll.u32 %v880, 16
        %v885 = vshrl.u32 %v880, 16
        %vm886 = vc.u32 %v878, %v882
        %v887 = vsel %vm886, 1, 0
        %v888 = vadd.s32 %v878, %v882
        %v889 = vadd.s32 %v881, %v887
        %vm890 = vc.u32 %v888, %v884
        %v891 = vsel %vm890, 1, 0
        %v892 = vadd.s32 %v888, %v884
        %v893 = vadd.s32 %v889, %v891
        %v894 = vadd.s32 %v893, %v883
        %v895 = vadd.s32 %v894, %v885
        %v896 = vshrl.u32 %v895, 5
        %v897 = vmul.u32 %v896, 34
        %v898 = vsub.s32 %v874, %v897
        %v899 = vsub.s32 0, %v898
        %v900 = vsel %vm872, %v899, %v898
        %vm901 = vcmp.lt.s32.totalorder %v864, 0
        %v902 = vsub.s32 0, %v864
        %v903 = vsel %vm901, %v902, %v864
        %v904 = vand.u32 %v903, 65535
        %v905 = vshrl.u32 %v903, 16
        %v907 = vmul.u32 %v904, 61681
        %v908 = vmul.u32 %v904, 61680
        %v909 = vmul.u32 %v905, 61681
        %v910 = vmul.u32 %v905, 61680
        %v911 = vshll.u32 %v908, 16
        %v912 = vshrl.u32 %v908, 16
        %v913 = vshll.u32 %v909, 16
        %v914 = vshrl.u32 %v909, 16
        %vm915 = vc.u32 %v907, %v911
        %v916 = vsel %vm915, 1, 0
        %v917 = vadd.s32 %v907, %v911
        %v918 = vadd.s32 %v910, %v916
        %vm919 = vc.u32 %v917, %v913
        %v920 = vsel %vm919, 1, 0
        %v921 = vadd.s32 %v917, %v913
        %v922 = vadd.s32 %v918, %v920
        %v923 = vadd.s32 %v922, %v912
        %v924 = vadd.s32 %v923, %v914
        %v925 = vshrl.u32 %v924, 5
        %v926 = vmul.u32 %v925, 34
        %v927 = vsub.s32 %v903, %v926
        %v928 = vsub.s32 0, %v927
        %v929 = vsel %vm901, %v928, %v927
        %vm930 = vcmp.lt.s32.totalorder %v865, 0
        %v931 = vsub.s32 0, %v865
        %v932 = vsel %vm930, %v931, %v865
        %v933 = vand.u32 %v932, 65535
        %v934 = vshrl.u32 %v932, 16
        %v936 = vmul.u32 %v933, 61681
        %v937 = vmul.u32 %v933, 61680
        %v938 = vmul.u32 %v934, 61681
        %v939 = vmul.u32 %v934, 61680
        %v940 = vshll.u32 %v937, 16
        %v941 = vshrl.u32 %v937, 16
        %v942 = vshll.u32 %v938, 16
        %v943 = vshrl.u32 %v938, 16
        %vm944 = vc.u32 %v936, %v940
        %v945 = vsel %vm944, 1, 0
        %v946 = vadd.s32 %v936, %v940
        %v947 = vadd.s32 %v939, %v945
        %vm948 = vc.u32 %v946, %v942
        %v949 = vsel %vm948, 1, 0
        %v950 = vadd.s32 %v946, %v942
        %v951 = vadd.s32 %v947, %v949
        %v952 = vadd.s32 %v951, %v941
        %v953 = vadd.s32 %v952, %v943
        %v954 = vshrl.u32 %v953, 5
        %v955 = vmul.u32 %v954, 34
        %v956 = vsub.s32 %v932, %v955
        %v957 = vsub.s32 0, %v956
        %v958 = vsel %vm930, %v957, %v956
        %vm959 = vcmp.lt.s32.totalorder %v866, 0
        %v960 = vsub.s32 0, %v866
        %v961 = vsel %vm959, %v960, %v866
        %v962 = vand.u32 %v961, 65535
        %v963 = vshrl.u32 %v961, 16
        %v965 = vmul.u32 %v962, 61681
        %v966 = vmul.u32 %v962, 61680
        %v967 = vmul.u32 %v963, 61681
        %v968 = vmul.u32 %v963, 61680
        %v969 = vshll.u32 %v966, 16
        %v970 = vshrl.u32 %v966, 16
        %v971 = vshll.u32 %v967, 16
        %v972 = vshrl.u32 %v967, 16
        %vm973 = vc.u32 %v965, %v969
        %v974 = vsel %vm973, 1, 0
        %v975 = vadd.s32 %v965, %v969
        %v976 = vadd.s32 %v968, %v974
        %vm977 = vc.u32 %v975, %v971
        %v978 = vsel %vm977, 1, 0
        %v979 = vadd.s32 %v975, %v971
        %v980 = vadd.s32 %v976, %v978
        %v981 = vadd.s32 %v980, %v970
        %v982 = vadd.s32 %v981, %v972
        %v983 = vshrl.u32 %v982, 5
        %v984 = vmul.u32 %v983, 34
        %v985 = vsub.s32 %v961, %v984
        %v986 = vsub.s32 0, %v985
        %v987 = vsel %vm959, %v986, %v985
        %vm988 = vcmp.lt.s32.totalorder %v867, 0
        %v989 = vsub.s32 0, %v867
        %v990 = vsel %vm988, %v989, %v867
        %v991 = vand.u32 %v990, 65535
        %v992 = vshrl.u32 %v990, 16
        %v994 = vmul.u32 %v991, 61681
        %v995 = vmul.u32 %v991, 61680
        %v996 = vmul.u32 %v992, 61681
        %v997 = vmul.u32 %v992, 61680
        %v998 = vshll.u32 %v995, 16
        %v999 = vshrl.u32 %v995, 16
        %v1000 = vshll.u32 %v996, 16
        %v1001 = vshrl.u32 %v996, 16
        %vm1002 = vc.u32 %v994, %v998
        %v1003 = vsel %vm1002, 1, 0
        %v1004 = vadd.s32 %v994, %v998
        %v1005 = vadd.s32 %v997, %v1003
        %vm1006 = vc.u32 %v1004, %v1000
        %v1007 = vsel %vm1006, 1, 0
        %v1008 = vadd.s32 %v1004, %v1000
        %v1009 = vadd.s32 %v1005, %v1007
        %v1010 = vadd.s32 %v1009, %v999
        %v1011 = vadd.s32 %v1010, %v1001
        %v1012 = vshrl.u32 %v1011, 5
        %v1013 = vmul.u32 %v1012, 34
        %v1014 = vsub.s32 %v990, %v1013
        %v1015 = vsub.s32 0, %v1014
        %v1016 = vsel %vm988, %v1015, %v1014
        %vm1017 = vcmp.lt.s32.totalorder %v868, 0
        %v1018 = vsub.s32 0, %v868
        %v1019 = vsel %vm1017, %v1018, %v868
        %v1020 = vand.u32 %v1019, 65535
        %v1021 = vshrl.u32 %v1019, 16
        %v1023 = vmul.u32 %v1020, 61681
        %v1024 = vmul.u32 %v1020, 61680
        %v1025 = vmul.u32 %v1021, 61681
        %v1026 = vmul.u32 %v1021, 61680
        %v1027 = vshll.u32 %v1024, 16
        %v1028 = vshrl.u32 %v1024, 16
        %v1029 = vshll.u32 %v1025, 16
        %v1030 = vshrl.u32 %v1025, 16
        %vm1031 = vc.u32 %v1023, %v1027
        %v1032 = vsel %vm1031, 1, 0
        %v1033 = vadd.s32 %v1023, %v1027
        %v1034 = vadd.s32 %v1026, %v1032
        %vm1035 = vc.u32 %v1033, %v1029
        %v1036 = vsel %vm1035, 1, 0
        %v1037 = vadd.s32 %v1033, %v1029
        %v1038 = vadd.s32 %v1034, %v1036
        %v1039 = vadd.s32 %v1038, %v1028
        %v1040 = vadd.s32 %v1039, %v1030
        %v1041 = vshrl.u32 %v1040, 5
        %v1042 = vmul.u32 %v1041, 34
        %v1043 = vsub.s32 %v1019, %v1042
        %v1044 = vsub.s32 0, %v1043
        %v1045 = vsel %vm1017, %v1044, %v1043
        %vm1046 = vcmp.lt.s32.totalorder %v869, 0
        %v1047 = vsub.s32 0, %v869
        %v1048 = vsel %vm1046, %v1047, %v869
        %v1049 = vand.u32 %v1048, 65535
        %v1050 = vshrl.u32 %v1048, 16
        %v1052 = vmul.u32 %v1049, 61681
        %v1053 = vmul.u32 %v1049, 61680
        %v1054 = vmul.u32 %v1050, 61681
        %v1055 = vmul.u32 %v1050, 61680
        %v1056 = vshll.u32 %v1053, 16
        %v1057 = vshrl.u32 %v1053, 16
        %v1058 = vshll.u32 %v1054, 16
        %v1059 = vshrl.u32 %v1054, 16
        %vm1060 = vc.u32 %v1052, %v1056
        %v1061 = vsel %vm1060, 1, 0
        %v1062 = vadd.s32 %v1052, %v1056
        %v1063 = vadd.s32 %v1055, %v1061
        %vm1064 = vc.u32 %v1062, %v1058
        %v1065 = vsel %vm1064, 1, 0
        %v1066 = vadd.s32 %v1062, %v1058
        %v1067 = vadd.s32 %v1063, %v1065
        %v1068 = vadd.s32 %v1067, %v1057
        %v1069 = vadd.s32 %v1068, %v1059
        %v1070 = vshrl.u32 %v1069, 5
        %v1071 = vmul.u32 %v1070, 34
        %v1072 = vsub.s32 %v1048, %v1071
        %v1073 = vsub.s32 0, %v1072
        %v1074 = vsel %vm1046, %v1073, %v1072
        %vm1075 = vcmp.lt.s32.totalorder %v870, 0
        %v1076 = vsub.s32 0, %v870
        %v1077 = vsel %vm1075, %v1076, %v870
        %v1078 = vand.u32 %v1077, 65535
        %v1079 = vshrl.u32 %v1077, 16
        %v1081 = vmul.u32 %v1078, 61681
        %v1082 = vmul.u32 %v1078, 61680
        %v1083 = vmul.u32 %v1079, 61681
        %v1084 = vmul.u32 %v1079, 61680
        %v1085 = vshll.u32 %v1082, 16
        %v1086 = vshrl.u32 %v1082, 16
        %v1087 = vshll.u32 %v1083, 16
        %v1088 = vshrl.u32 %v1083, 16
        %vm1089 = vc.u32 %v1081, %v1085
        %v1090 = vsel %vm1089, 1, 0
        %v1091 = vadd.s32 %v1081, %v1085
        %v1092 = vadd.s32 %v1084, %v1090
        %vm1093 = vc.u32 %v1091, %v1087
        %v1094 = vsel %vm1093, 1, 0
        %v1095 = vadd.s32 %v1091, %v1087
        %v1096 = vadd.s32 %v1092, %v1094
        %v1097 = vadd.s32 %v1096, %v1086
        %v1098 = vadd.s32 %v1097, %v1088
        %v1099 = vshrl.u32 %v1098, 5
        %v1100 = vmul.u32 %v1099, 34
        %v1101 = vsub.s32 %v1077, %v1100
        %v1102 = vsub.s32 0, %v1101
        %v1103 = vsel %vm1075, %v1102, %v1101
        %vm1104 = vcmp.lt.s32.totalorder %v871, 0
        %v1105 = vsub.s32 0, %v871
        %v1106 = vsel %vm1104, %v1105, %v871
        %v1107 = vand.u32 %v1106, 65535
        %v1108 = vshrl.u32 %v1106, 16
        %v1110 = vmul.u32 %v1107, 61681
        %v1111 = vmul.u32 %v1107, 61680
        %v1112 = vmul.u32 %v1108, 61681
        %v1113 = vmul.u32 %v1108, 61680
        %v1114 = vshll.u32 %v1111, 16
        %v1115 = vshrl.u32 %v1111, 16
        %v1116 = vshll.u32 %v1112, 16
        %v1117 = vshrl.u32 %v1112, 16
        %vm1118 = vc.u32 %v1110, %v1114
        %v1119 = vsel %vm1118, 1, 0
        %v1120 = vadd.s32 %v1110, %v1114
        %v1121 = vadd.s32 %v1113, %v1119
        %vm1122 = vc.u32 %v1120, %v1116
        %v1123 = vsel %vm1122, 1, 0
        %v1124 = vadd.s32 %v1120, %v1116
        %v1125 = vadd.s32 %v1121, %v1123
        %v1126 = vadd.s32 %v1125, %v1115
        %v1127 = vadd.s32 %v1126, %v1117
        %v1128 = vshrl.u32 %v1127, 5
        %v1129 = vmul.u32 %v1128, 34
        %v1130 = vsub.s32 %v1106, %v1129
        %v1131 = vsub.s32 0, %v1130
        %v1132 = vsel %vm1104, %v1131, %v1130
        %vm1133 = vcmp.ne.s32.totalorder %v900, 0
        %vm1134 = vcmp.ne.s32.totalorder %v929, 0
        %vm1135 = vcmp.ne.s32.totalorder %v958, 0
        %vm1136 = vcmp.ne.s32.totalorder %v987, 0
        %vm1137 = vcmp.ne.s32.totalorder %v1016, 0
        %vm1138 = vcmp.ne.s32.totalorder %v1045, 0
        %vm1139 = vcmp.ne.s32.totalorder %v1074, 0
        %vm1140 = vcmp.ne.s32.totalorder %v1103, 0
        %vm1141 = vcmp.ne.s32.totalorder %v1132, 0
        %vm1142 = vcmp.lt.s32.totalorder %v900, 0
        %vm1143 = vcmp.lt.s32.totalorder %v929, 0
        %vm1144 = vcmp.lt.s32.totalorder %v958, 0
        %vm1145 = vcmp.lt.s32.totalorder %v987, 0
        %vm1146 = vcmp.lt.s32.totalorder %v1016, 0
        %vm1147 = vcmp.lt.s32.totalorder %v1045, 0
        %vm1148 = vcmp.lt.s32.totalorder %v1074, 0
        %vm1149 = vcmp.lt.s32.totalorder %v1103, 0
        %vm1150 = vcmp.lt.s32.totalorder %v1132, 0
        %vm1151 = vmand %vm1142, %vm1133
        %vm1152 = vmand %vm1143, %vm1134
        %vm1153 = vmand %vm1144, %vm1135
        %vm1154 = vmand %vm1145, %vm1136
        %vm1155 = vmand %vm1146, %vm1137
        %vm1156 = vmand %vm1147, %vm1138
        %vm1157 = vmand %vm1148, %vm1139
        %vm1158 = vmand %vm1149, %vm1140
        %vm1159 = vmand %vm1150, %vm1141
        %v1160 = vadd.s32 %v900, 34
        %v1161 = vadd.s32 %v929, 34
        %v1162 = vadd.s32 %v958, 34
        %v1163 = vadd.s32 %v987, 34
        %v1164 = vadd.s32 %v1016, 34
        %v1165 = vadd.s32 %v1045, 34
        %v1166 = vadd.s32 %v1074, 34
        %v1167 = vadd.s32 %v1103, 34
        %v1168 = vadd.s32 %v1132, 34
        %v1169 = vsel %vm1151, %v1160, %v900
        %v1170 = vsel %vm1152, %v1161, %v929
        %v1171 = vsel %vm1153, %v1162, %v958
        %v1172 = vsel %vm1154, %v1163, %v987
        %v1173 = vsel %vm1155, %v1164, %v1016
        %v1174 = vsel %vm1156, %v1165, %v1045
        %v1175 = vsel %vm1157, %v1166, %v1074
        %v1176 = vsel %vm1158, %v1167, %v1103
        %v1177 = vsel %vm1159, %v1168, %v1132
        %vm1178 = vcmp.lt.s32.totalorder %v1169, 32
        %vm1179 = vcmp.lt.s32.totalorder %v1170, 32
        %vm1180 = vcmp.lt.s32.totalorder %v1171, 32
        %vm1181 = vcmp.lt.s32.totalorder %v1172, 32
        %vm1182 = vcmp.lt.s32.totalorder %v1173, 32
        %vm1183 = vcmp.lt.s32.totalorder %v1174, 32
        %vm1184 = vcmp.lt.s32.totalorder %v1175, 32
        %vm1185 = vcmp.lt.s32.totalorder %v1176, 32
        %vm1186 = vcmp.lt.s32.totalorder %v1177, 32
        %v1187 = vsel %vm1178, 1, 0
        %v1188 = vsel %vm1179, 1, 0
        %v1189 = vsel %vm1180, 1, 0
        %v1190 = vsel %vm1181, 1, 0
        %v1191 = vsel %vm1182, 1, 0
        %v1192 = vsel %vm1183, 1, 0
        %v1193 = vsel %vm1184, 1, 0
        %v1194 = vsel %vm1185, 1, 0
        %v1195 = vsel %vm1186, 1, 0
        %v1196 = vcvt.s32.f32 %v1187
        %v1197 = vcvt.s32.f32 %v1188
        %v1198 = vcvt.s32.f32 %v1189
        %v1199 = vcvt.s32.f32 %v1190
        %v1200 = vcvt.s32.f32 %v1191
        %v1201 = vcvt.s32.f32 %v1192
        %v1202 = vcvt.s32.f32 %v1193
        %v1203 = vcvt.s32.f32 %v1194
        %v1204 = vcvt.s32.f32 %v1195
        %v1205 = vmul.f32 %v844, %v1196
        %v1206 = vmul.f32 %v845, %v1197
        %v1207 = vmul.f32 %v846, %v1198
        %v1208 = vmul.f32 %v847, %v1199
        %v1209 = vmul.f32 %v848, %v1200
        %v1210 = vmul.f32 %v849, %v1201
        %v1211 = vmul.f32 %v850, %v1202
        %v1212 = vmul.f32 %v851, %v1203
        %v1213 = vmul.f32 %v852, %v1204
        %v1214 = vmul.f32 %v853, %v1196
        %v1215 = vmul.f32 %v854, %v1197
        %v1216 = vmul.f32 %v855, %v1198
        %v1217 = vmul.f32 %v856, %v1199
        %v1218 = vmul.f32 %v857, %v1200
        %v1219 = vmul.f32 %v858, %v1201
        %v1220 = vmul.f32 %v859, %v1202
        %v1221 = vmul.f32 %v860, %v1203
        %v1222 = vmul.f32 %v861, %v1204
        %v1223 = vadd.f32 %v1205, %v1206
        %v1224 = vadd.f32 %v1223, %v1207
        %v1225 = vadd.f32 %v1224, %v1208
        %v1226 = vadd.f32 %v1225, %v1209
        %v1227 = vadd.f32 %v1226, %v1210
        %v1228 = vadd.f32 %v1227, %v1211
        %v1229 = vadd.f32 %v1228, %v1212
        %v1230 = vsel %vm838, %v1213, 0.0
        %v1231 = vadd.f32 %v1229, %v1230
        %1232 = vadd.xlane.f32.xlu0 %v1231
        %v1233 = vpop.xlane.xlu0 %1232
        %v1234 = vadd.f32 %v1214, %v1215
        %v1235 = vadd.f32 %v1234, %v1216
        %v1236 = vadd.f32 %v1235, %v1217
        %v1237 = vadd.f32 %v1236, %v1218
        %v1238 = vadd.f32 %v1237, %v1219
        %v1239 = vadd.f32 %v1238, %v1220
        %v1240 = vadd.f32 %v1239, %v1221
        %v1241 = vsel %vm838, %v1222, 0.0
        %v1242 = vadd.f32 %v1240, %v1241
        %1243 = vadd.xlane.f32.xlu0 %v1242
        %v1244 = vpop.xlane.xlu0 %1243
        %v1245 = vadd.f32 %v1233, %v1244
        %v1246 = vmul.f32 %v1245, 0.00048828125
        %v1247 = vsub.f32 %v844, %v1246
        %v1248 = vsub.f32 %v845, %v1246
        %v1249 = vsub.f32 %v846, %v1246
        %v1250 = vsub.f32 %v847, %v1246
        %v1251 = vsub.f32 %v848, %v1246
        %v1252 = vsub.f32 %v849, %v1246
        %v1253 = vsub.f32 %v850, %v1246
        %v1254 = vsub.f32 %v851, %v1246
        %v1255 = vsub.f32 %v852, %v1246
        %v1256 = vsub.f32 %v853, %v1246
        %v1257 = vsub.f32 %v854, %v1246
        %v1258 = vsub.f32 %v855, %v1246
        %v1259 = vsub.f32 %v856, %v1246
        %v1260 = vsub.f32 %v857, %v1246
        %v1261 = vsub.f32 %v858, %v1246
        %v1262 = vsub.f32 %v859, %v1246
        %v1263 = vsub.f32 %v860, %v1246
        %v1264 = vsub.f32 %v861, %v1246
        %v1265 = vmul.f32 %v1247, %v1196
        %v1266 = vmul.f32 %v1248, %v1197
        %v1267 = vmul.f32 %v1249, %v1198
        %v1268 = vmul.f32 %v1250, %v1199
        %v1269 = vmul.f32 %v1251, %v1200
        %v1270 = vmul.f32 %v1252, %v1201
        %v1271 = vmul.f32 %v1253, %v1202
        %v1272 = vmul.f32 %v1254, %v1203
        %v1273 = vmul.f32 %v1255, %v1204
        %v1274 = vmul.f32 %v1256, %v1196
        %v1275 = vmul.f32 %v1257, %v1197
        %v1276 = vmul.f32 %v1258, %v1198
        %v1277 = vmul.f32 %v1259, %v1199
        %v1278 = vmul.f32 %v1260, %v1200
        %v1279 = vmul.f32 %v1261, %v1201
        %v1280 = vmul.f32 %v1262, %v1202
        %v1281 = vmul.f32 %v1263, %v1203
        %v1282 = vmul.f32 %v1264, %v1204
        %v1283 = vmul.f32 %v1265, %v1265
        %v1284 = vmul.f32 %v1266, %v1266
        %v1285 = vmul.f32 %v1267, %v1267
        %v1286 = vmul.f32 %v1268, %v1268
        %v1287 = vmul.f32 %v1269, %v1269
        %v1288 = vmul.f32 %v1270, %v1270
        %v1289 = vmul.f32 %v1271, %v1271
        %v1290 = vmul.f32 %v1272, %v1272
        %v1291 = vmul.f32 %v1273, %v1273
        %v1292 = vmul.f32 %v1274, %v1274
        %v1293 = vmul.f32 %v1275, %v1275
        %v1294 = vmul.f32 %v1276, %v1276
        %v1295 = vmul.f32 %v1277, %v1277
        %v1296 = vmul.f32 %v1278, %v1278
        %v1297 = vmul.f32 %v1279, %v1279
        %v1298 = vmul.f32 %v1280, %v1280
        %v1299 = vmul.f32 %v1281, %v1281
        %v1300 = vmul.f32 %v1282, %v1282
        %v1301 = vadd.f32 %v1283, %v1284
        %v1302 = vadd.f32 %v1301, %v1285
        %v1303 = vadd.f32 %v1302, %v1286
        %v1304 = vadd.f32 %v1303, %v1287
        %v1305 = vadd.f32 %v1304, %v1288
        %v1306 = vadd.f32 %v1305, %v1289
        %v1307 = vadd.f32 %v1306, %v1290
        %v1308 = vsel %vm838, %v1291, 0.0
        %v1309 = vadd.f32 %v1307, %v1308
        %1310 = vadd.xlane.f32.xlu0 %v1309
        %v1311 = vpop.xlane.xlu0 %1310
        %v1312 = vadd.f32 %v1292, %v1293
        %v1313 = vadd.f32 %v1312, %v1294
        %v1314 = vadd.f32 %v1313, %v1295
        %v1315 = vadd.f32 %v1314, %v1296
        %v1316 = vadd.f32 %v1315, %v1297
        %v1317 = vadd.f32 %v1316, %v1298
        %v1318 = vadd.f32 %v1317, %v1299
        %v1319 = vsel %vm838, %v1300, 0.0
        %v1320 = vadd.f32 %v1318, %v1319
        %1321 = vadd.xlane.f32.xlu0 %v1320
        %v1322 = vpop.xlane.xlu0 %1321
        %v1323 = vadd.f32 %v1311, %v1322
        %v1324 = vmul.f32 %v1323, 0.00048828125
        %v1325 = vadd.f32 %v1324, 1e-05
        %v1326 = vrsqrt.pop %v1325
        %v1327 = vmul.f32 %v1326, %v1325
        %v1328 = vmul.f32 %v1327, %v1326
        %v1329 = vmul.f32 0.5, %v1328
        %v1330 = vsub.f32 1.5, %v1329
        %v1331 = vmul.f32 %v1326, %v1330
        %vm1332 = vweird.f32 %v1325
        %vm1333 = vweird.f32 %v1326
        %vm1334 = vmor %vm1332, %vm1333
        %v1335 = vsel %vm1334, %v1326, %v1331
        %v1336 = vld [vmem:[%s3] sm:$0xff]
        %v1337 = vmul.f32 %v1335, %v1336
        %1339 = vset.pattern.permute.xlu0 0
        %1340 = vperm.xlu0 %1339, %v1337
        %v1341 = vpop.permute.xlu0 %1340
        %v1343 = vmul.f32 %v1247, %v1341
        %v1344 = vmul.f32 %v1248, %v1341
        %v1345 = vmul.f32 %v1249, %v1341
        %v1346 = vmul.f32 %v1250, %v1341
        %v1347 = vmul.f32 %v1251, %v1341
        %v1348 = vmul.f32 %v1252, %v1341
        %v1349 = vmul.f32 %v1253, %v1341
        %v1350 = vmul.f32 %v1254, %v1341
        %v1351 = vmul.f32 %v1255, %v1341
        %v1352 = vmul.f32 %v1256, %v1341
        %v1353 = vmul.f32 %v1257, %v1341
        %v1354 = vmul.f32 %v1258, %v1341
        %v1355 = vmul.f32 %v1259, %v1341
        %v1356 = vmul.f32 %v1260, %v1341
        %v1357 = vmul.f32 %v1261, %v1341
        %v1358 = vmul.f32 %v1262, %v1341
        %v1359 = vmul.f32 %v1263, %v1341
        %v1360 = vmul.f32 %v1264, %v1341
        %v1361 = vld [vmem:[%s4] sm:$0xff]
        %1363 = vset.pattern.permute.xlu0 0
        %1364 = vperm.xlu0 %1363, %v1361
        %v1365 = vpop.permute.xlu0 %1364
        %v1367 = vadd.f32 %v1343, %v1365
        %v1368 = vadd.f32 %v1344, %v1365
        %v1369 = vadd.f32 %v1345, %v1365
        %v1370 = vadd.f32 %v1346, %v1365
        %v1371 = vadd.f32 %v1347, %v1365
        %v1372 = vadd.f32 %v1348, %v1365
        %v1373 = vadd.f32 %v1349, %v1365
        %v1374 = vadd.f32 %v1350, %v1365
        %v1375 = vadd.f32 %v1351, %v1365
        %v1376 = vadd.f32 %v1352, %v1365
        %v1377 = vadd.f32 %v1353, %v1365
        %v1378 = vadd.f32 %v1354, %v1365
        %v1379 = vadd.f32 %v1355, %v1365
        %v1380 = vadd.f32 %v1356, %v1365
        %v1381 = vadd.f32 %v1357, %v1365
        %v1382 = vadd.f32 %v1358, %v1365
        %v1383 = vadd.f32 %v1359, %v1365
        %v1384 = vadd.f32 %v1360, %v1365
        %1385 = vst [vmem:[%s5] sm:$0xff] %v1367
        %1386 = vst [vmem:[%s5 + $0x8] sm:$0xff] %v1368
        %1387 = vst [vmem:[%s5 + $0x10] sm:$0xff] %v1369
        %1388 = vst [vmem:[%s5 + $0x18] sm:$0xff] %v1370
        %1389 = vst [vmem:[%s5 + $0x20] sm:$0xff] %v1371
        %1390 = vst [vmem:[%s5 + $0x28] sm:$0xff] %v1372
        %1391 = vst [vmem:[%s5 + $0x30] sm:$0xff] %v1373
        %1392 = vst [vmem:[%s5 + $0x38] sm:$0xff] %v1374
        %1393 = vst.msk [vmem:[%s5 + $0x40] sm:$0xff] %vm838, %v1375
        %1394 = vst [vmem:[%s5 + $0x48] sm:$0xff] %v1376
        %1395 = vst [vmem:[%s5 + $0x50] sm:$0xff] %v1377
        %1396 = vst [vmem:[%s5 + $0x58] sm:$0xff] %v1378
        %1397 = vst [vmem:[%s5 + $0x60] sm:$0xff] %v1379
        %1398 = vst [vmem:[%s5 + $0x68] sm:$0xff] %v1380
        %1399 = vst [vmem:[%s5 + $0x70] sm:$0xff] %v1381
        %1400 = vst [vmem:[%s5 + $0x78] sm:$0xff] %v1382
        %1401 = vst [vmem:[%s5 + $0x80] sm:$0xff] %v1383
        %1402 = vst.msk [vmem:[%s5 + $0x88] sm:$0xff] %vm838, %v1384
      $region44: #{dec_subpix_branch_forward.6} parent=39 // pred_fallthru
        _
      // Predicated region
      $region45: #{dec_subpix_branch_forward.6} parent=39 // pred_check
        %p1403 = pneg %p139
      $region46: #{dec_subpix_branch_forward.6} parent=39 // pred_check_branch
        %1405 = sbr.rel (%p1403) target = $region48
      $region47: #{dec_subpix_branch_forward.6} parent=39 // pred_region
        _
      $region48: #{dec_subpix_branch_forward.6} parent=39 // pred_fallthru
        _
      // Predicated region
      $region49: #{dec_subpix_branch_forward.6} parent=39 // pred_check
        %p1406 = pneg %p139
      $region50: #{dec_subpix_branch_forward.6} parent=39 // pred_check_branch
        %1408 = sbr.rel (%p1406) target = $region52
      $region51: #{dec_subpix_branch_forward.6} parent=39 // pred_region
        _
      $region52: #{dec_subpix_branch_forward.6} parent=39 // pred_fallthru
        _
    $region40: #{dec_subpix_branch_forward.6} parent=5 // pred_fallthru
      _
    %p1409 = scmp.le.s32.totalorder 2, %s11
    // Predicated region
    $region53: #{dec_subpix_branch_forward.6} parent=5 // pred_check
      %p1410 = pneg %p1409
    $region54: #{dec_subpix_branch_forward.6} parent=5 // pred_check_branch
      %1412 = sbr.rel (%p1410) target = $region56
    $region55: #{dec_subpix_branch_forward.6} parent=5 // pred_region
      %s1413 = ssub.s32 %s11, 2
    $region56: #{dec_subpix_branch_forward.6} parent=5 // pred_fallthru
      _
  $region6: #{dec_subpix_branch_forward.6} parent=0 // loop_footer
    %s15 = sadd.s32 1, %s11
  $region7: #{dec_subpix_branch_forward.6} parent=0 // loop_footer_branch
    %10 = sbr.rel target = $region3
  $region8: #{dec_subpix_branch_forward.6} parent=0 // loop_exit
    _

// kernel: dec_subpix_branch_forward.7
$region0: #{dec_subpix_branch_forward.7}
  #allocation0 [shape = 'u32[]', space=smem, size = 0x4, offset = 0x4, fixed_abs, tag = 'smem constant byte address 0x4 - core index']
  #allocation1 [shape = 'u32[72,128]{1,0:T(1,128)}', space=vmem, size = 0x9000, scoped, tag = 'internal scratch']
  %s0 = inlined_call_operand.vmem [shape: bf16[2,16,1090], index: 0, kind: input, shape index: {}]
  %s1 = inlined_call_operand.vmem [shape: bf16[32,64], index: 1, kind: input, shape index: {}]
  %s2 = inlined_call_operand.vmem [shape: f32[32,1], index: 2, kind: input, shape index: {}]
  %s3 = inlined_call_operand.vmem [shape: bf16[2,32,1056], index: 3, kind: output, shape index: {}]
  %s4 = sld [smem:[#allocation0]]
  $region45: #{dec_subpix_branch_forward.7} parent=0
    _
  %s6 = ssub.s32 1, %s4
  %s7 = scalar_select 0, %s6, %s4
  loop: start=0, step=1, limit=4
  $region2: #{dec_subpix_branch_forward.7} parent=0 // loop_pre_header
    _
  $region3: #{dec_subpix_branch_forward.7} parent=0 // loop_header
    %s9 = sphi 0, %s13
    %p10 = scmp.ge.s32.totalorder %s9, 4
    %s19 = sphi 0, %s21
    %s22 = sphi 0, %s19
    %s23 = sphi 0, %s22
    %s39 = sphi 0, %s23
    %s43 = sphi 0, %s43
    %s45 = sphi 0, %s43
    %s46 = sphi 0, %s45
    %s60 = sphi 0, %s46
    %s64 = sphi 0, %s64
    %s66 = sphi 0, %s64
    %s67 = sphi 0, %s66
    %s81 = sphi 0, %s67
    %s87 = sphi 0, %s89
    %s90 = sphi 0, %s87
    %s91 = sphi 0, %s90
    %s107 = sphi 0, %s91
  $region4: #{dec_subpix_branch_forward.7} parent=0 // loop_header_branch
    %12 = sbr.rel (%p10) target = $region8
  $region5: #{dec_subpix_branch_forward.7} parent=0 // loop_body
    %s14 = ssub.s32 %s9, 1
    %s15 = ssub.s32 %s9, 2
    %s16 = sadd.s32 %s9, 1
    %s17 = ssub.s32 %s9, %s16
    %p18 = scmp.eq.s32.totalorder %s17, 0
    %s20 = sadd.s32 %s19, 1
    %s21 = scalar_select %p18, %s19, %s20
    %p24 = pneg %p18
    %p25 = scmp.eq.s32.totalorder %s9, 1
    %p26 = por %p24, %p25
    %p27 = scmp.ne.s32.totalorder %s19, %s22
    %p28 = scmp.eq.s32.totalorder %s9, 0
    %p29 = por %p27, %p28
    %p30 = scmp.ne.s32.totalorder %s19, %s22
    %p31 = scmp.eq.s32.totalorder %s14, 1
    %p32 = por %p30, %p31
    %p33 = scmp.ne.s32.totalorder %s22, %s23
    %p34 = scmp.eq.s32.totalorder %s14, 0
    %p35 = por %p33, %p34
    %p36 = scmp.ne.s32.totalorder %s22, %s23
    %p37 = scmp.eq.s32.totalorder %s15, 1
    %p38 = por %p36, %p37
    %p40 = scmp.ne.s32.totalorder %s23, %s39
    %p41 = scmp.eq.s32.totalorder %s15, 0
    %p42 = por %p40, %p41
    %s44 = sadd.s32 %s43, 1
    %p47 = scmp.eq.s32.totalorder %s9, 1
    %p48 = scmp.ne.s32.totalorder %s43, %s45
    %p49 = scmp.eq.s32.totalorder %s9, 0
    %p50 = por %p48, %p49
    %p51 = scmp.ne.s32.totalorder %s43, %s45
    %p52 = scmp.eq.s32.totalorder %s14, 1
    %p53 = por %p51, %p52
    %p54 = scmp.ne.s32.totalorder %s45, %s46
    %p55 = scmp.eq.s32.totalorder %s14, 0
    %p56 = por %p54, %p55
    %p57 = scmp.ne.s32.totalorder %s45, %s46
    %p58 = scmp.eq.s32.totalorder %s15, 1
    %p59 = por %p57, %p58
    %p61 = scmp.ne.s32.totalorder %s46, %s60
    %p62 = scmp.eq.s32.totalorder %s15, 0
    %p63 = por %p61, %p62
    %s65 = sadd.s32 %s64, 1
    %p68 = scmp.eq.s32.totalorder %s9, 1
    %p69 = scmp.ne.s32.totalorder %s64, %s66
    %p70 = scmp.eq.s32.totalorder %s9, 0
    %p71 = por %p69, %p70
    %p72 = scmp.ne.s32.totalorder %s64, %s66
    %p73 = scmp.eq.s32.totalorder %s14, 1
    %p74 = por %p72, %p73
    %p75 = scmp.ne.s32.totalorder %s66, %s67
    %p76 = scmp.eq.s32.totalorder %s14, 0
    %p77 = por %p75, %p76
    %p78 = scmp.ne.s32.totalorder %s66, %s67
    %p79 = scmp.eq.s32.totalorder %s15, 1
    %p80 = por %p78, %p79
    %p82 = scmp.ne.s32.totalorder %s67, %s81
    %p83 = scmp.eq.s32.totalorder %s15, 0
    %p84 = por %p82, %p83
    %s85 = ssub.s32 %s9, %s16
    %p86 = scmp.eq.s32.totalorder %s85, 0
    %s88 = sadd.s32 %s87, 1
    %s89 = scalar_select %p86, %s87, %s88
    %p92 = pneg %p86
    %p93 = scmp.eq.s32.totalorder %s9, 1
    %p94 = por %p92, %p93
    %p95 = scmp.ne.s32.totalorder %s87, %s90
    %p96 = scmp.eq.s32.totalorder %s9, 0
    %p97 = por %p95, %p96
    %p98 = scmp.ne.s32.totalorder %s87, %s90
    %p99 = scmp.eq.s32.totalorder %s14, 1
    %p100 = por %p98, %p99
    %p101 = scmp.ne.s32.totalorder %s90, %s91
    %p102 = scmp.eq.s32.totalorder %s14, 0
    %p103 = por %p101, %p102
    %p104 = scmp.ne.s32.totalorder %s90, %s91
    %p105 = scmp.eq.s32.totalorder %s15, 1
    %p106 = por %p104, %p105
    %p108 = scmp.ne.s32.totalorder %s91, %s107
    %p109 = scmp.eq.s32.totalorder %s15, 0
    %p110 = por %p108, %p109
    %p111 = scmp.le.s32.totalorder 1, %s9
    %p112 = scmp.lt.s32.totalorder %s9, 3
    %p113 = pnand %p111, %p112
    %p114 = pneg %p113
    // Predicated region
    $region9: #{dec_subpix_branch_forward.7} parent=5 // pred_check
      _
    $region10: #{dec_subpix_branch_forward.7} parent=5 // pred_check_branch
      %116 = sbr.rel (%p113) target = $region12
    $region11: #{dec_subpix_branch_forward.7} parent=5 // pred_region
      %s117 = ssub.s32 %s9, 1
      // Predicated region
      $region13: #{dec_subpix_branch_forward.7} parent=11 // pred_check
        %p118 = pneg %p56
      $region14: #{dec_subpix_branch_forward.7} parent=11 // pred_check_branch
        %120 = sbr.rel (%p118) target = $region16
      $region15: #{dec_subpix_branch_forward.7} parent=11 // pred_region
        _
      $region16: #{dec_subpix_branch_forward.7} parent=11 // pred_fallthru
        _
      // Predicated region
      $region17: #{dec_subpix_branch_forward.7} parent=11 // pred_check
        %p121 = pneg %p77
      $region18: #{dec_subpix_branch_forward.7} parent=11 // pred_check_branch
        %123 = sbr.rel (%p121) target = $region20
      $region19: #{dec_subpix_branch_forward.7} parent=11 // pred_region
        _
      $region20: #{dec_subpix_branch_forward.7} parent=11 // pred_fallthru
        _
    $region12: #{dec_subpix_branch_forward.7} parent=5 // pred_fallthru
      _
    %p124 = scmp.lt.s32.totalorder %s9, 2
    // Predicated region
    $region21: #{dec_subpix_branch_forward.7} parent=5 // pred_check
      %p125 = pneg %p124
    $region22: #{dec_subpix_branch_forward.7} parent=5 // pred_check_branch
      %127 = sbr.rel (%p125) target = $region24
    $region23: #{dec_subpix_branch_forward.7} parent=5 // pred_region
      // Predicated region
      $region25: #{dec_subpix_branch_forward.7} parent=23 // pred_check
        %p128 = pneg %p29
      $region26: #{dec_subpix_branch_forward.7} parent=23 // pred_check_branch
        %130 = sbr.rel (%p128) target = $region28
      $region27: #{dec_subpix_branch_forward.7} parent=23 // pred_region
        %p131 = scmp.lt.s32.totalorder %s9, 1
        %s132 = scalar_select %p131, %s9, 1
        %s133 = smul.addr %s132, 18
        %s134 = smul.addr %s133, 4
        %s135 = scalar_lea.vmem %s0, %s134
      $region28: #{dec_subpix_branch_forward.7} parent=23 // pred_fallthru
        _
    $region24: #{dec_subpix_branch_forward.7} parent=5 // pred_fallthru
      _
    %p136 = scmp.le.s32.totalorder 1, %s9
    %p137 = scmp.lt.s32.totalorder %s9, 3
    %p138 = pnand %p136, %p137
    %p139 = pneg %p138
    // Predicated region
    $region29: #{dec_subpix_branch_forward.7} parent=5 // pred_check
      _
    $region30: #{dec_subpix_branch_forward.7} parent=5 // pred_check_branch
      %141 = sbr.rel (%p138) target = $region32
    $region31: #{dec_subpix_branch_forward.7} parent=5 // pred_region
      %s142 = ssub.s32 %s9, 1
      %p143 = scmp.lt.s32.totalorder %s14, 1
      %s144 = scalar_select %p143, %s14, 1
      %s145 = smul.addr %s144, 18
      %s146 = smul.addr %s145, 4
      %s147 = scalar_lea.vmem %s0, %s146
      %p148 = pneg %p35
      %p149 = pneg %p32
      %p150 = pneg %p56
      %p151 = pneg %p53
      %p152 = pneg %p77
      %p153 = pneg %p74
      %p154 = pneg %p103
      %p155 = pneg %p100
      %p156 = scmp.lt.s32.totalorder %s14, 1
      %s157 = scalar_select %p156, %s14, 1
      %s158 = smul.addr %s157, 36
      %s159 = smul.addr %s158, 4
      %s160 = scalar_lea.vmem %s3, %s159
      %p161 = scmp.lt.s32.totalorder %s14, 1
      %s162 = scalar_select %p161, %s14, 1
      %s163 = smul.addr %s162, 18
      %s164 = smul.addr %s163, 4
      %s165 = scalar_lea.vmem %s0, %s164
      %p166 = scmp.lt.s32.totalorder %s14, 1
      %s167 = scalar_select %p166, %s14, 1
      %s168 = smul.addr %s167, 36
      %s169 = smul.addr %s168, 4
      %s170 = scalar_lea.vmem %s3, %s169
      %v172 = vld [vmem:[%s165] sm:$0xff]
      %v173 = vld [vmem:[%s165 + $0x8] sm:$0xff]
      %v174 = vld [vmem:[%s165 + $0x10] sm:$0xff]
      %v175 = vld [vmem:[%s165 + $0x18] sm:$0xff]
      %v176 = vld [vmem:[%s165 + $0x20] sm:$0xf]
      %v177 = vld [vmem:[%s165 + $0x24] sm:$0xff]
      %v178 = vld [vmem:[%s165 + $0x2c] sm:$0xff]
      %v179 = vld [vmem:[%s165 + $0x34] sm:$0xff]
      %v180 = vld [vmem:[%s165 + $0x3c] sm:$0xff]
      %v181 = vld [vmem:[%s165 + $0x44] sm:$0xf]
      %v192 = vunpack.c.l.b16 %v172
      %v193 = vunpack.c.h.b16 %v172
      %v194 = vunpack.c.l.b16 %v173
      %v195 = vunpack.c.h.b16 %v173
      %v196 = vunpack.c.l.b16 %v174
      %v197 = vunpack.c.h.b16 %v174
      %v198 = vunpack.c.l.b16 %v175
      %v199 = vunpack.c.h.b16 %v175
      %v200 = vunpack.c.l.b16 %v176
      %v201 = vunpack.c.l.b16 %v177
      %v202 = vunpack.c.h.b16 %v177
      %v203 = vunpack.c.l.b16 %v178
      %v204 = vunpack.c.h.b16 %v178
      %v205 = vunpack.c.l.b16 %v179
      %v206 = vunpack.c.h.b16 %v179
      %v207 = vunpack.c.l.b16 %v180
      %v208 = vunpack.c.h.b16 %v180
      %v209 = vunpack.c.l.b16 %v181
      %v210 = vpack.c.b16 %v201, %v192
      %v211 = vpack.c.b16 %v202, %v193
      %v212 = vpack.c.b16 %v203, %v194
      %v213 = vpack.c.b16 %v204, %v195
      %v214 = vpack.c.b16 %v205, %v196
      %v215 = vpack.c.b16 %v206, %v197
      %v216 = vpack.c.b16 %v207, %v198
      %v217 = vpack.c.b16 %v208, %v199
      %v218 = vpack.c.b16 %v209, %v200
      %228 = vrot.lane.b32.xlu0 %v210, 127
      %v229 = vpop.permute.xlu0 %228
      %230 = vrot.lane.b32.xlu0 %v211, 127
      %v231 = vpop.permute.xlu0 %230
      %232 = vrot.lane.b32.xlu0 %v212, 127
      %v233 = vpop.permute.xlu0 %232
      %234 = vrot.lane.b32.xlu0 %v213, 127
      %v235 = vpop.permute.xlu0 %234
      %236 = vrot.lane.b32.xlu0 %v214, 127
      %v237 = vpop.permute.xlu0 %236
      %238 = vrot.lane.b32.xlu0 %v215, 127
      %v239 = vpop.permute.xlu0 %238
      %240 = vrot.lane.b32.xlu0 %v216, 127
      %v241 = vpop.permute.xlu0 %240
      %242 = vrot.lane.b32.xlu0 %v217, 127
      %v243 = vpop.permute.xlu0 %242
      %244 = vrot.lane.b32.xlu0 %v218, 127
      %v245 = vpop.permute.xlu0 %244
      %vm246 = vcmask 1039360
      %v247 = vsel %vm246, %v229, %v231
      %v248 = vsel %vm246, %v231, %v233
      %v249 = vsel %vm246, %v233, %v235
      %v250 = vsel %vm246, %v235, %v237
      %v251 = vsel %vm246, %v237, %v239
      %v252 = vsel %vm246, %v239, %v241
      %v253 = vsel %vm246, %v241, %v243
      %v254 = vsel %vm246, %v243, %v245
      %264 = vrot.lane.b32.xlu0 %v210, 95
      %v265 = vpop.permute.xlu0 %264
      %266 = vrot.lane.b32.xlu0 %v211, 95
      %v267 = vpop.permute.xlu0 %266
      %268 = vrot.lane.b32.xlu0 %v212, 95
      %v269 = vpop.permute.xlu0 %268
      %270 = vrot.lane.b32.xlu0 %v213, 95
      %v271 = vpop.permute.xlu0 %270
      %272 = vrot.lane.b32.xlu0 %v214, 95
      %v273 = vpop.permute.xlu0 %272
      %274 = vrot.lane.b32.xlu0 %v215, 95
      %v275 = vpop.permute.xlu0 %274
      %276 = vrot.lane.b32.xlu0 %v216, 95
      %v277 = vpop.permute.xlu0 %276
      %278 = vrot.lane.b32.xlu0 %v217, 95
      %v279 = vpop.permute.xlu0 %278
      %280 = vrot.lane.b32.xlu0 %v218, 95
      %v281 = vpop.permute.xlu0 %280
      %vm282 = vcmask 777216
      %v283 = vsel %vm282, %v265, %v267
      %v284 = vsel %vm282, %v267, %v269
      %v285 = vsel %vm282, %v269, %v271
      %v286 = vsel %vm282, %v271, %v273
      %v287 = vsel %vm282, %v273, %v275
      %v288 = vsel %vm282, %v275, %v277
      %v289 = vsel %vm282, %v277, %v279
      %v290 = vsel %vm282, %v279, %v281
      %300 = vrot.lane.b32.xlu0 %v210, 94
      %v301 = vpop.permute.xlu0 %300
      %302 = vrot.lane.b32.xlu0 %v211, 94
      %v303 = vpop.permute.xlu0 %302
      %304 = vrot.lane.b32.xlu0 %v212, 94
      %v305 = vpop.permute.xlu0 %304
      %306 = vrot.lane.b32.xlu0 %v213, 94
      %v307 = vpop.permute.xlu0 %306
      %308 = vrot.lane.b32.xlu0 %v214, 94
      %v309 = vpop.permute.xlu0 %308
      %310 = vrot.lane.b32.xlu0 %v215, 94
      %v311 = vpop.permute.xlu0 %310
      %312 = vrot.lane.b32.xlu0 %v216, 94
      %v313 = vpop.permute.xlu0 %312
      %314 = vrot.lane.b32.xlu0 %v217, 94
      %v315 = vpop.permute.xlu0 %314
      %316 = vrot.lane.b32.xlu0 %v218, 94
      %v317 = vpop.permute.xlu0 %316
      %vm318 = vcmask 769024
      %v319 = vsel %vm318, %v301, %v303
      %v320 = vsel %vm318, %v303, %v305
      %v321 = vsel %vm318, %v305, %v307
      %v322 = vsel %vm318, %v307, %v309
      %v323 = vsel %vm318, %v309, %v311
      %v324 = vsel %vm318, %v311, %v313
      %v325 = vsel %vm318, %v313, %v315
      %v326 = vsel %vm318, %v315, %v317
      %v336 = vld [vmem:[%s1] sm:$0xf]
      %v337 = vld [vmem:[%s1 + $0x4] sm:$0xf]
      %v338 = vld [vmem:[%s1 + $0x8] sm:$0xf]
      %v339 = vld [vmem:[%s1 + $0xc] sm:$0xf]
      %v340 = vld [vmem:[%s2] sm:$0xff]
      %v341 = vld [vmem:[%s2 + $0x8] sm:$0xff]
      %v342 = vld [vmem:[%s2 + $0x10] sm:$0xff]
      %v343 = vld [vmem:[%s2 + $0x18] sm:$0xff]
      %345 = vset.pattern.permute.xlu0 0
      %346 = vperm.xlu0 %345, %v340
      %v347 = vpop.permute.xlu0 %346
      %350 = vset.pattern.permute.xlu0 0
      %351 = vperm.xlu0 %350, %v341
      %v352 = vpop.permute.xlu0 %351
      %355 = vset.pattern.permute.xlu0 0
      %356 = vperm.xlu0 %355, %v342
      %v357 = vpop.permute.xlu0 %356
      %360 = vset.pattern.permute.xlu0 0
      %361 = vperm.xlu0 %360, %v343
      %v362 = vpop.permute.xlu0 %361
      %v368 = vunpack.c.l.b16 %v336
      %v369 = vunpack.c.l.b16 %v337
      %v370 = vunpack.c.l.b16 %v338
      %v371 = vunpack.c.l.b16 %v339
      %v372 = vpack.c.b16 %v369, %v368
      %v373 = vpack.c.b16 %v371, %v370
      %vm374 = vcmask 523264
      %v376 = vsel %vm374, %v372, 0
      %v379 = vsel %vm374, %v373, 0
      %381 = vmatpush.bf16.msra.mxu0 0
      %382 = vmatpush.bf16.msra.mxu0 0
      %383 = vmatpush.bf16.msra.mxu0 0
      %384 = vmatpush.bf16.msra.mxu0 0
      %385 = vmatpush.bf16.msra.mxu0 %v319
      %386 = vmatpush.bf16.msra.mxu0 %v283
      %387 = vmatpush.bf16.msra.mxu0 %v247
      %388 = vmatpush.bf16.msra.mxu0 %v210
      %389 = vmatmul.bf16.gmra.mxu0 %v376
      %v390 = vpop.f32.mrf.mxu0
      %v391 = vadd.f32 %v347, %v390
      %v392 = vpop.f32.mrf.mxu0
      %v393 = vadd.f32 %v352, %v392
      %394 = vmatmul.bf16.gmra.mxu0 %v379
      %v395 = vpop.f32.mrf.mxu0
      %v396 = vadd.f32 %v357, %v395
      %v397 = vpop.f32.mrf.mxu0
      %v398 = vadd.f32 %v362, %v397
      %399 = vdwg.mxu0
      %400 = vmatpush.bf16.msra.mxu0 0
      %401 = vmatpush.bf16.msra.mxu0 0
      %402 = vmatpush.bf16.msra.mxu0 0
      %403 = vmatpush.bf16.msra.mxu0 0
      %404 = vmatpush.bf16.msra.mxu0 %v320
      %405 = vmatpush.bf16.msra.mxu0 %v284
      %406 = vmatpush.bf16.msra.mxu0 %v248
      %407 = vmatpush.bf16.msra.mxu0 %v211
      %408 = vmatmul.bf16.gmra.mxu0 %v376
      %v409 = vpop.f32.mrf.mxu0
      %v410 = vadd.f32 %v347, %v409
      %v411 = vpop.f32.mrf.mxu0
      %v412 = vadd.f32 %v352, %v411
      %413 = vmatmul.bf16.gmra.mxu0 %v379
      %v414 = vpop.f32.mrf.mxu0
      %v415 = vadd.f32 %v357, %v414
      %v416 = vpop.f32.mrf.mxu0
      %v417 = vadd.f32 %v362, %v416
      %418 = vdwg.mxu0
      %419 = vmatpush.bf16.msra.mxu0 0
      %420 = vmatpush.bf16.msra.mxu0 0
      %421 = vmatpush.bf16.msra.mxu0 0
      %422 = vmatpush.bf16.msra.mxu0 0
      %423 = vmatpush.bf16.msra.mxu0 %v321
      %424 = vmatpush.bf16.msra.mxu0 %v285
      %425 = vmatpush.bf16.msra.mxu0 %v249
      %426 = vmatpush.bf16.msra.mxu0 %v212
      %427 = vmatmul.bf16.gmra.mxu0 %v376
      %v428 = vpop.f32.mrf.mxu0
      %v429 = vadd.f32 %v347, %v428
      %v430 = vpop.f32.mrf.mxu0
      %v431 = vadd.f32 %v352, %v430
      %432 = vmatmul.bf16.gmra.mxu0 %v379
      %v433 = vpop.f32.mrf.mxu0
      %v434 = vadd.f32 %v357, %v433
      %v435 = vpop.f32.mrf.mxu0
      %v436 = vadd.f32 %v362, %v435
      %437 = vdwg.mxu0
      %438 = vmatpush.bf16.msra.mxu0 0
      %439 = vmatpush.bf16.msra.mxu0 0
      %440 = vmatpush.bf16.msra.mxu0 0
      %441 = vmatpush.bf16.msra.mxu0 0
      %442 = vmatpush.bf16.msra.mxu0 %v322
      %443 = vmatpush.bf16.msra.mxu0 %v286
      %444 = vmatpush.bf16.msra.mxu0 %v250
      %445 = vmatpush.bf16.msra.mxu0 %v213
      %446 = vmatmul.bf16.gmra.mxu0 %v376
      %v447 = vpop.f32.mrf.mxu0
      %v448 = vadd.f32 %v347, %v447
      %v449 = vpop.f32.mrf.mxu0
      %v450 = vadd.f32 %v352, %v449
      %451 = vmatmul.bf16.gmra.mxu0 %v379
      %v452 = vpop.f32.mrf.mxu0
      %v453 = vadd.f32 %v357, %v452
      %v454 = vpop.f32.mrf.mxu0
      %v455 = vadd.f32 %v362, %v454
      %456 = vdwg.mxu0
      %457 = vmatpush.bf16.msra.mxu0 0
      %458 = vmatpush.bf16.msra.mxu0 0
      %459 = vmatpush.bf16.msra.mxu0 0
      %460 = vmatpush.bf16.msra.mxu0 0
      %461 = vmatpush.bf16.msra.mxu0 %v323
      %462 = vmatpush.bf16.msra.mxu0 %v287
      %463 = vmatpush.bf16.msra.mxu0 %v251
      %464 = vmatpush.bf16.msra.mxu0 %v214
      %465 = vmatmul.bf16.gmra.mxu0 %v376
      %v466 = vpop.f32.mrf.mxu0
      %v467 = vadd.f32 %v347, %v466
      %v468 = vpop.f32.mrf.mxu0
      %v469 = vadd.f32 %v352, %v468
      %470 = vmatmul.bf16.gmra.mxu0 %v379
      %v471 = vpop.f32.mrf.mxu0
      %v472 = vadd.f32 %v357, %v471
      %v473 = vpop.f32.mrf.mxu0
      %v474 = vadd.f32 %v362, %v473
      %475 = vdwg.mxu0
      %476 = vmatpush.bf16.msra.mxu0 0
      %477 = vmatpush.bf16.msra.mxu0 0
      %478 = vmatpush.bf16.msra.mxu0 0
      %479 = vmatpush.bf16.msra.mxu0 0
      %480 = vmatpush.bf16.msra.mxu0 %v324
      %481 = vmatpush.bf16.msra.mxu0 %v288
      %482 = vmatpush.bf16.msra.mxu0 %v252
      %483 = vmatpush.bf16.msra.mxu0 %v215
      %484 = vmatmul.bf16.gmra.mxu0 %v376
      %v485 = vpop.f32.mrf.mxu0
      %v486 = vadd.f32 %v347, %v485
      %v487 = vpop.f32.mrf.mxu0
      %v488 = vadd.f32 %v352, %v487
      %489 = vmatmul.bf16.gmra.mxu0 %v379
      %v490 = vpop.f32.mrf.mxu0
      %v491 = vadd.f32 %v357, %v490
      %v492 = vpop.f32.mrf.mxu0
      %v493 = vadd.f32 %v362, %v492
      %494 = vdwg.mxu0
      %495 = vmatpush.bf16.msra.mxu0 0
      %496 = vmatpush.bf16.msra.mxu0 0
      %497 = vmatpush.bf16.msra.mxu0 0
      %498 = vmatpush.bf16.msra.mxu0 0
      %499 = vmatpush.bf16.msra.mxu0 %v325
      %500 = vmatpush.bf16.msra.mxu0 %v289
      %501 = vmatpush.bf16.msra.mxu0 %v253
      %502 = vmatpush.bf16.msra.mxu0 %v216
      %503 = vmatmul.bf16.gmra.mxu0 %v376
      %v504 = vpop.f32.mrf.mxu0
      %v505 = vadd.f32 %v347, %v504
      %v506 = vpop.f32.mrf.mxu0
      %v507 = vadd.f32 %v352, %v506
      %508 = vmatmul.bf16.gmra.mxu0 %v379
      %v509 = vpop.f32.mrf.mxu0
      %v510 = vadd.f32 %v357, %v509
      %v511 = vpop.f32.mrf.mxu0
      %v512 = vadd.f32 %v362, %v511
      %513 = vdwg.mxu0
      %514 = vmatpush.bf16.msra.mxu0 0
      %515 = vmatpush.bf16.msra.mxu0 0
      %516 = vmatpush.bf16.msra.mxu0 0
      %517 = vmatpush.bf16.msra.mxu0 0
      %518 = vmatpush.bf16.msra.mxu0 %v326
      %519 = vmatpush.bf16.msra.mxu0 %v290
      %520 = vmatpush.bf16.msra.mxu0 %v254
      %521 = vmatpush.bf16.msra.mxu0 %v217
      %522 = vmatmul.bf16.gmra.mxu0 %v376
      %v523 = vpop.f32.mrf.mxu0
      %v524 = vadd.f32 %v347, %v523
      %v525 = vpop.f32.mrf.mxu0
      %v526 = vadd.f32 %v352, %v525
      %527 = vmatmul.bf16.gmra.mxu0 %v379
      %v528 = vpop.f32.mrf.mxu0
      %v529 = vadd.f32 %v357, %v528
      %v530 = vpop.f32.mrf.mxu0
      %v531 = vadd.f32 %v362, %v530
      %532 = vdwg.mxu0
      %533 = vmatpush.bf16.msra.mxu0 0
      %534 = vmatpush.bf16.msra.mxu0 0
      %535 = vmatpush.bf16.msra.mxu0 0
      %536 = vmatpush.bf16.msra.mxu0 0
      %537 = vmatpush.bf16.msra.mxu0 %v317
      %538 = vmatpush.bf16.msra.mxu0 %v281
      %539 = vmatpush.bf16.msra.mxu0 %v245
      %540 = vmatpush.bf16.msra.mxu0 %v218
      %541 = vmatmul.bf16.gmra.mxu0 %v376
      %v542 = vpop.f32.mrf.mxu0
      %v543 = vadd.f32 %v347, %v542
      %v544 = vpop.f32.mrf.mxu0
      %v545 = vadd.f32 %v352, %v544
      %546 = vmatmul.bf16.gmra.mxu0 %v379
      %v547 = vpop.f32.mrf.mxu0
      %v548 = vadd.f32 %v357, %v547
      %v549 = vpop.f32.mrf.mxu0
      %v550 = vadd.f32 %v362, %v549
      %551 = vdwg.mxu0
      %v552 = vpack.c.bf16 %v410, %v391
      %v553 = vpack.c.bf16 %v448, %v429
      %v554 = vpack.c.bf16 %v486, %v467
      %v555 = vpack.c.bf16 %v524, %v505
      %v556 = vpack.c.bf16 %v543, %v543
      %v557 = vpack.c.bf16 %v412, %v393
      %v558 = vpack.c.bf16 %v450, %v431
      %v559 = vpack.c.bf16 %v488, %v469
      %v560 = vpack.c.bf16 %v526, %v507
      %v561 = vpack.c.bf16 %v545, %v545
      %v562 = vpack.c.bf16 %v415, %v396
      %v563 = vpack.c.bf16 %v453, %v434
      %v564 = vpack.c.bf16 %v491, %v472
      %v565 = vpack.c.bf16 %v529, %v510
      %v566 = vpack.c.bf16 %v548, %v548
      %v567 = vpack.c.bf16 %v417, %v398
      %v568 = vpack.c.bf16 %v455, %v436
      %v569 = vpack.c.bf16 %v493, %v474
      %v570 = vpack.c.bf16 %v531, %v512
      %v571 = vpack.c.bf16 %v550, %v550
      %572 = vst [vmem:[%s170] sm:$0xff] %v552
      %573 = vst [vmem:[%s170 + $0x8] sm:$0xff] %v553
      %574 = vst [vmem:[%s170 + $0x10] sm:$0xff] %v554
      %575 = vst [vmem:[%s170 + $0x18] sm:$0xff] %v555
      %vm576 = vcmask 257024
      %577 = vst.msk [vmem:[%s170 + $0x20] sm:$0xf] %vm576, %v556
      %578 = vst [vmem:[%s170 + $0x24] sm:$0xff] %v557
      %579 = vst [vmem:[%s170 + $0x2c] sm:$0xff] %v558
      %580 = vst [vmem:[%s170 + $0x34] sm:$0xff] %v559
      %581 = vst [vmem:[%s170 + $0x3c] sm:$0xff] %v560
      %582 = vst.msk [vmem:[%s170 + $0x44] sm:$0xf] %vm576, %v561
      %583 = vst [vmem:[%s170 + $0x48] sm:$0xff] %v562
      %584 = vst [vmem:[%s170 + $0x50] sm:$0xff] %v563
      %585 = vst [vmem:[%s170 + $0x58] sm:$0xff] %v564
      %586 = vst [vmem:[%s170 + $0x60] sm:$0xff] %v565
      %587 = vst.msk [vmem:[%s170 + $0x68] sm:$0xf] %vm576, %v566
      %588 = vst [vmem:[%s170 + $0x6c] sm:$0xff] %v567
      %589 = vst [vmem:[%s170 + $0x74] sm:$0xff] %v568
      %590 = vst [vmem:[%s170 + $0x7c] sm:$0xff] %v569
      %591 = vst [vmem:[%s170 + $0x84] sm:$0xff] %v570
      %592 = vst.msk [vmem:[%s170 + $0x8c] sm:$0xf] %vm576, %v571
      %p593 = scmp.lt.s32.totalorder %s14, 1
      %s594 = scalar_select %p593, %s14, 1
      %s595 = smul.addr %s594, 36
      %s596 = smul.addr %s595, 4
      %s597 = scalar_lea.vmem %s3, %s596
      // Predicated region
      $region33: #{dec_subpix_branch_forward.7} parent=31 // pred_check
        %p598 = pneg %p100
      $region34: #{dec_subpix_branch_forward.7} parent=31 // pred_check_branch
        %600 = sbr.rel (%p598) target = $region36
      $region35: #{dec_subpix_branch_forward.7} parent=31 // pred_region
        _
      $region36: #{dec_subpix_branch_forward.7} parent=31 // pred_fallthru
        _
    $region32: #{dec_subpix_branch_forward.7} parent=5 // pred_fallthru
      _
    %p601 = scmp.le.s32.totalorder 2, %s9
    // Predicated region
    $region37: #{dec_subpix_branch_forward.7} parent=5 // pred_check
      %p602 = pneg %p601
    $region38: #{dec_subpix_branch_forward.7} parent=5 // pred_check_branch
      %604 = sbr.rel (%p602) target = $region40
    $region39: #{dec_subpix_branch_forward.7} parent=5 // pred_region
      %s605 = ssub.s32 %s9, 2
      // Predicated region
      $region41: #{dec_subpix_branch_forward.7} parent=39 // pred_check
        %p606 = pneg %p106
      $region42: #{dec_subpix_branch_forward.7} parent=39 // pred_check_branch
        %608 = sbr.rel (%p606) target = $region44
      $region43: #{dec_subpix_branch_forward.7} parent=39 // pred_region
        %p609 = scmp.lt.s32.totalorder %s15, 1
        %s610 = scalar_select %p609, %s15, 1
        %s611 = smul.addr %s610, 36
        %s612 = smul.addr %s611, 4
        %s613 = scalar_lea.vmem %s3, %s612
      $region44: #{dec_subpix_branch_forward.7} parent=39 // pred_fallthru
        _
    $region40: #{dec_subpix_branch_forward.7} parent=5 // pred_fallthru
      _
  $region6: #{dec_subpix_branch_forward.7} parent=0 // loop_footer
    %s13 = sadd.s32 1, %s9
  $region7: #{dec_subpix_branch_forward.7} parent=0 // loop_footer_branch
    %8 = sbr.rel target = $region3
  $region8: #{dec_subpix_branch_forward.7} parent=0 // loop_exit
    _

// kernel: dec_subpix_branch_forward.8
$region0: #{dec_subpix_branch_forward.8}
  #allocation0 [shape = 'u32[]', space=smem, size = 0x4, offset = 0x4, fixed_abs, tag = 'smem constant byte address 0x4 - core index']
  #allocation1 [shape = 'u32[72,128]{1,0:T(1,128)}', space=vmem, size = 0x9000, scoped, tag = 'internal scratch']
  %s0 = inlined_call_operand.vmem [shape: bf16[2,16,4358], index: 0, kind: input, shape index: {}]
  %s1 = inlined_call_operand.vmem [shape: bf16[8,144], index: 1, kind: input, shape index: {}]
  %s2 = inlined_call_operand.vmem [shape: f32[8,1], index: 2, kind: input, shape index: {}]
  %s3 = inlined_call_operand.vmem [shape: f32[8,1], index: 3, kind: input, shape index: {}]
  %s4 = inlined_call_operand.vmem [shape: f32[8,1], index: 4, kind: input, shape index: {}]
  %s5 = inlined_call_operand.vmem [shape: f32[2,8,4224], index: 5, kind: output, shape index: {}]
  %s6 = sld [smem:[#allocation0]]
  $region57: #{dec_subpix_branch_forward.8} parent=0
    _
  %s8 = ssub.s32 1, %s6
  %s9 = scalar_select 0, %s8, %s6
  loop: start=0, step=1, limit=4
  $region2: #{dec_subpix_branch_forward.8} parent=0 // loop_pre_header
    _
  $region3: #{dec_subpix_branch_forward.8} parent=0 // loop_header
    %s11 = sphi 0, %s15
    %p12 = scmp.ge.s32.totalorder %s11, 4
    %s21 = sphi 0, %s23
    %s24 = sphi 0, %s21
    %s25 = sphi 0, %s24
    %s41 = sphi 0, %s25
    %s45 = sphi 0, %s45
    %s47 = sphi 0, %s45
    %s48 = sphi 0, %s47
    %s62 = sphi 0, %s48
    %s66 = sphi 0, %s66
    %s68 = sphi 0, %s66
    %s69 = sphi 0, %s68
    %s83 = sphi 0, %s69
    %s87 = sphi 0, %s87
    %s89 = sphi 0, %s87
    %s90 = sphi 0, %s89
    %s104 = sphi 0, %s90
    %s108 = sphi 0, %s108
    %s110 = sphi 0, %s108
    %s111 = sphi 0, %s110
    %s125 = sphi 0, %s111
    %s129 = sphi 0, %s129
    %s131 = sphi 0, %s129
    %s132 = sphi 0, %s131
    %s146 = sphi 0, %s132
  $region4: #{dec_subpix_branch_forward.8} parent=0 // loop_header_branch
    %14 = sbr.rel (%p12) target = $region8
  $region5: #{dec_subpix_branch_forward.8} parent=0 // loop_body
    %s16 = ssub.s32 %s11, 1
    %s17 = ssub.s32 %s11, 2
    %s18 = sadd.s32 %s11, 1
    %s19 = ssub.s32 %s11, %s18
    %p20 = scmp.eq.s32.totalorder %s19, 0
    %s22 = sadd.s32 %s21, 1
    %s23 = scalar_select %p20, %s21, %s22
    %p26 = pneg %p20
    %p27 = scmp.eq.s32.totalorder %s11, 1
    %p28 = por %p26, %p27
    %p29 = scmp.ne.s32.totalorder %s21, %s24
    %p30 = scmp.eq.s32.totalorder %s11, 0
    %p31 = por %p29, %p30
    %p32 = scmp.ne.s32.totalorder %s21, %s24
    %p33 = scmp.eq.s32.totalorder %s16, 1
    %p34 = por %p32, %p33
    %p35 = scmp.ne.s32.totalorder %s24, %s25
    %p36 = scmp.eq.s32.totalorder %s16, 0
    %p37 = por %p35, %p36
    %p38 = scmp.ne.s32.totalorder %s24, %s25
    %p39 = scmp.eq.s32.totalorder %s17, 1
    %p40 = por %p38, %p39
    %p42 = scmp.ne.s32.totalorder %s25, %s41
    %p43 = scmp.eq.s32.totalorder %s17, 0
    %p44 = por %p42, %p43
    %s46 = sadd.s32 %s45, 1
    %p49 = scmp.eq.s32.totalorder %s11, 1
    %p50 = scmp.ne.s32.totalorder %s45, %s47
    %p51 = scmp.eq.s32.totalorder %s11, 0
    %p52 = por %p50, %p51
    %p53 = scmp.ne.s32.totalorder %s45, %s47
    %p54 = scmp.eq.s32.totalorder %s16, 1
    %p55 = por %p53, %p54
    %p56 = scmp.ne.s32.totalorder %s47, %s48
    %p57 = scmp.eq.s32.totalorder %s16, 0
    %p58 = por %p56, %p57
    %p59 = scmp.ne.s32.totalorder %s47, %s48
    %p60 = scmp.eq.s32.totalorder %s17, 1
    %p61 = por %p59, %p60
    %p63 = scmp.ne.s32.totalorder %s48, %s62
    %p64 = scmp.eq.s32.totalorder %s17, 0
    %p65 = por %p63, %p64
    %s67 = sadd.s32 %s66, 1
    %p70 = scmp.eq.s32.totalorder %s11, 1
    %p71 = scmp.ne.s32.totalorder %s66, %s68
    %p72 = scmp.eq.s32.totalorder %s11, 0
    %p73 = por %p71, %p72
    %p74 = scmp.ne.s32.totalorder %s66, %s68
    %p75 = scmp.eq.s32.totalorder %s16, 1
    %p76 = por %p74, %p75
    %p77 = scmp.ne.s32.totalorder %s68, %s69
    %p78 = scmp.eq.s32.totalorder %s16, 0
    %p79 = por %p77, %p78
    %p80 = scmp.ne.s32.totalorder %s68, %s69
    %p81 = scmp.eq.s32.totalorder %s17, 1
    %p82 = por %p80, %p81
    %p84 = scmp.ne.s32.totalorder %s69, %s83
    %p85 = scmp.eq.s32.totalorder %s17, 0
    %p86 = por %p84, %p85
    %s88 = sadd.s32 %s87, 1
    %p91 = scmp.eq.s32.totalorder %s11, 1
    %p92 = scmp.ne.s32.totalorder %s87, %s89
    %p93 = scmp.eq.s32.totalorder %s11, 0
    %p94 = por %p92, %p93
    %p95 = scmp.ne.s32.totalorder %s87, %s89
    %p96 = scmp.eq.s32.totalorder %s16, 1
    %p97 = por %p95, %p96
    %p98 = scmp.ne.s32.totalorder %s89, %s90
    %p99 = scmp.eq.s32.totalorder %s16, 0
    %p100 = por %p98, %p99
    %p101 = scmp.ne.s32.totalorder %s89, %s90
    %p102 = scmp.eq.s32.totalorder %s17, 1
    %p103 = por %p101, %p102
    %p105 = scmp.ne.s32.totalorder %s90, %s104
    %p106 = scmp.eq.s32.totalorder %s17, 0
    %p107 = por %p105, %p106
    %s109 = sadd.s32 %s108, 1
    %p112 = scmp.eq.s32.totalorder %s11, 1
    %p113 = scmp.ne.s32.totalorder %s108, %s110
    %p114 = scmp.eq.s32.totalorder %s11, 0
    %p115 = por %p113, %p114
    %p116 = scmp.ne.s32.totalorder %s108, %s110
    %p117 = scmp.eq.s32.totalorder %s16, 1
    %p118 = por %p116, %p117
    %p119 = scmp.ne.s32.totalorder %s110, %s111
    %p120 = scmp.eq.s32.totalorder %s16, 0
    %p121 = por %p119, %p120
    %p122 = scmp.ne.s32.totalorder %s110, %s111
    %p123 = scmp.eq.s32.totalorder %s17, 1
    %p124 = por %p122, %p123
    %p126 = scmp.ne.s32.totalorder %s111, %s125
    %p127 = scmp.eq.s32.totalorder %s17, 0
    %p128 = por %p126, %p127
    %s130 = sadd.s32 %s129, 1
    %p133 = scmp.eq.s32.totalorder %s11, 1
    %p134 = scmp.ne.s32.totalorder %s129, %s131
    %p135 = scmp.eq.s32.totalorder %s11, 0
    %p136 = por %p134, %p135
    %p137 = scmp.ne.s32.totalorder %s129, %s131
    %p138 = scmp.eq.s32.totalorder %s16, 1
    %p139 = por %p137, %p138
    %p140 = scmp.ne.s32.totalorder %s131, %s132
    %p141 = scmp.eq.s32.totalorder %s16, 0
    %p142 = por %p140, %p141
    %p143 = scmp.ne.s32.totalorder %s131, %s132
    %p144 = scmp.eq.s32.totalorder %s17, 1
    %p145 = por %p143, %p144
    %p147 = scmp.ne.s32.totalorder %s132, %s146
    %p148 = scmp.eq.s32.totalorder %s17, 0
    %p149 = por %p147, %p148
    %p150 = scmp.le.s32.totalorder 1, %s11
    %p151 = scmp.lt.s32.totalorder %s11, 3
    %p152 = pnand %p150, %p151
    %p153 = pneg %p152
    // Predicated region
    $region9: #{dec_subpix_branch_forward.8} parent=5 // pred_check
      _
    $region10: #{dec_subpix_branch_forward.8} parent=5 // pred_check_branch
      %155 = sbr.rel (%p152) target = $region12
    $region11: #{dec_subpix_branch_forward.8} parent=5 // pred_region
      %s156 = ssub.s32 %s11, 1
      // Predicated region
      $region13: #{dec_subpix_branch_forward.8} parent=11 // pred_check
        %p157 = pneg %p58
      $region14: #{dec_subpix_branch_forward.8} parent=11 // pred_check_branch
        %159 = sbr.rel (%p157) target = $region16
      $region15: #{dec_subpix_branch_forward.8} parent=11 // pred_region
        _
      $region16: #{dec_subpix_branch_forward.8} parent=11 // pred_fallthru
        _
      // Predicated region
      $region17: #{dec_subpix_branch_forward.8} parent=11 // pred_check
        %p160 = pneg %p79
      $region18: #{dec_subpix_branch_forward.8} parent=11 // pred_check_branch
        %162 = sbr.rel (%p160) target = $region20
      $region19: #{dec_subpix_branch_forward.8} parent=11 // pred_region
        _
      $region20: #{dec_subpix_branch_forward.8} parent=11 // pred_fallthru
        _
      // Predicated region
      $region21: #{dec_subpix_branch_forward.8} parent=11 // pred_check
        %p163 = pneg %p100
      $region22: #{dec_subpix_branch_forward.8} parent=11 // pred_check_branch
        %165 = sbr.rel (%p163) target = $region24
      $region23: #{dec_subpix_branch_forward.8} parent=11 // pred_region
        _
      $region24: #{dec_subpix_branch_forward.8} parent=11 // pred_fallthru
        _
      // Predicated region
      $region25: #{dec_subpix_branch_forward.8} parent=11 // pred_check
        %p166 = pneg %p121
      $region26: #{dec_subpix_branch_forward.8} parent=11 // pred_check_branch
        %168 = sbr.rel (%p166) target = $region28
      $region27: #{dec_subpix_branch_forward.8} parent=11 // pred_region
        _
      $region28: #{dec_subpix_branch_forward.8} parent=11 // pred_fallthru
        _
    $region12: #{dec_subpix_branch_forward.8} parent=5 // pred_fallthru
      _
    %p169 = scmp.lt.s32.totalorder %s11, 2
    // Predicated region
    $region29: #{dec_subpix_branch_forward.8} parent=5 // pred_check
      %p170 = pneg %p169
    $region30: #{dec_subpix_branch_forward.8} parent=5 // pred_check_branch
      %172 = sbr.rel (%p170) target = $region32
    $region31: #{dec_subpix_branch_forward.8} parent=5 // pred_region
      // Predicated region
      $region33: #{dec_subpix_branch_forward.8} parent=31 // pred_check
        %p173 = pneg %p31
      $region34: #{dec_subpix_branch_forward.8} parent=31 // pred_check_branch
        %175 = sbr.rel (%p173) target = $region36
      $region35: #{dec_subpix_branch_forward.8} parent=31 // pred_region
        %p176 = scmp.lt.s32.totalorder %s11, 1
        %s177 = scalar_select %p176, %s11, 1
        %s178 = smul.addr %s177, 70
        %s179 = smul.addr %s178, 4
        %s180 = scalar_lea.vmem %s0, %s179
      $region36: #{dec_subpix_branch_forward.8} parent=31 // pred_fallthru
        _
    $region32: #{dec_subpix_branch_forward.8} parent=5 // pred_fallthru
      _
    %p181 = scmp.le.s32.totalorder 1, %s11
    %p182 = scmp.lt.s32.totalorder %s11, 3
    %p183 = pnand %p181, %p182
    %p184 = pneg %p183
    // Predicated region
    $region37: #{dec_subpix_branch_forward.8} parent=5 // pred_check
      _
    $region38: #{dec_subpix_branch_forward.8} parent=5 // pred_check_branch
      %186 = sbr.rel (%p183) target = $region40
    $region39: #{dec_subpix_branch_forward.8} parent=5 // pred_region
      %s187 = ssub.s32 %s11, 1
      %p188 = scmp.lt.s32.totalorder %s16, 1
      %s189 = scalar_select %p188, %s16, 1
      %s190 = smul.addr %s189, 70
      %s191 = smul.addr %s190, 4
      %s192 = scalar_lea.vmem %s0, %s191
      %p193 = pneg %p37
      %p194 = pneg %p34
      %p195 = pneg %p58
      %p196 = pneg %p55
      %p197 = pneg %p79
      %p198 = pneg %p76
      %p199 = pneg %p100
      %p200 = pneg %p97
      %p201 = pneg %p121
      %p202 = pneg %p118
      %p203 = pneg %p142
      %p204 = pneg %p139
      %p205 = scmp.lt.s32.totalorder %s16, 1
      %s206 = scalar_select %p205, %s16, 1
      %s207 = smul.addr %s206, 70
      %s208 = smul.addr %s207, 4
      %s209 = scalar_lea.vmem %s0, %s208
      %v211 = vld [vmem:[%s209] sm:$0xff]
      %v212 = vld [vmem:[%s209 + $0x8] sm:$0xff]
      %v213 = vld [vmem:[%s209 + $0x10] sm:$0xff]
      %v214 = vld [vmem:[%s209 + $0x18] sm:$0xff]
      %v215 = vld [vmem:[%s209 + $0x20] sm:$0xff]
      %v216 = vld [vmem:[%s209 + $0x28] sm:$0xff]
      %v217 = vld [vmem:[%s209 + $0x30] sm:$0xff]
      %v218 = vld [vmem:[%s209 + $0x38] sm:$0xff]
      %v219 = vld [vmem:[%s209 + $0x40] sm:$0xff]
      %v220 = vld [vmem:[%s209 + $0x48] sm:$0xff]
      %v221 = vld [vmem:[%s209 + $0x50] sm:$0xff]
      %v222 = vld [vmem:[%s209 + $0x58] sm:$0xff]
      %v223 = vld [vmem:[%s209 + $0x60] sm:$0xff]
      %v224 = vld [vmem:[%s209 + $0x68] sm:$0xff]
      %v225 = vld [vmem:[%s209 + $0x70] sm:$0xff]
      %v226 = vld [vmem:[%s209 + $0x78] sm:$0xff]
      %v227 = vld [vmem:[%s209 + $0x80] sm:$0xff]
      %v228 = vld [vmem:[%s209 + $0x88] sm:$0xf]
      %v229 = vld [vmem:[%s209 + $0x8c] sm:$0xff]
      %v230 = vld [vmem:[%s209 + $0x94] sm:$0xff]
      %v231 = vld [vmem:[%s209 + $0x9c] sm:$0xff]
      %v232 = vld [vmem:[%s209 + $0xa4] sm:$0xff]
      %v233 = vld [vmem:[%s209 + $0xac] sm:$0xff]
      %v234 = vld [vmem:[%s209 + $0xb4] sm:$0xff]
      %v235 = vld [vmem:[%s209 + $0xbc] sm:$0xff]
      %v236 = vld [vmem:[%s209 + $0xc4] sm:$0xff]
      %v237 = vld [vmem:[%s209 + $0xcc] sm:$0xff]
      %v238 = vld [vmem:[%s209 + $0xd4] sm:$0xff]
      %v239 = vld [vmem:[%s209 + $0xdc] sm:$0xff]
      %v240 = vld [vmem:[%s209 + $0xe4] sm:$0xff]
      %v241 = vld [vmem:[%s209 + $0xec] sm:$0xff]
      %v242 = vld [vmem:[%s209 + $0xf4] sm:$0xff]
      %v243 = vld [vmem:[%s209 + $0xfc] sm:$0xff]
      %v244 = vld [vmem:[%s209 + $0x104] sm:$0xff]
      %v245 = vld [vmem:[%s209 + $0x10c] sm:$0xff]
      %v246 = vld [vmem:[%s209 + $0x114] sm:$0xf]
      %v281 = vunpack.c.l.b16 %v211
      %v282 = vunpack.c.h.b16 %v211
      %v283 = vunpack.c.l.b16 %v212
      %v284 = vunpack.c.h.b16 %v212
      %v285 = vunpack.c.l.b16 %v213
      %v286 = vunpack.c.h.b16 %v213
      %v287 = vunpack.c.l.b16 %v214
      %v288 = vunpack.c.h.b16 %v214
      %v289 = vunpack.c.l.b16 %v215
      %v290 = vunpack.c.h.b16 %v215
      %v291 = vunpack.c.l.b16 %v216
      %v292 = vunpack.c.h.b16 %v216
      %v293 = vunpack.c.l.b16 %v217
      %v294 = vunpack.c.h.b16 %v217
      %v295 = vunpack.c.l.b16 %v218
      %v296 = vunpack.c.h.b16 %v218
      %v297 = vunpack.c.l.b16 %v219
      %v298 = vunpack.c.h.b16 %v219
      %v299 = vunpack.c.l.b16 %v220
      %v300 = vunpack.c.h.b16 %v220
      %v301 = vunpack.c.l.b16 %v221
      %v302 = vunpack.c.h.b16 %v221
      %v303 = vunpack.c.l.b16 %v222
      %v304 = vunpack.c.h.b16 %v222
      %v305 = vunpack.c.l.b16 %v223
      %v306 = vunpack.c.h.b16 %v223
      %v307 = vunpack.c.l.b16 %v224
      %v308 = vunpack.c.h.b16 %v224
      %v309 = vunpack.c.l.b16 %v225
      %v310 = vunpack.c.h.b16 %v225
      %v311 = vunpack.c.l.b16 %v226
      %v312 = vunpack.c.h.b16 %v226
      %v313 = vunpack.c.l.b16 %v227
      %v314 = vunpack.c.l.b16 %v229
      %v315 = vunpack.c.h.b16 %v229
      %v316 = vunpack.c.l.b16 %v230
      %v317 = vunpack.c.h.b16 %v230
      %v318 = vunpack.c.l.b16 %v231
      %v319 = vunpack.c.h.b16 %v231
      %v320 = vunpack.c.l.b16 %v232
      %v321 = vunpack.c.h.b16 %v232
      %v322 = vunpack.c.l.b16 %v233
      %v323 = vunpack.c.h.b16 %v233
      %v324 = vunpack.c.l.b16 %v234
      %v325 = vunpack.c.h.b16 %v234
      %v326 = vunpack.c.l.b16 %v235
      %v327 = vunpack.c.h.b16 %v235
      %v328 = vunpack.c.l.b16 %v236
      %v329 = vunpack.c.h.b16 %v236
      %v330 = vunpack.c.l.b16 %v237
      %v331 = vunpack.c.h.b16 %v237
      %v332 = vunpack.c.l.b16 %v238
      %v333 = vunpack.c.h.b16 %v238
      %v334 = vunpack.c.l.b16 %v239
      %v335 = vunpack.c.h.b16 %v239
      %v336 = vunpack.c.l.b16 %v240
      %v337 = vunpack.c.h.b16 %v240
      %v338 = vunpack.c.l.b16 %v241
      %v339 = vunpack.c.h.b16 %v241
      %v340 = vunpack.c.l.b16 %v242
      %v341 = vunpack.c.h.b16 %v242
      %v342 = vunpack.c.l.b16 %v243
      %v343 = vunpack.c.h.b16 %v243
      %v344 = vunpack.c.l.b16 %v244
      %v345 = vunpack.c.h.b16 %v244
      %v346 = vunpack.c.l.b16 %v245
      %v347 = vpack.c.b16 %v314, %v281
      %v348 = vpack.c.b16 %v315, %v282
      %v349 = vpack.c.b16 %v316, %v283
      %v350 = vpack.c.b16 %v317, %v284
      %v351 = vpack.c.b16 %v318, %v285
      %v352 = vpack.c.b16 %v319, %v286
      %v353 = vpack.c.b16 %v320, %v287
      %v354 = vpack.c.b16 %v321, %v288
      %v355 = vpack.c.b16 %v322, %v289
      %v356 = vpack.c.b16 %v323, %v290
      %v357 = vpack.c.b16 %v324, %v291
      %v358 = vpack.c.b16 %v325, %v292
      %v359 = vpack.c.b16 %v326, %v293
      %v360 = vpack.c.b16 %v327, %v294
      %v361 = vpack.c.b16 %v328, %v295
      %v362 = vpack.c.b16 %v329, %v296
      %v363 = vpack.c.b16 %v330, %v297
      %v364 = vpack.c.b16 %v331, %v298
      %v365 = vpack.c.b16 %v332, %v299
      %v366 = vpack.c.b16 %v333, %v300
      %v367 = vpack.c.b16 %v334, %v301
      %v368 = vpack.c.b16 %v335, %v302
      %v369 = vpack.c.b16 %v336, %v303
      %v370 = vpack.c.b16 %v337, %v304
      %v371 = vpack.c.b16 %v338, %v305
      %v372 = vpack.c.b16 %v339, %v306
      %v373 = vpack.c.b16 %v340, %v307
      %v374 = vpack.c.b16 %v341, %v308
      %v375 = vpack.c.b16 %v342, %v309
      %v376 = vpack.c.b16 %v343, %v310
      %v377 = vpack.c.b16 %v344, %v311
      %v378 = vpack.c.b16 %v345, %v312
      %v379 = vpack.c.b16 %v346, %v313
      %v413 = vunpack.c.h.b16 %v227
      %v414 = vunpack.c.h.b16 %v245
      %v415 = vpack.c.b16 %v414, %v413
      %416 = vrot.lane.b32.xlu0 %v347, 127
      %v417 = vpop.permute.xlu0 %416
      %418 = vrot.lane.b32.xlu0 %v348, 127
      %v419 = vpop.permute.xlu0 %418
      %420 = vrot.lane.b32.xlu0 %v349, 127
      %v421 = vpop.permute.xlu0 %420
      %422 = vrot.lane.b32.xlu0 %v350, 127
      %v423 = vpop.permute.xlu0 %422
      %424 = vrot.lane.b32.xlu0 %v351, 127
      %v425 = vpop.permute.xlu0 %424
      %426 = vrot.lane.b32.xlu0 %v352, 127
      %v427 = vpop.permute.xlu0 %426
      %428 = vrot.lane.b32.xlu0 %v353, 127
      %v429 = vpop.permute.xlu0 %428
      %430 = vrot.lane.b32.xlu0 %v354, 127
      %v431 = vpop.permute.xlu0 %430
      %432 = vrot.lane.b32.xlu0 %v355, 127
      %v433 = vpop.permute.xlu0 %432
      %434 = vrot.lane.b32.xlu0 %v356, 127
      %v435 = vpop.permute.xlu0 %434
      %436 = vrot.lane.b32.xlu0 %v357, 127
      %v437 = vpop.permute.xlu0 %436
      %438 = vrot.lane.b32.xlu0 %v358, 127
      %v439 = vpop.permute.xlu0 %438
      %440 = vrot.lane.b32.xlu0 %v359, 127
      %v441 = vpop.permute.xlu0 %440
      %442 = vrot.lane.b32.xlu0 %v360, 127
      %v443 = vpop.permute.xlu0 %442
      %444 = vrot.lane.b32.xlu0 %v361, 127
      %v445 = vpop.permute.xlu0 %444
      %446 = vrot.lane.b32.xlu0 %v362, 127
      %v447 = vpop.permute.xlu0 %446
      %448 = vrot.lane.b32.xlu0 %v363, 127
      %v449 = vpop.permute.xlu0 %448
      %450 = vrot.lane.b32.xlu0 %v364, 127
      %v451 = vpop.permute.xlu0 %450
      %452 = vrot.lane.b32.xlu0 %v365, 127
      %v453 = vpop.permute.xlu0 %452
      %454 = vrot.lane.b32.xlu0 %v366, 127
      %v455 = vpop.permute.xlu0 %454
      %456 = vrot.lane.b32.xlu0 %v367, 127
      %v457 = vpop.permute.xlu0 %456
      %458 = vrot.lane.b32.xlu0 %v368, 127
      %v459 = vpop.permute.xlu0 %458
      %460 = vrot.lane.b32.xlu0 %v369, 127
      %v461 = vpop.permute.xlu0 %460
      %462 = vrot.lane.b32.xlu0 %v370, 127
      %v463 = vpop.permute.xlu0 %462
      %464 = vrot.lane.b32.xlu0 %v371, 127
      %v465 = vpop.permute.xlu0 %464
      %466 = vrot.lane.b32.xlu0 %v372, 127
      %v467 = vpop.permute.xlu0 %466
      %468 = vrot.lane.b32.xlu0 %v373, 127
      %v469 = vpop.permute.xlu0 %468
      %470 = vrot.lane.b32.xlu0 %v374, 127
      %v471 = vpop.permute.xlu0 %470
      %472 = vrot.lane.b32.xlu0 %v375, 127
      %v473 = vpop.permute.xlu0 %472
      %474 = vrot.lane.b32.xlu0 %v376, 127
      %v475 = vpop.permute.xlu0 %474
      %476 = vrot.lane.b32.xlu0 %v377, 127
      %v477 = vpop.permute.xlu0 %476
      %478 = vrot.lane.b32.xlu0 %v378, 127
      %v479 = vpop.permute.xlu0 %478
      %480 = vrot.lane.b32.xlu0 %v379, 127
      %v481 = vpop.permute.xlu0 %480
      %482 = vrot.lane.b32.xlu0 %v415, 127
      %v483 = vpop.permute.xlu0 %482
      %vm484 = vcmask 1039360
      %v485 = vsel %vm484, %v417, %v419
      %v486 = vsel %vm484, %v419, %v421
      %v487 = vsel %vm484, %v421, %v423
      %v488 = vsel %vm484, %v423, %v425
      %v489 = vsel %vm484, %v425, %v427
      %v490 = vsel %vm484, %v427, %v429
      %v491 = vsel %vm484, %v429, %v431
      %v492 = vsel %vm484, %v431, %v433
      %v493 = vsel %vm484, %v433, %v435
      %v494 = vsel %vm484, %v435, %v437
      %v495 = vsel %vm484, %v437, %v439
      %v496 = vsel %vm484, %v439, %v441
      %v497 = vsel %vm484, %v441, %v443
      %v498 = vsel %vm484, %v443, %v445
      %v499 = vsel %vm484, %v445, %v447
      %v500 = vsel %vm484, %v447, %v449
      %v501 = vsel %vm484, %v449, %v451
      %v502 = vsel %vm484, %v451, %v453
      %v503 = vsel %vm484, %v453, %v455
      %v504 = vsel %vm484, %v455, %v457
      %v505 = vsel %vm484, %v457, %v459
      %v506 = vsel %vm484, %v459, %v461
      %v507 = vsel %vm484, %v461, %v463
      %v508 = vsel %vm484, %v463, %v465
      %v509 = vsel %vm484, %v465, %v467
      %v510 = vsel %vm484, %v467, %v469
      %v511 = vsel %vm484, %v469, %v471
      %v512 = vsel %vm484, %v471, %v473
      %v513 = vsel %vm484, %v473, %v475
      %v514 = vsel %vm484, %v475, %v477
      %v515 = vsel %vm484, %v477, %v479
      %v516 = vsel %vm484, %v479, %v481
      %v517 = vsel %vm484, %v481, %v483
      %551 = vrot.lane.b32.xlu0 %v347, 126
      %v552 = vpop.permute.xlu0 %551
      %553 = vrot.lane.b32.xlu0 %v348, 126
      %v554 = vpop.permute.xlu0 %553
      %555 = vrot.lane.b32.xlu0 %v349, 126
      %v556 = vpop.permute.xlu0 %555
      %557 = vrot.lane.b32.xlu0 %v350, 126
      %v558 = vpop.permute.xlu0 %557
      %559 = vrot.lane.b32.xlu0 %v351, 126
      %v560 = vpop.permute.xlu0 %559
      %561 = vrot.lane.b32.xlu0 %v352, 126
      %v562 = vpop.permute.xlu0 %561
      %563 = vrot.lane.b32.xlu0 %v353, 126
      %v564 = vpop.permute.xlu0 %563
      %565 = vrot.lane.b32.xlu0 %v354, 126
      %v566 = vpop.permute.xlu0 %565
      %567 = vrot.lane.b32.xlu0 %v355, 126
      %v568 = vpop.permute.xlu0 %567
      %569 = vrot.lane.b32.xlu0 %v356, 126
      %v570 = vpop.permute.xlu0 %569
      %571 = vrot.lane.b32.xlu0 %v357, 126
      %v572 = vpop.permute.xlu0 %571
      %573 = vrot.lane.b32.xlu0 %v358, 126
      %v574 = vpop.permute.xlu0 %573
      %575 = vrot.lane.b32.xlu0 %v359, 126
      %v576 = vpop.permute.xlu0 %575
      %577 = vrot.lane.b32.xlu0 %v360, 126
      %v578 = vpop.permute.xlu0 %577
      %579 = vrot.lane.b32.xlu0 %v361, 126
      %v580 = vpop.permute.xlu0 %579
      %581 = vrot.lane.b32.xlu0 %v362, 126
      %v582 = vpop.permute.xlu0 %581
      %583 = vrot.lane.b32.xlu0 %v363, 126
      %v584 = vpop.permute.xlu0 %583
      %585 = vrot.lane.b32.xlu0 %v364, 126
      %v586 = vpop.permute.xlu0 %585
      %587 = vrot.lane.b32.xlu0 %v365, 126
      %v588 = vpop.permute.xlu0 %587
      %589 = vrot.lane.b32.xlu0 %v366, 126
      %v590 = vpop.permute.xlu0 %589
      %591 = vrot.lane.b32.xlu0 %v367, 126
      %v592 = vpop.permute.xlu0 %591
      %593 = vrot.lane.b32.xlu0 %v368, 126
      %v594 = vpop.permute.xlu0 %593
      %595 = vrot.lane.b32.xlu0 %v369, 126
      %v596 = vpop.permute.xlu0 %595
      %597 = vrot.lane.b32.xlu0 %v370, 126
      %v598 = vpop.permute.xlu0 %597
      %599 = vrot.lane.b32.xlu0 %v371, 126
      %v600 = vpop.permute.xlu0 %599
      %601 = vrot.lane.b32.xlu0 %v372, 126
      %v602 = vpop.permute.xlu0 %601
      %603 = vrot.lane.b32.xlu0 %v373, 126
      %v604 = vpop.permute.xlu0 %603
      %605 = vrot.lane.b32.xlu0 %v374, 126
      %v606 = vpop.permute.xlu0 %605
      %607 = vrot.lane.b32.xlu0 %v375, 126
      %v608 = vpop.permute.xlu0 %607
      %609 = vrot.lane.b32.xlu0 %v376, 126
      %v610 = vpop.permute.xlu0 %609
      %611 = vrot.lane.b32.xlu0 %v377, 126
      %v612 = vpop.permute.xlu0 %611
      %613 = vrot.lane.b32.xlu0 %v378, 126
      %v614 = vpop.permute.xlu0 %613
      %615 = vrot.lane.b32.xlu0 %v379, 126
      %v616 = vpop.permute.xlu0 %615
      %617 = vrot.lane.b32.xlu0 %v415, 126
      %v618 = vpop.permute.xlu0 %617
      %vm619 = vcmask 1031168
      %v620 = vsel %vm619, %v552, %v554
      %v621 = vsel %vm619, %v554, %v556
      %v622 = vsel %vm619, %v556, %v558
      %v623 = vsel %vm619, %v558, %v560
      %v624 = vsel %vm619, %v560, %v562
      %v625 = vsel %vm619, %v562, %v564
      %v626 = vsel %vm619, %v564, %v566
      %v627 = vsel %vm619, %v566, %v568
      %v628 = vsel %vm619, %v568, %v570
      %v629 = vsel %vm619, %v570, %v572
      %v630 = vsel %vm619, %v572, %v574
      %v631 = vsel %vm619, %v574, %v576
      %v632 = vsel %vm619, %v576, %v578
      %v633 = vsel %vm619, %v578, %v580
      %v634 = vsel %vm619, %v580, %v582
      %v635 = vsel %vm619, %v582, %v584
      %v636 = vsel %vm619, %v584, %v586
      %v637 = vsel %vm619, %v586, %v588
      %v638 = vsel %vm619, %v588, %v590
      %v639 = vsel %vm619, %v590, %v592
      %v640 = vsel %vm619, %v592, %v594
      %v641 = vsel %vm619, %v594, %v596
      %v642 = vsel %vm619, %v596, %v598
      %v643 = vsel %vm619, %v598, %v600
      %v644 = vsel %vm619, %v600, %v602
      %v645 = vsel %vm619, %v602, %v604
      %v646 = vsel %vm619, %v604, %v606
      %v647 = vsel %vm619, %v606, %v608
      %v648 = vsel %vm619, %v608, %v610
      %v649 = vsel %vm619, %v610, %v612
      %v650 = vsel %vm619, %v612, %v614
      %v651 = vsel %vm619, %v614, %v616
      %v652 = vsel %vm619, %v616, %v618
      %686 = vrot.lane.b32.xlu0 %v347, 62
      %v687 = vpop.permute.xlu0 %686
      %688 = vrot.lane.b32.xlu0 %v348, 62
      %v689 = vpop.permute.xlu0 %688
      %690 = vrot.lane.b32.xlu0 %v349, 62
      %v691 = vpop.permute.xlu0 %690
      %692 = vrot.lane.b32.xlu0 %v350, 62
      %v693 = vpop.permute.xlu0 %692
      %694 = vrot.lane.b32.xlu0 %v351, 62
      %v695 = vpop.permute.xlu0 %694
      %696 = vrot.lane.b32.xlu0 %v352, 62
      %v697 = vpop.permute.xlu0 %696
      %698 = vrot.lane.b32.xlu0 %v353, 62
      %v699 = vpop.permute.xlu0 %698
      %700 = vrot.lane.b32.xlu0 %v354, 62
      %v701 = vpop.permute.xlu0 %700
      %702 = vrot.lane.b32.xlu0 %v355, 62
      %v703 = vpop.permute.xlu0 %702
      %704 = vrot.lane.b32.xlu0 %v356, 62
      %v705 = vpop.permute.xlu0 %704
      %706 = vrot.lane.b32.xlu0 %v357, 62
      %v707 = vpop.permute.xlu0 %706
      %708 = vrot.lane.b32.xlu0 %v358, 62
      %v709 = vpop.permute.xlu0 %708
      %710 = vrot.lane.b32.xlu0 %v359, 62
      %v711 = vpop.permute.xlu0 %710
      %712 = vrot.lane.b32.xlu0 %v360, 62
      %v713 = vpop.permute.xlu0 %712
      %714 = vrot.lane.b32.xlu0 %v361, 62
      %v715 = vpop.permute.xlu0 %714
      %716 = vrot.lane.b32.xlu0 %v362, 62
      %v717 = vpop.permute.xlu0 %716
      %718 = vrot.lane.b32.xlu0 %v363, 62
      %v719 = vpop.permute.xlu0 %718
      %720 = vrot.lane.b32.xlu0 %v364, 62
      %v721 = vpop.permute.xlu0 %720
      %722 = vrot.lane.b32.xlu0 %v365, 62
      %v723 = vpop.permute.xlu0 %722
      %724 = vrot.lane.b32.xlu0 %v366, 62
      %v725 = vpop.permute.xlu0 %724
      %726 = vrot.lane.b32.xlu0 %v367, 62
      %v727 = vpop.permute.xlu0 %726
      %728 = vrot.lane.b32.xlu0 %v368, 62
      %v729 = vpop.permute.xlu0 %728
      %730 = vrot.lane.b32.xlu0 %v369, 62
      %v731 = vpop.permute.xlu0 %730
      %732 = vrot.lane.b32.xlu0 %v370, 62
      %v733 = vpop.permute.xlu0 %732
      %734 = vrot.lane.b32.xlu0 %v371, 62
      %v735 = vpop.permute.xlu0 %734
      %736 = vrot.lane.b32.xlu0 %v372, 62
      %v737 = vpop.permute.xlu0 %736
      %738 = vrot.lane.b32.xlu0 %v373, 62
      %v739 = vpop.permute.xlu0 %738
      %740 = vrot.lane.b32.xlu0 %v374, 62
      %v741 = vpop.permute.xlu0 %740
      %742 = vrot.lane.b32.xlu0 %v375, 62
      %v743 = vpop.permute.xlu0 %742
      %744 = vrot.lane.b32.xlu0 %v376, 62
      %v745 = vpop.permute.xlu0 %744
      %746 = vrot.lane.b32.xlu0 %v377, 62
      %v747 = vpop.permute.xlu0 %746
      %748 = vrot.lane.b32.xlu0 %v378, 62
      %v749 = vpop.permute.xlu0 %748
      %750 = vrot.lane.b32.xlu0 %v379, 62
      %v751 = vpop.permute.xlu0 %750
      %752 = vrot.lane.b32.xlu0 %v415, 62
      %v753 = vpop.permute.xlu0 %752
      %vm754 = vcmask 506880
      %v755 = vsel %vm754, %v687, %v689
      %v756 = vsel %vm754, %v689, %v691
      %v757 = vsel %vm754, %v691, %v693
      %v758 = vsel %vm754, %v693, %v695
      %v759 = vsel %vm754, %v695, %v697
      %v760 = vsel %vm754, %v697, %v699
      %v761 = vsel %vm754, %v699, %v701
      %v762 = vsel %vm754, %v701, %v703
      %v763 = vsel %vm754, %v703, %v705
      %v764 = vsel %vm754, %v705, %v707
      %v765 = vsel %vm754, %v707, %v709
      %v766 = vsel %vm754, %v709, %v711
      %v767 = vsel %vm754, %v711, %v713
      %v768 = vsel %vm754, %v713, %v715
      %v769 = vsel %vm754, %v715, %v717
      %v770 = vsel %vm754, %v717, %v719
      %v771 = vsel %vm754, %v719, %v721
      %v772 = vsel %vm754, %v721, %v723
      %v773 = vsel %vm754, %v723, %v725
      %v774 = vsel %vm754, %v725, %v727
      %v775 = vsel %vm754, %v727, %v729
      %v776 = vsel %vm754, %v729, %v731
      %v777 = vsel %vm754, %v731, %v733
      %v778 = vsel %vm754, %v733, %v735
      %v779 = vsel %vm754, %v735, %v737
      %v780 = vsel %vm754, %v737, %v739
      %v781 = vsel %vm754, %v739, %v741
      %v782 = vsel %vm754, %v741, %v743
      %v783 = vsel %vm754, %v743, %v745
      %v784 = vsel %vm754, %v745, %v747
      %v785 = vsel %vm754, %v747, %v749
      %v786 = vsel %vm754, %v749, %v751
      %v787 = vsel %vm754, %v751, %v753
      %821 = vrot.lane.b32.xlu0 %v347, 61
      %v822 = vpop.permute.xlu0 %821
      %823 = vrot.lane.b32.xlu0 %v348, 61
      %v824 = vpop.permute.xlu0 %823
      %825 = vrot.lane.b32.xlu0 %v349, 61
      %v826 = vpop.permute.xlu0 %825
      %827 = vrot.lane.b32.xlu0 %v350, 61
      %v828 = vpop.permute.xlu0 %827
      %829 = vrot.lane.b32.xlu0 %v351, 61
      %v830 = vpop.permute.xlu0 %829
      %831 = vrot.lane.b32.xlu0 %v352, 61
      %v832 = vpop.permute.xlu0 %831
      %833 = vrot.lane.b32.xlu0 %v353, 61
      %v834 = vpop.permute.xlu0 %833
      %835 = vrot.lane.b32.xlu0 %v354, 61
      %v836 = vpop.permute.xlu0 %835
      %837 = vrot.lane.b32.xlu0 %v355, 61
      %v838 = vpop.permute.xlu0 %837
      %839 = vrot.lane.b32.xlu0 %v356, 61
      %v840 = vpop.permute.xlu0 %839
      %841 = vrot.lane.b32.xlu0 %v357, 61
      %v842 = vpop.permute.xlu0 %841
      %843 = vrot.lane.b32.xlu0 %v358, 61
      %v844 = vpop.permute.xlu0 %843
      %845 = vrot.lane.b32.xlu0 %v359, 61
      %v846 = vpop.permute.xlu0 %845
      %847 = vrot.lane.b32.xlu0 %v360, 61
      %v848 = vpop.permute.xlu0 %847
      %849 = vrot.lane.b32.xlu0 %v361, 61
      %v850 = vpop.permute.xlu0 %849
      %851 = vrot.lane.b32.xlu0 %v362, 61
      %v852 = vpop.permute.xlu0 %851
      %853 = vrot.lane.b32.xlu0 %v363, 61
      %v854 = vpop.permute.xlu0 %853
      %855 = vrot.lane.b32.xlu0 %v364, 61
      %v856 = vpop.permute.xlu0 %855
      %857 = vrot.lane.b32.xlu0 %v365, 61
      %v858 = vpop.permute.xlu0 %857
      %859 = vrot.lane.b32.xlu0 %v366, 61
      %v860 = vpop.permute.xlu0 %859
      %861 = vrot.lane.b32.xlu0 %v367, 61
      %v862 = vpop.permute.xlu0 %861
      %863 = vrot.lane.b32.xlu0 %v368, 61
      %v864 = vpop.permute.xlu0 %863
      %865 = vrot.lane.b32.xlu0 %v369, 61
      %v866 = vpop.permute.xlu0 %865
      %867 = vrot.lane.b32.xlu0 %v370, 61
      %v868 = vpop.permute.xlu0 %867
      %869 = vrot.lane.b32.xlu0 %v371, 61
      %v870 = vpop.permute.xlu0 %869
      %871 = vrot.lane.b32.xlu0 %v372, 61
      %v872 = vpop.permute.xlu0 %871
      %873 = vrot.lane.b32.xlu0 %v373, 61
      %v874 = vpop.permute.xlu0 %873
      %875 = vrot.lane.b32.xlu0 %v374, 61
      %v876 = vpop.permute.xlu0 %875
      %877 = vrot.lane.b32.xlu0 %v375, 61
      %v878 = vpop.permute.xlu0 %877
      %879 = vrot.lane.b32.xlu0 %v376, 61
      %v880 = vpop.permute.xlu0 %879
      %881 = vrot.lane.b32.xlu0 %v377, 61
      %v882 = vpop.permute.xlu0 %881
      %883 = vrot.lane.b32.xlu0 %v378, 61
      %v884 = vpop.permute.xlu0 %883
      %885 = vrot.lane.b32.xlu0 %v379, 61
      %v886 = vpop.permute.xlu0 %885
      %887 = vrot.lane.b32.xlu0 %v415, 61
      %v888 = vpop.permute.xlu0 %887
      %vm889 = vcmask 498688
      %v890 = vsel %vm889, %v822, %v824
      %v891 = vsel %vm889, %v824, %v826
      %v892 = vsel %vm889, %v826, %v828
      %v893 = vsel %vm889, %v828, %v830
      %v894 = vsel %vm889, %v830, %v832
      %v895 = vsel %vm889, %v832, %v834
      %v896 = vsel %vm889, %v834, %v836
      %v897 = vsel %vm889, %v836, %v838
      %v898 = vsel %vm889, %v838, %v840
      %v899 = vsel %vm889, %v840, %v842
      %v900 = vsel %vm889, %v842, %v844
      %v901 = vsel %vm889, %v844, %v846
      %v902 = vsel %vm889, %v846, %v848
      %v903 = vsel %vm889, %v848, %v850
      %v904 = vsel %vm889, %v850, %v852
      %v905 = vsel %vm889, %v852, %v854
      %v906 = vsel %vm889, %v854, %v856
      %v907 = vsel %vm889, %v856, %v858
      %v908 = vsel %vm889, %v858, %v860
      %v909 = vsel %vm889, %v860, %v862
      %v910 = vsel %vm889, %v862, %v864
      %v911 = vsel %vm889, %v864, %v866
      %v912 = vsel %vm889, %v866, %v868
      %v913 = vsel %vm889, %v868, %v870
      %v914 = vsel %vm889, %v870, %v872
      %v915 = vsel %vm889, %v872, %v874
      %v916 = vsel %vm889, %v874, %v876
      %v917 = vsel %vm889, %v876, %v878
      %v918 = vsel %vm889, %v878, %v880
      %v919 = vsel %vm889, %v880, %v882
      %v920 = vsel %vm889, %v882, %v884
      %v921 = vsel %vm889, %v884, %v886
      %v922 = vsel %vm889, %v886, %v888
      %956 = vrot.lane.b32.xlu0 %v347, 60
      %v957 = vpop.permute.xlu0 %956
      %958 = vrot.lane.b32.xlu0 %v348, 60
      %v959 = vpop.permute.xlu0 %958
      %960 = vrot.lane.b32.xlu0 %v349, 60
      %v961 = vpop.permute.xlu0 %960
      %962 = vrot.lane.b32.xlu0 %v350, 60
      %v963 = vpop.permute.xlu0 %962
      %964 = vrot.lane.b32.xlu0 %v351, 60
      %v965 = vpop.permute.xlu0 %964
      %966 = vrot.lane.b32.xlu0 %v352, 60
      %v967 = vpop.permute.xlu0 %966
      %968 = vrot.lane.b32.xlu0 %v353, 60
      %v969 = vpop.permute.xlu0 %968
      %970 = vrot.lane.b32.xlu0 %v354, 60
      %v971 = vpop.permute.xlu0 %970
      %972 = vrot.lane.b32.xlu0 %v355, 60
      %v973 = vpop.permute.xlu0 %972
      %974 = vrot.lane.b32.xlu0 %v356, 60
      %v975 = vpop.permute.xlu0 %974
      %976 = vrot.lane.b32.xlu0 %v357, 60
      %v977 = vpop.permute.xlu0 %976
      %978 = vrot.lane.b32.xlu0 %v358, 60
      %v979 = vpop.permute.xlu0 %978
      %980 = vrot.lane.b32.xlu0 %v359, 60
      %v981 = vpop.permute.xlu0 %980
      %982 = vrot.lane.b32.xlu0 %v360, 60
      %v983 = vpop.permute.xlu0 %982
      %984 = vrot.lane.b32.xlu0 %v361, 60
      %v985 = vpop.permute.xlu0 %984
      %986 = vrot.lane.b32.xlu0 %v362, 60
      %v987 = vpop.permute.xlu0 %986
      %988 = vrot.lane.b32.xlu0 %v363, 60
      %v989 = vpop.permute.xlu0 %988
      %990 = vrot.lane.b32.xlu0 %v364, 60
      %v991 = vpop.permute.xlu0 %990
      %992 = vrot.lane.b32.xlu0 %v365, 60
      %v993 = vpop.permute.xlu0 %992
      %994 = vrot.lane.b32.xlu0 %v366, 60
      %v995 = vpop.permute.xlu0 %994
      %996 = vrot.lane.b32.xlu0 %v367, 60
      %v997 = vpop.permute.xlu0 %996
      %998 = vrot.lane.b32.xlu0 %v368, 60
      %v999 = vpop.permute.xlu0 %998
      %1000 = vrot.lane.b32.xlu0 %v369, 60
      %v1001 = vpop.permute.xlu0 %1000
      %1002 = vrot.lane.b32.xlu0 %v370, 60
      %v1003 = vpop.permute.xlu0 %1002
      %1004 = vrot.lane.b32.xlu0 %v371, 60
      %v1005 = vpop.permute.xlu0 %1004
      %1006 = vrot.lane.b32.xlu0 %v372, 60
      %v1007 = vpop.permute.xlu0 %1006
      %1008 = vrot.lane.b32.xlu0 %v373, 60
      %v1009 = vpop.permute.xlu0 %1008
      %1010 = vrot.lane.b32.xlu0 %v374, 60
      %v1011 = vpop.permute.xlu0 %1010
      %1012 = vrot.lane.b32.xlu0 %v375, 60
      %v1013 = vpop.permute.xlu0 %1012
      %1014 = vrot.lane.b32.xlu0 %v376, 60
      %v1015 = vpop.permute.xlu0 %1014
      %1016 = vrot.lane.b32.xlu0 %v377, 60
      %v1017 = vpop.permute.xlu0 %1016
      %1018 = vrot.lane.b32.xlu0 %v378, 60
      %v1019 = vpop.permute.xlu0 %1018
      %1020 = vrot.lane.b32.xlu0 %v379, 60
      %v1021 = vpop.permute.xlu0 %1020
      %1022 = vrot.lane.b32.xlu0 %v415, 60
      %v1023 = vpop.permute.xlu0 %1022
      %vm1024 = vcmask 490496
      %v1025 = vsel %vm1024, %v957, %v959
      %v1026 = vsel %vm1024, %v959, %v961
      %v1027 = vsel %vm1024, %v961, %v963
      %v1028 = vsel %vm1024, %v963, %v965
      %v1029 = vsel %vm1024, %v965, %v967
      %v1030 = vsel %vm1024, %v967, %v969
      %v1031 = vsel %vm1024, %v969, %v971
      %v1032 = vsel %vm1024, %v971, %v973
      %v1033 = vsel %vm1024, %v973, %v975
      %v1034 = vsel %vm1024, %v975, %v977
      %v1035 = vsel %vm1024, %v977, %v979
      %v1036 = vsel %vm1024, %v979, %v981
      %v1037 = vsel %vm1024, %v981, %v983
      %v1038 = vsel %vm1024, %v983, %v985
      %v1039 = vsel %vm1024, %v985, %v987
      %v1040 = vsel %vm1024, %v987, %v989
      %v1041 = vsel %vm1024, %v989, %v991
      %v1042 = vsel %vm1024, %v991, %v993
      %v1043 = vsel %vm1024, %v993, %v995
      %v1044 = vsel %vm1024, %v995, %v997
      %v1045 = vsel %vm1024, %v997, %v999
      %v1046 = vsel %vm1024, %v999, %v1001
      %v1047 = vsel %vm1024, %v1001, %v1003
      %v1048 = vsel %vm1024, %v1003, %v1005
      %v1049 = vsel %vm1024, %v1005, %v1007
      %v1050 = vsel %vm1024, %v1007, %v1009
      %v1051 = vsel %vm1024, %v1009, %v1011
      %v1052 = vsel %vm1024, %v1011, %v1013
      %v1053 = vsel %vm1024, %v1013, %v1015
      %v1054 = vsel %vm1024, %v1015, %v1017
      %v1055 = vsel %vm1024, %v1017, %v1019
      %v1056 = vsel %vm1024, %v1019, %v1021
      %v1057 = vsel %vm1024, %v1021, %v1023
      %v1093 = vunpack.c.l.b16 %v228
      %v1094 = vunpack.c.l.b16 %v246
      %v1095 = vpack.c.b16 %v1094, %v1093
      %1096 = vrot.lane.b32.xlu0 %v348, 124
      %v1097 = vpop.permute.xlu0 %1096
      %1098 = vrot.lane.b32.xlu0 %v349, 124
      %v1099 = vpop.permute.xlu0 %1098
      %1100 = vrot.lane.b32.xlu0 %v350, 124
      %v1101 = vpop.permute.xlu0 %1100
      %1102 = vrot.lane.b32.xlu0 %v351, 124
      %v1103 = vpop.permute.xlu0 %1102
      %1104 = vrot.lane.b32.xlu0 %v352, 124
      %v1105 = vpop.permute.xlu0 %1104
      %1106 = vrot.lane.b32.xlu0 %v353, 124
      %v1107 = vpop.permute.xlu0 %1106
      %1108 = vrot.lane.b32.xlu0 %v354, 124
      %v1109 = vpop.permute.xlu0 %1108
      %1110 = vrot.lane.b32.xlu0 %v355, 124
      %v1111 = vpop.permute.xlu0 %1110
      %1112 = vrot.lane.b32.xlu0 %v356, 124
      %v1113 = vpop.permute.xlu0 %1112
      %1114 = vrot.lane.b32.xlu0 %v357, 124
      %v1115 = vpop.permute.xlu0 %1114
      %1116 = vrot.lane.b32.xlu0 %v358, 124
      %v1117 = vpop.permute.xlu0 %1116
      %1118 = vrot.lane.b32.xlu0 %v359, 124
      %v1119 = vpop.permute.xlu0 %1118
      %1120 = vrot.lane.b32.xlu0 %v360, 124
      %v1121 = vpop.permute.xlu0 %1120
      %1122 = vrot.lane.b32.xlu0 %v361, 124
      %v1123 = vpop.permute.xlu0 %1122
      %1124 = vrot.lane.b32.xlu0 %v362, 124
      %v1125 = vpop.permute.xlu0 %1124
      %1126 = vrot.lane.b32.xlu0 %v363, 124
      %v1127 = vpop.permute.xlu0 %1126
      %1128 = vrot.lane.b32.xlu0 %v364, 124
      %v1129 = vpop.permute.xlu0 %1128
      %1130 = vrot.lane.b32.xlu0 %v365, 124
      %v1131 = vpop.permute.xlu0 %1130
      %1132 = vrot.lane.b32.xlu0 %v366, 124
      %v1133 = vpop.permute.xlu0 %1132
      %1134 = vrot.lane.b32.xlu0 %v367, 124
      %v1135 = vpop.permute.xlu0 %1134
      %1136 = vrot.lane.b32.xlu0 %v368, 124
      %v1137 = vpop.permute.xlu0 %1136
      %1138 = vrot.lane.b32.xlu0 %v369, 124
      %v1139 = vpop.permute.xlu0 %1138
      %1140 = vrot.lane.b32.xlu0 %v370, 124
      %v1141 = vpop.permute.xlu0 %1140
      %1142 = vrot.lane.b32.xlu0 %v371, 124
      %v1143 = vpop.permute.xlu0 %1142
      %1144 = vrot.lane.b32.xlu0 %v372, 124
      %v1145 = vpop.permute.xlu0 %1144
      %1146 = vrot.lane.b32.xlu0 %v373, 124
      %v1147 = vpop.permute.xlu0 %1146
      %1148 = vrot.lane.b32.xlu0 %v374, 124
      %v1149 = vpop.permute.xlu0 %1148
      %1150 = vrot.lane.b32.xlu0 %v375, 124
      %v1151 = vpop.permute.xlu0 %1150
      %1152 = vrot.lane.b32.xlu0 %v376, 124
      %v1153 = vpop.permute.xlu0 %1152
      %1154 = vrot.lane.b32.xlu0 %v377, 124
      %v1155 = vpop.permute.xlu0 %1154
      %1156 = vrot.lane.b32.xlu0 %v378, 124
      %v1157 = vpop.permute.xlu0 %1156
      %1158 = vrot.lane.b32.xlu0 %v379, 124
      %v1159 = vpop.permute.xlu0 %1158
      %1160 = vrot.lane.b32.xlu0 %v415, 124
      %v1161 = vpop.permute.xlu0 %1160
      %1162 = vrot.lane.b32.xlu0 %v1095, 124
      %v1163 = vpop.permute.xlu0 %1162
      %vm1164 = vcmask 1014784
      %v1165 = vsel %vm1164, %v1097, %v1099
      %v1166 = vsel %vm1164, %v1099, %v1101
      %v1167 = vsel %vm1164, %v1101, %v1103
      %v1168 = vsel %vm1164, %v1103, %v1105
      %v1169 = vsel %vm1164, %v1105, %v1107
      %v1170 = vsel %vm1164, %v1107, %v1109
      %v1171 = vsel %vm1164, %v1109, %v1111
      %v1172 = vsel %vm1164, %v1111, %v1113
      %v1173 = vsel %vm1164, %v1113, %v1115
      %v1174 = vsel %vm1164, %v1115, %v1117
      %v1175 = vsel %vm1164, %v1117, %v1119
      %v1176 = vsel %vm1164, %v1119, %v1121
      %v1177 = vsel %vm1164, %v1121, %v1123
      %v1178 = vsel %vm1164, %v1123, %v1125
      %v1179 = vsel %vm1164, %v1125, %v1127
      %v1180 = vsel %vm1164, %v1127, %v1129
      %v1181 = vsel %vm1164, %v1129, %v1131
      %v1182 = vsel %vm1164, %v1131, %v1133
      %v1183 = vsel %vm1164, %v1133, %v1135
      %v1184 = vsel %vm1164, %v1135, %v1137
      %v1185 = vsel %vm1164, %v1137, %v1139
      %v1186 = vsel %vm1164, %v1139, %v1141
      %v1187 = vsel %vm1164, %v1141, %v1143
      %v1188 = vsel %vm1164, %v1143, %v1145
      %v1189 = vsel %vm1164, %v1145, %v1147
      %v1190 = vsel %vm1164, %v1147, %v1149
      %v1191 = vsel %vm1164, %v1149, %v1151
      %v1192 = vsel %vm1164, %v1151, %v1153
      %v1193 = vsel %vm1164, %v1153, %v1155
      %v1194 = vsel %vm1164, %v1155, %v1157
      %v1195 = vsel %vm1164, %v1157, %v1159
      %v1196 = vsel %vm1164, %v1159, %v1161
      %v1197 = vsel %vm1164, %v1161, %v1163
      %1231 = vrot.lane.b32.xlu0 %v348, 123
      %v1232 = vpop.permute.xlu0 %1231
      %1233 = vrot.lane.b32.xlu0 %v349, 123
      %v1234 = vpop.permute.xlu0 %1233
      %1235 = vrot.lane.b32.xlu0 %v350, 123
      %v1236 = vpop.permute.xlu0 %1235
      %1237 = vrot.lane.b32.xlu0 %v351, 123
      %v1238 = vpop.permute.xlu0 %1237
      %1239 = vrot.lane.b32.xlu0 %v352, 123
      %v1240 = vpop.permute.xlu0 %1239
      %1241 = vrot.lane.b32.xlu0 %v353, 123
      %v1242 = vpop.permute.xlu0 %1241
      %1243 = vrot.lane.b32.xlu0 %v354, 123
      %v1244 = vpop.permute.xlu0 %1243
      %1245 = vrot.lane.b32.xlu0 %v355, 123
      %v1246 = vpop.permute.xlu0 %1245
      %1247 = vrot.lane.b32.xlu0 %v356, 123
      %v1248 = vpop.permute.xlu0 %1247
      %1249 = vrot.lane.b32.xlu0 %v357, 123
      %v1250 = vpop.permute.xlu0 %1249
      %1251 = vrot.lane.b32.xlu0 %v358, 123
      %v1252 = vpop.permute.xlu0 %1251
      %1253 = vrot.lane.b32.xlu0 %v359, 123
      %v1254 = vpop.permute.xlu0 %1253
      %1255 = vrot.lane.b32.xlu0 %v360, 123
      %v1256 = vpop.permute.xlu0 %1255
      %1257 = vrot.lane.b32.xlu0 %v361, 123
      %v1258 = vpop.permute.xlu0 %1257
      %1259 = vrot.lane.b32.xlu0 %v362, 123
      %v1260 = vpop.permute.xlu0 %1259
      %1261 = vrot.lane.b32.xlu0 %v363, 123
      %v1262 = vpop.permute.xlu0 %1261
      %1263 = vrot.lane.b32.xlu0 %v364, 123
      %v1264 = vpop.permute.xlu0 %1263
      %1265 = vrot.lane.b32.xlu0 %v365, 123
      %v1266 = vpop.permute.xlu0 %1265
      %1267 = vrot.lane.b32.xlu0 %v366, 123
      %v1268 = vpop.permute.xlu0 %1267
      %1269 = vrot.lane.b32.xlu0 %v367, 123
      %v1270 = vpop.permute.xlu0 %1269
      %1271 = vrot.lane.b32.xlu0 %v368, 123
      %v1272 = vpop.permute.xlu0 %1271
      %1273 = vrot.lane.b32.xlu0 %v369, 123
      %v1274 = vpop.permute.xlu0 %1273
      %1275 = vrot.lane.b32.xlu0 %v370, 123
      %v1276 = vpop.permute.xlu0 %1275
      %1277 = vrot.lane.b32.xlu0 %v371, 123
      %v1278 = vpop.permute.xlu0 %1277
      %1279 = vrot.lane.b32.xlu0 %v372, 123
      %v1280 = vpop.permute.xlu0 %1279
      %1281 = vrot.lane.b32.xlu0 %v373, 123
      %v1282 = vpop.permute.xlu0 %1281
      %1283 = vrot.lane.b32.xlu0 %v374, 123
      %v1284 = vpop.permute.xlu0 %1283
      %1285 = vrot.lane.b32.xlu0 %v375, 123
      %v1286 = vpop.permute.xlu0 %1285
      %1287 = vrot.lane.b32.xlu0 %v376, 123
      %v1288 = vpop.permute.xlu0 %1287
      %1289 = vrot.lane.b32.xlu0 %v377, 123
      %v1290 = vpop.permute.xlu0 %1289
      %1291 = vrot.lane.b32.xlu0 %v378, 123
      %v1292 = vpop.permute.xlu0 %1291
      %1293 = vrot.lane.b32.xlu0 %v379, 123
      %v1294 = vpop.permute.xlu0 %1293
      %1295 = vrot.lane.b32.xlu0 %v415, 123
      %v1296 = vpop.permute.xlu0 %1295
      %1297 = vrot.lane.b32.xlu0 %v1095, 123
      %v1298 = vpop.permute.xlu0 %1297
      %vm1299 = vcmask 1006592
      %v1300 = vsel %vm1299, %v1232, %v1234
      %v1301 = vsel %vm1299, %v1234, %v1236
      %v1302 = vsel %vm1299, %v1236, %v1238
      %v1303 = vsel %vm1299, %v1238, %v1240
      %v1304 = vsel %vm1299, %v1240, %v1242
      %v1305 = vsel %vm1299, %v1242, %v1244
      %v1306 = vsel %vm1299, %v1244, %v1246
      %v1307 = vsel %vm1299, %v1246, %v1248
      %v1308 = vsel %vm1299, %v1248, %v1250
      %v1309 = vsel %vm1299, %v1250, %v1252
      %v1310 = vsel %vm1299, %v1252, %v1254
      %v1311 = vsel %vm1299, %v1254, %v1256
      %v1312 = vsel %vm1299, %v1256, %v1258
      %v1313 = vsel %vm1299, %v1258, %v1260
      %v1314 = vsel %vm1299, %v1260, %v1262
      %v1315 = vsel %vm1299, %v1262, %v1264
      %v1316 = vsel %vm1299, %v1264, %v1266
      %v1317 = vsel %vm1299, %v1266, %v1268
      %v1318 = vsel %vm1299, %v1268, %v1270
      %v1319 = vsel %vm1299, %v1270, %v1272
      %v1320 = vsel %vm1299, %v1272, %v1274
      %v1321 = vsel %vm1299, %v1274, %v1276
      %v1322 = vsel %vm1299, %v1276, %v1278
      %v1323 = vsel %vm1299, %v1278, %v1280
      %v1324 = vsel %vm1299, %v1280, %v1282
      %v1325 = vsel %vm1299, %v1282, %v1284
      %v1326 = vsel %vm1299, %v1284, %v1286
      %v1327 = vsel %vm1299, %v1286, %v1288
      %v1328 = vsel %vm1299, %v1288, %v1290
      %v1329 = vsel %vm1299, %v1290, %v1292
      %v1330 = vsel %vm1299, %v1292, %v1294
      %v1331 = vsel %vm1299, %v1294, %v1296
      %v1332 = vsel %vm1299, %v1296, %v1298
      %1366 = vrot.lane.b32.xlu0 %v348, 122
      %v1367 = vpop.permute.xlu0 %1366
      %1368 = vrot.lane.b32.xlu0 %v349, 122
      %v1369 = vpop.permute.xlu0 %1368
      %1370 = vrot.lane.b32.xlu0 %v350, 122
      %v1371 = vpop.permute.xlu0 %1370
      %1372 = vrot.lane.b32.xlu0 %v351, 122
      %v1373 = vpop.permute.xlu0 %1372
      %1374 = vrot.lane.b32.xlu0 %v352, 122
      %v1375 = vpop.permute.xlu0 %1374
      %1376 = vrot.lane.b32.xlu0 %v353, 122
      %v1377 = vpop.permute.xlu0 %1376
      %1378 = vrot.lane.b32.xlu0 %v354, 122
      %v1379 = vpop.permute.xlu0 %1378
      %1380 = vrot.lane.b32.xlu0 %v355, 122
      %v1381 = vpop.permute.xlu0 %1380
      %1382 = vrot.lane.b32.xlu0 %v356, 122
      %v1383 = vpop.permute.xlu0 %1382
      %1384 = vrot.lane.b32.xlu0 %v357, 122
      %v1385 = vpop.permute.xlu0 %1384
      %1386 = vrot.lane.b32.xlu0 %v358, 122
      %v1387 = vpop.permute.xlu0 %1386
      %1388 = vrot.lane.b32.xlu0 %v359, 122
      %v1389 = vpop.permute.xlu0 %1388
      %1390 = vrot.lane.b32.xlu0 %v360, 122
      %v1391 = vpop.permute.xlu0 %1390
      %1392 = vrot.lane.b32.xlu0 %v361, 122
      %v1393 = vpop.permute.xlu0 %1392
      %1394 = vrot.lane.b32.xlu0 %v362, 122
      %v1395 = vpop.permute.xlu0 %1394
      %1396 = vrot.lane.b32.xlu0 %v363, 122
      %v1397 = vpop.permute.xlu0 %1396
      %1398 = vrot.lane.b32.xlu0 %v364, 122
      %v1399 = vpop.permute.xlu0 %1398
      %1400 = vrot.lane.b32.xlu0 %v365, 122
      %v1401 = vpop.permute.xlu0 %1400
      %1402 = vrot.lane.b32.xlu0 %v366, 122
      %v1403 = vpop.permute.xlu0 %1402
      %1404 = vrot.lane.b32.xlu0 %v367, 122
      %v1405 = vpop.permute.xlu0 %1404
      %1406 = vrot.lane.b32.xlu0 %v368, 122
      %v1407 = vpop.permute.xlu0 %1406
      %1408 = vrot.lane.b32.xlu0 %v369, 122
      %v1409 = vpop.permute.xlu0 %1408
      %1410 = vrot.lane.b32.xlu0 %v370, 122
      %v1411 = vpop.permute.xlu0 %1410
      %1412 = vrot.lane.b32.xlu0 %v371, 122
      %v1413 = vpop.permute.xlu0 %1412
      %1414 = vrot.lane.b32.xlu0 %v372, 122
      %v1415 = vpop.permute.xlu0 %1414
      %1416 = vrot.lane.b32.xlu0 %v373, 122
      %v1417 = vpop.permute.xlu0 %1416
      %1418 = vrot.lane.b32.xlu0 %v374, 122
      %v1419 = vpop.permute.xlu0 %1418
      %1420 = vrot.lane.b32.xlu0 %v375, 122
      %v1421 = vpop.permute.xlu0 %1420
      %1422 = vrot.lane.b32.xlu0 %v376, 122
      %v1423 = vpop.permute.xlu0 %1422
      %1424 = vrot.lane.b32.xlu0 %v377, 122
      %v1425 = vpop.permute.xlu0 %1424
      %1426 = vrot.lane.b32.xlu0 %v378, 122
      %v1427 = vpop.permute.xlu0 %1426
      %1428 = vrot.lane.b32.xlu0 %v379, 122
      %v1429 = vpop.permute.xlu0 %1428
      %1430 = vrot.lane.b32.xlu0 %v415, 122
      %v1431 = vpop.permute.xlu0 %1430
      %1432 = vrot.lane.b32.xlu0 %v1095, 122
      %v1433 = vpop.permute.xlu0 %1432
      %vm1434 = vcmask 998400
      %v1435 = vsel %vm1434, %v1367, %v1369
      %v1436 = vsel %vm1434, %v1369, %v1371
      %v1437 = vsel %vm1434, %v1371, %v1373
      %v1438 = vsel %vm1434, %v1373, %v1375
      %v1439 = vsel %vm1434, %v1375, %v1377
      %v1440 = vsel %vm1434, %v1377, %v1379
      %v1441 = vsel %vm1434, %v1379, %v1381
      %v1442 = vsel %vm1434, %v1381, %v1383
      %v1443 = vsel %vm1434, %v1383, %v1385
      %v1444 = vsel %vm1434, %v1385, %v1387
      %v1445 = vsel %vm1434, %v1387, %v1389
      %v1446 = vsel %vm1434, %v1389, %v1391
      %v1447 = vsel %vm1434, %v1391, %v1393
      %v1448 = vsel %vm1434, %v1393, %v1395
      %v1449 = vsel %vm1434, %v1395, %v1397
      %v1450 = vsel %vm1434, %v1397, %v1399
      %v1451 = vsel %vm1434, %v1399, %v1401
      %v1452 = vsel %vm1434, %v1401, %v1403
      %v1453 = vsel %vm1434, %v1403, %v1405
      %v1454 = vsel %vm1434, %v1405, %v1407
      %v1455 = vsel %vm1434, %v1407, %v1409
      %v1456 = vsel %vm1434, %v1409, %v1411
      %v1457 = vsel %vm1434, %v1411, %v1413
      %v1458 = vsel %vm1434, %v1413, %v1415
      %v1459 = vsel %vm1434, %v1415, %v1417
      %v1460 = vsel %vm1434, %v1417, %v1419
      %v1461 = vsel %vm1434, %v1419, %v1421
      %v1462 = vsel %vm1434, %v1421, %v1423
      %v1463 = vsel %vm1434, %v1423, %v1425
      %v1464 = vsel %vm1434, %v1425, %v1427
      %v1465 = vsel %vm1434, %v1427, %v1429
      %v1466 = vsel %vm1434, %v1429, %v1431
      %v1467 = vsel %vm1434, %v1431, %v1433
      %v1501 = vld [vmem:[%s1] sm:$0xff]
      %v1502 = vld [vmem:[%s2] sm:$0xff]
      %1504 = vset.pattern.permute.xlu0 0
      %1505 = vperm.xlu0 %1504, %v1502
      %v1506 = vpop.permute.xlu0 %1505
      %v1509 = vunpack.c.l.b16 %v1501
      %v1510 = vunpack.c.h.b16 %v1501
      %v1511 = vpack.c.b16 %v1509, %v1509
      %v1512 = vpack.c.b16 %v1510, %v1510
      %vm1514 = vcmask 130048
      %v1516 = vsel %vm1514, %v1512, 0
      %1518 = vmatpush.bf16.msra.mxu0 %v1300
      %1519 = vmatpush.bf16.msra.mxu0 %v1165
      %1520 = vmatpush.bf16.msra.mxu0 %v1025
      %1521 = vmatpush.bf16.msra.mxu0 %v890
      %1522 = vmatpush.bf16.msra.mxu0 %v755
      %1523 = vmatpush.bf16.msra.mxu0 %v620
      %1524 = vmatpush.bf16.msra.mxu0 %v485
      %1525 = vmatpush.bf16.msra.mxu0 %v347
      %1526 = vmatmul.bf16.gmra.mxu0 %v1511
      %v1527 = vpop.f32.mrf.mxu0
      %v1528 = vadd.f32 %v1506, %v1527
      %v1529 = vpop.f32.mrf.mxu0
      %1530 = vdwg.mxu0
      %1531 = vmatpush.bf16.msra.mxu0 0
      %1532 = vmatpush.bf16.msra.mxu0 0
      %1533 = vmatpush.bf16.msra.mxu0 0
      %1534 = vmatpush.bf16.msra.mxu0 0
      %1535 = vmatpush.bf16.msra.mxu0 0
      %1536 = vmatpush.bf16.msra.mxu0 0
      %1537 = vmatpush.bf16.msra.mxu0 0
      %1538 = vmatpush.bf16.msra.mxu0 %v1435
      %1539 = vmatmul.bf16.gmra.mxu0 %v1516
      %v1540 = vpop.f32.mrf.mxu0
      %v1541 = vadd.f32 %v1528, %v1540
      %v1542 = vpop.f32.mrf.mxu0
      %1543 = vdwg.mxu0
      %1544 = vmatpush.bf16.msra.mxu0 %v1301
      %1545 = vmatpush.bf16.msra.mxu0 %v1166
      %1546 = vmatpush.bf16.msra.mxu0 %v1026
      %1547 = vmatpush.bf16.msra.mxu0 %v891
      %1548 = vmatpush.bf16.msra.mxu0 %v756
      %1549 = vmatpush.bf16.msra.mxu0 %v621
      %1550 = vmatpush.bf16.msra.mxu0 %v486
      %1551 = vmatpush.bf16.msra.mxu0 %v348
      %1552 = vmatmul.bf16.gmra.mxu0 %v1511
      %v1553 = vpop.f32.mrf.mxu0
      %v1554 = vadd.f32 %v1506, %v1553
      %v1555 = vpop.f32.mrf.mxu0
      %1556 = vdwg.mxu0
      %1557 = vmatpush.bf16.msra.mxu0 0
      %1558 = vmatpush.bf16.msra.mxu0 0
      %1559 = vmatpush.bf16.msra.mxu0 0
      %1560 = vmatpush.bf16.msra.mxu0 0
      %1561 = vmatpush.bf16.msra.mxu0 0
      %1562 = vmatpush.bf16.msra.mxu0 0
      %1563 = vmatpush.bf16.msra.mxu0 0
      %1564 = vmatpush.bf16.msra.mxu0 %v1436
      %1565 = vmatmul.bf16.gmra.mxu0 %v1516
      %v1566 = vpop.f32.mrf.mxu0
      %v1567 = vadd.f32 %v1554, %v1566
      %v1568 = vpop.f32.mrf.mxu0
      %1569 = vdwg.mxu0
      %1570 = vmatpush.bf16.msra.mxu0 %v1302
      %1571 = vmatpush.bf16.msra.mxu0 %v1167
      %1572 = vmatpush.bf16.msra.mxu0 %v1027
      %1573 = vmatpush.bf16.msra.mxu0 %v892
      %1574 = vmatpush.bf16.msra.mxu0 %v757
      %1575 = vmatpush.bf16.msra.mxu0 %v622
      %1576 = vmatpush.bf16.msra.mxu0 %v487
      %1577 = vmatpush.bf16.msra.mxu0 %v349
      %1578 = vmatmul.bf16.gmra.mxu0 %v1511
      %v1579 = vpop.f32.mrf.mxu0
      %v1580 = vadd.f32 %v1506, %v1579
      %v1581 = vpop.f32.mrf.mxu0
      %1582 = vdwg.mxu0
      %1583 = vmatpush.bf16.msra.mxu0 0
      %1584 = vmatpush.bf16.msra.mxu0 0
      %1585 = vmatpush.bf16.msra.mxu0 0
      %1586 = vmatpush.bf16.msra.mxu0 0
      %1587 = vmatpush.bf16.msra.mxu0 0
      %1588 = vmatpush.bf16.msra.mxu0 0
      %1589 = vmatpush.bf16.msra.mxu0 0
      %1590 = vmatpush.bf16.msra.mxu0 %v1437
      %1591 = vmatmul.bf16.gmra.mxu0 %v1516
      %v1592 = vpop.f32.mrf.mxu0
      %v1593 = vadd.f32 %v1580, %v1592
      %v1594 = vpop.f32.mrf.mxu0
      %1595 = vdwg.mxu0
      %1596 = vmatpush.bf16.msra.mxu0 %v1303
      %1597 = vmatpush.bf16.msra.mxu0 %v1168
      %1598 = vmatpush.bf16.msra.mxu0 %v1028
      %1599 = vmatpush.bf16.msra.mxu0 %v893
      %1600 = vmatpush.bf16.msra.mxu0 %v758
      %1601 = vmatpush.bf16.msra.mxu0 %v623
      %1602 = vmatpush.bf16.msra.mxu0 %v488
      %1603 = vmatpush.bf16.msra.mxu0 %v350
      %1604 = vmatmul.bf16.gmra.mxu0 %v1511
      %v1605 = vpop.f32.mrf.mxu0
      %v1606 = vadd.f32 %v1506, %v1605
      %v1607 = vpop.f32.mrf.mxu0
      %1608 = vdwg.mxu0
      %1609 = vmatpush.bf16.msra.mxu0 0
      %1610 = vmatpush.bf16.msra.mxu0 0
      %1611 = vmatpush.bf16.msra.mxu0 0
      %1612 = vmatpush.bf16.msra.mxu0 0
      %1613 = vmatpush.bf16.msra.mxu0 0
      %1614 = vmatpush.bf16.msra.mxu0 0
      %1615 = vmatpush.bf16.msra.mxu0 0
      %1616 = vmatpush.bf16.msra.mxu0 %v1438
      %1617 = vmatmul.bf16.gmra.mxu0 %v1516
      %v1618 = vpop.f32.mrf.mxu0
      %v1619 = vadd.f32 %v1606, %v1618
      %v1620 = vpop.f32.mrf.mxu0
      %1621 = vdwg.mxu0
      %1622 = vmatpush.bf16.msra.mxu0 %v1304
      %1623 = vmatpush.bf16.msra.mxu0 %v1169
      %1624 = vmatpush.bf16.msra.mxu0 %v1029
      %1625 = vmatpush.bf16.msra.mxu0 %v894
      %1626 = vmatpush.bf16.msra.mxu0 %v759
      %1627 = vmatpush.bf16.msra.mxu0 %v624
      %1628 = vmatpush.bf16.msra.mxu0 %v489
      %1629 = vmatpush.bf16.msra.mxu0 %v351
      %1630 = vmatmul.bf16.gmra.mxu0 %v1511
      %v1631 = vpop.f32.mrf.mxu0
      %v1632 = vadd.f32 %v1506, %v1631
      %v1633 = vpop.f32.mrf.mxu0
      %1634 = vdwg.mxu0
      %1635 = vmatpush.bf16.msra.mxu0 0
      %1636 = vmatpush.bf16.msra.mxu0 0
      %1637 = vmatpush.bf16.msra.mxu0 0
      %1638 = vmatpush.bf16.msra.mxu0 0
      %1639 = vmatpush.bf16.msra.mxu0 0
      %1640 = vmatpush.bf16.msra.mxu0 0
      %1641 = vmatpush.bf16.msra.mxu0 0
      %1642 = vmatpush.bf16.msra.mxu0 %v1439
      %1643 = vmatmul.bf16.gmra.mxu0 %v1516
      %v1644 = vpop.f32.mrf.mxu0
      %v1645 = vadd.f32 %v1632, %v1644
      %v1646 = vpop.f32.mrf.mxu0
      %1647 = vdwg.mxu0
      %1648 = vmatpush.bf16.msra.mxu0 %v1305
      %1649 = vmatpush.bf16.msra.mxu0 %v1170
      %1650 = vmatpush.bf16.msra.mxu0 %v1030
      %1651 = vmatpush.bf16.msra.mxu0 %v895
      %1652 = vmatpush.bf16.msra.mxu0 %v760
      %1653 = vmatpush.bf16.msra.mxu0 %v625
      %1654 = vmatpush.bf16.msra.mxu0 %v490
      %1655 = vmatpush.bf16.msra.mxu0 %v352
      %1656 = vmatmul.bf16.gmra.mxu0 %v1511
      %v1657 = vpop.f32.mrf.mxu0
      %v1658 = vadd.f32 %v1506, %v1657
      %v1659 = vpop.f32.mrf.mxu0
      %1660 = vdwg.mxu0
      %1661 = vmatpush.bf16.msra.mxu0 0
      %1662 = vmatpush.bf16.msra.mxu0 0
      %1663 = vmatpush.bf16.msra.mxu0 0
      %1664 = vmatpush.bf16.msra.mxu0 0
      %1665 = vmatpush.bf16.msra.mxu0 0
      %1666 = vmatpush.bf16.msra.mxu0 0
      %1667 = vmatpush.bf16.msra.mxu0 0
      %1668 = vmatpush.bf16.msra.mxu0 %v1440
      %1669 = vmatmul.bf16.gmra.mxu0 %v1516
      %v1670 = vpop.f32.mrf.mxu0
      %v1671 = vadd.f32 %v1658, %v1670
      %v1672 = vpop.f32.mrf.mxu0
      %1673 = vdwg.mxu0
      %1674 = vmatpush.bf16.msra.mxu0 %v1306
      %1675 = vmatpush.bf16.msra.mxu0 %v1171
      %1676 = vmatpush.bf16.msra.mxu0 %v1031
      %1677 = vmatpush.bf16.msra.mxu0 %v896
      %1678 = vmatpush.bf16.msra.mxu0 %v761
      %1679 = vmatpush.bf16.msra.mxu0 %v626
      %1680 = vmatpush.bf16.msra.mxu0 %v491
      %1681 = vmatpush.bf16.msra.mxu0 %v353
      %1682 = vmatmul.bf16.gmra.mxu0 %v1511
      %v1683 = vpop.f32.mrf.mxu0
      %v1684 = vadd.f32 %v1506, %v1683
      %v1685 = vpop.f32.mrf.mxu0
      %1686 = vdwg.mxu0
      %1687 = vmatpush.bf16.msra.mxu0 0
      %1688 = vmatpush.bf16.msra.mxu0 0
      %1689 = vmatpush.bf16.msra.mxu0 0
      %1690 = vmatpush.bf16.msra.mxu0 0
      %1691 = vmatpush.bf16.msra.mxu0 0
      %1692 = vmatpush.bf16.msra.mxu0 0
      %1693 = vmatpush.bf16.msra.mxu0 0
      %1694 = vmatpush.bf16.msra.mxu0 %v1441
      %1695 = vmatmul.bf16.gmra.mxu0 %v1516
      %v1696 = vpop.f32.mrf.mxu0
      %v1697 = vadd.f32 %v1684, %v1696
      %v1698 = vpop.f32.mrf.mxu0
      %1699 = vdwg.mxu0
      %1700 = vmatpush.bf16.msra.mxu0 %v1307
      %1701 = vmatpush.bf16.msra.mxu0 %v1172
      %1702 = vmatpush.bf16.msra.mxu0 %v1032
      %1703 = vmatpush.bf16.msra.mxu0 %v897
      %1704 = vmatpush.bf16.msra.mxu0 %v762
      %1705 = vmatpush.bf16.msra.mxu0 %v627
      %1706 = vmatpush.bf16.msra.mxu0 %v492
      %1707 = vmatpush.bf16.msra.mxu0 %v354
      %1708 = vmatmul.bf16.gmra.mxu0 %v1511
      %v1709 = vpop.f32.mrf.mxu0
      %v1710 = vadd.f32 %v1506, %v1709
      %v1711 = vpop.f32.mrf.mxu0
      %1712 = vdwg.mxu0
      %1713 = vmatpush.bf16.msra.mxu0 0
      %1714 = vmatpush.bf16.msra.mxu0 0
      %1715 = vmatpush.bf16.msra.mxu0 0
      %1716 = vmatpush.bf16.msra.mxu0 0
      %1717 = vmatpush.bf16.msra.mxu0 0
      %1718 = vmatpush.bf16.msra.mxu0 0
      %1719 = vmatpush.bf16.msra.mxu0 0
      %1720 = vmatpush.bf16.msra.mxu0 %v1442
      %1721 = vmatmul.bf16.gmra.mxu0 %v1516
      %v1722 = vpop.f32.mrf.mxu0
      %v1723 = vadd.f32 %v1710, %v1722
      %v1724 = vpop.f32.mrf.mxu0
      %1725 = vdwg.mxu0
      %1726 = vmatpush.bf16.msra.mxu0 %v1308
      %1727 = vmatpush.bf16.msra.mxu0 %v1173
      %1728 = vmatpush.bf16.msra.mxu0 %v1033
      %1729 = vmatpush.bf16.msra.mxu0 %v898
      %1730 = vmatpush.bf16.msra.mxu0 %v763
      %1731 = vmatpush.bf16.msra.mxu0 %v628
      %1732 = vmatpush.bf16.msra.mxu0 %v493
      %1733 = vmatpush.bf16.msra.mxu0 %v355
      %1734 = vmatmul.bf16.gmra.mxu0 %v1511
      %v1735 = vpop.f32.mrf.mxu0
      %v1736 = vadd.f32 %v1506, %v1735
      %v1737 = vpop.f32.mrf.mxu0
      %1738 = vdwg.mxu0
      %1739 = vmatpush.bf16.msra.mxu0 0
      %1740 = vmatpush.bf16.msra.mxu0 0
      %1741 = vmatpush.bf16.msra.mxu0 0
      %1742 = vmatpush.bf16.msra.mxu0 0
      %1743 = vmatpush.bf16.msra.mxu0 0
      %1744 = vmatpush.bf16.msra.mxu0 0
      %1745 = vmatpush.bf16.msra.mxu0 0
      %1746 = vmatpush.bf16.msra.mxu0 %v1443
      %1747 = vmatmul.bf16.gmra.mxu0 %v1516
      %v1748 = vpop.f32.mrf.mxu0
      %v1749 = vadd.f32 %v1736, %v1748
      %v1750 = vpop.f32.mrf.mxu0
      %1751 = vdwg.mxu0
      %1752 = vmatpush.bf16.msra.mxu0 %v1309
      %1753 = vmatpush.bf16.msra.mxu0 %v1174
      %1754 = vmatpush.bf16.msra.mxu0 %v1034
      %1755 = vmatpush.bf16.msra.mxu0 %v899
      %1756 = vmatpush.bf16.msra.mxu0 %v764
      %1757 = vmatpush.bf16.msra.mxu0 %v629
      %1758 = vmatpush.bf16.msra.mxu0 %v494
      %1759 = vmatpush.bf16.msra.mxu0 %v356
      %1760 = vmatmul.bf16.gmra.mxu0 %v1511
      %v1761 = vpop.f32.mrf.mxu0
      %v1762 = vadd.f32 %v1506, %v1761
      %v1763 = vpop.f32.mrf.mxu0
      %1764 = vdwg.mxu0
      %1765 = vmatpush.bf16.msra.mxu0 0
      %1766 = vmatpush.bf16.msra.mxu0 0
      %1767 = vmatpush.bf16.msra.mxu0 0
      %1768 = vmatpush.bf16.msra.mxu0 0
      %1769 = vmatpush.bf16.msra.mxu0 0
      %1770 = vmatpush.bf16.msra.mxu0 0
      %1771 = vmatpush.bf16.msra.mxu0 0
      %1772 = vmatpush.bf16.msra.mxu0 %v1444
      %1773 = vmatmul.bf16.gmra.mxu0 %v1516
      %v1774 = vpop.f32.mrf.mxu0
      %v1775 = vadd.f32 %v1762, %v1774
      %v1776 = vpop.f32.mrf.mxu0
      %1777 = vdwg.mxu0
      %1778 = vmatpush.bf16.msra.mxu0 %v1310
      %1779 = vmatpush.bf16.msra.mxu0 %v1175
      %1780 = vmatpush.bf16.msra.mxu0 %v1035
      %1781 = vmatpush.bf16.msra.mxu0 %v900
      %1782 = vmatpush.bf16.msra.mxu0 %v765
      %1783 = vmatpush.bf16.msra.mxu0 %v630
      %1784 = vmatpush.bf16.msra.mxu0 %v495
      %1785 = vmatpush.bf16.msra.mxu0 %v357
      %1786 = vmatmul.bf16.gmra.mxu0 %v1511
      %v1787 = vpop.f32.mrf.mxu0
      %v1788 = vadd.f32 %v1506, %v1787
      %v1789 = vpop.f32.mrf.mxu0
      %1790 = vdwg.mxu0
      %1791 = vmatpush.bf16.msra.mxu0 0
      %1792 = vmatpush.bf16.msra.mxu0 0
      %1793 = vmatpush.bf16.msra.mxu0 0
      %1794 = vmatpush.bf16.msra.mxu0 0
      %1795 = vmatpush.bf16.msra.mxu0 0
      %1796 = vmatpush.bf16.msra.mxu0 0
      %1797 = vmatpush.bf16.msra.mxu0 0
      %1798 = vmatpush.bf16.msra.mxu0 %v1445
      %1799 = vmatmul.bf16.gmra.mxu0 %v1516
      %v1800 = vpop.f32.mrf.mxu0
      %v1801 = vadd.f32 %v1788, %v1800
      %v1802 = vpop.f32.mrf.mxu0
      %1803 = vdwg.mxu0
      %1804 = vmatpush.bf16.msra.mxu0 %v1311
      %1805 = vmatpush.bf16.msra.mxu0 %v1176
      %1806 = vmatpush.bf16.msra.mxu0 %v1036
      %1807 = vmatpush.bf16.msra.mxu0 %v901
      %1808 = vmatpush.bf16.msra.mxu0 %v766
      %1809 = vmatpush.bf16.msra.mxu0 %v631
      %1810 = vmatpush.bf16.msra.mxu0 %v496
      %1811 = vmatpush.bf16.msra.mxu0 %v358
      %1812 = vmatmul.bf16.gmra.mxu0 %v1511
      %v1813 = vpop.f32.mrf.mxu0
      %v1814 = vadd.f32 %v1506, %v1813
      %v1815 = vpop.f32.mrf.mxu0
      %1816 = vdwg.mxu0
      %1817 = vmatpush.bf16.msra.mxu0 0
      %1818 = vmatpush.bf16.msra.mxu0 0
      %1819 = vmatpush.bf16.msra.mxu0 0
      %1820 = vmatpush.bf16.msra.mxu0 0
      %1821 = vmatpush.bf16.msra.mxu0 0
      %1822 = vmatpush.bf16.msra.mxu0 0
      %1823 = vmatpush.bf16.msra.mxu0 0
      %1824 = vmatpush.bf16.msra.mxu0 %v1446
      %1825 = vmatmul.bf16.gmra.mxu0 %v1516
      %v1826 = vpop.f32.mrf.mxu0
      %v1827 = vadd.f32 %v1814, %v1826
      %v1828 = vpop.f32.mrf.mxu0
      %1829 = vdwg.mxu0
      %1830 = vmatpush.bf16.msra.mxu0 %v1312
      %1831 = vmatpush.bf16.msra.mxu0 %v1177
      %1832 = vmatpush.bf16.msra.mxu0 %v1037
      %1833 = vmatpush.bf16.msra.mxu0 %v902
      %1834 = vmatpush.bf16.msra.mxu0 %v767
      %1835 = vmatpush.bf16.msra.mxu0 %v632
      %1836 = vmatpush.bf16.msra.mxu0 %v497
      %1837 = vmatpush.bf16.msra.mxu0 %v359
      %1838 = vmatmul.bf16.gmra.mxu0 %v1511
      %v1839 = vpop.f32.mrf.mxu0
      %v1840 = vadd.f32 %v1506, %v1839
      %v1841 = vpop.f32.mrf.mxu0
      %1842 = vdwg.mxu0
      %1843 = vmatpush.bf16.msra.mxu0 0
      %1844 = vmatpush.bf16.msra.mxu0 0
      %1845 = vmatpush.bf16.msra.mxu0 0
      %1846 = vmatpush.bf16.msra.mxu0 0
      %1847 = vmatpush.bf16.msra.mxu0 0
      %1848 = vmatpush.bf16.msra.mxu0 0
      %1849 = vmatpush.bf16.msra.mxu0 0
      %1850 = vmatpush.bf16.msra.mxu0 %v1447
      %1851 = vmatmul.bf16.gmra.mxu0 %v1516
      %v1852 = vpop.f32.mrf.mxu0
      %v1853 = vadd.f32 %v1840, %v1852
      %v1854 = vpop.f32.mrf.mxu0
      %1855 = vdwg.mxu0
      %1856 = vmatpush.bf16.msra.mxu0 %v1313
      %1857 = vmatpush.bf16.msra.mxu0 %v1178
      %1858 = vmatpush.bf16.msra.mxu0 %v1038
      %1859 = vmatpush.bf16.msra.mxu0 %v903
      %1860 = vmatpush.bf16.msra.mxu0 %v768
      %1861 = vmatpush.bf16.msra.mxu0 %v633
      %1862 = vmatpush.bf16.msra.mxu0 %v498
      %1863 = vmatpush.bf16.msra.mxu0 %v360
      %1864 = vmatmul.bf16.gmra.mxu0 %v1511
      %v1865 = vpop.f32.mrf.mxu0
      %v1866 = vadd.f32 %v1506, %v1865
      %v1867 = vpop.f32.mrf.mxu0
      %1868 = vdwg.mxu0
      %1869 = vmatpush.bf16.msra.mxu0 0
      %1870 = vmatpush.bf16.msra.mxu0 0
      %1871 = vmatpush.bf16.msra.mxu0 0
      %1872 = vmatpush.bf16.msra.mxu0 0
      %1873 = vmatpush.bf16.msra.mxu0 0
      %1874 = vmatpush.bf16.msra.mxu0 0
      %1875 = vmatpush.bf16.msra.mxu0 0
      %1876 = vmatpush.bf16.msra.mxu0 %v1448
      %1877 = vmatmul.bf16.gmra.mxu0 %v1516
      %v1878 = vpop.f32.mrf.mxu0
      %v1879 = vadd.f32 %v1866, %v1878
      %v1880 = vpop.f32.mrf.mxu0
      %1881 = vdwg.mxu0
      %1882 = vmatpush.bf16.msra.mxu0 %v1314
      %1883 = vmatpush.bf16.msra.mxu0 %v1179
      %1884 = vmatpush.bf16.msra.mxu0 %v1039
      %1885 = vmatpush.bf16.msra.mxu0 %v904
      %1886 = vmatpush.bf16.msra.mxu0 %v769
      %1887 = vmatpush.bf16.msra.mxu0 %v634
      %1888 = vmatpush.bf16.msra.mxu0 %v499
      %1889 = vmatpush.bf16.msra.mxu0 %v361
      %1890 = vmatmul.bf16.gmra.mxu0 %v1511
      %v1891 = vpop.f32.mrf.mxu0
      %v1892 = vadd.f32 %v1506, %v1891
      %v1893 = vpop.f32.mrf.mxu0
      %1894 = vdwg.mxu0
      %1895 = vmatpush.bf16.msra.mxu0 0
      %1896 = vmatpush.bf16.msra.mxu0 0
      %1897 = vmatpush.bf16.msra.mxu0 0
      %1898 = vmatpush.bf16.msra.mxu0 0
      %1899 = vmatpush.bf16.msra.mxu0 0
      %1900 = vmatpush.bf16.msra.mxu0 0
      %1901 = vmatpush.bf16.msra.mxu0 0
      %1902 = vmatpush.bf16.msra.mxu0 %v1449
      %1903 = vmatmul.bf16.gmra.mxu0 %v1516
      %v1904 = vpop.f32.mrf.mxu0
      %v1905 = vadd.f32 %v1892, %v1904
      %v1906 = vpop.f32.mrf.mxu0
      %1907 = vdwg.mxu0
      %1908 = vmatpush.bf16.msra.mxu0 %v1315
      %1909 = vmatpush.bf16.msra.mxu0 %v1180
      %1910 = vmatpush.bf16.msra.mxu0 %v1040
      %1911 = vmatpush.bf16.msra.mxu0 %v905
      %1912 = vmatpush.bf16.msra.mxu0 %v770
      %1913 = vmatpush.bf16.msra.mxu0 %v635
      %1914 = vmatpush.bf16.msra.mxu0 %v500
      %1915 = vmatpush.bf16.msra.mxu0 %v362
      %1916 = vmatmul.bf16.gmra.mxu0 %v1511
      %v1917 = vpop.f32.mrf.mxu0
      %v1918 = vadd.f32 %v1506, %v1917
      %v1919 = vpop.f32.mrf.mxu0
      %1920 = vdwg.mxu0
      %1921 = vmatpush.bf16.msra.mxu0 0
      %1922 = vmatpush.bf16.msra.mxu0 0
      %1923 = vmatpush.bf16.msra.mxu0 0
      %1924 = vmatpush.bf16.msra.mxu0 0
      %1925 = vmatpush.bf16.msra.mxu0 0
      %1926 = vmatpush.bf16.msra.mxu0 0
      %1927 = vmatpush.bf16.msra.mxu0 0
      %1928 = vmatpush.bf16.msra.mxu0 %v1450
      %1929 = vmatmul.bf16.gmra.mxu0 %v1516
      %v1930 = vpop.f32.mrf.mxu0
      %v1931 = vadd.f32 %v1918, %v1930
      %v1932 = vpop.f32.mrf.mxu0
      %1933 = vdwg.mxu0
      %1934 = vmatpush.bf16.msra.mxu0 %v1316
      %1935 = vmatpush.bf16.msra.mxu0 %v1181
      %1936 = vmatpush.bf16.msra.mxu0 %v1041
      %1937 = vmatpush.bf16.msra.mxu0 %v906
      %1938 = vmatpush.bf16.msra.mxu0 %v771
      %1939 = vmatpush.bf16.msra.mxu0 %v636
      %1940 = vmatpush.bf16.msra.mxu0 %v501
      %1941 = vmatpush.bf16.msra.mxu0 %v363
      %1942 = vmatmul.bf16.gmra.mxu0 %v1511
      %v1943 = vpop.f32.mrf.mxu0
      %v1944 = vadd.f32 %v1506, %v1943
      %v1945 = vpop.f32.mrf.mxu0
      %1946 = vdwg.mxu0
      %1947 = vmatpush.bf16.msra.mxu0 0
      %1948 = vmatpush.bf16.msra.mxu0 0
      %1949 = vmatpush.bf16.msra.mxu0 0
      %1950 = vmatpush.bf16.msra.mxu0 0
      %1951 = vmatpush.bf16.msra.mxu0 0
      %1952 = vmatpush.bf16.msra.mxu0 0
      %1953 = vmatpush.bf16.msra.mxu0 0
      %1954 = vmatpush.bf16.msra.mxu0 %v1451
      %1955 = vmatmul.bf16.gmra.mxu0 %v1516
      %v1956 = vpop.f32.mrf.mxu0
      %v1957 = vadd.f32 %v1944, %v1956
      %v1958 = vpop.f32.mrf.mxu0
      %1959 = vdwg.mxu0
      %1960 = vmatpush.bf16.msra.mxu0 %v1317
      %1961 = vmatpush.bf16.msra.mxu0 %v1182
      %1962 = vmatpush.bf16.msra.mxu0 %v1042
      %1963 = vmatpush.bf16.msra.mxu0 %v907
      %1964 = vmatpush.bf16.msra.mxu0 %v772
      %1965 = vmatpush.bf16.msra.mxu0 %v637
      %1966 = vmatpush.bf16.msra.mxu0 %v502
      %1967 = vmatpush.bf16.msra.mxu0 %v364
      %1968 = vmatmul.bf16.gmra.mxu0 %v1511
      %v1969 = vpop.f32.mrf.mxu0
      %v1970 = vadd.f32 %v1506, %v1969
      %v1971 = vpop.f32.mrf.mxu0
      %1972 = vdwg.mxu0
      %1973 = vmatpush.bf16.msra.mxu0 0
      %1974 = vmatpush.bf16.msra.mxu0 0
      %1975 = vmatpush.bf16.msra.mxu0 0
      %1976 = vmatpush.bf16.msra.mxu0 0
      %1977 = vmatpush.bf16.msra.mxu0 0
      %1978 = vmatpush.bf16.msra.mxu0 0
      %1979 = vmatpush.bf16.msra.mxu0 0
      %1980 = vmatpush.bf16.msra.mxu0 %v1452
      %1981 = vmatmul.bf16.gmra.mxu0 %v1516
      %v1982 = vpop.f32.mrf.mxu0
      %v1983 = vadd.f32 %v1970, %v1982
      %v1984 = vpop.f32.mrf.mxu0
      %1985 = vdwg.mxu0
      %1986 = vmatpush.bf16.msra.mxu0 %v1318
      %1987 = vmatpush.bf16.msra.mxu0 %v1183
      %1988 = vmatpush.bf16.msra.mxu0 %v1043
      %1989 = vmatpush.bf16.msra.mxu0 %v908
      %1990 = vmatpush.bf16.msra.mxu0 %v773
      %1991 = vmatpush.bf16.msra.mxu0 %v638
      %1992 = vmatpush.bf16.msra.mxu0 %v503
      %1993 = vmatpush.bf16.msra.mxu0 %v365
      %1994 = vmatmul.bf16.gmra.mxu0 %v1511
      %v1995 = vpop.f32.mrf.mxu0
      %v1996 = vadd.f32 %v1506, %v1995
      %v1997 = vpop.f32.mrf.mxu0
      %1998 = vdwg.mxu0
      %1999 = vmatpush.bf16.msra.mxu0 0
      %2000 = vmatpush.bf16.msra.mxu0 0
      %2001 = vmatpush.bf16.msra.mxu0 0
      %2002 = vmatpush.bf16.msra.mxu0 0
      %2003 = vmatpush.bf16.msra.mxu0 0
      %2004 = vmatpush.bf16.msra.mxu0 0
      %2005 = vmatpush.bf16.msra.mxu0 0
      %2006 = vmatpush.bf16.msra.mxu0 %v1453
      %2007 = vmatmul.bf16.gmra.mxu0 %v1516
      %v2008 = vpop.f32.mrf.mxu0
      %v2009 = vadd.f32 %v1996, %v2008
      %v2010 = vpop.f32.mrf.mxu0
      %2011 = vdwg.mxu0
      %2012 = vmatpush.bf16.msra.mxu0 %v1319
      %2013 = vmatpush.bf16.msra.mxu0 %v1184
      %2014 = vmatpush.bf16.msra.mxu0 %v1044
      %2015 = vmatpush.bf16.msra.mxu0 %v909
      %2016 = vmatpush.bf16.msra.mxu0 %v774
      %2017 = vmatpush.bf16.msra.mxu0 %v639
      %2018 = vmatpush.bf16.msra.mxu0 %v504
      %2019 = vmatpush.bf16.msra.mxu0 %v366
      %2020 = vmatmul.bf16.gmra.mxu0 %v1511
      %v2021 = vpop.f32.mrf.mxu0
      %v2022 = vadd.f32 %v1506, %v2021
      %v2023 = vpop.f32.mrf.mxu0
      %2024 = vdwg.mxu0
      %2025 = vmatpush.bf16.msra.mxu0 0
      %2026 = vmatpush.bf16.msra.mxu0 0
      %2027 = vmatpush.bf16.msra.mxu0 0
      %2028 = vmatpush.bf16.msra.mxu0 0
      %2029 = vmatpush.bf16.msra.mxu0 0
      %2030 = vmatpush.bf16.msra.mxu0 0
      %2031 = vmatpush.bf16.msra.mxu0 0
      %2032 = vmatpush.bf16.msra.mxu0 %v1454
      %2033 = vmatmul.bf16.gmra.mxu0 %v1516
      %v2034 = vpop.f32.mrf.mxu0
      %v2035 = vadd.f32 %v2022, %v2034
      %v2036 = vpop.f32.mrf.mxu0
      %2037 = vdwg.mxu0
      %2038 = vmatpush.bf16.msra.mxu0 %v1320
      %2039 = vmatpush.bf16.msra.mxu0 %v1185
      %2040 = vmatpush.bf16.msra.mxu0 %v1045
      %2041 = vmatpush.bf16.msra.mxu0 %v910
      %2042 = vmatpush.bf16.msra.mxu0 %v775
      %2043 = vmatpush.bf16.msra.mxu0 %v640
      %2044 = vmatpush.bf16.msra.mxu0 %v505
      %2045 = vmatpush.bf16.msra.mxu0 %v367
      %2046 = vmatmul.bf16.gmra.mxu0 %v1511
      %v2047 = vpop.f32.mrf.mxu0
      %v2048 = vadd.f32 %v1506, %v2047
      %v2049 = vpop.f32.mrf.mxu0
      %2050 = vdwg.mxu0
      %2051 = vmatpush.bf16.msra.mxu0 0
      %2052 = vmatpush.bf16.msra.mxu0 0
      %2053 = vmatpush.bf16.msra.mxu0 0
      %2054 = vmatpush.bf16.msra.mxu0 0
      %2055 = vmatpush.bf16.msra.mxu0 0
      %2056 = vmatpush.bf16.msra.mxu0 0
      %2057 = vmatpush.bf16.msra.mxu0 0
      %2058 = vmatpush.bf16.msra.mxu0 %v1455
      %2059 = vmatmul.bf16.gmra.mxu0 %v1516
      %v2060 = vpop.f32.mrf.mxu0
      %v2061 = vadd.f32 %v2048, %v2060
      %v2062 = vpop.f32.mrf.mxu0
      %2063 = vdwg.mxu0
      %2064 = vmatpush.bf16.msra.mxu0 %v1321
      %2065 = vmatpush.bf16.msra.mxu0 %v1186
      %2066 = vmatpush.bf16.msra.mxu0 %v1046
      %2067 = vmatpush.bf16.msra.mxu0 %v911
      %2068 = vmatpush.bf16.msra.mxu0 %v776
      %2069 = vmatpush.bf16.msra.mxu0 %v641
      %2070 = vmatpush.bf16.msra.mxu0 %v506
      %2071 = vmatpush.bf16.msra.mxu0 %v368
      %2072 = vmatmul.bf16.gmra.mxu0 %v1511
      %v2073 = vpop.f32.mrf.mxu0
      %v2074 = vadd.f32 %v1506, %v2073
      %v2075 = vpop.f32.mrf.mxu0
      %2076 = vdwg.mxu0
      %2077 = vmatpush.bf16.msra.mxu0 0
      %2078 = vmatpush.bf16.msra.mxu0 0
      %2079 = vmatpush.bf16.msra.mxu0 0
      %2080 = vmatpush.bf16.msra.mxu0 0
      %2081 = vmatpush.bf16.msra.mxu0 0
      %2082 = vmatpush.bf16.msra.mxu0 0
      %2083 = vmatpush.bf16.msra.mxu0 0
      %2084 = vmatpush.bf16.msra.mxu0 %v1456
      %2085 = vmatmul.bf16.gmra.mxu0 %v1516
      %v2086 = vpop.f32.mrf.mxu0
      %v2087 = vadd.f32 %v2074, %v2086
      %v2088 = vpop.f32.mrf.mxu0
      %2089 = vdwg.mxu0
      %2090 = vmatpush.bf16.msra.mxu0 %v1322
      %2091 = vmatpush.bf16.msra.mxu0 %v1187
      %2092 = vmatpush.bf16.msra.mxu0 %v1047
      %2093 = vmatpush.bf16.msra.mxu0 %v912
      %2094 = vmatpush.bf16.msra.mxu0 %v777
      %2095 = vmatpush.bf16.msra.mxu0 %v642
      %2096 = vmatpush.bf16.msra.mxu0 %v507
      %2097 = vmatpush.bf16.msra.mxu0 %v369
      %2098 = vmatmul.bf16.gmra.mxu0 %v1511
      %v2099 = vpop.f32.mrf.mxu0
      %v2100 = vadd.f32 %v1506, %v2099
      %v2101 = vpop.f32.mrf.mxu0
      %2102 = vdwg.mxu0
      %2103 = vmatpush.bf16.msra.mxu0 0
      %2104 = vmatpush.bf16.msra.mxu0 0
      %2105 = vmatpush.bf16.msra.mxu0 0
      %2106 = vmatpush.bf16.msra.mxu0 0
      %2107 = vmatpush.bf16.msra.mxu0 0
      %2108 = vmatpush.bf16.msra.mxu0 0
      %2109 = vmatpush.bf16.msra.mxu0 0
      %2110 = vmatpush.bf16.msra.mxu0 %v1457
      %2111 = vmatmul.bf16.gmra.mxu0 %v1516
      %v2112 = vpop.f32.mrf.mxu0
      %v2113 = vadd.f32 %v2100, %v2112
      %v2114 = vpop.f32.mrf.mxu0
      %2115 = vdwg.mxu0
      %2116 = vmatpush.bf16.msra.mxu0 %v1323
      %2117 = vmatpush.bf16.msra.mxu0 %v1188
      %2118 = vmatpush.bf16.msra.mxu0 %v1048
      %2119 = vmatpush.bf16.msra.mxu0 %v913
      %2120 = vmatpush.bf16.msra.mxu0 %v778
      %2121 = vmatpush.bf16.msra.mxu0 %v643
      %2122 = vmatpush.bf16.msra.mxu0 %v508
      %2123 = vmatpush.bf16.msra.mxu0 %v370
      %2124 = vmatmul.bf16.gmra.mxu0 %v1511
      %v2125 = vpop.f32.mrf.mxu0
      %v2126 = vadd.f32 %v1506, %v2125
      %v2127 = vpop.f32.mrf.mxu0
      %2128 = vdwg.mxu0
      %2129 = vmatpush.bf16.msra.mxu0 0
      %2130 = vmatpush.bf16.msra.mxu0 0
      %2131 = vmatpush.bf16.msra.mxu0 0
      %2132 = vmatpush.bf16.msra.mxu0 0
      %2133 = vmatpush.bf16.msra.mxu0 0
      %2134 = vmatpush.bf16.msra.mxu0 0
      %2135 = vmatpush.bf16.msra.mxu0 0
      %2136 = vmatpush.bf16.msra.mxu0 %v1458
      %2137 = vmatmul.bf16.gmra.mxu0 %v1516
      %v2138 = vpop.f32.mrf.mxu0
      %v2139 = vadd.f32 %v2126, %v2138
      %v2140 = vpop.f32.mrf.mxu0
      %2141 = vdwg.mxu0
      %2142 = vmatpush.bf16.msra.mxu0 %v1324
      %2143 = vmatpush.bf16.msra.mxu0 %v1189
      %2144 = vmatpush.bf16.msra.mxu0 %v1049
      %2145 = vmatpush.bf16.msra.mxu0 %v914
      %2146 = vmatpush.bf16.msra.mxu0 %v779
      %2147 = vmatpush.bf16.msra.mxu0 %v644
      %2148 = vmatpush.bf16.msra.mxu0 %v509
      %2149 = vmatpush.bf16.msra.mxu0 %v371
      %2150 = vmatmul.bf16.gmra.mxu0 %v1511
      %v2151 = vpop.f32.mrf.mxu0
      %v2152 = vadd.f32 %v1506, %v2151
      %v2153 = vpop.f32.mrf.mxu0
      %2154 = vdwg.mxu0
      %2155 = vmatpush.bf16.msra.mxu0 0
      %2156 = vmatpush.bf16.msra.mxu0 0
      %2157 = vmatpush.bf16.msra.mxu0 0
      %2158 = vmatpush.bf16.msra.mxu0 0
      %2159 = vmatpush.bf16.msra.mxu0 0
      %2160 = vmatpush.bf16.msra.mxu0 0
      %2161 = vmatpush.bf16.msra.mxu0 0
      %2162 = vmatpush.bf16.msra.mxu0 %v1459
      %2163 = vmatmul.bf16.gmra.mxu0 %v1516
      %v2164 = vpop.f32.mrf.mxu0
      %v2165 = vadd.f32 %v2152, %v2164
      %v2166 = vpop.f32.mrf.mxu0
      %2167 = vdwg.mxu0
      %2168 = vmatpush.bf16.msra.mxu0 %v1325
      %2169 = vmatpush.bf16.msra.mxu0 %v1190
      %2170 = vmatpush.bf16.msra.mxu0 %v1050
      %2171 = vmatpush.bf16.msra.mxu0 %v915
      %2172 = vmatpush.bf16.msra.mxu0 %v780
      %2173 = vmatpush.bf16.msra.mxu0 %v645
      %2174 = vmatpush.bf16.msra.mxu0 %v510
      %2175 = vmatpush.bf16.msra.mxu0 %v372
      %2176 = vmatmul.bf16.gmra.mxu0 %v1511
      %v2177 = vpop.f32.mrf.mxu0
      %v2178 = vadd.f32 %v1506, %v2177
      %v2179 = vpop.f32.mrf.mxu0
      %2180 = vdwg.mxu0
      %2181 = vmatpush.bf16.msra.mxu0 0
      %2182 = vmatpush.bf16.msra.mxu0 0
      %2183 = vmatpush.bf16.msra.mxu0 0
      %2184 = vmatpush.bf16.msra.mxu0 0
      %2185 = vmatpush.bf16.msra.mxu0 0
      %2186 = vmatpush.bf16.msra.mxu0 0
      %2187 = vmatpush.bf16.msra.mxu0 0
      %2188 = vmatpush.bf16.msra.mxu0 %v1460
      %2189 = vmatmul.bf16.gmra.mxu0 %v1516
      %v2190 = vpop.f32.mrf.mxu0
      %v2191 = vadd.f32 %v2178, %v2190
      %v2192 = vpop.f32.mrf.mxu0
      %2193 = vdwg.mxu0
      %2194 = vmatpush.bf16.msra.mxu0 %v1326
      %2195 = vmatpush.bf16.msra.mxu0 %v1191
      %2196 = vmatpush.bf16.msra.mxu0 %v1051
      %2197 = vmatpush.bf16.msra.mxu0 %v916
      %2198 = vmatpush.bf16.msra.mxu0 %v781
      %2199 = vmatpush.bf16.msra.mxu0 %v646
      %2200 = vmatpush.bf16.msra.mxu0 %v511
      %2201 = vmatpush.bf16.msra.mxu0 %v373
      %2202 = vmatmul.bf16.gmra.mxu0 %v1511
      %v2203 = vpop.f32.mrf.mxu0
      %v2204 = vadd.f32 %v1506, %v2203
      %v2205 = vpop.f32.mrf.mxu0
      %2206 = vdwg.mxu0
      %2207 = vmatpush.bf16.msra.mxu0 0
      %2208 = vmatpush.bf16.msra.mxu0 0
      %2209 = vmatpush.bf16.msra.mxu0 0
      %2210 = vmatpush.bf16.msra.mxu0 0
      %2211 = vmatpush.bf16.msra.mxu0 0
      %2212 = vmatpush.bf16.msra.mxu0 0
      %2213 = vmatpush.bf16.msra.mxu0 0
      %2214 = vmatpush.bf16.msra.mxu0 %v1461
      %2215 = vmatmul.bf16.gmra.mxu0 %v1516
      %v2216 = vpop.f32.mrf.mxu0
      %v2217 = vadd.f32 %v2204, %v2216
      %v2218 = vpop.f32.mrf.mxu0
      %2219 = vdwg.mxu0
      %2220 = vmatpush.bf16.msra.mxu0 %v1327
      %2221 = vmatpush.bf16.msra.mxu0 %v1192
      %2222 = vmatpush.bf16.msra.mxu0 %v1052
      %2223 = vmatpush.bf16.msra.mxu0 %v917
      %2224 = vmatpush.bf16.msra.mxu0 %v782
      %2225 = vmatpush.bf16.msra.mxu0 %v647
      %2226 = vmatpush.bf16.msra.mxu0 %v512
      %2227 = vmatpush.bf16.msra.mxu0 %v374
      %2228 = vmatmul.bf16.gmra.mxu0 %v1511
      %v2229 = vpop.f32.mrf.mxu0
      %v2230 = vadd.f32 %v1506, %v2229
      %v2231 = vpop.f32.mrf.mxu0
      %2232 = vdwg.mxu0
      %2233 = vmatpush.bf16.msra.mxu0 0
      %2234 = vmatpush.bf16.msra.mxu0 0
      %2235 = vmatpush.bf16.msra.mxu0 0
      %2236 = vmatpush.bf16.msra.mxu0 0
      %2237 = vmatpush.bf16.msra.mxu0 0
      %2238 = vmatpush.bf16.msra.mxu0 0
      %2239 = vmatpush.bf16.msra.mxu0 0
      %2240 = vmatpush.bf16.msra.mxu0 %v1462
      %2241 = vmatmul.bf16.gmra.mxu0 %v1516
      %v2242 = vpop.f32.mrf.mxu0
      %v2243 = vadd.f32 %v2230, %v2242
      %v2244 = vpop.f32.mrf.mxu0
      %2245 = vdwg.mxu0
      %2246 = vmatpush.bf16.msra.mxu0 %v1328
      %2247 = vmatpush.bf16.msra.mxu0 %v1193
      %2248 = vmatpush.bf16.msra.mxu0 %v1053
      %2249 = vmatpush.bf16.msra.mxu0 %v918
      %2250 = vmatpush.bf16.msra.mxu0 %v783
      %2251 = vmatpush.bf16.msra.mxu0 %v648
      %2252 = vmatpush.bf16.msra.mxu0 %v513
      %2253 = vmatpush.bf16.msra.mxu0 %v375
      %2254 = vmatmul.bf16.gmra.mxu0 %v1511
      %v2255 = vpop.f32.mrf.mxu0
      %v2256 = vadd.f32 %v1506, %v2255
      %v2257 = vpop.f32.mrf.mxu0
      %2258 = vdwg.mxu0
      %2259 = vmatpush.bf16.msra.mxu0 0
      %2260 = vmatpush.bf16.msra.mxu0 0
      %2261 = vmatpush.bf16.msra.mxu0 0
      %2262 = vmatpush.bf16.msra.mxu0 0
      %2263 = vmatpush.bf16.msra.mxu0 0
      %2264 = vmatpush.bf16.msra.mxu0 0
      %2265 = vmatpush.bf16.msra.mxu0 0
      %2266 = vmatpush.bf16.msra.mxu0 %v1463
      %2267 = vmatmul.bf16.gmra.mxu0 %v1516
      %v2268 = vpop.f32.mrf.mxu0
      %v2269 = vadd.f32 %v2256, %v2268
      %v2270 = vpop.f32.mrf.mxu0
      %2271 = vdwg.mxu0
      %2272 = vmatpush.bf16.msra.mxu0 %v1329
      %2273 = vmatpush.bf16.msra.mxu0 %v1194
      %2274 = vmatpush.bf16.msra.mxu0 %v1054
      %2275 = vmatpush.bf16.msra.mxu0 %v919
      %2276 = vmatpush.bf16.msra.mxu0 %v784
      %2277 = vmatpush.bf16.msra.mxu0 %v649
      %2278 = vmatpush.bf16.msra.mxu0 %v514
      %2279 = vmatpush.bf16.msra.mxu0 %v376
      %2280 = vmatmul.bf16.gmra.mxu0 %v1511
      %v2281 = vpop.f32.mrf.mxu0
      %v2282 = vadd.f32 %v1506, %v2281
      %v2283 = vpop.f32.mrf.mxu0
      %2284 = vdwg.mxu0
      %2285 = vmatpush.bf16.msra.mxu0 0
      %2286 = vmatpush.bf16.msra.mxu0 0
      %2287 = vmatpush.bf16.msra.mxu0 0
      %2288 = vmatpush.bf16.msra.mxu0 0
      %2289 = vmatpush.bf16.msra.mxu0 0
      %2290 = vmatpush.bf16.msra.mxu0 0
      %2291 = vmatpush.bf16.msra.mxu0 0
      %2292 = vmatpush.bf16.msra.mxu0 %v1464
      %2293 = vmatmul.bf16.gmra.mxu0 %v1516
      %v2294 = vpop.f32.mrf.mxu0
      %v2295 = vadd.f32 %v2282, %v2294
      %v2296 = vpop.f32.mrf.mxu0
      %2297 = vdwg.mxu0
      %2298 = vmatpush.bf16.msra.mxu0 %v1330
      %2299 = vmatpush.bf16.msra.mxu0 %v1195
      %2300 = vmatpush.bf16.msra.mxu0 %v1055
      %2301 = vmatpush.bf16.msra.mxu0 %v920
      %2302 = vmatpush.bf16.msra.mxu0 %v785
      %2303 = vmatpush.bf16.msra.mxu0 %v650
      %2304 = vmatpush.bf16.msra.mxu0 %v515
      %2305 = vmatpush.bf16.msra.mxu0 %v377
      %2306 = vmatmul.bf16.gmra.mxu0 %v1511
      %v2307 = vpop.f32.mrf.mxu0
      %v2308 = vadd.f32 %v1506, %v2307
      %v2309 = vpop.f32.mrf.mxu0
      %2310 = vdwg.mxu0
      %2311 = vmatpush.bf16.msra.mxu0 0
      %2312 = vmatpush.bf16.msra.mxu0 0
      %2313 = vmatpush.bf16.msra.mxu0 0
      %2314 = vmatpush.bf16.msra.mxu0 0
      %2315 = vmatpush.bf16.msra.mxu0 0
      %2316 = vmatpush.bf16.msra.mxu0 0
      %2317 = vmatpush.bf16.msra.mxu0 0
      %2318 = vmatpush.bf16.msra.mxu0 %v1465
      %2319 = vmatmul.bf16.gmra.mxu0 %v1516
      %v2320 = vpop.f32.mrf.mxu0
      %v2321 = vadd.f32 %v2308, %v2320
      %v2322 = vpop.f32.mrf.mxu0
      %2323 = vdwg.mxu0
      %2324 = vmatpush.bf16.msra.mxu0 %v1331
      %2325 = vmatpush.bf16.msra.mxu0 %v1196
      %2326 = vmatpush.bf16.msra.mxu0 %v1056
      %2327 = vmatpush.bf16.msra.mxu0 %v921
      %2328 = vmatpush.bf16.msra.mxu0 %v786
      %2329 = vmatpush.bf16.msra.mxu0 %v651
      %2330 = vmatpush.bf16.msra.mxu0 %v516
      %2331 = vmatpush.bf16.msra.mxu0 %v378
      %2332 = vmatmul.bf16.gmra.mxu0 %v1511
      %v2333 = vpop.f32.mrf.mxu0
      %v2334 = vadd.f32 %v1506, %v2333
      %v2335 = vpop.f32.mrf.mxu0
      %2336 = vdwg.mxu0
      %2337 = vmatpush.bf16.msra.mxu0 0
      %2338 = vmatpush.bf16.msra.mxu0 0
      %2339 = vmatpush.bf16.msra.mxu0 0
      %2340 = vmatpush.bf16.msra.mxu0 0
      %2341 = vmatpush.bf16.msra.mxu0 0
      %2342 = vmatpush.bf16.msra.mxu0 0
      %2343 = vmatpush.bf16.msra.mxu0 0
      %2344 = vmatpush.bf16.msra.mxu0 %v1466
      %2345 = vmatmul.bf16.gmra.mxu0 %v1516
      %v2346 = vpop.f32.mrf.mxu0
      %v2347 = vadd.f32 %v2334, %v2346
      %v2348 = vpop.f32.mrf.mxu0
      %2349 = vdwg.mxu0
      %2350 = vmatpush.bf16.msra.mxu0 %v1332
      %2351 = vmatpush.bf16.msra.mxu0 %v1197
      %2352 = vmatpush.bf16.msra.mxu0 %v1057
      %2353 = vmatpush.bf16.msra.mxu0 %v922
      %2354 = vmatpush.bf16.msra.mxu0 %v787
      %2355 = vmatpush.bf16.msra.mxu0 %v652
      %2356 = vmatpush.bf16.msra.mxu0 %v517
      %2357 = vmatpush.bf16.msra.mxu0 %v379
      %2358 = vmatmul.bf16.gmra.mxu0 %v1511
      %v2359 = vpop.f32.mrf.mxu0
      %v2360 = vadd.f32 %v1506, %v2359
      %v2361 = vpop.f32.mrf.mxu0
      %2362 = vdwg.mxu0
      %2363 = vmatpush.bf16.msra.mxu0 0
      %2364 = vmatpush.bf16.msra.mxu0 0
      %2365 = vmatpush.bf16.msra.mxu0 0
      %2366 = vmatpush.bf16.msra.mxu0 0
      %2367 = vmatpush.bf16.msra.mxu0 0
      %2368 = vmatpush.bf16.msra.mxu0 0
      %2369 = vmatpush.bf16.msra.mxu0 0
      %2370 = vmatpush.bf16.msra.mxu0 %v1467
      %2371 = vmatmul.bf16.gmra.mxu0 %v1516
      %v2372 = vpop.f32.mrf.mxu0
      %v2373 = vadd.f32 %v2360, %v2372
      %v2374 = vpop.f32.mrf.mxu0
      %2375 = vdwg.mxu0
      %v2376 = vmax.f32 %v1541, 0.0
      %v2377 = vmax.f32 %v1567, 0.0
      %v2378 = vmax.f32 %v1593, 0.0
      %v2379 = vmax.f32 %v1619, 0.0
      %v2380 = vmax.f32 %v1645, 0.0
      %v2381 = vmax.f32 %v1671, 0.0
      %v2382 = vmax.f32 %v1697, 0.0
      %v2383 = vmax.f32 %v1723, 0.0
      %v2384 = vmax.f32 %v1749, 0.0
      %v2385 = vmax.f32 %v1775, 0.0
      %v2386 = vmax.f32 %v1801, 0.0
      %v2387 = vmax.f32 %v1827, 0.0
      %v2388 = vmax.f32 %v1853, 0.0
      %v2389 = vmax.f32 %v1879, 0.0
      %v2390 = vmax.f32 %v1905, 0.0
      %v2391 = vmax.f32 %v1931, 0.0
      %v2392 = vmax.f32 %v1957, 0.0
      %v2393 = vmax.f32 %v1983, 0.0
      %v2394 = vmax.f32 %v2009, 0.0
      %v2395 = vmax.f32 %v2035, 0.0
      %v2396 = vmax.f32 %v2061, 0.0
      %v2397 = vmax.f32 %v2087, 0.0
      %v2398 = vmax.f32 %v2113, 0.0
      %v2399 = vmax.f32 %v2139, 0.0
      %v2400 = vmax.f32 %v2165, 0.0
      %v2401 = vmax.f32 %v2191, 0.0
      %v2402 = vmax.f32 %v2217, 0.0
      %v2403 = vmax.f32 %v2243, 0.0
      %v2404 = vmax.f32 %v2269, 0.0
      %v2405 = vmax.f32 %v2295, 0.0
      %v2406 = vmax.f32 %v2321, 0.0
      %v2407 = vmax.f32 %v2347, 0.0
      %v2408 = vmax.f32 %v2373, 0.0
      %s2409 = smul.u32 %s16, 33
      %s2410 = smul.addr %s2409, 8
      %s2411 = scalar_lea.vmem %s5, %s2410
      %2412 = vst [vmem:[%s2411] sm:$0xff] %v2376
      %2413 = vst [vmem:[%s2411 + $0x8] sm:$0xff] %v2377
      %2414 = vst [vmem:[%s2411 + $0x10] sm:$0xff] %v2378
      %2415 = vst [vmem:[%s2411 + $0x18] sm:$0xff] %v2379
      %2416 = vst [vmem:[%s2411 + $0x20] sm:$0xff] %v2380
      %2417 = vst [vmem:[%s2411 + $0x28] sm:$0xff] %v2381
      %2418 = vst [vmem:[%s2411 + $0x30] sm:$0xff] %v2382
      %2419 = vst [vmem:[%s2411 + $0x38] sm:$0xff] %v2383
      %2420 = vst [vmem:[%s2411 + $0x40] sm:$0xff] %v2384
      %2421 = vst [vmem:[%s2411 + $0x48] sm:$0xff] %v2385
      %2422 = vst [vmem:[%s2411 + $0x50] sm:$0xff] %v2386
      %2423 = vst [vmem:[%s2411 + $0x58] sm:$0xff] %v2387
      %2424 = vst [vmem:[%s2411 + $0x60] sm:$0xff] %v2388
      %2425 = vst [vmem:[%s2411 + $0x68] sm:$0xff] %v2389
      %2426 = vst [vmem:[%s2411 + $0x70] sm:$0xff] %v2390
      %2427 = vst [vmem:[%s2411 + $0x78] sm:$0xff] %v2391
      %2428 = vst [vmem:[%s2411 + $0x80] sm:$0xff] %v2392
      %2429 = vst [vmem:[%s2411 + $0x88] sm:$0xff] %v2393
      %2430 = vst [vmem:[%s2411 + $0x90] sm:$0xff] %v2394
      %2431 = vst [vmem:[%s2411 + $0x98] sm:$0xff] %v2395
      %2432 = vst [vmem:[%s2411 + $0xa0] sm:$0xff] %v2396
      %2433 = vst [vmem:[%s2411 + $0xa8] sm:$0xff] %v2397
      %2434 = vst [vmem:[%s2411 + $0xb0] sm:$0xff] %v2398
      %2435 = vst [vmem:[%s2411 + $0xb8] sm:$0xff] %v2399
      %2436 = vst [vmem:[%s2411 + $0xc0] sm:$0xff] %v2400
      %2437 = vst [vmem:[%s2411 + $0xc8] sm:$0xff] %v2401
      %2438 = vst [vmem:[%s2411 + $0xd0] sm:$0xff] %v2402
      %2439 = vst [vmem:[%s2411 + $0xd8] sm:$0xff] %v2403
      %2440 = vst [vmem:[%s2411 + $0xe0] sm:$0xff] %v2404
      %2441 = vst [vmem:[%s2411 + $0xe8] sm:$0xff] %v2405
      %2442 = vst [vmem:[%s2411 + $0xf0] sm:$0xff] %v2406
      %2443 = vst [vmem:[%s2411 + $0xf8] sm:$0xff] %v2407
      %2444 = vst [vmem:[%s2411 + $0x100] sm:$0xff] %v2408
      %p2445 = scmp.eq.s32.totalorder %s16, 1
      // Predicated region
      $region41: #{dec_subpix_branch_forward.8} parent=39 // pred_check
        %p2446 = pneg %p2445
      $region42: #{dec_subpix_branch_forward.8} parent=39 // pred_check_branch
        %2448 = sbr.rel (%p2446) target = $region44
      $region43: #{dec_subpix_branch_forward.8} parent=39 // pred_region
        %v2449 = vld [vmem:[%s5] sm:$0xff]
        %v2450 = vld [vmem:[%s5 + $0x8] sm:$0xff]
        %v2451 = vld [vmem:[%s5 + $0x10] sm:$0xff]
        %v2452 = vld [vmem:[%s5 + $0x18] sm:$0xff]
        %v2453 = vld [vmem:[%s5 + $0x20] sm:$0xff]
        %v2454 = vld [vmem:[%s5 + $0x28] sm:$0xff]
        %v2455 = vld [vmem:[%s5 + $0x30] sm:$0xff]
        %v2456 = vld [vmem:[%s5 + $0x38] sm:$0xff]
        %v2457 = vld [vmem:[%s5 + $0x40] sm:$0xff]
        %v2458 = vld [vmem:[%s5 + $0x48] sm:$0xff]
        %v2459 = vld [vmem:[%s5 + $0x50] sm:$0xff]
        %v2460 = vld [vmem:[%s5 + $0x58] sm:$0xff]
        %v2461 = vld [vmem:[%s5 + $0x60] sm:$0xff]
        %v2462 = vld [vmem:[%s5 + $0x68] sm:$0xff]
        %v2463 = vld [vmem:[%s5 + $0x70] sm:$0xff]
        %v2464 = vld [vmem:[%s5 + $0x78] sm:$0xff]
        %v2465 = vld [vmem:[%s5 + $0x80] sm:$0xff]
        %v2466 = vld [vmem:[%s5 + $0x88] sm:$0xff]
        %v2467 = vld [vmem:[%s5 + $0x90] sm:$0xff]
        %v2468 = vld [vmem:[%s5 + $0x98] sm:$0xff]
        %v2469 = vld [vmem:[%s5 + $0xa0] sm:$0xff]
        %v2470 = vld [vmem:[%s5 + $0xa8] sm:$0xff]
        %v2471 = vld [vmem:[%s5 + $0xb0] sm:$0xff]
        %v2472 = vld [vmem:[%s5 + $0xb8] sm:$0xff]
        %v2473 = vld [vmem:[%s5 + $0xc0] sm:$0xff]
        %v2474 = vld [vmem:[%s5 + $0xc8] sm:$0xff]
        %v2475 = vld [vmem:[%s5 + $0xd0] sm:$0xff]
        %v2476 = vld [vmem:[%s5 + $0xd8] sm:$0xff]
        %v2477 = vld [vmem:[%s5 + $0xe0] sm:$0xff]
        %v2478 = vld [vmem:[%s5 + $0xe8] sm:$0xff]
        %v2479 = vld [vmem:[%s5 + $0xf0] sm:$0xff]
        %v2480 = vld [vmem:[%s5 + $0xf8] sm:$0xff]
        %v2481 = vld [vmem:[%s5 + $0x100] sm:$0xff]
        %v2482 = vld [vmem:[%s5 + $0x108] sm:$0xff]
        %v2483 = vld [vmem:[%s5 + $0x110] sm:$0xff]
        %v2484 = vld [vmem:[%s5 + $0x118] sm:$0xff]
        %v2485 = vld [vmem:[%s5 + $0x120] sm:$0xff]
        %v2486 = vld [vmem:[%s5 + $0x128] sm:$0xff]
        %v2487 = vld [vmem:[%s5 + $0x130] sm:$0xff]
        %v2488 = vld [vmem:[%s5 + $0x138] sm:$0xff]
        %v2489 = vld [vmem:[%s5 + $0x140] sm:$0xff]
        %v2490 = vld [vmem:[%s5 + $0x148] sm:$0xff]
        %v2491 = vld [vmem:[%s5 + $0x150] sm:$0xff]
        %v2492 = vld [vmem:[%s5 + $0x158] sm:$0xff]
        %v2493 = vld [vmem:[%s5 + $0x160] sm:$0xff]
        %v2494 = vld [vmem:[%s5 + $0x168] sm:$0xff]
        %v2495 = vld [vmem:[%s5 + $0x170] sm:$0xff]
        %v2496 = vld [vmem:[%s5 + $0x178] sm:$0xff]
        %v2497 = vld [vmem:[%s5 + $0x180] sm:$0xff]
        %v2498 = vld [vmem:[%s5 + $0x188] sm:$0xff]
        %v2499 = vld [vmem:[%s5 + $0x190] sm:$0xff]
        %v2500 = vld [vmem:[%s5 + $0x198] sm:$0xff]
        %v2501 = vld [vmem:[%s5 + $0x1a0] sm:$0xff]
        %v2502 = vld [vmem:[%s5 + $0x1a8] sm:$0xff]
        %v2503 = vld [vmem:[%s5 + $0x1b0] sm:$0xff]
        %v2504 = vld [vmem:[%s5 + $0x1b8] sm:$0xff]
        %v2505 = vld [vmem:[%s5 + $0x1c0] sm:$0xff]
        %v2506 = vld [vmem:[%s5 + $0x1c8] sm:$0xff]
        %v2507 = vld [vmem:[%s5 + $0x1d0] sm:$0xff]
        %v2508 = vld [vmem:[%s5 + $0x1d8] sm:$0xff]
        %v2509 = vld [vmem:[%s5 + $0x1e0] sm:$0xff]
        %v2510 = vld [vmem:[%s5 + $0x1e8] sm:$0xff]
        %v2511 = vld [vmem:[%s5 + $0x1f0] sm:$0xff]
        %v2512 = vld [vmem:[%s5 + $0x1f8] sm:$0xff]
        %v2513 = vld [vmem:[%s5 + $0x200] sm:$0xff]
        %v2514 = vld [vmem:[%s5 + $0x208] sm:$0xff]
        %v2515 = vlaneseq
        %v2516 = vand.u32 %v2515, 127
        %v2517 = vadd.s32 %v2516, 128
        %v2518 = vadd.s32 %v2516, 256
        %v2519 = vadd.s32 %v2516, 384
        %v2520 = vadd.s32 %v2516, 512
        %v2521 = vadd.s32 %v2516, 640
        %v2522 = vadd.s32 %v2516, 768
        %v2523 = vadd.s32 %v2516, 896
        %v2524 = vadd.s32 %v2516, 1024
        %v2525 = vadd.s32 %v2516, 1152
        %v2526 = vadd.s32 %v2516, 1280
        %v2527 = vadd.s32 %v2516, 1408
        %v2528 = vadd.s32 %v2516, 1536
        %v2529 = vadd.s32 %v2516, 1664
        %v2530 = vadd.s32 %v2516, 1792
        %v2531 = vadd.s32 %v2516, 1920
        %v2532 = vadd.s32 %v2516, 2048
        %v2533 = vadd.s32 %v2516, 2176
        %v2534 = vadd.s32 %v2516, 2304
        %v2535 = vadd.s32 %v2516, 2432
        %v2536 = vadd.s32 %v2516, 2560
        %v2537 = vadd.s32 %v2516, 2688
        %v2538 = vadd.s32 %v2516, 2816
        %v2539 = vadd.s32 %v2516, 2944
        %v2540 = vadd.s32 %v2516, 3072
        %v2541 = vadd.s32 %v2516, 3200
        %v2542 = vadd.s32 %v2516, 3328
        %v2543 = vadd.s32 %v2516, 3456
        %v2544 = vadd.s32 %v2516, 3584
        %v2545 = vadd.s32 %v2516, 3712
        %v2546 = vadd.s32 %v2516, 3840
        %v2547 = vadd.s32 %v2516, 3968
        %v2548 = vadd.s32 %v2516, 4096
        %vm2549 = vcmp.lt.s32.totalorder %v2516, 0
        %v2550 = vsub.s32 0, %v2516
        %v2551 = vsel %vm2549, %v2550, %v2516
        %v2552 = vand.u32 %v2551, 65535
        %v2553 = vshrl.u32 %v2551, 16
        %v2555 = vmul.u32 %v2552, 3972
        %v2556 = vmul.u32 %v2552, 63550
        %v2557 = vmul.u32 %v2553, 3972
        %v2558 = vmul.u32 %v2553, 63550
        %v2559 = vshll.u32 %v2556, 16
        %v2560 = vshrl.u32 %v2556, 16
        %v2561 = vshll.u32 %v2557, 16
        %v2562 = vshrl.u32 %v2557, 16
        %vm2563 = vc.u32 %v2555, %v2559
        %v2564 = vsel %vm2563, 1, 0
        %v2565 = vadd.s32 %v2555, %v2559
        %v2566 = vadd.s32 %v2558, %v2564
        %vm2567 = vc.u32 %v2565, %v2561
        %v2568 = vsel %vm2567, 1, 0
        %v2569 = vadd.s32 %v2565, %v2561
        %v2570 = vadd.s32 %v2566, %v2568
        %v2571 = vadd.s32 %v2570, %v2560
        %v2572 = vadd.s32 %v2571, %v2562
        %v2573 = vshrl.u32 %v2572, 6
        %v2574 = vmul.u32 %v2573, 66
        %v2575 = vsub.s32 %v2551, %v2574
        %v2576 = vsub.s32 0, %v2575
        %v2577 = vsel %vm2549, %v2576, %v2575
        %vm2578 = vcmp.lt.s32.totalorder %v2517, 0
        %v2579 = vsub.s32 0, %v2517
        %v2580 = vsel %vm2578, %v2579, %v2517
        %v2581 = vand.u32 %v2580, 65535
        %v2582 = vshrl.u32 %v2580, 16
        %v2584 = vmul.u32 %v2581, 3972
        %v2585 = vmul.u32 %v2581, 63550
        %v2586 = vmul.u32 %v2582, 3972
        %v2587 = vmul.u32 %v2582, 63550
        %v2588 = vshll.u32 %v2585, 16
        %v2589 = vshrl.u32 %v2585, 16
        %v2590 = vshll.u32 %v2586, 16
        %v2591 = vshrl.u32 %v2586, 16
        %vm2592 = vc.u32 %v2584, %v2588
        %v2593 = vsel %vm2592, 1, 0
        %v2594 = vadd.s32 %v2584, %v2588
        %v2595 = vadd.s32 %v2587, %v2593
        %vm2596 = vc.u32 %v2594, %v2590
        %v2597 = vsel %vm2596, 1, 0
        %v2598 = vadd.s32 %v2594, %v2590
        %v2599 = vadd.s32 %v2595, %v2597
        %v2600 = vadd.s32 %v2599, %v2589
        %v2601 = vadd.s32 %v2600, %v2591
        %v2602 = vshrl.u32 %v2601, 6
        %v2603 = vmul.u32 %v2602, 66
        %v2604 = vsub.s32 %v2580, %v2603
        %v2605 = vsub.s32 0, %v2604
        %v2606 = vsel %vm2578, %v2605, %v2604
        %vm2607 = vcmp.lt.s32.totalorder %v2518, 0
        %v2608 = vsub.s32 0, %v2518
        %v2609 = vsel %vm2607, %v2608, %v2518
        %v2610 = vand.u32 %v2609, 65535
        %v2611 = vshrl.u32 %v2609, 16
        %v2613 = vmul.u32 %v2610, 3972
        %v2614 = vmul.u32 %v2610, 63550
        %v2615 = vmul.u32 %v2611, 3972
        %v2616 = vmul.u32 %v2611, 63550
        %v2617 = vshll.u32 %v2614, 16
        %v2618 = vshrl.u32 %v2614, 16
        %v2619 = vshll.u32 %v2615, 16
        %v2620 = vshrl.u32 %v2615, 16
        %vm2621 = vc.u32 %v2613, %v2617
        %v2622 = vsel %vm2621, 1, 0
        %v2623 = vadd.s32 %v2613, %v2617
        %v2624 = vadd.s32 %v2616, %v2622
        %vm2625 = vc.u32 %v2623, %v2619
        %v2626 = vsel %vm2625, 1, 0
        %v2627 = vadd.s32 %v2623, %v2619
        %v2628 = vadd.s32 %v2624, %v2626
        %v2629 = vadd.s32 %v2628, %v2618
        %v2630 = vadd.s32 %v2629, %v2620
        %v2631 = vshrl.u32 %v2630, 6
        %v2632 = vmul.u32 %v2631, 66
        %v2633 = vsub.s32 %v2609, %v2632
        %v2634 = vsub.s32 0, %v2633
        %v2635 = vsel %vm2607, %v2634, %v2633
        %vm2636 = vcmp.lt.s32.totalorder %v2519, 0
        %v2637 = vsub.s32 0, %v2519
        %v2638 = vsel %vm2636, %v2637, %v2519
        %v2639 = vand.u32 %v2638, 65535
        %v2640 = vshrl.u32 %v2638, 16
        %v2642 = vmul.u32 %v2639, 3972
        %v2643 = vmul.u32 %v2639, 63550
        %v2644 = vmul.u32 %v2640, 3972
        %v2645 = vmul.u32 %v2640, 63550
        %v2646 = vshll.u32 %v2643, 16
        %v2647 = vshrl.u32 %v2643, 16
        %v2648 = vshll.u32 %v2644, 16
        %v2649 = vshrl.u32 %v2644, 16
        %vm2650 = vc.u32 %v2642, %v2646
        %v2651 = vsel %vm2650, 1, 0
        %v2652 = vadd.s32 %v2642, %v2646
        %v2653 = vadd.s32 %v2645, %v2651
        %vm2654 = vc.u32 %v2652, %v2648
        %v2655 = vsel %vm2654, 1, 0
        %v2656 = vadd.s32 %v2652, %v2648
        %v2657 = vadd.s32 %v2653, %v2655
        %v2658 = vadd.s32 %v2657, %v2647
        %v2659 = vadd.s32 %v2658, %v2649
        %v2660 = vshrl.u32 %v2659, 6
        %v2661 = vmul.u32 %v2660, 66
        %v2662 = vsub.s32 %v2638, %v2661
        %v2663 = vsub.s32 0, %v2662
        %v2664 = vsel %vm2636, %v2663, %v2662
        %vm2665 = vcmp.lt.s32.totalorder %v2520, 0
        %v2666 = vsub.s32 0, %v2520
        %v2667 = vsel %vm2665, %v2666, %v2520
        %v2668 = vand.u32 %v2667, 65535
        %v2669 = vshrl.u32 %v2667, 16
        %v2671 = vmul.u32 %v2668, 3972
        %v2672 = vmul.u32 %v2668, 63550
        %v2673 = vmul.u32 %v2669, 3972
        %v2674 = vmul.u32 %v2669, 63550
        %v2675 = vshll.u32 %v2672, 16
        %v2676 = vshrl.u32 %v2672, 16
        %v2677 = vshll.u32 %v2673, 16
        %v2678 = vshrl.u32 %v2673, 16
        %vm2679 = vc.u32 %v2671, %v2675
        %v2680 = vsel %vm2679, 1, 0
        %v2681 = vadd.s32 %v2671, %v2675
        %v2682 = vadd.s32 %v2674, %v2680
        %vm2683 = vc.u32 %v2681, %v2677
        %v2684 = vsel %vm2683, 1, 0
        %v2685 = vadd.s32 %v2681, %v2677
        %v2686 = vadd.s32 %v2682, %v2684
        %v2687 = vadd.s32 %v2686, %v2676
        %v2688 = vadd.s32 %v2687, %v2678
        %v2689 = vshrl.u32 %v2688, 6
        %v2690 = vmul.u32 %v2689, 66
        %v2691 = vsub.s32 %v2667, %v2690
        %v2692 = vsub.s32 0, %v2691
        %v2693 = vsel %vm2665, %v2692, %v2691
        %vm2694 = vcmp.lt.s32.totalorder %v2521, 0
        %v2695 = vsub.s32 0, %v2521
        %v2696 = vsel %vm2694, %v2695, %v2521
        %v2697 = vand.u32 %v2696, 65535
        %v2698 = vshrl.u32 %v2696, 16
        %v2700 = vmul.u32 %v2697, 3972
        %v2701 = vmul.u32 %v2697, 63550
        %v2702 = vmul.u32 %v2698, 3972
        %v2703 = vmul.u32 %v2698, 63550
        %v2704 = vshll.u32 %v2701, 16
        %v2705 = vshrl.u32 %v2701, 16
        %v2706 = vshll.u32 %v2702, 16
        %v2707 = vshrl.u32 %v2702, 16
        %vm2708 = vc.u32 %v2700, %v2704
        %v2709 = vsel %vm2708, 1, 0
        %v2710 = vadd.s32 %v2700, %v2704
        %v2711 = vadd.s32 %v2703, %v2709
        %vm2712 = vc.u32 %v2710, %v2706
        %v2713 = vsel %vm2712, 1, 0
        %v2714 = vadd.s32 %v2710, %v2706
        %v2715 = vadd.s32 %v2711, %v2713
        %v2716 = vadd.s32 %v2715, %v2705
        %v2717 = vadd.s32 %v2716, %v2707
        %v2718 = vshrl.u32 %v2717, 6
        %v2719 = vmul.u32 %v2718, 66
        %v2720 = vsub.s32 %v2696, %v2719
        %v2721 = vsub.s32 0, %v2720
        %v2722 = vsel %vm2694, %v2721, %v2720
        %vm2723 = vcmp.lt.s32.totalorder %v2522, 0
        %v2724 = vsub.s32 0, %v2522
        %v2725 = vsel %vm2723, %v2724, %v2522
        %v2726 = vand.u32 %v2725, 65535
        %v2727 = vshrl.u32 %v2725, 16
        %v2729 = vmul.u32 %v2726, 3972
        %v2730 = vmul.u32 %v2726, 63550
        %v2731 = vmul.u32 %v2727, 3972
        %v2732 = vmul.u32 %v2727, 63550
        %v2733 = vshll.u32 %v2730, 16
        %v2734 = vshrl.u32 %v2730, 16
        %v2735 = vshll.u32 %v2731, 16
        %v2736 = vshrl.u32 %v2731, 16
        %vm2737 = vc.u32 %v2729, %v2733
        %v2738 = vsel %vm2737, 1, 0
        %v2739 = vadd.s32 %v2729, %v2733
        %v2740 = vadd.s32 %v2732, %v2738
        %vm2741 = vc.u32 %v2739, %v2735
        %v2742 = vsel %vm2741, 1, 0
        %v2743 = vadd.s32 %v2739, %v2735
        %v2744 = vadd.s32 %v2740, %v2742
        %v2745 = vadd.s32 %v2744, %v2734
        %v2746 = vadd.s32 %v2745, %v2736
        %v2747 = vshrl.u32 %v2746, 6
        %v2748 = vmul.u32 %v2747, 66
        %v2749 = vsub.s32 %v2725, %v2748
        %v2750 = vsub.s32 0, %v2749
        %v2751 = vsel %vm2723, %v2750, %v2749
        %vm2752 = vcmp.lt.s32.totalorder %v2523, 0
        %v2753 = vsub.s32 0, %v2523
        %v2754 = vsel %vm2752, %v2753, %v2523
        %v2755 = vand.u32 %v2754, 65535
        %v2756 = vshrl.u32 %v2754, 16
        %v2758 = vmul.u32 %v2755, 3972
        %v2759 = vmul.u32 %v2755, 63550
        %v2760 = vmul.u32 %v2756, 3972
        %v2761 = vmul.u32 %v2756, 63550
        %v2762 = vshll.u32 %v2759, 16
        %v2763 = vshrl.u32 %v2759, 16
        %v2764 = vshll.u32 %v2760, 16
        %v2765 = vshrl.u32 %v2760, 16
        %vm2766 = vc.u32 %v2758, %v2762
        %v2767 = vsel %vm2766, 1, 0
        %v2768 = vadd.s32 %v2758, %v2762
        %v2769 = vadd.s32 %v2761, %v2767
        %vm2770 = vc.u32 %v2768, %v2764
        %v2771 = vsel %vm2770, 1, 0
        %v2772 = vadd.s32 %v2768, %v2764
        %v2773 = vadd.s32 %v2769, %v2771
        %v2774 = vadd.s32 %v2773, %v2763
        %v2775 = vadd.s32 %v2774, %v2765
        %v2776 = vshrl.u32 %v2775, 6
        %v2777 = vmul.u32 %v2776, 66
        %v2778 = vsub.s32 %v2754, %v2777
        %v2779 = vsub.s32 0, %v2778
        %v2780 = vsel %vm2752, %v2779, %v2778
        %vm2781 = vcmp.lt.s32.totalorder %v2524, 0
        %v2782 = vsub.s32 0, %v2524
        %v2783 = vsel %vm2781, %v2782, %v2524
        %v2784 = vand.u32 %v2783, 65535
        %v2785 = vshrl.u32 %v2783, 16
        %v2787 = vmul.u32 %v2784, 3972
        %v2788 = vmul.u32 %v2784, 63550
        %v2789 = vmul.u32 %v2785, 3972
        %v2790 = vmul.u32 %v2785, 63550
        %v2791 = vshll.u32 %v2788, 16
        %v2792 = vshrl.u32 %v2788, 16
        %v2793 = vshll.u32 %v2789, 16
        %v2794 = vshrl.u32 %v2789, 16
        %vm2795 = vc.u32 %v2787, %v2791
        %v2796 = vsel %vm2795, 1, 0
        %v2797 = vadd.s32 %v2787, %v2791
        %v2798 = vadd.s32 %v2790, %v2796
        %vm2799 = vc.u32 %v2797, %v2793
        %v2800 = vsel %vm2799, 1, 0
        %v2801 = vadd.s32 %v2797, %v2793
        %v2802 = vadd.s32 %v2798, %v2800
        %v2803 = vadd.s32 %v2802, %v2792
        %v2804 = vadd.s32 %v2803, %v2794
        %v2805 = vshrl.u32 %v2804, 6
        %v2806 = vmul.u32 %v2805, 66
        %v2807 = vsub.s32 %v2783, %v2806
        %v2808 = vsub.s32 0, %v2807
        %v2809 = vsel %vm2781, %v2808, %v2807
        %vm2810 = vcmp.lt.s32.totalorder %v2525, 0
        %v2811 = vsub.s32 0, %v2525
        %v2812 = vsel %vm2810, %v2811, %v2525
        %v2813 = vand.u32 %v2812, 65535
        %v2814 = vshrl.u32 %v2812, 16
        %v2816 = vmul.u32 %v2813, 3972
        %v2817 = vmul.u32 %v2813, 63550
        %v2818 = vmul.u32 %v2814, 3972
        %v2819 = vmul.u32 %v2814, 63550
        %v2820 = vshll.u32 %v2817, 16
        %v2821 = vshrl.u32 %v2817, 16
        %v2822 = vshll.u32 %v2818, 16
        %v2823 = vshrl.u32 %v2818, 16
        %vm2824 = vc.u32 %v2816, %v2820
        %v2825 = vsel %vm2824, 1, 0
        %v2826 = vadd.s32 %v2816, %v2820
        %v2827 = vadd.s32 %v2819, %v2825
        %vm2828 = vc.u32 %v2826, %v2822
        %v2829 = vsel %vm2828, 1, 0
        %v2830 = vadd.s32 %v2826, %v2822
        %v2831 = vadd.s32 %v2827, %v2829
        %v2832 = vadd.s32 %v2831, %v2821
        %v2833 = vadd.s32 %v2832, %v2823
        %v2834 = vshrl.u32 %v2833, 6
        %v2835 = vmul.u32 %v2834, 66
        %v2836 = vsub.s32 %v2812, %v2835
        %v2837 = vsub.s32 0, %v2836
        %v2838 = vsel %vm2810, %v2837, %v2836
        %vm2839 = vcmp.lt.s32.totalorder %v2526, 0
        %v2840 = vsub.s32 0, %v2526
        %v2841 = vsel %vm2839, %v2840, %v2526
        %v2842 = vand.u32 %v2841, 65535
        %v2843 = vshrl.u32 %v2841, 16
        %v2845 = vmul.u32 %v2842, 3972
        %v2846 = vmul.u32 %v2842, 63550
        %v2847 = vmul.u32 %v2843, 3972
        %v2848 = vmul.u32 %v2843, 63550
        %v2849 = vshll.u32 %v2846, 16
        %v2850 = vshrl.u32 %v2846, 16
        %v2851 = vshll.u32 %v2847, 16
        %v2852 = vshrl.u32 %v2847, 16
        %vm2853 = vc.u32 %v2845, %v2849
        %v2854 = vsel %vm2853, 1, 0
        %v2855 = vadd.s32 %v2845, %v2849
        %v2856 = vadd.s32 %v2848, %v2854
        %vm2857 = vc.u32 %v2855, %v2851
        %v2858 = vsel %vm2857, 1, 0
        %v2859 = vadd.s32 %v2855, %v2851
        %v2860 = vadd.s32 %v2856, %v2858
        %v2861 = vadd.s32 %v2860, %v2850
        %v2862 = vadd.s32 %v2861, %v2852
        %v2863 = vshrl.u32 %v2862, 6
        %v2864 = vmul.u32 %v2863, 66
        %v2865 = vsub.s32 %v2841, %v2864
        %v2866 = vsub.s32 0, %v2865
        %v2867 = vsel %vm2839, %v2866, %v2865
        %vm2868 = vcmp.lt.s32.totalorder %v2527, 0
        %v2869 = vsub.s32 0, %v2527
        %v2870 = vsel %vm2868, %v2869, %v2527
        %v2871 = vand.u32 %v2870, 65535
        %v2872 = vshrl.u32 %v2870, 16
        %v2874 = vmul.u32 %v2871, 3972
        %v2875 = vmul.u32 %v2871, 63550
        %v2876 = vmul.u32 %v2872, 3972
        %v2877 = vmul.u32 %v2872, 63550
        %v2878 = vshll.u32 %v2875, 16
        %v2879 = vshrl.u32 %v2875, 16
        %v2880 = vshll.u32 %v2876, 16
        %v2881 = vshrl.u32 %v2876, 16
        %vm2882 = vc.u32 %v2874, %v2878
        %v2883 = vsel %vm2882, 1, 0
        %v2884 = vadd.s32 %v2874, %v2878
        %v2885 = vadd.s32 %v2877, %v2883
        %vm2886 = vc.u32 %v2884, %v2880
        %v2887 = vsel %vm2886, 1, 0
        %v2888 = vadd.s32 %v2884, %v2880
        %v2889 = vadd.s32 %v2885, %v2887
        %v2890 = vadd.s32 %v2889, %v2879
        %v2891 = vadd.s32 %v2890, %v2881
        %v2892 = vshrl.u32 %v2891, 6
        %v2893 = vmul.u32 %v2892, 66
        %v2894 = vsub.s32 %v2870, %v2893
        %v2895 = vsub.s32 0, %v2894
        %v2896 = vsel %vm2868, %v2895, %v2894
        %vm2897 = vcmp.lt.s32.totalorder %v2528, 0
        %v2898 = vsub.s32 0, %v2528
        %v2899 = vsel %vm2897, %v2898, %v2528
        %v2900 = vand.u32 %v2899, 65535
        %v2901 = vshrl.u32 %v2899, 16
        %v2903 = vmul.u32 %v2900, 3972
        %v2904 = vmul.u32 %v2900, 63550
        %v2905 = vmul.u32 %v2901, 3972
        %v2906 = vmul.u32 %v2901, 63550
        %v2907 = vshll.u32 %v2904, 16
        %v2908 = vshrl.u32 %v2904, 16
        %v2909 = vshll.u32 %v2905, 16
        %v2910 = vshrl.u32 %v2905, 16
        %vm2911 = vc.u32 %v2903, %v2907
        %v2912 = vsel %vm2911, 1, 0
        %v2913 = vadd.s32 %v2903, %v2907
        %v2914 = vadd.s32 %v2906, %v2912
        %vm2915 = vc.u32 %v2913, %v2909
        %v2916 = vsel %vm2915, 1, 0
        %v2917 = vadd.s32 %v2913, %v2909
        %v2918 = vadd.s32 %v2914, %v2916
        %v2919 = vadd.s32 %v2918, %v2908
        %v2920 = vadd.s32 %v2919, %v2910
        %v2921 = vshrl.u32 %v2920, 6
        %v2922 = vmul.u32 %v2921, 66
        %v2923 = vsub.s32 %v2899, %v2922
        %v2924 = vsub.s32 0, %v2923
        %v2925 = vsel %vm2897, %v2924, %v2923
        %vm2926 = vcmp.lt.s32.totalorder %v2529, 0
        %v2927 = vsub.s32 0, %v2529
        %v2928 = vsel %vm2926, %v2927, %v2529
        %v2929 = vand.u32 %v2928, 65535
        %v2930 = vshrl.u32 %v2928, 16
        %v2932 = vmul.u32 %v2929, 3972
        %v2933 = vmul.u32 %v2929, 63550
        %v2934 = vmul.u32 %v2930, 3972
        %v2935 = vmul.u32 %v2930, 63550
        %v2936 = vshll.u32 %v2933, 16
        %v2937 = vshrl.u32 %v2933, 16
        %v2938 = vshll.u32 %v2934, 16
        %v2939 = vshrl.u32 %v2934, 16
        %vm2940 = vc.u32 %v2932, %v2936
        %v2941 = vsel %vm2940, 1, 0
        %v2942 = vadd.s32 %v2932, %v2936
        %v2943 = vadd.s32 %v2935, %v2941
        %vm2944 = vc.u32 %v2942, %v2938
        %v2945 = vsel %vm2944, 1, 0
        %v2946 = vadd.s32 %v2942, %v2938
        %v2947 = vadd.s32 %v2943, %v2945
        %v2948 = vadd.s32 %v2947, %v2937
        %v2949 = vadd.s32 %v2948, %v2939
        %v2950 = vshrl.u32 %v2949, 6
        %v2951 = vmul.u32 %v2950, 66
        %v2952 = vsub.s32 %v2928, %v2951
        %v2953 = vsub.s32 0, %v2952
        %v2954 = vsel %vm2926, %v2953, %v2952
        %vm2955 = vcmp.lt.s32.totalorder %v2530, 0
        %v2956 = vsub.s32 0, %v2530
        %v2957 = vsel %vm2955, %v2956, %v2530
        %v2958 = vand.u32 %v2957, 65535
        %v2959 = vshrl.u32 %v2957, 16
        %v2961 = vmul.u32 %v2958, 3972
        %v2962 = vmul.u32 %v2958, 63550
        %v2963 = vmul.u32 %v2959, 3972
        %v2964 = vmul.u32 %v2959, 63550
        %v2965 = vshll.u32 %v2962, 16
        %v2966 = vshrl.u32 %v2962, 16
        %v2967 = vshll.u32 %v2963, 16
        %v2968 = vshrl.u32 %v2963, 16
        %vm2969 = vc.u32 %v2961, %v2965
        %v2970 = vsel %vm2969, 1, 0
        %v2971 = vadd.s32 %v2961, %v2965
        %v2972 = vadd.s32 %v2964, %v2970
        %vm2973 = vc.u32 %v2971, %v2967
        %v2974 = vsel %vm2973, 1, 0
        %v2975 = vadd.s32 %v2971, %v2967
        %v2976 = vadd.s32 %v2972, %v2974
        %v2977 = vadd.s32 %v2976, %v2966
        %v2978 = vadd.s32 %v2977, %v2968
        %v2979 = vshrl.u32 %v2978, 6
        %v2980 = vmul.u32 %v2979, 66
        %v2981 = vsub.s32 %v2957, %v2980
        %v2982 = vsub.s32 0, %v2981
        %v2983 = vsel %vm2955, %v2982, %v2981
        %vm2984 = vcmp.lt.s32.totalorder %v2531, 0
        %v2985 = vsub.s32 0, %v2531
        %v2986 = vsel %vm2984, %v2985, %v2531
        %v2987 = vand.u32 %v2986, 65535
        %v2988 = vshrl.u32 %v2986, 16
        %v2990 = vmul.u32 %v2987, 3972
        %v2991 = vmul.u32 %v2987, 63550
        %v2992 = vmul.u32 %v2988, 3972
        %v2993 = vmul.u32 %v2988, 63550
        %v2994 = vshll.u32 %v2991, 16
        %v2995 = vshrl.u32 %v2991, 16
        %v2996 = vshll.u32 %v2992, 16
        %v2997 = vshrl.u32 %v2992, 16
        %vm2998 = vc.u32 %v2990, %v2994
        %v2999 = vsel %vm2998, 1, 0
        %v3000 = vadd.s32 %v2990, %v2994
        %v3001 = vadd.s32 %v2993, %v2999
        %vm3002 = vc.u32 %v3000, %v2996
        %v3003 = vsel %vm3002, 1, 0
        %v3004 = vadd.s32 %v3000, %v2996
        %v3005 = vadd.s32 %v3001, %v3003
        %v3006 = vadd.s32 %v3005, %v2995
        %v3007 = vadd.s32 %v3006, %v2997
        %v3008 = vshrl.u32 %v3007, 6
        %v3009 = vmul.u32 %v3008, 66
        %v3010 = vsub.s32 %v2986, %v3009
        %v3011 = vsub.s32 0, %v3010
        %v3012 = vsel %vm2984, %v3011, %v3010
        %vm3013 = vcmp.lt.s32.totalorder %v2532, 0
        %v3014 = vsub.s32 0, %v2532
        %v3015 = vsel %vm3013, %v3014, %v2532
        %v3016 = vand.u32 %v3015, 65535
        %v3017 = vshrl.u32 %v3015, 16
        %v3019 = vmul.u32 %v3016, 3972
        %v3020 = vmul.u32 %v3016, 63550
        %v3021 = vmul.u32 %v3017, 3972
        %v3022 = vmul.u32 %v3017, 63550
        %v3023 = vshll.u32 %v3020, 16
        %v3024 = vshrl.u32 %v3020, 16
        %v3025 = vshll.u32 %v3021, 16
        %v3026 = vshrl.u32 %v3021, 16
        %vm3027 = vc.u32 %v3019, %v3023
        %v3028 = vsel %vm3027, 1, 0
        %v3029 = vadd.s32 %v3019, %v3023
        %v3030 = vadd.s32 %v3022, %v3028
        %vm3031 = vc.u32 %v3029, %v3025
        %v3032 = vsel %vm3031, 1, 0
        %v3033 = vadd.s32 %v3029, %v3025
        %v3034 = vadd.s32 %v3030, %v3032
        %v3035 = vadd.s32 %v3034, %v3024
        %v3036 = vadd.s32 %v3035, %v3026
        %v3037 = vshrl.u32 %v3036, 6
        %v3038 = vmul.u32 %v3037, 66
        %v3039 = vsub.s32 %v3015, %v3038
        %v3040 = vsub.s32 0, %v3039
        %v3041 = vsel %vm3013, %v3040, %v3039
        %vm3042 = vcmp.lt.s32.totalorder %v2533, 0
        %v3043 = vsub.s32 0, %v2533
        %v3044 = vsel %vm3042, %v3043, %v2533
        %v3045 = vand.u32 %v3044, 65535
        %v3046 = vshrl.u32 %v3044, 16
        %v3048 = vmul.u32 %v3045, 3972
        %v3049 = vmul.u32 %v3045, 63550
        %v3050 = vmul.u32 %v3046, 3972
        %v3051 = vmul.u32 %v3046, 63550
        %v3052 = vshll.u32 %v3049, 16
        %v3053 = vshrl.u32 %v3049, 16
        %v3054 = vshll.u32 %v3050, 16
        %v3055 = vshrl.u32 %v3050, 16
        %vm3056 = vc.u32 %v3048, %v3052
        %v3057 = vsel %vm3056, 1, 0
        %v3058 = vadd.s32 %v3048, %v3052
        %v3059 = vadd.s32 %v3051, %v3057
        %vm3060 = vc.u32 %v3058, %v3054
        %v3061 = vsel %vm3060, 1, 0
        %v3062 = vadd.s32 %v3058, %v3054
        %v3063 = vadd.s32 %v3059, %v3061
        %v3064 = vadd.s32 %v3063, %v3053
        %v3065 = vadd.s32 %v3064, %v3055
        %v3066 = vshrl.u32 %v3065, 6
        %v3067 = vmul.u32 %v3066, 66
        %v3068 = vsub.s32 %v3044, %v3067
        %v3069 = vsub.s32 0, %v3068
        %v3070 = vsel %vm3042, %v3069, %v3068
        %vm3071 = vcmp.lt.s32.totalorder %v2534, 0
        %v3072 = vsub.s32 0, %v2534
        %v3073 = vsel %vm3071, %v3072, %v2534
        %v3074 = vand.u32 %v3073, 65535
        %v3075 = vshrl.u32 %v3073, 16
        %v3077 = vmul.u32 %v3074, 3972
        %v3078 = vmul.u32 %v3074, 63550
        %v3079 = vmul.u32 %v3075, 3972
        %v3080 = vmul.u32 %v3075, 63550
        %v3081 = vshll.u32 %v3078, 16
        %v3082 = vshrl.u32 %v3078, 16
        %v3083 = vshll.u32 %v3079, 16
        %v3084 = vshrl.u32 %v3079, 16
        %vm3085 = vc.u32 %v3077, %v3081
        %v3086 = vsel %vm3085, 1, 0
        %v3087 = vadd.s32 %v3077, %v3081
        %v3088 = vadd.s32 %v3080, %v3086
        %vm3089 = vc.u32 %v3087, %v3083
        %v3090 = vsel %vm3089, 1, 0
        %v3091 = vadd.s32 %v3087, %v3083
        %v3092 = vadd.s32 %v3088, %v3090
        %v3093 = vadd.s32 %v3092, %v3082
        %v3094 = vadd.s32 %v3093, %v3084
        %v3095 = vshrl.u32 %v3094, 6
        %v3096 = vmul.u32 %v3095, 66
        %v3097 = vsub.s32 %v3073, %v3096
        %v3098 = vsub.s32 0, %v3097
        %v3099 = vsel %vm3071, %v3098, %v3097
        %vm3100 = vcmp.lt.s32.totalorder %v2535, 0
        %v3101 = vsub.s32 0, %v2535
        %v3102 = vsel %vm3100, %v3101, %v2535
        %v3103 = vand.u32 %v3102, 65535
        %v3104 = vshrl.u32 %v3102, 16
        %v3106 = vmul.u32 %v3103, 3972
        %v3107 = vmul.u32 %v3103, 63550
        %v3108 = vmul.u32 %v3104, 3972
        %v3109 = vmul.u32 %v3104, 63550
        %v3110 = vshll.u32 %v3107, 16
        %v3111 = vshrl.u32 %v3107, 16
        %v3112 = vshll.u32 %v3108, 16
        %v3113 = vshrl.u32 %v3108, 16
        %vm3114 = vc.u32 %v3106, %v3110
        %v3115 = vsel %vm3114, 1, 0
        %v3116 = vadd.s32 %v3106, %v3110
        %v3117 = vadd.s32 %v3109, %v3115
        %vm3118 = vc.u32 %v3116, %v3112
        %v3119 = vsel %vm3118, 1, 0
        %v3120 = vadd.s32 %v3116, %v3112
        %v3121 = vadd.s32 %v3117, %v3119
        %v3122 = vadd.s32 %v3121, %v3111
        %v3123 = vadd.s32 %v3122, %v3113
        %v3124 = vshrl.u32 %v3123, 6
        %v3125 = vmul.u32 %v3124, 66
        %v3126 = vsub.s32 %v3102, %v3125
        %v3127 = vsub.s32 0, %v3126
        %v3128 = vsel %vm3100, %v3127, %v3126
        %vm3129 = vcmp.lt.s32.totalorder %v2536, 0
        %v3130 = vsub.s32 0, %v2536
        %v3131 = vsel %vm3129, %v3130, %v2536
        %v3132 = vand.u32 %v3131, 65535
        %v3133 = vshrl.u32 %v3131, 16
        %v3135 = vmul.u32 %v3132, 3972
        %v3136 = vmul.u32 %v3132, 63550
        %v3137 = vmul.u32 %v3133, 3972
        %v3138 = vmul.u32 %v3133, 63550
        %v3139 = vshll.u32 %v3136, 16
        %v3140 = vshrl.u32 %v3136, 16
        %v3141 = vshll.u32 %v3137, 16
        %v3142 = vshrl.u32 %v3137, 16
        %vm3143 = vc.u32 %v3135, %v3139
        %v3144 = vsel %vm3143, 1, 0
        %v3145 = vadd.s32 %v3135, %v3139
        %v3146 = vadd.s32 %v3138, %v3144
        %vm3147 = vc.u32 %v3145, %v3141
        %v3148 = vsel %vm3147, 1, 0
        %v3149 = vadd.s32 %v3145, %v3141
        %v3150 = vadd.s32 %v3146, %v3148
        %v3151 = vadd.s32 %v3150, %v3140
        %v3152 = vadd.s32 %v3151, %v3142
        %v3153 = vshrl.u32 %v3152, 6
        %v3154 = vmul.u32 %v3153, 66
        %v3155 = vsub.s32 %v3131, %v3154
        %v3156 = vsub.s32 0, %v3155
        %v3157 = vsel %vm3129, %v3156, %v3155
        %vm3158 = vcmp.lt.s32.totalorder %v2537, 0
        %v3159 = vsub.s32 0, %v2537
        %v3160 = vsel %vm3158, %v3159, %v2537
        %v3161 = vand.u32 %v3160, 65535
        %v3162 = vshrl.u32 %v3160, 16
        %v3164 = vmul.u32 %v3161, 3972
        %v3165 = vmul.u32 %v3161, 63550
        %v3166 = vmul.u32 %v3162, 3972
        %v3167 = vmul.u32 %v3162, 63550
        %v3168 = vshll.u32 %v3165, 16
        %v3169 = vshrl.u32 %v3165, 16
        %v3170 = vshll.u32 %v3166, 16
        %v3171 = vshrl.u32 %v3166, 16
        %vm3172 = vc.u32 %v3164, %v3168
        %v3173 = vsel %vm3172, 1, 0
        %v3174 = vadd.s32 %v3164, %v3168
        %v3175 = vadd.s32 %v3167, %v3173
        %vm3176 = vc.u32 %v3174, %v3170
        %v3177 = vsel %vm3176, 1, 0
        %v3178 = vadd.s32 %v3174, %v3170
        %v3179 = vadd.s32 %v3175, %v3177
        %v3180 = vadd.s32 %v3179, %v3169
        %v3181 = vadd.s32 %v3180, %v3171
        %v3182 = vshrl.u32 %v3181, 6
        %v3183 = vmul.u32 %v3182, 66
        %v3184 = vsub.s32 %v3160, %v3183
        %v3185 = vsub.s32 0, %v3184
        %v3186 = vsel %vm3158, %v3185, %v3184
        %vm3187 = vcmp.lt.s32.totalorder %v2538, 0
        %v3188 = vsub.s32 0, %v2538
        %v3189 = vsel %vm3187, %v3188, %v2538
        %v3190 = vand.u32 %v3189, 65535
        %v3191 = vshrl.u32 %v3189, 16
        %v3193 = vmul.u32 %v3190, 3972
        %v3194 = vmul.u32 %v3190, 63550
        %v3195 = vmul.u32 %v3191, 3972
        %v3196 = vmul.u32 %v3191, 63550
        %v3197 = vshll.u32 %v3194, 16
        %v3198 = vshrl.u32 %v3194, 16
        %v3199 = vshll.u32 %v3195, 16
        %v3200 = vshrl.u32 %v3195, 16
        %vm3201 = vc.u32 %v3193, %v3197
        %v3202 = vsel %vm3201, 1, 0
        %v3203 = vadd.s32 %v3193, %v3197
        %v3204 = vadd.s32 %v3196, %v3202
        %vm3205 = vc.u32 %v3203, %v3199
        %v3206 = vsel %vm3205, 1, 0
        %v3207 = vadd.s32 %v3203, %v3199
        %v3208 = vadd.s32 %v3204, %v3206
        %v3209 = vadd.s32 %v3208, %v3198
        %v3210 = vadd.s32 %v3209, %v3200
        %v3211 = vshrl.u32 %v3210, 6
        %v3212 = vmul.u32 %v3211, 66
        %v3213 = vsub.s32 %v3189, %v3212
        %v3214 = vsub.s32 0, %v3213
        %v3215 = vsel %vm3187, %v3214, %v3213
        %vm3216 = vcmp.lt.s32.totalorder %v2539, 0
        %v3217 = vsub.s32 0, %v2539
        %v3218 = vsel %vm3216, %v3217, %v2539
        %v3219 = vand.u32 %v3218, 65535
        %v3220 = vshrl.u32 %v3218, 16
        %v3222 = vmul.u32 %v3219, 3972
        %v3223 = vmul.u32 %v3219, 63550
        %v3224 = vmul.u32 %v3220, 3972
        %v3225 = vmul.u32 %v3220, 63550
        %v3226 = vshll.u32 %v3223, 16
        %v3227 = vshrl.u32 %v3223, 16
        %v3228 = vshll.u32 %v3224, 16
        %v3229 = vshrl.u32 %v3224, 16
        %vm3230 = vc.u32 %v3222, %v3226
        %v3231 = vsel %vm3230, 1, 0
        %v3232 = vadd.s32 %v3222, %v3226
        %v3233 = vadd.s32 %v3225, %v3231
        %vm3234 = vc.u32 %v3232, %v3228
        %v3235 = vsel %vm3234, 1, 0
        %v3236 = vadd.s32 %v3232, %v3228
        %v3237 = vadd.s32 %v3233, %v3235
        %v3238 = vadd.s32 %v3237, %v3227
        %v3239 = vadd.s32 %v3238, %v3229
        %v3240 = vshrl.u32 %v3239, 6
        %v3241 = vmul.u32 %v3240, 66
        %v3242 = vsub.s32 %v3218, %v3241
        %v3243 = vsub.s32 0, %v3242
        %v3244 = vsel %vm3216, %v3243, %v3242
        %vm3245 = vcmp.lt.s32.totalorder %v2540, 0
        %v3246 = vsub.s32 0, %v2540
        %v3247 = vsel %vm3245, %v3246, %v2540
        %v3248 = vand.u32 %v3247, 65535
        %v3249 = vshrl.u32 %v3247, 16
        %v3251 = vmul.u32 %v3248, 3972
        %v3252 = vmul.u32 %v3248, 63550
        %v3253 = vmul.u32 %v3249, 3972
        %v3254 = vmul.u32 %v3249, 63550
        %v3255 = vshll.u32 %v3252, 16
        %v3256 = vshrl.u32 %v3252, 16
        %v3257 = vshll.u32 %v3253, 16
        %v3258 = vshrl.u32 %v3253, 16
        %vm3259 = vc.u32 %v3251, %v3255
        %v3260 = vsel %vm3259, 1, 0
        %v3261 = vadd.s32 %v3251, %v3255
        %v3262 = vadd.s32 %v3254, %v3260
        %vm3263 = vc.u32 %v3261, %v3257
        %v3264 = vsel %vm3263, 1, 0
        %v3265 = vadd.s32 %v3261, %v3257
        %v3266 = vadd.s32 %v3262, %v3264
        %v3267 = vadd.s32 %v3266, %v3256
        %v3268 = vadd.s32 %v3267, %v3258
        %v3269 = vshrl.u32 %v3268, 6
        %v3270 = vmul.u32 %v3269, 66
        %v3271 = vsub.s32 %v3247, %v3270
        %v3272 = vsub.s32 0, %v3271
        %v3273 = vsel %vm3245, %v3272, %v3271
        %vm3274 = vcmp.lt.s32.totalorder %v2541, 0
        %v3275 = vsub.s32 0, %v2541
        %v3276 = vsel %vm3274, %v3275, %v2541
        %v3277 = vand.u32 %v3276, 65535
        %v3278 = vshrl.u32 %v3276, 16
        %v3280 = vmul.u32 %v3277, 3972
        %v3281 = vmul.u32 %v3277, 63550
        %v3282 = vmul.u32 %v3278, 3972
        %v3283 = vmul.u32 %v3278, 63550
        %v3284 = vshll.u32 %v3281, 16
        %v3285 = vshrl.u32 %v3281, 16
        %v3286 = vshll.u32 %v3282, 16
        %v3287 = vshrl.u32 %v3282, 16
        %vm3288 = vc.u32 %v3280, %v3284
        %v3289 = vsel %vm3288, 1, 0
        %v3290 = vadd.s32 %v3280, %v3284
        %v3291 = vadd.s32 %v3283, %v3289
        %vm3292 = vc.u32 %v3290, %v3286
        %v3293 = vsel %vm3292, 1, 0
        %v3294 = vadd.s32 %v3290, %v3286
        %v3295 = vadd.s32 %v3291, %v3293
        %v3296 = vadd.s32 %v3295, %v3285
        %v3297 = vadd.s32 %v3296, %v3287
        %v3298 = vshrl.u32 %v3297, 6
        %v3299 = vmul.u32 %v3298, 66
        %v3300 = vsub.s32 %v3276, %v3299
        %v3301 = vsub.s32 0, %v3300
        %v3302 = vsel %vm3274, %v3301, %v3300
        %vm3303 = vcmp.lt.s32.totalorder %v2542, 0
        %v3304 = vsub.s32 0, %v2542
        %v3305 = vsel %vm3303, %v3304, %v2542
        %v3306 = vand.u32 %v3305, 65535
        %v3307 = vshrl.u32 %v3305, 16
        %v3309 = vmul.u32 %v3306, 3972
        %v3310 = vmul.u32 %v3306, 63550
        %v3311 = vmul.u32 %v3307, 3972
        %v3312 = vmul.u32 %v3307, 63550
        %v3313 = vshll.u32 %v3310, 16
        %v3314 = vshrl.u32 %v3310, 16
        %v3315 = vshll.u32 %v3311, 16
        %v3316 = vshrl.u32 %v3311, 16
        %vm3317 = vc.u32 %v3309, %v3313
        %v3318 = vsel %vm3317, 1, 0
        %v3319 = vadd.s32 %v3309, %v3313
        %v3320 = vadd.s32 %v3312, %v3318
        %vm3321 = vc.u32 %v3319, %v3315
        %v3322 = vsel %vm3321, 1, 0
        %v3323 = vadd.s32 %v3319, %v3315
        %v3324 = vadd.s32 %v3320, %v3322
        %v3325 = vadd.s32 %v3324, %v3314
        %v3326 = vadd.s32 %v3325, %v3316
        %v3327 = vshrl.u32 %v3326, 6
        %v3328 = vmul.u32 %v3327, 66
        %v3329 = vsub.s32 %v3305, %v3328
        %v3330 = vsub.s32 0, %v3329
        %v3331 = vsel %vm3303, %v3330, %v3329
        %vm3332 = vcmp.lt.s32.totalorder %v2543, 0
        %v3333 = vsub.s32 0, %v2543
        %v3334 = vsel %vm3332, %v3333, %v2543
        %v3335 = vand.u32 %v3334, 65535
        %v3336 = vshrl.u32 %v3334, 16
        %v3338 = vmul.u32 %v3335, 3972
        %v3339 = vmul.u32 %v3335, 63550
        %v3340 = vmul.u32 %v3336, 3972
        %v3341 = vmul.u32 %v3336, 63550
        %v3342 = vshll.u32 %v3339, 16
        %v3343 = vshrl.u32 %v3339, 16
        %v3344 = vshll.u32 %v3340, 16
        %v3345 = vshrl.u32 %v3340, 16
        %vm3346 = vc.u32 %v3338, %v3342
        %v3347 = vsel %vm3346, 1, 0
        %v3348 = vadd.s32 %v3338, %v3342
        %v3349 = vadd.s32 %v3341, %v3347
        %vm3350 = vc.u32 %v3348, %v3344
        %v3351 = vsel %vm3350, 1, 0
        %v3352 = vadd.s32 %v3348, %v3344
        %v3353 = vadd.s32 %v3349, %v3351
        %v3354 = vadd.s32 %v3353, %v3343
        %v3355 = vadd.s32 %v3354, %v3345
        %v3356 = vshrl.u32 %v3355, 6
        %v3357 = vmul.u32 %v3356, 66
        %v3358 = vsub.s32 %v3334, %v3357
        %v3359 = vsub.s32 0, %v3358
        %v3360 = vsel %vm3332, %v3359, %v3358
        %vm3361 = vcmp.lt.s32.totalorder %v2544, 0
        %v3362 = vsub.s32 0, %v2544
        %v3363 = vsel %vm3361, %v3362, %v2544
        %v3364 = vand.u32 %v3363, 65535
        %v3365 = vshrl.u32 %v3363, 16
        %v3367 = vmul.u32 %v3364, 3972
        %v3368 = vmul.u32 %v3364, 63550
        %v3369 = vmul.u32 %v3365, 3972
        %v3370 = vmul.u32 %v3365, 63550
        %v3371 = vshll.u32 %v3368, 16
        %v3372 = vshrl.u32 %v3368, 16
        %v3373 = vshll.u32 %v3369, 16
        %v3374 = vshrl.u32 %v3369, 16
        %vm3375 = vc.u32 %v3367, %v3371
        %v3376 = vsel %vm3375, 1, 0
        %v3377 = vadd.s32 %v3367, %v3371
        %v3378 = vadd.s32 %v3370, %v3376
        %vm3379 = vc.u32 %v3377, %v3373
        %v3380 = vsel %vm3379, 1, 0
        %v3381 = vadd.s32 %v3377, %v3373
        %v3382 = vadd.s32 %v3378, %v3380
        %v3383 = vadd.s32 %v3382, %v3372
        %v3384 = vadd.s32 %v3383, %v3374
        %v3385 = vshrl.u32 %v3384, 6
        %v3386 = vmul.u32 %v3385, 66
        %v3387 = vsub.s32 %v3363, %v3386
        %v3388 = vsub.s32 0, %v3387
        %v3389 = vsel %vm3361, %v3388, %v3387
        %vm3390 = vcmp.lt.s32.totalorder %v2545, 0
        %v3391 = vsub.s32 0, %v2545
        %v3392 = vsel %vm3390, %v3391, %v2545
        %v3393 = vand.u32 %v3392, 65535
        %v3394 = vshrl.u32 %v3392, 16
        %v3396 = vmul.u32 %v3393, 3972
        %v3397 = vmul.u32 %v3393, 63550
        %v3398 = vmul.u32 %v3394, 3972
        %v3399 = vmul.u32 %v3394, 63550
        %v3400 = vshll.u32 %v3397, 16
        %v3401 = vshrl.u32 %v3397, 16
        %v3402 = vshll.u32 %v3398, 16
        %v3403 = vshrl.u32 %v3398, 16
        %vm3404 = vc.u32 %v3396, %v3400
        %v3405 = vsel %vm3404, 1, 0
        %v3406 = vadd.s32 %v3396, %v3400
        %v3407 = vadd.s32 %v3399, %v3405
        %vm3408 = vc.u32 %v3406, %v3402
        %v3409 = vsel %vm3408, 1, 0
        %v3410 = vadd.s32 %v3406, %v3402
        %v3411 = vadd.s32 %v3407, %v3409
        %v3412 = vadd.s32 %v3411, %v3401
        %v3413 = vadd.s32 %v3412, %v3403
        %v3414 = vshrl.u32 %v3413, 6
        %v3415 = vmul.u32 %v3414, 66
        %v3416 = vsub.s32 %v3392, %v3415
        %v3417 = vsub.s32 0, %v3416
        %v3418 = vsel %vm3390, %v3417, %v3416
        %vm3419 = vcmp.lt.s32.totalorder %v2546, 0
        %v3420 = vsub.s32 0, %v2546
        %v3421 = vsel %vm3419, %v3420, %v2546
        %v3422 = vand.u32 %v3421, 65535
        %v3423 = vshrl.u32 %v3421, 16
        %v3425 = vmul.u32 %v3422, 3972
        %v3426 = vmul.u32 %v3422, 63550
        %v3427 = vmul.u32 %v3423, 3972
        %v3428 = vmul.u32 %v3423, 63550
        %v3429 = vshll.u32 %v3426, 16
        %v3430 = vshrl.u32 %v3426, 16
        %v3431 = vshll.u32 %v3427, 16
        %v3432 = vshrl.u32 %v3427, 16
        %vm3433 = vc.u32 %v3425, %v3429
        %v3434 = vsel %vm3433, 1, 0
        %v3435 = vadd.s32 %v3425, %v3429
        %v3436 = vadd.s32 %v3428, %v3434
        %vm3437 = vc.u32 %v3435, %v3431
        %v3438 = vsel %vm3437, 1, 0
        %v3439 = vadd.s32 %v3435, %v3431
        %v3440 = vadd.s32 %v3436, %v3438
        %v3441 = vadd.s32 %v3440, %v3430
        %v3442 = vadd.s32 %v3441, %v3432
        %v3443 = vshrl.u32 %v3442, 6
        %v3444 = vmul.u32 %v3443, 66
        %v3445 = vsub.s32 %v3421, %v3444
        %v3446 = vsub.s32 0, %v3445
        %v3447 = vsel %vm3419, %v3446, %v3445
        %vm3448 = vcmp.lt.s32.totalorder %v2547, 0
        %v3449 = vsub.s32 0, %v2547
        %v3450 = vsel %vm3448, %v3449, %v2547
        %v3451 = vand.u32 %v3450, 65535
        %v3452 = vshrl.u32 %v3450, 16
        %v3454 = vmul.u32 %v3451, 3972
        %v3455 = vmul.u32 %v3451, 63550
        %v3456 = vmul.u32 %v3452, 3972
        %v3457 = vmul.u32 %v3452, 63550
        %v3458 = vshll.u32 %v3455, 16
        %v3459 = vshrl.u32 %v3455, 16
        %v3460 = vshll.u32 %v3456, 16
        %v3461 = vshrl.u32 %v3456, 16
        %vm3462 = vc.u32 %v3454, %v3458
        %v3463 = vsel %vm3462, 1, 0
        %v3464 = vadd.s32 %v3454, %v3458
        %v3465 = vadd.s32 %v3457, %v3463
        %vm3466 = vc.u32 %v3464, %v3460
        %v3467 = vsel %vm3466, 1, 0
        %v3468 = vadd.s32 %v3464, %v3460
        %v3469 = vadd.s32 %v3465, %v3467
        %v3470 = vadd.s32 %v3469, %v3459
        %v3471 = vadd.s32 %v3470, %v3461
        %v3472 = vshrl.u32 %v3471, 6
        %v3473 = vmul.u32 %v3472, 66
        %v3474 = vsub.s32 %v3450, %v3473
        %v3475 = vsub.s32 0, %v3474
        %v3476 = vsel %vm3448, %v3475, %v3474
        %vm3477 = vcmp.lt.s32.totalorder %v2548, 0
        %v3478 = vsub.s32 0, %v2548
        %v3479 = vsel %vm3477, %v3478, %v2548
        %v3480 = vand.u32 %v3479, 65535
        %v3481 = vshrl.u32 %v3479, 16
        %v3483 = vmul.u32 %v3480, 3972
        %v3484 = vmul.u32 %v3480, 63550
        %v3485 = vmul.u32 %v3481, 3972
        %v3486 = vmul.u32 %v3481, 63550
        %v3487 = vshll.u32 %v3484, 16
        %v3488 = vshrl.u32 %v3484, 16
        %v3489 = vshll.u32 %v3485, 16
        %v3490 = vshrl.u32 %v3485, 16
        %vm3491 = vc.u32 %v3483, %v3487
        %v3492 = vsel %vm3491, 1, 0
        %v3493 = vadd.s32 %v3483, %v3487
        %v3494 = vadd.s32 %v3486, %v3492
        %vm3495 = vc.u32 %v3493, %v3489
        %v3496 = vsel %vm3495, 1, 0
        %v3497 = vadd.s32 %v3493, %v3489
        %v3498 = vadd.s32 %v3494, %v3496
        %v3499 = vadd.s32 %v3498, %v3488
        %v3500 = vadd.s32 %v3499, %v3490
        %v3501 = vshrl.u32 %v3500, 6
        %v3502 = vmul.u32 %v3501, 66
        %v3503 = vsub.s32 %v3479, %v3502
        %v3504 = vsub.s32 0, %v3503
        %v3505 = vsel %vm3477, %v3504, %v3503
        %vm3506 = vcmp.ne.s32.totalorder %v2577, 0
        %vm3507 = vcmp.ne.s32.totalorder %v2606, 0
        %vm3508 = vcmp.ne.s32.totalorder %v2635, 0
        %vm3509 = vcmp.ne.s32.totalorder %v2664, 0
        %vm3510 = vcmp.ne.s32.totalorder %v2693, 0
        %vm3511 = vcmp.ne.s32.totalorder %v2722, 0
        %vm3512 = vcmp.ne.s32.totalorder %v2751, 0
        %vm3513 = vcmp.ne.s32.totalorder %v2780, 0
        %vm3514 = vcmp.ne.s32.totalorder %v2809, 0
        %vm3515 = vcmp.ne.s32.totalorder %v2838, 0
        %vm3516 = vcmp.ne.s32.totalorder %v2867, 0
        %vm3517 = vcmp.ne.s32.totalorder %v2896, 0
        %vm3518 = vcmp.ne.s32.totalorder %v2925, 0
        %vm3519 = vcmp.ne.s32.totalorder %v2954, 0
        %vm3520 = vcmp.ne.s32.totalorder %v2983, 0
        %vm3521 = vcmp.ne.s32.totalorder %v3012, 0
        %vm3522 = vcmp.ne.s32.totalorder %v3041, 0
        %vm3523 = vcmp.ne.s32.totalorder %v3070, 0
        %vm3524 = vcmp.ne.s32.totalorder %v3099, 0
        %vm3525 = vcmp.ne.s32.totalorder %v3128, 0
        %vm3526 = vcmp.ne.s32.totalorder %v3157, 0
        %vm3527 = vcmp.ne.s32.totalorder %v3186, 0
        %vm3528 = vcmp.ne.s32.totalorder %v3215, 0
        %vm3529 = vcmp.ne.s32.totalorder %v3244, 0
        %vm3530 = vcmp.ne.s32.totalorder %v3273, 0
        %vm3531 = vcmp.ne.s32.totalorder %v3302, 0
        %vm3532 = vcmp.ne.s32.totalorder %v3331, 0
        %vm3533 = vcmp.ne.s32.totalorder %v3360, 0
        %vm3534 = vcmp.ne.s32.totalorder %v3389, 0
        %vm3535 = vcmp.ne.s32.totalorder %v3418, 0
        %vm3536 = vcmp.ne.s32.totalorder %v3447, 0
        %vm3537 = vcmp.ne.s32.totalorder %v3476, 0
        %vm3538 = vcmp.ne.s32.totalorder %v3505, 0
        %vm3539 = vcmp.lt.s32.totalorder %v2577, 0
        %vm3540 = vcmp.lt.s32.totalorder %v2606, 0
        %vm3541 = vcmp.lt.s32.totalorder %v2635, 0
        %vm3542 = vcmp.lt.s32.totalorder %v2664, 0
        %vm3543 = vcmp.lt.s32.totalorder %v2693, 0
        %vm3544 = vcmp.lt.s32.totalorder %v2722, 0
        %vm3545 = vcmp.lt.s32.totalorder %v2751, 0
        %vm3546 = vcmp.lt.s32.totalorder %v2780, 0
        %vm3547 = vcmp.lt.s32.totalorder %v2809, 0
        %vm3548 = vcmp.lt.s32.totalorder %v2838, 0
        %vm3549 = vcmp.lt.s32.totalorder %v2867, 0
        %vm3550 = vcmp.lt.s32.totalorder %v2896, 0
        %vm3551 = vcmp.lt.s32.totalorder %v2925, 0
        %vm3552 = vcmp.lt.s32.totalorder %v2954, 0
        %vm3553 = vcmp.lt.s32.totalorder %v2983, 0
        %vm3554 = vcmp.lt.s32.totalorder %v3012, 0
        %vm3555 = vcmp.lt.s32.totalorder %v3041, 0
        %vm3556 = vcmp.lt.s32.totalorder %v3070, 0
        %vm3557 = vcmp.lt.s32.totalorder %v3099, 0
        %vm3558 = vcmp.lt.s32.totalorder %v3128, 0
        %vm3559 = vcmp.lt.s32.totalorder %v3157, 0
        %vm3560 = vcmp.lt.s32.totalorder %v3186, 0
        %vm3561 = vcmp.lt.s32.totalorder %v3215, 0
        %vm3562 = vcmp.lt.s32.totalorder %v3244, 0
        %vm3563 = vcmp.lt.s32.totalorder %v3273, 0
        %vm3564 = vcmp.lt.s32.totalorder %v3302, 0
        %vm3565 = vcmp.lt.s32.totalorder %v3331, 0
        %vm3566 = vcmp.lt.s32.totalorder %v3360, 0
        %vm3567 = vcmp.lt.s32.totalorder %v3389, 0
        %vm3568 = vcmp.lt.s32.totalorder %v3418, 0
        %vm3569 = vcmp.lt.s32.totalorder %v3447, 0
        %vm3570 = vcmp.lt.s32.totalorder %v3476, 0
        %vm3571 = vcmp.lt.s32.totalorder %v3505, 0
        %vm3572 = vmand %vm3539, %vm3506
        %vm3573 = vmand %vm3540, %vm3507
        %vm3574 = vmand %vm3541, %vm3508
        %vm3575 = vmand %vm3542, %vm3509
        %vm3576 = vmand %vm3543, %vm3510
        %vm3577 = vmand %vm3544, %vm3511
        %vm3578 = vmand %vm3545, %vm3512
        %vm3579 = vmand %vm3546, %vm3513
        %vm3580 = vmand %vm3547, %vm3514
        %vm3581 = vmand %vm3548, %vm3515
        %vm3582 = vmand %vm3549, %vm3516
        %vm3583 = vmand %vm3550, %vm3517
        %vm3584 = vmand %vm3551, %vm3518
        %vm3585 = vmand %vm3552, %vm3519
        %vm3586 = vmand %vm3553, %vm3520
        %vm3587 = vmand %vm3554, %vm3521
        %vm3588 = vmand %vm3555, %vm3522
        %vm3589 = vmand %vm3556, %vm3523
        %vm3590 = vmand %vm3557, %vm3524
        %vm3591 = vmand %vm3558, %vm3525
        %vm3592 = vmand %vm3559, %vm3526
        %vm3593 = vmand %vm3560, %vm3527
        %vm3594 = vmand %vm3561, %vm3528
        %vm3595 = vmand %vm3562, %vm3529
        %vm3596 = vmand %vm3563, %vm3530
        %vm3597 = vmand %vm3564, %vm3531
        %vm3598 = vmand %vm3565, %vm3532
        %vm3599 = vmand %vm3566, %vm3533
        %vm3600 = vmand %vm3567, %vm3534
        %vm3601 = vmand %vm3568, %vm3535
        %vm3602 = vmand %vm3569, %vm3536
        %vm3603 = vmand %vm3570, %vm3537
        %vm3604 = vmand %vm3571, %vm3538
        %v3605 = vadd.s32 %v2577, 66
        %v3606 = vadd.s32 %v2606, 66
        %v3607 = vadd.s32 %v2635, 66
        %v3608 = vadd.s32 %v2664, 66
        %v3609 = vadd.s32 %v2693, 66
        %v3610 = vadd.s32 %v2722, 66
        %v3611 = vadd.s32 %v2751, 66
        %v3612 = vadd.s32 %v2780, 66
        %v3613 = vadd.s32 %v2809, 66
        %v3614 = vadd.s32 %v2838, 66
        %v3615 = vadd.s32 %v2867, 66
        %v3616 = vadd.s32 %v2896, 66
        %v3617 = vadd.s32 %v2925, 66
        %v3618 = vadd.s32 %v2954, 66
        %v3619 = vadd.s32 %v2983, 66
        %v3620 = vadd.s32 %v3012, 66
        %v3621 = vadd.s32 %v3041, 66
        %v3622 = vadd.s32 %v3070, 66
        %v3623 = vadd.s32 %v3099, 66
        %v3624 = vadd.s32 %v3128, 66
        %v3625 = vadd.s32 %v3157, 66
        %v3626 = vadd.s32 %v3186, 66
        %v3627 = vadd.s32 %v3215, 66
        %v3628 = vadd.s32 %v3244, 66
        %v3629 = vadd.s32 %v3273, 66
        %v3630 = vadd.s32 %v3302, 66
        %v3631 = vadd.s32 %v3331, 66
        %v3632 = vadd.s32 %v3360, 66
        %v3633 = vadd.s32 %v3389, 66
        %v3634 = vadd.s32 %v3418, 66
        %v3635 = vadd.s32 %v3447, 66
        %v3636 = vadd.s32 %v3476, 66
        %v3637 = vadd.s32 %v3505, 66
        %v3638 = vsel %vm3572, %v3605, %v2577
        %v3639 = vsel %vm3573, %v3606, %v2606
        %v3640 = vsel %vm3574, %v3607, %v2635
        %v3641 = vsel %vm3575, %v3608, %v2664
        %v3642 = vsel %vm3576, %v3609, %v2693
        %v3643 = vsel %vm3577, %v3610, %v2722
        %v3644 = vsel %vm3578, %v3611, %v2751
        %v3645 = vsel %vm3579, %v3612, %v2780
        %v3646 = vsel %vm3580, %v3613, %v2809
        %v3647 = vsel %vm3581, %v3614, %v2838
        %v3648 = vsel %vm3582, %v3615, %v2867
        %v3649 = vsel %vm3583, %v3616, %v2896
        %v3650 = vsel %vm3584, %v3617, %v2925
        %v3651 = vsel %vm3585, %v3618, %v2954
        %v3652 = vsel %vm3586, %v3619, %v2983
        %v3653 = vsel %vm3587, %v3620, %v3012
        %v3654 = vsel %vm3588, %v3621, %v3041
        %v3655 = vsel %vm3589, %v3622, %v3070
        %v3656 = vsel %vm3590, %v3623, %v3099
        %v3657 = vsel %vm3591, %v3624, %v3128
        %v3658 = vsel %vm3592, %v3625, %v3157
        %v3659 = vsel %vm3593, %v3626, %v3186
        %v3660 = vsel %vm3594, %v3627, %v3215
        %v3661 = vsel %vm3595, %v3628, %v3244
        %v3662 = vsel %vm3596, %v3629, %v3273
        %v3663 = vsel %vm3597, %v3630, %v3302
        %v3664 = vsel %vm3598, %v3631, %v3331
        %v3665 = vsel %vm3599, %v3632, %v3360
        %v3666 = vsel %vm3600, %v3633, %v3389
        %v3667 = vsel %vm3601, %v3634, %v3418
        %v3668 = vsel %vm3602, %v3635, %v3447
        %v3669 = vsel %vm3603, %v3636, %v3476
        %v3670 = vsel %vm3604, %v3637, %v3505
        %vm3671 = vcmp.lt.s32.totalorder %v3638, 64
        %vm3672 = vcmp.lt.s32.totalorder %v3639, 64
        %vm3673 = vcmp.lt.s32.totalorder %v3640, 64
        %vm3674 = vcmp.lt.s32.totalorder %v3641, 64
        %vm3675 = vcmp.lt.s32.totalorder %v3642, 64
        %vm3676 = vcmp.lt.s32.totalorder %v3643, 64
        %vm3677 = vcmp.lt.s32.totalorder %v3644, 64
        %vm3678 = vcmp.lt.s32.totalorder %v3645, 64
        %vm3679 = vcmp.lt.s32.totalorder %v3646, 64
        %vm3680 = vcmp.lt.s32.totalorder %v3647, 64
        %vm3681 = vcmp.lt.s32.totalorder %v3648, 64
        %vm3682 = vcmp.lt.s32.totalorder %v3649, 64
        %vm3683 = vcmp.lt.s32.totalorder %v3650, 64
        %vm3684 = vcmp.lt.s32.totalorder %v3651, 64
        %vm3685 = vcmp.lt.s32.totalorder %v3652, 64
        %vm3686 = vcmp.lt.s32.totalorder %v3653, 64
        %vm3687 = vcmp.lt.s32.totalorder %v3654, 64
        %vm3688 = vcmp.lt.s32.totalorder %v3655, 64
        %vm3689 = vcmp.lt.s32.totalorder %v3656, 64
        %vm3690 = vcmp.lt.s32.totalorder %v3657, 64
        %vm3691 = vcmp.lt.s32.totalorder %v3658, 64
        %vm3692 = vcmp.lt.s32.totalorder %v3659, 64
        %vm3693 = vcmp.lt.s32.totalorder %v3660, 64
        %vm3694 = vcmp.lt.s32.totalorder %v3661, 64
        %vm3695 = vcmp.lt.s32.totalorder %v3662, 64
        %vm3696 = vcmp.lt.s32.totalorder %v3663, 64
        %vm3697 = vcmp.lt.s32.totalorder %v3664, 64
        %vm3698 = vcmp.lt.s32.totalorder %v3665, 64
        %vm3699 = vcmp.lt.s32.totalorder %v3666, 64
        %vm3700 = vcmp.lt.s32.totalorder %v3667, 64
        %vm3701 = vcmp.lt.s32.totalorder %v3668, 64
        %vm3702 = vcmp.lt.s32.totalorder %v3669, 64
        %vm3703 = vcmp.lt.s32.totalorder %v3670, 64
        %v3704 = vsel %vm3671, 1, 0
        %v3705 = vsel %vm3672, 1, 0
        %v3706 = vsel %vm3673, 1, 0
        %v3707 = vsel %vm3674, 1, 0
        %v3708 = vsel %vm3675, 1, 0
        %v3709 = vsel %vm3676, 1, 0
        %v3710 = vsel %vm3677, 1, 0
        %v3711 = vsel %vm3678, 1, 0
        %v3712 = vsel %vm3679, 1, 0
        %v3713 = vsel %vm3680, 1, 0
        %v3714 = vsel %vm3681, 1, 0
        %v3715 = vsel %vm3682, 1, 0
        %v3716 = vsel %vm3683, 1, 0
        %v3717 = vsel %vm3684, 1, 0
        %v3718 = vsel %vm3685, 1, 0
        %v3719 = vsel %vm3686, 1, 0
        %v3720 = vsel %vm3687, 1, 0
        %v3721 = vsel %vm3688, 1, 0
        %v3722 = vsel %vm3689, 1, 0
        %v3723 = vsel %vm3690, 1, 0
        %v3724 = vsel %vm3691, 1, 0
        %v3725 = vsel %vm3692, 1, 0
        %v3726 = vsel %vm3693, 1, 0
        %v3727 = vsel %vm3694, 1, 0
        %v3728 = vsel %vm3695, 1, 0
        %v3729 = vsel %vm3696, 1, 0
        %v3730 = vsel %vm3697, 1, 0
        %v3731 = vsel %vm3698, 1, 0
        %v3732 = vsel %vm3699, 1, 0
        %v3733 = vsel %vm3700, 1, 0
        %v3734 = vsel %vm3701, 1, 0
        %v3735 = vsel %vm3702, 1, 0
        %v3736 = vsel %vm3703, 1, 0
        %v3737 = vcvt.s32.f32 %v3704
        %v3738 = vcvt.s32.f32 %v3705
        %v3739 = vcvt.s32.f32 %v3706
        %v3740 = vcvt.s32.f32 %v3707
        %v3741 = vcvt.s32.f32 %v3708
        %v3742 = vcvt.s32.f32 %v3709
        %v3743 = vcvt.s32.f32 %v3710
        %v3744 = vcvt.s32.f32 %v3711
        %v3745 = vcvt.s32.f32 %v3712
        %v3746 = vcvt.s32.f32 %v3713
        %v3747 = vcvt.s32.f32 %v3714
        %v3748 = vcvt.s32.f32 %v3715
        %v3749 = vcvt.s32.f32 %v3716
        %v3750 = vcvt.s32.f32 %v3717
        %v3751 = vcvt.s32.f32 %v3718
        %v3752 = vcvt.s32.f32 %v3719
        %v3753 = vcvt.s32.f32 %v3720
        %v3754 = vcvt.s32.f32 %v3721
        %v3755 = vcvt.s32.f32 %v3722
        %v3756 = vcvt.s32.f32 %v3723
        %v3757 = vcvt.s32.f32 %v3724
        %v3758 = vcvt.s32.f32 %v3725
        %v3759 = vcvt.s32.f32 %v3726
        %v3760 = vcvt.s32.f32 %v3727
        %v3761 = vcvt.s32.f32 %v3728
        %v3762 = vcvt.s32.f32 %v3729
        %v3763 = vcvt.s32.f32 %v3730
        %v3764 = vcvt.s32.f32 %v3731
        %v3765 = vcvt.s32.f32 %v3732
        %v3766 = vcvt.s32.f32 %v3733
        %v3767 = vcvt.s32.f32 %v3734
        %v3768 = vcvt.s32.f32 %v3735
        %v3769 = vcvt.s32.f32 %v3736
        %v3770 = vmul.f32 %v2449, %v3737
        %v3771 = vmul.f32 %v2450, %v3738
        %v3772 = vmul.f32 %v2451, %v3739
        %v3773 = vmul.f32 %v2452, %v3740
        %v3774 = vmul.f32 %v2453, %v3741
        %v3775 = vmul.f32 %v2454, %v3742
        %v3776 = vmul.f32 %v2455, %v3743
        %v3777 = vmul.f32 %v2456, %v3744
        %v3778 = vmul.f32 %v2457, %v3745
        %v3779 = vmul.f32 %v2458, %v3746
        %v3780 = vmul.f32 %v2459, %v3747
        %v3781 = vmul.f32 %v2460, %v3748
        %v3782 = vmul.f32 %v2461, %v3749
        %v3783 = vmul.f32 %v2462, %v3750
        %v3784 = vmul.f32 %v2463, %v3751
        %v3785 = vmul.f32 %v2464, %v3752
        %v3786 = vmul.f32 %v2465, %v3753
        %v3787 = vmul.f32 %v2466, %v3754
        %v3788 = vmul.f32 %v2467, %v3755
        %v3789 = vmul.f32 %v2468, %v3756
        %v3790 = vmul.f32 %v2469, %v3757
        %v3791 = vmul.f32 %v2470, %v3758
        %v3792 = vmul.f32 %v2471, %v3759
        %v3793 = vmul.f32 %v2472, %v3760
        %v3794 = vmul.f32 %v2473, %v3761
        %v3795 = vmul.f32 %v2474, %v3762
        %v3796 = vmul.f32 %v2475, %v3763
        %v3797 = vmul.f32 %v2476, %v3764
        %v3798 = vmul.f32 %v2477, %v3765
        %v3799 = vmul.f32 %v2478, %v3766
        %v3800 = vmul.f32 %v2479, %v3767
        %v3801 = vmul.f32 %v2480, %v3768
        %v3802 = vmul.f32 %v2481, %v3769
        %v3803 = vmul.f32 %v2482, %v3737
        %v3804 = vmul.f32 %v2483, %v3738
        %v3805 = vmul.f32 %v2484, %v3739
        %v3806 = vmul.f32 %v2485, %v3740
        %v3807 = vmul.f32 %v2486, %v3741
        %v3808 = vmul.f32 %v2487, %v3742
        %v3809 = vmul.f32 %v2488, %v3743
        %v3810 = vmul.f32 %v2489, %v3744
        %v3811 = vmul.f32 %v2490, %v3745
        %v3812 = vmul.f32 %v2491, %v3746
        %v3813 = vmul.f32 %v2492, %v3747
        %v3814 = vmul.f32 %v2493, %v3748
        %v3815 = vmul.f32 %v2494, %v3749
        %v3816 = vmul.f32 %v2495, %v3750
        %v3817 = vmul.f32 %v2496, %v3751
        %v3818 = vmul.f32 %v2497, %v3752
        %v3819 = vmul.f32 %v2498, %v3753
        %v3820 = vmul.f32 %v2499, %v3754
        %v3821 = vmul.f32 %v2500, %v3755
        %v3822 = vmul.f32 %v2501, %v3756
        %v3823 = vmul.f32 %v2502, %v3757
        %v3824 = vmul.f32 %v2503, %v3758
        %v3825 = vmul.f32 %v2504, %v3759
        %v3826 = vmul.f32 %v2505, %v3760
        %v3827 = vmul.f32 %v2506, %v3761
        %v3828 = vmul.f32 %v2507, %v3762
        %v3829 = vmul.f32 %v2508, %v3763
        %v3830 = vmul.f32 %v2509, %v3764
        %v3831 = vmul.f32 %v2510, %v3765
        %v3832 = vmul.f32 %v2511, %v3766
        %v3833 = vmul.f32 %v2512, %v3767
        %v3834 = vmul.f32 %v2513, %v3768
        %v3835 = vmul.f32 %v2514, %v3769
        %v3836 = vadd.f32 %v3770, %v3771
        %v3837 = vadd.f32 %v3836, %v3772
        %v3838 = vadd.f32 %v3837, %v3773
        %v3839 = vadd.f32 %v3838, %v3774
        %v3840 = vadd.f32 %v3839, %v3775
        %v3841 = vadd.f32 %v3840, %v3776
        %v3842 = vadd.f32 %v3841, %v3777
        %v3843 = vadd.f32 %v3842, %v3778
        %v3844 = vadd.f32 %v3843, %v3779
        %v3845 = vadd.f32 %v3844, %v3780
        %v3846 = vadd.f32 %v3845, %v3781
        %v3847 = vadd.f32 %v3846, %v3782
        %v3848 = vadd.f32 %v3847, %v3783
        %v3849 = vadd.f32 %v3848, %v3784
        %v3850 = vadd.f32 %v3849, %v3785
        %v3851 = vadd.f32 %v3850, %v3786
        %v3852 = vadd.f32 %v3851, %v3787
        %v3853 = vadd.f32 %v3852, %v3788
        %v3854 = vadd.f32 %v3853, %v3789
        %v3855 = vadd.f32 %v3854, %v3790
        %v3856 = vadd.f32 %v3855, %v3791
        %v3857 = vadd.f32 %v3856, %v3792
        %v3858 = vadd.f32 %v3857, %v3793
        %v3859 = vadd.f32 %v3858, %v3794
        %v3860 = vadd.f32 %v3859, %v3795
        %v3861 = vadd.f32 %v3860, %v3796
        %v3862 = vadd.f32 %v3861, %v3797
        %v3863 = vadd.f32 %v3862, %v3798
        %v3864 = vadd.f32 %v3863, %v3799
        %v3865 = vadd.f32 %v3864, %v3800
        %v3866 = vadd.f32 %v3865, %v3801
        %v3867 = vadd.f32 %v3866, %v3802
        %3868 = vadd.xlane.f32.xlu0 %v3867
        %v3869 = vpop.xlane.xlu0 %3868
        %v3870 = vadd.f32 %v3803, %v3804
        %v3871 = vadd.f32 %v3870, %v3805
        %v3872 = vadd.f32 %v3871, %v3806
        %v3873 = vadd.f32 %v3872, %v3807
        %v3874 = vadd.f32 %v3873, %v3808
        %v3875 = vadd.f32 %v3874, %v3809
        %v3876 = vadd.f32 %v3875, %v3810
        %v3877 = vadd.f32 %v3876, %v3811
        %v3878 = vadd.f32 %v3877, %v3812
        %v3879 = vadd.f32 %v3878, %v3813
        %v3880 = vadd.f32 %v3879, %v3814
        %v3881 = vadd.f32 %v3880, %v3815
        %v3882 = vadd.f32 %v3881, %v3816
        %v3883 = vadd.f32 %v3882, %v3817
        %v3884 = vadd.f32 %v3883, %v3818
        %v3885 = vadd.f32 %v3884, %v3819
        %v3886 = vadd.f32 %v3885, %v3820
        %v3887 = vadd.f32 %v3886, %v3821
        %v3888 = vadd.f32 %v3887, %v3822
        %v3889 = vadd.f32 %v3888, %v3823
        %v3890 = vadd.f32 %v3889, %v3824
        %v3891 = vadd.f32 %v3890, %v3825
        %v3892 = vadd.f32 %v3891, %v3826
        %v3893 = vadd.f32 %v3892, %v3827
        %v3894 = vadd.f32 %v3893, %v3828
        %v3895 = vadd.f32 %v3894, %v3829
        %v3896 = vadd.f32 %v3895, %v3830
        %v3897 = vadd.f32 %v3896, %v3831
        %v3898 = vadd.f32 %v3897, %v3832
        %v3899 = vadd.f32 %v3898, %v3833
        %v3900 = vadd.f32 %v3899, %v3834
        %v3901 = vadd.f32 %v3900, %v3835
        %3902 = vadd.xlane.f32.xlu0 %v3901
        %v3903 = vpop.xlane.xlu0 %3902
        %v3904 = vadd.f32 %v3869, %v3903
        %v3905 = vmul.f32 %v3904, 0.00012207031
        %v3906 = vsub.f32 %v2449, %v3905
        %v3907 = vsub.f32 %v2450, %v3905
        %v3908 = vsub.f32 %v2451, %v3905
        %v3909 = vsub.f32 %v2452, %v3905
        %v3910 = vsub.f32 %v2453, %v3905
        %v3911 = vsub.f32 %v2454, %v3905
        %v3912 = vsub.f32 %v2455, %v3905
        %v3913 = vsub.f32 %v2456, %v3905
        %v3914 = vsub.f32 %v2457, %v3905
        %v3915 = vsub.f32 %v2458, %v3905
        %v3916 = vsub.f32 %v2459, %v3905
        %v3917 = vsub.f32 %v2460, %v3905
        %v3918 = vsub.f32 %v2461, %v3905
        %v3919 = vsub.f32 %v2462, %v3905
        %v3920 = vsub.f32 %v2463, %v3905
        %v3921 = vsub.f32 %v2464, %v3905
        %v3922 = vsub.f32 %v2465, %v3905
        %v3923 = vsub.f32 %v2466, %v3905
        %v3924 = vsub.f32 %v2467, %v3905
        %v3925 = vsub.f32 %v2468, %v3905
        %v3926 = vsub.f32 %v2469, %v3905
        %v3927 = vsub.f32 %v2470, %v3905
        %v3928 = vsub.f32 %v2471, %v3905
        %v3929 = vsub.f32 %v2472, %v3905
        %v3930 = vsub.f32 %v2473, %v3905
        %v3931 = vsub.f32 %v2474, %v3905
        %v3932 = vsub.f32 %v2475, %v3905
        %v3933 = vsub.f32 %v2476, %v3905
        %v3934 = vsub.f32 %v2477, %v3905
        %v3935 = vsub.f32 %v2478, %v3905
        %v3936 = vsub.f32 %v2479, %v3905
        %v3937 = vsub.f32 %v2480, %v3905
        %v3938 = vsub.f32 %v2481, %v3905
        %v3939 = vsub.f32 %v2482, %v3905
        %v3940 = vsub.f32 %v2483, %v3905
        %v3941 = vsub.f32 %v2484, %v3905
        %v3942 = vsub.f32 %v2485, %v3905
        %v3943 = vsub.f32 %v2486, %v3905
        %v3944 = vsub.f32 %v2487, %v3905
        %v3945 = vsub.f32 %v2488, %v3905
        %v3946 = vsub.f32 %v2489, %v3905
        %v3947 = vsub.f32 %v2490, %v3905
        %v3948 = vsub.f32 %v2491, %v3905
        %v3949 = vsub.f32 %v2492, %v3905
        %v3950 = vsub.f32 %v2493, %v3905
        %v3951 = vsub.f32 %v2494, %v3905
        %v3952 = vsub.f32 %v2495, %v3905
        %v3953 = vsub.f32 %v2496, %v3905
        %v3954 = vsub.f32 %v2497, %v3905
        %v3955 = vsub.f32 %v2498, %v3905
        %v3956 = vsub.f32 %v2499, %v3905
        %v3957 = vsub.f32 %v2500, %v3905
        %v3958 = vsub.f32 %v2501, %v3905
        %v3959 = vsub.f32 %v2502, %v3905
        %v3960 = vsub.f32 %v2503, %v3905
        %v3961 = vsub.f32 %v2504, %v3905
        %v3962 = vsub.f32 %v2505, %v3905
        %v3963 = vsub.f32 %v2506, %v3905
        %v3964 = vsub.f32 %v2507, %v3905
        %v3965 = vsub.f32 %v2508, %v3905
        %v3966 = vsub.f32 %v2509, %v3905
        %v3967 = vsub.f32 %v2510, %v3905
        %v3968 = vsub.f32 %v2511, %v3905
        %v3969 = vsub.f32 %v2512, %v3905
        %v3970 = vsub.f32 %v2513, %v3905
        %v3971 = vsub.f32 %v2514, %v3905
        %v3972 = vmul.f32 %v3906, %v3737
        %v3973 = vmul.f32 %v3907, %v3738
        %v3974 = vmul.f32 %v3908, %v3739
        %v3975 = vmul.f32 %v3909, %v3740
        %v3976 = vmul.f32 %v3910, %v3741
        %v3977 = vmul.f32 %v3911, %v3742
        %v3978 = vmul.f32 %v3912, %v3743
        %v3979 = vmul.f32 %v3913, %v3744
        %v3980 = vmul.f32 %v3914, %v3745
        %v3981 = vmul.f32 %v3915, %v3746
        %v3982 = vmul.f32 %v3916, %v3747
        %v3983 = vmul.f32 %v3917, %v3748
        %v3984 = vmul.f32 %v3918, %v3749
        %v3985 = vmul.f32 %v3919, %v3750
        %v3986 = vmul.f32 %v3920, %v3751
        %v3987 = vmul.f32 %v3921, %v3752
        %v3988 = vmul.f32 %v3922, %v3753
        %v3989 = vmul.f32 %v3923, %v3754
        %v3990 = vmul.f32 %v3924, %v3755
        %v3991 = vmul.f32 %v3925, %v3756
        %v3992 = vmul.f32 %v3926, %v3757
        %v3993 = vmul.f32 %v3927, %v3758
        %v3994 = vmul.f32 %v3928, %v3759
        %v3995 = vmul.f32 %v3929, %v3760
        %v3996 = vmul.f32 %v3930, %v3761
        %v3997 = vmul.f32 %v3931, %v3762
        %v3998 = vmul.f32 %v3932, %v3763
        %v3999 = vmul.f32 %v3933, %v3764
        %v4000 = vmul.f32 %v3934, %v3765
        %v4001 = vmul.f32 %v3935, %v3766
        %v4002 = vmul.f32 %v3936, %v3767
        %v4003 = vmul.f32 %v3937, %v3768
        %v4004 = vmul.f32 %v3938, %v3769
        %v4005 = vmul.f32 %v3939, %v3737
        %v4006 = vmul.f32 %v3940, %v3738
        %v4007 = vmul.f32 %v3941, %v3739
        %v4008 = vmul.f32 %v3942, %v3740
        %v4009 = vmul.f32 %v3943, %v3741
        %v4010 = vmul.f32 %v3944, %v3742
        %v4011 = vmul.f32 %v3945, %v3743
        %v4012 = vmul.f32 %v3946, %v3744
        %v4013 = vmul.f32 %v3947, %v3745
        %v4014 = vmul.f32 %v3948, %v3746
        %v4015 = vmul.f32 %v3949, %v3747
        %v4016 = vmul.f32 %v3950, %v3748
        %v4017 = vmul.f32 %v3951, %v3749
        %v4018 = vmul.f32 %v3952, %v3750
        %v4019 = vmul.f32 %v3953, %v3751
        %v4020 = vmul.f32 %v3954, %v3752
        %v4021 = vmul.f32 %v3955, %v3753
        %v4022 = vmul.f32 %v3956, %v3754
        %v4023 = vmul.f32 %v3957, %v3755
        %v4024 = vmul.f32 %v3958, %v3756
        %v4025 = vmul.f32 %v3959, %v3757
        %v4026 = vmul.f32 %v3960, %v3758
        %v4027 = vmul.f32 %v3961, %v3759
        %v4028 = vmul.f32 %v3962, %v3760
        %v4029 = vmul.f32 %v3963, %v3761
        %v4030 = vmul.f32 %v3964, %v3762
        %v4031 = vmul.f32 %v3965, %v3763
        %v4032 = vmul.f32 %v3966, %v3764
        %v4033 = vmul.f32 %v3967, %v3765
        %v4034 = vmul.f32 %v3968, %v3766
        %v4035 = vmul.f32 %v3969, %v3767
        %v4036 = vmul.f32 %v3970, %v3768
        %v4037 = vmul.f32 %v3971, %v3769
        %v4038 = vmul.f32 %v3972, %v3972
        %v4039 = vmul.f32 %v3973, %v3973
        %v4040 = vmul.f32 %v3974, %v3974
        %v4041 = vmul.f32 %v3975, %v3975
        %v4042 = vmul.f32 %v3976, %v3976
        %v4043 = vmul.f32 %v3977, %v3977
        %v4044 = vmul.f32 %v3978, %v3978
        %v4045 = vmul.f32 %v3979, %v3979
        %v4046 = vmul.f32 %v3980, %v3980
        %v4047 = vmul.f32 %v3981, %v3981
        %v4048 = vmul.f32 %v3982, %v3982
        %v4049 = vmul.f32 %v3983, %v3983
        %v4050 = vmul.f32 %v3984, %v3984
        %v4051 = vmul.f32 %v3985, %v3985
        %v4052 = vmul.f32 %v3986, %v3986
        %v4053 = vmul.f32 %v3987, %v3987
        %v4054 = vmul.f32 %v3988, %v3988
        %v4055 = vmul.f32 %v3989, %v3989
        %v4056 = vmul.f32 %v3990, %v3990
        %v4057 = vmul.f32 %v3991, %v3991
        %v4058 = vmul.f32 %v3992, %v3992
        %v4059 = vmul.f32 %v3993, %v3993
        %v4060 = vmul.f32 %v3994, %v3994
        %v4061 = vmul.f32 %v3995, %v3995
        %v4062 = vmul.f32 %v3996, %v3996
        %v4063 = vmul.f32 %v3997, %v3997
        %v4064 = vmul.f32 %v3998, %v3998
        %v4065 = vmul.f32 %v3999, %v3999
        %v4066 = vmul.f32 %v4000, %v4000
        %v4067 = vmul.f32 %v4001, %v4001
        %v4068 = vmul.f32 %v4002, %v4002
        %v4069 = vmul.f32 %v4003, %v4003
        %v4070 = vmul.f32 %v4004, %v4004
        %v4071 = vmul.f32 %v4005, %v4005
        %v4072 = vmul.f32 %v4006, %v4006
        %v4073 = vmul.f32 %v4007, %v4007
        %v4074 = vmul.f32 %v4008, %v4008
        %v4075 = vmul.f32 %v4009, %v4009
        %v4076 = vmul.f32 %v4010, %v4010
        %v4077 = vmul.f32 %v4011, %v4011
        %v4078 = vmul.f32 %v4012, %v4012
        %v4079 = vmul.f32 %v4013, %v4013
        %v4080 = vmul.f32 %v4014, %v4014
        %v4081 = vmul.f32 %v4015, %v4015
        %v4082 = vmul.f32 %v4016, %v4016
        %v4083 = vmul.f32 %v4017, %v4017
        %v4084 = vmul.f32 %v4018, %v4018
        %v4085 = vmul.f32 %v4019, %v4019
        %v4086 = vmul.f32 %v4020, %v4020
        %v4087 = vmul.f32 %v4021, %v4021
        %v4088 = vmul.f32 %v4022, %v4022
        %v4089 = vmul.f32 %v4023, %v4023
        %v4090 = vmul.f32 %v4024, %v4024
        %v4091 = vmul.f32 %v4025, %v4025
        %v4092 = vmul.f32 %v4026, %v4026
        %v4093 = vmul.f32 %v4027, %v4027
        %v4094 = vmul.f32 %v4028, %v4028
        %v4095 = vmul.f32 %v4029, %v4029
        %v4096 = vmul.f32 %v4030, %v4030
        %v4097 = vmul.f32 %v4031, %v4031
        %v4098 = vmul.f32 %v4032, %v4032
        %v4099 = vmul.f32 %v4033, %v4033
        %v4100 = vmul.f32 %v4034, %v4034
        %v4101 = vmul.f32 %v4035, %v4035
        %v4102 = vmul.f32 %v4036, %v4036
        %v4103 = vmul.f32 %v4037, %v4037
        %v4104 = vadd.f32 %v4038, %v4039
        %v4105 = vadd.f32 %v4104, %v4040
        %v4106 = vadd.f32 %v4105, %v4041
        %v4107 = vadd.f32 %v4106, %v4042
        %v4108 = vadd.f32 %v4107, %v4043
        %v4109 = vadd.f32 %v4108, %v4044
        %v4110 = vadd.f32 %v4109, %v4045
        %v4111 = vadd.f32 %v4110, %v4046
        %v4112 = vadd.f32 %v4111, %v4047
        %v4113 = vadd.f32 %v4112, %v4048
        %v4114 = vadd.f32 %v4113, %v4049
        %v4115 = vadd.f32 %v4114, %v4050
        %v4116 = vadd.f32 %v4115, %v4051
        %v4117 = vadd.f32 %v4116, %v4052
        %v4118 = vadd.f32 %v4117, %v4053
        %v4119 = vadd.f32 %v4118, %v4054
        %v4120 = vadd.f32 %v4119, %v4055
        %v4121 = vadd.f32 %v4120, %v4056
        %v4122 = vadd.f32 %v4121, %v4057
        %v4123 = vadd.f32 %v4122, %v4058
        %v4124 = vadd.f32 %v4123, %v4059
        %v4125 = vadd.f32 %v4124, %v4060
        %v4126 = vadd.f32 %v4125, %v4061
        %v4127 = vadd.f32 %v4126, %v4062
        %v4128 = vadd.f32 %v4127, %v4063
        %v4129 = vadd.f32 %v4128, %v4064
        %v4130 = vadd.f32 %v4129, %v4065
        %v4131 = vadd.f32 %v4130, %v4066
        %v4132 = vadd.f32 %v4131, %v4067
        %v4133 = vadd.f32 %v4132, %v4068
        %v4134 = vadd.f32 %v4133, %v4069
        %v4135 = vadd.f32 %v4134, %v4070
        %4136 = vadd.xlane.f32.xlu0 %v4135
        %v4137 = vpop.xlane.xlu0 %4136
        %v4138 = vadd.f32 %v4071, %v4072
        %v4139 = vadd.f32 %v4138, %v4073
        %v4140 = vadd.f32 %v4139, %v4074
        %v4141 = vadd.f32 %v4140, %v4075
        %v4142 = vadd.f32 %v4141, %v4076
        %v4143 = vadd.f32 %v4142, %v4077
        %v4144 = vadd.f32 %v4143, %v4078
        %v4145 = vadd.f32 %v4144, %v4079
        %v4146 = vadd.f32 %v4145, %v4080
        %v4147 = vadd.f32 %v4146, %v4081
        %v4148 = vadd.f32 %v4147, %v4082
        %v4149 = vadd.f32 %v4148, %v4083
        %v4150 = vadd.f32 %v4149, %v4084
        %v4151 = vadd.f32 %v4150, %v4085
        %v4152 = vadd.f32 %v4151, %v4086
        %v4153 = vadd.f32 %v4152, %v4087
        %v4154 = vadd.f32 %v4153, %v4088
        %v4155 = vadd.f32 %v4154, %v4089
        %v4156 = vadd.f32 %v4155, %v4090
        %v4157 = vadd.f32 %v4156, %v4091
        %v4158 = vadd.f32 %v4157, %v4092
        %v4159 = vadd.f32 %v4158, %v4093
        %v4160 = vadd.f32 %v4159, %v4094
        %v4161 = vadd.f32 %v4160, %v4095
        %v4162 = vadd.f32 %v4161, %v4096
        %v4163 = vadd.f32 %v4162, %v4097
        %v4164 = vadd.f32 %v4163, %v4098
        %v4165 = vadd.f32 %v4164, %v4099
        %v4166 = vadd.f32 %v4165, %v4100
        %v4167 = vadd.f32 %v4166, %v4101
        %v4168 = vadd.f32 %v4167, %v4102
        %v4169 = vadd.f32 %v4168, %v4103
        %4170 = vadd.xlane.f32.xlu0 %v4169
        %v4171 = vpop.xlane.xlu0 %4170
        %v4172 = vadd.f32 %v4137, %v4171
        %v4173 = vmul.f32 %v4172, 0.00012207031
        %v4174 = vadd.f32 %v4173, 1e-05
        %v4175 = vrsqrt.pop %v4174
        %v4176 = vmul.f32 %v4175, %v4174
        %v4177 = vmul.f32 %v4176, %v4175
        %v4178 = vmul.f32 0.5, %v4177
        %v4179 = vsub.f32 1.5, %v4178
        %v4180 = vmul.f32 %v4175, %v4179
        %vm4181 = vweird.f32 %v4174
        %vm4182 = vweird.f32 %v4175
        %vm4183 = vmor %vm4181, %vm4182
        %v4184 = vsel %vm4183, %v4175, %v4180
        %v4185 = vld [vmem:[%s3] sm:$0xff]
        %v4186 = vmul.f32 %v4184, %v4185
        %4188 = vset.pattern.permute.xlu0 0
        %4189 = vperm.xlu0 %4188, %v4186
        %v4190 = vpop.permute.xlu0 %4189
        %v4192 = vmul.f32 %v3906, %v4190
        %v4193 = vmul.f32 %v3907, %v4190
        %v4194 = vmul.f32 %v3908, %v4190
        %v4195 = vmul.f32 %v3909, %v4190
        %v4196 = vmul.f32 %v3910, %v4190
        %v4197 = vmul.f32 %v3911, %v4190
        %v4198 = vmul.f32 %v3912, %v4190
        %v4199 = vmul.f32 %v3913, %v4190
        %v4200 = vmul.f32 %v3914, %v4190
        %v4201 = vmul.f32 %v3915, %v4190
        %v4202 = vmul.f32 %v3916, %v4190
        %v4203 = vmul.f32 %v3917, %v4190
        %v4204 = vmul.f32 %v3918, %v4190
        %v4205 = vmul.f32 %v3919, %v4190
        %v4206 = vmul.f32 %v3920, %v4190
        %v4207 = vmul.f32 %v3921, %v4190
        %v4208 = vmul.f32 %v3922, %v4190
        %v4209 = vmul.f32 %v3923, %v4190
        %v4210 = vmul.f32 %v3924, %v4190
        %v4211 = vmul.f32 %v3925, %v4190
        %v4212 = vmul.f32 %v3926, %v4190
        %v4213 = vmul.f32 %v3927, %v4190
        %v4214 = vmul.f32 %v3928, %v4190
        %v4215 = vmul.f32 %v3929, %v4190
        %v4216 = vmul.f32 %v3930, %v4190
        %v4217 = vmul.f32 %v3931, %v4190
        %v4218 = vmul.f32 %v3932, %v4190
        %v4219 = vmul.f32 %v3933, %v4190
        %v4220 = vmul.f32 %v3934, %v4190
        %v4221 = vmul.f32 %v3935, %v4190
        %v4222 = vmul.f32 %v3936, %v4190
        %v4223 = vmul.f32 %v3937, %v4190
        %v4224 = vmul.f32 %v3938, %v4190
        %v4225 = vmul.f32 %v3939, %v4190
        %v4226 = vmul.f32 %v3940, %v4190
        %v4227 = vmul.f32 %v3941, %v4190
        %v4228 = vmul.f32 %v3942, %v4190
        %v4229 = vmul.f32 %v3943, %v4190
        %v4230 = vmul.f32 %v3944, %v4190
        %v4231 = vmul.f32 %v3945, %v4190
        %v4232 = vmul.f32 %v3946, %v4190
        %v4233 = vmul.f32 %v3947, %v4190
        %v4234 = vmul.f32 %v3948, %v4190
        %v4235 = vmul.f32 %v3949, %v4190
        %v4236 = vmul.f32 %v3950, %v4190
        %v4237 = vmul.f32 %v3951, %v4190
        %v4238 = vmul.f32 %v3952, %v4190
        %v4239 = vmul.f32 %v3953, %v4190
        %v4240 = vmul.f32 %v3954, %v4190
        %v4241 = vmul.f32 %v3955, %v4190
        %v4242 = vmul.f32 %v3956, %v4190
        %v4243 = vmul.f32 %v3957, %v4190
        %v4244 = vmul.f32 %v3958, %v4190
        %v4245 = vmul.f32 %v3959, %v4190
        %v4246 = vmul.f32 %v3960, %v4190
        %v4247 = vmul.f32 %v3961, %v4190
        %v4248 = vmul.f32 %v3962, %v4190
        %v4249 = vmul.f32 %v3963, %v4190
        %v4250 = vmul.f32 %v3964, %v4190
        %v4251 = vmul.f32 %v3965, %v4190
        %v4252 = vmul.f32 %v3966, %v4190
        %v4253 = vmul.f32 %v3967, %v4190
        %v4254 = vmul.f32 %v3968, %v4190
        %v4255 = vmul.f32 %v3969, %v4190
        %v4256 = vmul.f32 %v3970, %v4190
        %v4257 = vmul.f32 %v3971, %v4190
        %v4258 = vld [vmem:[%s4] sm:$0xff]
        %4260 = vset.pattern.permute.xlu0 0
        %4261 = vperm.xlu0 %4260, %v4258
        %v4262 = vpop.permute.xlu0 %4261
        %v4264 = vadd.f32 %v4192, %v4262
        %v4265 = vadd.f32 %v4193, %v4262
        %v4266 = vadd.f32 %v4194, %v4262
        %v4267 = vadd.f32 %v4195, %v4262
        %v4268 = vadd.f32 %v4196, %v4262
        %v4269 = vadd.f32 %v4197, %v4262
        %v4270 = vadd.f32 %v4198, %v4262
        %v4271 = vadd.f32 %v4199, %v4262
        %v4272 = vadd.f32 %v4200, %v4262
        %v4273 = vadd.f32 %v4201, %v4262
        %v4274 = vadd.f32 %v4202, %v4262
        %v4275 = vadd.f32 %v4203, %v4262
        %v4276 = vadd.f32 %v4204, %v4262
        %v4277 = vadd.f32 %v4205, %v4262
        %v4278 = vadd.f32 %v4206, %v4262
        %v4279 = vadd.f32 %v4207, %v4262
        %v4280 = vadd.f32 %v4208, %v4262
        %v4281 = vadd.f32 %v4209, %v4262
        %v4282 = vadd.f32 %v4210, %v4262
        %v4283 = vadd.f32 %v4211, %v4262
        %v4284 = vadd.f32 %v4212, %v4262
        %v4285 = vadd.f32 %v4213, %v4262
        %v4286 = vadd.f32 %v4214, %v4262
        %v4287 = vadd.f32 %v4215, %v4262
        %v4288 = vadd.f32 %v4216, %v4262
        %v4289 = vadd.f32 %v4217, %v4262
        %v4290 = vadd.f32 %v4218, %v4262
        %v4291 = vadd.f32 %v4219, %v4262
        %v4292 = vadd.f32 %v4220, %v4262
        %v4293 = vadd.f32 %v4221, %v4262
        %v4294 = vadd.f32 %v4222, %v4262
        %v4295 = vadd.f32 %v4223, %v4262
        %v4296 = vadd.f32 %v4224, %v4262
        %v4297 = vadd.f32 %v4225, %v4262
        %v4298 = vadd.f32 %v4226, %v4262
        %v4299 = vadd.f32 %v4227, %v4262
        %v4300 = vadd.f32 %v4228, %v4262
        %v4301 = vadd.f32 %v4229, %v4262
        %v4302 = vadd.f32 %v4230, %v4262
        %v4303 = vadd.f32 %v4231, %v4262
        %v4304 = vadd.f32 %v4232, %v4262
        %v4305 = vadd.f32 %v4233, %v4262
        %v4306 = vadd.f32 %v4234, %v4262
        %v4307 = vadd.f32 %v4235, %v4262
        %v4308 = vadd.f32 %v4236, %v4262
        %v4309 = vadd.f32 %v4237, %v4262
        %v4310 = vadd.f32 %v4238, %v4262
        %v4311 = vadd.f32 %v4239, %v4262
        %v4312 = vadd.f32 %v4240, %v4262
        %v4313 = vadd.f32 %v4241, %v4262
        %v4314 = vadd.f32 %v4242, %v4262
        %v4315 = vadd.f32 %v4243, %v4262
        %v4316 = vadd.f32 %v4244, %v4262
        %v4317 = vadd.f32 %v4245, %v4262
        %v4318 = vadd.f32 %v4246, %v4262
        %v4319 = vadd.f32 %v4247, %v4262
        %v4320 = vadd.f32 %v4248, %v4262
        %v4321 = vadd.f32 %v4249, %v4262
        %v4322 = vadd.f32 %v4250, %v4262
        %v4323 = vadd.f32 %v4251, %v4262
        %v4324 = vadd.f32 %v4252, %v4262
        %v4325 = vadd.f32 %v4253, %v4262
        %v4326 = vadd.f32 %v4254, %v4262
        %v4327 = vadd.f32 %v4255, %v4262
        %v4328 = vadd.f32 %v4256, %v4262
        %v4329 = vadd.f32 %v4257, %v4262
        %4330 = vst [vmem:[%s5] sm:$0xff] %v4264
        %4331 = vst [vmem:[%s5 + $0x8] sm:$0xff] %v4265
        %4332 = vst [vmem:[%s5 + $0x10] sm:$0xff] %v4266
        %4333 = vst [vmem:[%s5 + $0x18] sm:$0xff] %v4267
        %4334 = vst [vmem:[%s5 + $0x20] sm:$0xff] %v4268
        %4335 = vst [vmem:[%s5 + $0x28] sm:$0xff] %v4269
        %4336 = vst [vmem:[%s5 + $0x30] sm:$0xff] %v4270
        %4337 = vst [vmem:[%s5 + $0x38] sm:$0xff] %v4271
        %4338 = vst [vmem:[%s5 + $0x40] sm:$0xff] %v4272
        %4339 = vst [vmem:[%s5 + $0x48] sm:$0xff] %v4273
        %4340 = vst [vmem:[%s5 + $0x50] sm:$0xff] %v4274
        %4341 = vst [vmem:[%s5 + $0x58] sm:$0xff] %v4275
        %4342 = vst [vmem:[%s5 + $0x60] sm:$0xff] %v4276
        %4343 = vst [vmem:[%s5 + $0x68] sm:$0xff] %v4277
        %4344 = vst [vmem:[%s5 + $0x70] sm:$0xff] %v4278
        %4345 = vst [vmem:[%s5 + $0x78] sm:$0xff] %v4279
        %4346 = vst [vmem:[%s5 + $0x80] sm:$0xff] %v4280
        %4347 = vst [vmem:[%s5 + $0x88] sm:$0xff] %v4281
        %4348 = vst [vmem:[%s5 + $0x90] sm:$0xff] %v4282
        %4349 = vst [vmem:[%s5 + $0x98] sm:$0xff] %v4283
        %4350 = vst [vmem:[%s5 + $0xa0] sm:$0xff] %v4284
        %4351 = vst [vmem:[%s5 + $0xa8] sm:$0xff] %v4285
        %4352 = vst [vmem:[%s5 + $0xb0] sm:$0xff] %v4286
        %4353 = vst [vmem:[%s5 + $0xb8] sm:$0xff] %v4287
        %4354 = vst [vmem:[%s5 + $0xc0] sm:$0xff] %v4288
        %4355 = vst [vmem:[%s5 + $0xc8] sm:$0xff] %v4289
        %4356 = vst [vmem:[%s5 + $0xd0] sm:$0xff] %v4290
        %4357 = vst [vmem:[%s5 + $0xd8] sm:$0xff] %v4291
        %4358 = vst [vmem:[%s5 + $0xe0] sm:$0xff] %v4292
        %4359 = vst [vmem:[%s5 + $0xe8] sm:$0xff] %v4293
        %4360 = vst [vmem:[%s5 + $0xf0] sm:$0xff] %v4294
        %4361 = vst [vmem:[%s5 + $0xf8] sm:$0xff] %v4295
        %4362 = vst [vmem:[%s5 + $0x100] sm:$0xff] %v4296
        %4363 = vst [vmem:[%s5 + $0x108] sm:$0xff] %v4297
        %4364 = vst [vmem:[%s5 + $0x110] sm:$0xff] %v4298
        %4365 = vst [vmem:[%s5 + $0x118] sm:$0xff] %v4299
        %4366 = vst [vmem:[%s5 + $0x120] sm:$0xff] %v4300
        %4367 = vst [vmem:[%s5 + $0x128] sm:$0xff] %v4301
        %4368 = vst [vmem:[%s5 + $0x130] sm:$0xff] %v4302
        %4369 = vst [vmem:[%s5 + $0x138] sm:$0xff] %v4303
        %4370 = vst [vmem:[%s5 + $0x140] sm:$0xff] %v4304
        %4371 = vst [vmem:[%s5 + $0x148] sm:$0xff] %v4305
        %4372 = vst [vmem:[%s5 + $0x150] sm:$0xff] %v4306
        %4373 = vst [vmem:[%s5 + $0x158] sm:$0xff] %v4307
        %4374 = vst [vmem:[%s5 + $0x160] sm:$0xff] %v4308
        %4375 = vst [vmem:[%s5 + $0x168] sm:$0xff] %v4309
        %4376 = vst [vmem:[%s5 + $0x170] sm:$0xff] %v4310
        %4377 = vst [vmem:[%s5 + $0x178] sm:$0xff] %v4311
        %4378 = vst [vmem:[%s5 + $0x180] sm:$0xff] %v4312
        %4379 = vst [vmem:[%s5 + $0x188] sm:$0xff] %v4313
        %4380 = vst [vmem:[%s5 + $0x190] sm:$0xff] %v4314
        %4381 = vst [vmem:[%s5 + $0x198] sm:$0xff] %v4315
        %4382 = vst [vmem:[%s5 + $0x1a0] sm:$0xff] %v4316
        %4383 = vst [vmem:[%s5 + $0x1a8] sm:$0xff] %v4317
        %4384 = vst [vmem:[%s5 + $0x1b0] sm:$0xff] %v4318
        %4385 = vst [vmem:[%s5 + $0x1b8] sm:$0xff] %v4319
        %4386 = vst [vmem:[%s5 + $0x1c0] sm:$0xff] %v4320
        %4387 = vst [vmem:[%s5 + $0x1c8] sm:$0xff] %v4321
        %4388 = vst [vmem:[%s5 + $0x1d0] sm:$0xff] %v4322
        %4389 = vst [vmem:[%s5 + $0x1d8] sm:$0xff] %v4323
        %4390 = vst [vmem:[%s5 + $0x1e0] sm:$0xff] %v4324
        %4391 = vst [vmem:[%s5 + $0x1e8] sm:$0xff] %v4325
        %4392 = vst [vmem:[%s5 + $0x1f0] sm:$0xff] %v4326
        %4393 = vst [vmem:[%s5 + $0x1f8] sm:$0xff] %v4327
        %4394 = vst [vmem:[%s5 + $0x200] sm:$0xff] %v4328
        %4395 = vst [vmem:[%s5 + $0x208] sm:$0xff] %v4329
      $region44: #{dec_subpix_branch_forward.8} parent=39 // pred_fallthru
        _
      // Predicated region
      $region45: #{dec_subpix_branch_forward.8} parent=39 // pred_check
        %p4396 = pneg %p139
      $region46: #{dec_subpix_branch_forward.8} parent=39 // pred_check_branch
        %4398 = sbr.rel (%p4396) target = $region48
      $region47: #{dec_subpix_branch_forward.8} parent=39 // pred_region
        _
      $region48: #{dec_subpix_branch_forward.8} parent=39 // pred_fallthru
        _
      // Predicated region
      $region49: #{dec_subpix_branch_forward.8} parent=39 // pred_check
        %p4399 = pneg %p139
      $region50: #{dec_subpix_branch_forward.8} parent=39 // pred_check_branch
        %4401 = sbr.rel (%p4399) target = $region52
      $region51: #{dec_subpix_branch_forward.8} parent=39 // pred_region
        _
      $region52: #{dec_subpix_branch_forward.8} parent=39 // pred_fallthru
        _
    $region40: #{dec_subpix_branch_forward.8} parent=5 // pred_fallthru
      _
    %p4402 = scmp.le.s32.totalorder 2, %s11
    // Predicated region
    $region53: #{dec_subpix_branch_forward.8} parent=5 // pred_check
      %p4403 = pneg %p4402
    $region54: #{dec_subpix_branch_forward.8} parent=5 // pred_check_branch
      %4405 = sbr.rel (%p4403) target = $region56
    $region55: #{dec_subpix_branch_forward.8} parent=5 // pred_region
      %s4406 = ssub.s32 %s11, 2
    $region56: #{dec_subpix_branch_forward.8} parent=5 // pred_fallthru
      _
  $region6: #{dec_subpix_branch_forward.8} parent=0 // loop_footer
    %s15 = sadd.s32 1, %s11
  $region7: #{dec_subpix_branch_forward.8} parent=0 // loop_footer_branch
    %10 = sbr.rel target = $region3
  $region8: #{dec_subpix_branch_forward.8} parent=0 // loop_exit
    _

// kernel: dec_subpix_branch_forward.9
$region0: #{dec_subpix_branch_forward.9}
  #allocation0 [shape = 'u32[]', space=smem, size = 0x4, offset = 0x4, fixed_abs, tag = 'smem constant byte address 0x4 - core index']
  #allocation1 [shape = 'u32[72,128]{1,0:T(1,128)}', space=vmem, size = 0x9000, scoped, tag = 'internal scratch']
  %s0 = inlined_call_operand.vmem [shape: bf16[2,16,4358], index: 0, kind: input, shape index: {}]
  %s1 = inlined_call_operand.vmem [shape: bf16[8,144], index: 1, kind: input, shape index: {}]
  %s2 = inlined_call_operand.vmem [shape: f32[8,1], index: 2, kind: input, shape index: {}]
  %s3 = inlined_call_operand.vmem [shape: f32[2,8,4224], index: 3, kind: output, shape index: {}]
  %s4 = sld [smem:[#allocation0]]
  $region45: #{dec_subpix_branch_forward.9} parent=0
    _
  %s6 = ssub.s32 1, %s4
  %s7 = scalar_select 0, %s6, %s4
  loop: start=0, step=1, limit=4
  $region2: #{dec_subpix_branch_forward.9} parent=0 // loop_pre_header
    _
  $region3: #{dec_subpix_branch_forward.9} parent=0 // loop_header
    %s9 = sphi 0, %s13
    %p10 = scmp.ge.s32.totalorder %s9, 4
    %s19 = sphi 0, %s21
    %s22 = sphi 0, %s19
    %s23 = sphi 0, %s22
    %s39 = sphi 0, %s23
    %s43 = sphi 0, %s43
    %s45 = sphi 0, %s43
    %s46 = sphi 0, %s45
    %s60 = sphi 0, %s46
    %s64 = sphi 0, %s64
    %s66 = sphi 0, %s64
    %s67 = sphi 0, %s66
    %s81 = sphi 0, %s67
    %s87 = sphi 0, %s89
    %s90 = sphi 0, %s87
    %s91 = sphi 0, %s90
    %s107 = sphi 0, %s91
  $region4: #{dec_subpix_branch_forward.9} parent=0 // loop_header_branch
    %12 = sbr.rel (%p10) target = $region8
  $region5: #{dec_subpix_branch_forward.9} parent=0 // loop_body
    %s14 = ssub.s32 %s9, 1
    %s15 = ssub.s32 %s9, 2
    %s16 = sadd.s32 %s9, 1
    %s17 = ssub.s32 %s9, %s16
    %p18 = scmp.eq.s32.totalorder %s17, 0
    %s20 = sadd.s32 %s19, 1
    %s21 = scalar_select %p18, %s19, %s20
    %p24 = pneg %p18
    %p25 = scmp.eq.s32.totalorder %s9, 1
    %p26 = por %p24, %p25
    %p27 = scmp.ne.s32.totalorder %s19, %s22
    %p28 = scmp.eq.s32.totalorder %s9, 0
    %p29 = por %p27, %p28
    %p30 = scmp.ne.s32.totalorder %s19, %s22
    %p31 = scmp.eq.s32.totalorder %s14, 1
    %p32 = por %p30, %p31
    %p33 = scmp.ne.s32.totalorder %s22, %s23
    %p34 = scmp.eq.s32.totalorder %s14, 0
    %p35 = por %p33, %p34
    %p36 = scmp.ne.s32.totalorder %s22, %s23
    %p37 = scmp.eq.s32.totalorder %s15, 1
    %p38 = por %p36, %p37
    %p40 = scmp.ne.s32.totalorder %s23, %s39
    %p41 = scmp.eq.s32.totalorder %s15, 0
    %p42 = por %p40, %p41
    %s44 = sadd.s32 %s43, 1
    %p47 = scmp.eq.s32.totalorder %s9, 1
    %p48 = scmp.ne.s32.totalorder %s43, %s45
    %p49 = scmp.eq.s32.totalorder %s9, 0
    %p50 = por %p48, %p49
    %p51 = scmp.ne.s32.totalorder %s43, %s45
    %p52 = scmp.eq.s32.totalorder %s14, 1
    %p53 = por %p51, %p52
    %p54 = scmp.ne.s32.totalorder %s45, %s46
    %p55 = scmp.eq.s32.totalorder %s14, 0
    %p56 = por %p54, %p55
    %p57 = scmp.ne.s32.totalorder %s45, %s46
    %p58 = scmp.eq.s32.totalorder %s15, 1
    %p59 = por %p57, %p58
    %p61 = scmp.ne.s32.totalorder %s46, %s60
    %p62 = scmp.eq.s32.totalorder %s15, 0
    %p63 = por %p61, %p62
    %s65 = sadd.s32 %s64, 1
    %p68 = scmp.eq.s32.totalorder %s9, 1
    %p69 = scmp.ne.s32.totalorder %s64, %s66
    %p70 = scmp.eq.s32.totalorder %s9, 0
    %p71 = por %p69, %p70
    %p72 = scmp.ne.s32.totalorder %s64, %s66
    %p73 = scmp.eq.s32.totalorder %s14, 1
    %p74 = por %p72, %p73
    %p75 = scmp.ne.s32.totalorder %s66, %s67
    %p76 = scmp.eq.s32.totalorder %s14, 0
    %p77 = por %p75, %p76
    %p78 = scmp.ne.s32.totalorder %s66, %s67
    %p79 = scmp.eq.s32.totalorder %s15, 1
    %p80 = por %p78, %p79
    %p82 = scmp.ne.s32.totalorder %s67, %s81
    %p83 = scmp.eq.s32.totalorder %s15, 0
    %p84 = por %p82, %p83
    %s85 = ssub.s32 %s9, %s16
    %p86 = scmp.eq.s32.totalorder %s85, 0
    %s88 = sadd.s32 %s87, 1
    %s89 = scalar_select %p86, %s87, %s88
    %p92 = pneg %p86
    %p93 = scmp.eq.s32.totalorder %s9, 1
    %p94 = por %p92, %p93
    %p95 = scmp.ne.s32.totalorder %s87, %s90
    %p96 = scmp.eq.s32.totalorder %s9, 0
    %p97 = por %p95, %p96
    %p98 = scmp.ne.s32.totalorder %s87, %s90
    %p99 = scmp.eq.s32.totalorder %s14, 1
    %p100 = por %p98, %p99
    %p101 = scmp.ne.s32.totalorder %s90, %s91
    %p102 = scmp.eq.s32.totalorder %s14, 0
    %p103 = por %p101, %p102
    %p104 = scmp.ne.s32.totalorder %s90, %s91
    %p105 = scmp.eq.s32.totalorder %s15, 1
    %p106 = por %p104, %p105
    %p108 = scmp.ne.s32.totalorder %s91, %s107
    %p109 = scmp.eq.s32.totalorder %s15, 0
    %p110 = por %p108, %p109
    %p111 = scmp.le.s32.totalorder 1, %s9
    %p112 = scmp.lt.s32.totalorder %s9, 3
    %p113 = pnand %p111, %p112
    %p114 = pneg %p113
    // Predicated region
    $region9: #{dec_subpix_branch_forward.9} parent=5 // pred_check
      _
    $region10: #{dec_subpix_branch_forward.9} parent=5 // pred_check_branch
      %116 = sbr.rel (%p113) target = $region12
    $region11: #{dec_subpix_branch_forward.9} parent=5 // pred_region
      %s117 = ssub.s32 %s9, 1
      // Predicated region
      $region13: #{dec_subpix_branch_forward.9} parent=11 // pred_check
        %p118 = pneg %p56
      $region14: #{dec_subpix_branch_forward.9} parent=11 // pred_check_branch
        %120 = sbr.rel (%p118) target = $region16
      $region15: #{dec_subpix_branch_forward.9} parent=11 // pred_region
        _
      $region16: #{dec_subpix_branch_forward.9} parent=11 // pred_fallthru
        _
      // Predicated region
      $region17: #{dec_subpix_branch_forward.9} parent=11 // pred_check
        %p121 = pneg %p77
      $region18: #{dec_subpix_branch_forward.9} parent=11 // pred_check_branch
        %123 = sbr.rel (%p121) target = $region20
      $region19: #{dec_subpix_branch_forward.9} parent=11 // pred_region
        _
      $region20: #{dec_subpix_branch_forward.9} parent=11 // pred_fallthru
        _
    $region12: #{dec_subpix_branch_forward.9} parent=5 // pred_fallthru
      _
    %p124 = scmp.lt.s32.totalorder %s9, 2
    // Predicated region
    $region21: #{dec_subpix_branch_forward.9} parent=5 // pred_check
      %p125 = pneg %p124
    $region22: #{dec_subpix_branch_forward.9} parent=5 // pred_check_branch
      %127 = sbr.rel (%p125) target = $region24
    $region23: #{dec_subpix_branch_forward.9} parent=5 // pred_region
      // Predicated region
      $region25: #{dec_subpix_branch_forward.9} parent=23 // pred_check
        %p128 = pneg %p29
      $region26: #{dec_subpix_branch_forward.9} parent=23 // pred_check_branch
        %130 = sbr.rel (%p128) target = $region28
      $region27: #{dec_subpix_branch_forward.9} parent=23 // pred_region
        %p131 = scmp.lt.s32.totalorder %s9, 1
        %s132 = scalar_select %p131, %s9, 1
        %s133 = smul.addr %s132, 70
        %s134 = smul.addr %s133, 4
        %s135 = scalar_lea.vmem %s0, %s134
      $region28: #{dec_subpix_branch_forward.9} parent=23 // pred_fallthru
        _
    $region24: #{dec_subpix_branch_forward.9} parent=5 // pred_fallthru
      _
    %p136 = scmp.le.s32.totalorder 1, %s9
    %p137 = scmp.lt.s32.totalorder %s9, 3
    %p138 = pnand %p136, %p137
    %p139 = pneg %p138
    // Predicated region
    $region29: #{dec_subpix_branch_forward.9} parent=5 // pred_check
      _
    $region30: #{dec_subpix_branch_forward.9} parent=5 // pred_check_branch
      %141 = sbr.rel (%p138) target = $region32
    $region31: #{dec_subpix_branch_forward.9} parent=5 // pred_region
      %s142 = ssub.s32 %s9, 1
      %p143 = scmp.lt.s32.totalorder %s14, 1
      %s144 = scalar_select %p143, %s14, 1
      %s145 = smul.addr %s144, 70
      %s146 = smul.addr %s145, 4
      %s147 = scalar_lea.vmem %s0, %s146
      %p148 = pneg %p35
      %p149 = pneg %p32
      %p150 = pneg %p56
      %p151 = pneg %p53
      %p152 = pneg %p77
      %p153 = pneg %p74
      %p154 = pneg %p103
      %p155 = pneg %p100
      %p156 = scmp.lt.s32.totalorder %s14, 1
      %s157 = scalar_select %p156, %s14, 1
      %s158 = smul.addr %s157, 33
      %s159 = smul.addr %s158, 8
      %s160 = scalar_lea.vmem %s3, %s159
      %p161 = scmp.lt.s32.totalorder %s14, 1
      %s162 = scalar_select %p161, %s14, 1
      %s163 = smul.addr %s162, 70
      %s164 = smul.addr %s163, 4
      %s165 = scalar_lea.vmem %s0, %s164
      %p166 = scmp.lt.s32.totalorder %s14, 1
      %s167 = scalar_select %p166, %s14, 1
      %s168 = smul.addr %s167, 33
      %s169 = smul.addr %s168, 8
      %s170 = scalar_lea.vmem %s3, %s169
      %v172 = vld [vmem:[%s165] sm:$0xff]
      %v173 = vld [vmem:[%s165 + $0x8] sm:$0xff]
      %v174 = vld [vmem:[%s165 + $0x10] sm:$0xff]
      %v175 = vld [vmem:[%s165 + $0x18] sm:$0xff]
      %v176 = vld [vmem:[%s165 + $0x20] sm:$0xff]
      %v177 = vld [vmem:[%s165 + $0x28] sm:$0xff]
      %v178 = vld [vmem:[%s165 + $0x30] sm:$0xff]
      %v179 = vld [vmem:[%s165 + $0x38] sm:$0xff]
      %v180 = vld [vmem:[%s165 + $0x40] sm:$0xff]
      %v181 = vld [vmem:[%s165 + $0x48] sm:$0xff]
      %v182 = vld [vmem:[%s165 + $0x50] sm:$0xff]
      %v183 = vld [vmem:[%s165 + $0x58] sm:$0xff]
      %v184 = vld [vmem:[%s165 + $0x60] sm:$0xff]
      %v185 = vld [vmem:[%s165 + $0x68] sm:$0xff]
      %v186 = vld [vmem:[%s165 + $0x70] sm:$0xff]
      %v187 = vld [vmem:[%s165 + $0x78] sm:$0xff]
      %v188 = vld [vmem:[%s165 + $0x80] sm:$0xff]
      %v189 = vld [vmem:[%s165 + $0x88] sm:$0xf]
      %v190 = vld [vmem:[%s165 + $0x8c] sm:$0xff]
      %v191 = vld [vmem:[%s165 + $0x94] sm:$0xff]
      %v192 = vld [vmem:[%s165 + $0x9c] sm:$0xff]
      %v193 = vld [vmem:[%s165 + $0xa4] sm:$0xff]
      %v194 = vld [vmem:[%s165 + $0xac] sm:$0xff]
      %v195 = vld [vmem:[%s165 + $0xb4] sm:$0xff]
      %v196 = vld [vmem:[%s165 + $0xbc] sm:$0xff]
      %v197 = vld [vmem:[%s165 + $0xc4] sm:$0xff]
      %v198 = vld [vmem:[%s165 + $0xcc] sm:$0xff]
      %v199 = vld [vmem:[%s165 + $0xd4] sm:$0xff]
      %v200 = vld [vmem:[%s165 + $0xdc] sm:$0xff]
      %v201 = vld [vmem:[%s165 + $0xe4] sm:$0xff]
      %v202 = vld [vmem:[%s165 + $0xec] sm:$0xff]
      %v203 = vld [vmem:[%s165 + $0xf4] sm:$0xff]
      %v204 = vld [vmem:[%s165 + $0xfc] sm:$0xff]
      %v205 = vld [vmem:[%s165 + $0x104] sm:$0xff]
      %v206 = vld [vmem:[%s165 + $0x10c] sm:$0xff]
      %v207 = vld [vmem:[%s165 + $0x114] sm:$0xf]
      %v242 = vunpack.c.l.b16 %v172
      %v243 = vunpack.c.h.b16 %v172
      %v244 = vunpack.c.l.b16 %v173
      %v245 = vunpack.c.h.b16 %v173
      %v246 = vunpack.c.l.b16 %v174
      %v247 = vunpack.c.h.b16 %v174
      %v248 = vunpack.c.l.b16 %v175
      %v249 = vunpack.c.h.b16 %v175
      %v250 = vunpack.c.l.b16 %v176
      %v251 = vunpack.c.h.b16 %v176
      %v252 = vunpack.c.l.b16 %v177
      %v253 = vunpack.c.h.b16 %v177
      %v254 = vunpack.c.l.b16 %v178
      %v255 = vunpack.c.h.b16 %v178
      %v256 = vunpack.c.l.b16 %v179
      %v257 = vunpack.c.h.b16 %v179
      %v258 = vunpack.c.l.b16 %v180
      %v259 = vunpack.c.h.b16 %v180
      %v260 = vunpack.c.l.b16 %v181
      %v261 = vunpack.c.h.b16 %v181
      %v262 = vunpack.c.l.b16 %v182
      %v263 = vunpack.c.h.b16 %v182
      %v264 = vunpack.c.l.b16 %v183
      %v265 = vunpack.c.h.b16 %v183
      %v266 = vunpack.c.l.b16 %v184
      %v267 = vunpack.c.h.b16 %v184
      %v268 = vunpack.c.l.b16 %v185
      %v269 = vunpack.c.h.b16 %v185
      %v270 = vunpack.c.l.b16 %v186
      %v271 = vunpack.c.h.b16 %v186
      %v272 = vunpack.c.l.b16 %v187
      %v273 = vunpack.c.h.b16 %v187
      %v274 = vunpack.c.l.b16 %v188
      %v275 = vunpack.c.l.b16 %v190
      %v276 = vunpack.c.h.b16 %v190
      %v277 = vunpack.c.l.b16 %v191
      %v278 = vunpack.c.h.b16 %v191
      %v279 = vunpack.c.l.b16 %v192
      %v280 = vunpack.c.h.b16 %v192
      %v281 = vunpack.c.l.b16 %v193
      %v282 = vunpack.c.h.b16 %v193
      %v283 = vunpack.c.l.b16 %v194
      %v284 = vunpack.c.h.b16 %v194
      %v285 = vunpack.c.l.b16 %v195
      %v286 = vunpack.c.h.b16 %v195
      %v287 = vunpack.c.l.b16 %v196
      %v288 = vunpack.c.h.b16 %v196
      %v289 = vunpack.c.l.b16 %v197
      %v290 = vunpack.c.h.b16 %v197
      %v291 = vunpack.c.l.b16 %v198
      %v292 = vunpack.c.h.b16 %v198
      %v293 = vunpack.c.l.b16 %v199
      %v294 = vunpack.c.h.b16 %v199
      %v295 = vunpack.c.l.b16 %v200
      %v296 = vunpack.c.h.b16 %v200
      %v297 = vunpack.c.l.b16 %v201
      %v298 = vunpack.c.h.b16 %v201
      %v299 = vunpack.c.l.b16 %v202
      %v300 = vunpack.c.h.b16 %v202
      %v301 = vunpack.c.l.b16 %v203
      %v302 = vunpack.c.h.b16 %v203
      %v303 = vunpack.c.l.b16 %v204
      %v304 = vunpack.c.h.b16 %v204
      %v305 = vunpack.c.l.b16 %v205
      %v306 = vunpack.c.h.b16 %v205
      %v307 = vunpack.c.l.b16 %v206
      %v308 = vpack.c.b16 %v275, %v242
      %v309 = vpack.c.b16 %v276, %v243
      %v310 = vpack.c.b16 %v277, %v244
      %v311 = vpack.c.b16 %v278, %v245
      %v312 = vpack.c.b16 %v279, %v246
      %v313 = vpack.c.b16 %v280, %v247
      %v314 = vpack.c.b16 %v281, %v248
      %v315 = vpack.c.b16 %v282, %v249
      %v316 = vpack.c.b16 %v283, %v250
      %v317 = vpack.c.b16 %v284, %v251
      %v318 = vpack.c.b16 %v285, %v252
      %v319 = vpack.c.b16 %v286, %v253
      %v320 = vpack.c.b16 %v287, %v254
      %v321 = vpack.c.b16 %v288, %v255
      %v322 = vpack.c.b16 %v289, %v256
      %v323 = vpack.c.b16 %v290, %v257
      %v324 = vpack.c.b16 %v291, %v258
      %v325 = vpack.c.b16 %v292, %v259
      %v326 = vpack.c.b16 %v293, %v260
      %v327 = vpack.c.b16 %v294, %v261
      %v328 = vpack.c.b16 %v295, %v262
      %v329 = vpack.c.b16 %v296, %v263
      %v330 = vpack.c.b16 %v297, %v264
      %v331 = vpack.c.b16 %v298, %v265
      %v332 = vpack.c.b16 %v299, %v266
      %v333 = vpack.c.b16 %v300, %v267
      %v334 = vpack.c.b16 %v301, %v268
      %v335 = vpack.c.b16 %v302, %v269
      %v336 = vpack.c.b16 %v303, %v270
      %v337 = vpack.c.b16 %v304, %v271
      %v338 = vpack.c.b16 %v305, %v272
      %v339 = vpack.c.b16 %v306, %v273
      %v340 = vpack.c.b16 %v307, %v274
      %v374 = vunpack.c.h.b16 %v188
      %v375 = vunpack.c.h.b16 %v206
      %v376 = vpack.c.b16 %v375, %v374
      %377 = vrot.lane.b32.xlu0 %v308, 127
      %v378 = vpop.permute.xlu0 %377
      %379 = vrot.lane.b32.xlu0 %v309, 127
      %v380 = vpop.permute.xlu0 %379
      %381 = vrot.lane.b32.xlu0 %v310, 127
      %v382 = vpop.permute.xlu0 %381
      %383 = vrot.lane.b32.xlu0 %v311, 127
      %v384 = vpop.permute.xlu0 %383
      %385 = vrot.lane.b32.xlu0 %v312, 127
      %v386 = vpop.permute.xlu0 %385
      %387 = vrot.lane.b32.xlu0 %v313, 127
      %v388 = vpop.permute.xlu0 %387
      %389 = vrot.lane.b32.xlu0 %v314, 127
      %v390 = vpop.permute.xlu0 %389
      %391 = vrot.lane.b32.xlu0 %v315, 127
      %v392 = vpop.permute.xlu0 %391
      %393 = vrot.lane.b32.xlu0 %v316, 127
      %v394 = vpop.permute.xlu0 %393
      %395 = vrot.lane.b32.xlu0 %v317, 127
      %v396 = vpop.permute.xlu0 %395
      %397 = vrot.lane.b32.xlu0 %v318, 127
      %v398 = vpop.permute.xlu0 %397
      %399 = vrot.lane.b32.xlu0 %v319, 127
      %v400 = vpop.permute.xlu0 %399
      %401 = vrot.lane.b32.xlu0 %v320, 127
      %v402 = vpop.permute.xlu0 %401
      %403 = vrot.lane.b32.xlu0 %v321, 127
      %v404 = vpop.permute.xlu0 %403
      %405 = vrot.lane.b32.xlu0 %v322, 127
      %v406 = vpop.permute.xlu0 %405
      %407 = vrot.lane.b32.xlu0 %v323, 127
      %v408 = vpop.permute.xlu0 %407
      %409 = vrot.lane.b32.xlu0 %v324, 127
      %v410 = vpop.permute.xlu0 %409
      %411 = vrot.lane.b32.xlu0 %v325, 127
      %v412 = vpop.permute.xlu0 %411
      %413 = vrot.lane.b32.xlu0 %v326, 127
      %v414 = vpop.permute.xlu0 %413
      %415 = vrot.lane.b32.xlu0 %v327, 127
      %v416 = vpop.permute.xlu0 %415
      %417 = vrot.lane.b32.xlu0 %v328, 127
      %v418 = vpop.permute.xlu0 %417
      %419 = vrot.lane.b32.xlu0 %v329, 127
      %v420 = vpop.permute.xlu0 %419
      %421 = vrot.lane.b32.xlu0 %v330, 127
      %v422 = vpop.permute.xlu0 %421
      %423 = vrot.lane.b32.xlu0 %v331, 127
      %v424 = vpop.permute.xlu0 %423
      %425 = vrot.lane.b32.xlu0 %v332, 127
      %v426 = vpop.permute.xlu0 %425
      %427 = vrot.lane.b32.xlu0 %v333, 127
      %v428 = vpop.permute.xlu0 %427
      %429 = vrot.lane.b32.xlu0 %v334, 127
      %v430 = vpop.permute.xlu0 %429
      %431 = vrot.lane.b32.xlu0 %v335, 127
      %v432 = vpop.permute.xlu0 %431
      %433 = vrot.lane.b32.xlu0 %v336, 127
      %v434 = vpop.permute.xlu0 %433
      %435 = vrot.lane.b32.xlu0 %v337, 127
      %v436 = vpop.permute.xlu0 %435
      %437 = vrot.lane.b32.xlu0 %v338, 127
      %v438 = vpop.permute.xlu0 %437
      %439 = vrot.lane.b32.xlu0 %v339, 127
      %v440 = vpop.permute.xlu0 %439
      %441 = vrot.lane.b32.xlu0 %v340, 127
      %v442 = vpop.permute.xlu0 %441
      %443 = vrot.lane.b32.xlu0 %v376, 127
      %v444 = vpop.permute.xlu0 %443
      %vm445 = vcmask 1039360
      %v446 = vsel %vm445, %v378, %v380
      %v447 = vsel %vm445, %v380, %v382
      %v448 = vsel %vm445, %v382, %v384
      %v449 = vsel %vm445, %v384, %v386
      %v450 = vsel %vm445, %v386, %v388
      %v451 = vsel %vm445, %v388, %v390
      %v452 = vsel %vm445, %v390, %v392
      %v453 = vsel %vm445, %v392, %v394
      %v454 = vsel %vm445, %v394, %v396
      %v455 = vsel %vm445, %v396, %v398
      %v456 = vsel %vm445, %v398, %v400
      %v457 = vsel %vm445, %v400, %v402
      %v458 = vsel %vm445, %v402, %v404
      %v459 = vsel %vm445, %v404, %v406
      %v460 = vsel %vm445, %v406, %v408
      %v461 = vsel %vm445, %v408, %v410
      %v462 = vsel %vm445, %v410, %v412
      %v463 = vsel %vm445, %v412, %v414
      %v464 = vsel %vm445, %v414, %v416
      %v465 = vsel %vm445, %v416, %v418
      %v466 = vsel %vm445, %v418, %v420
      %v467 = vsel %vm445, %v420, %v422
      %v468 = vsel %vm445, %v422, %v424
      %v469 = vsel %vm445, %v424, %v426
      %v470 = vsel %vm445, %v426, %v428
      %v471 = vsel %vm445, %v428, %v430
      %v472 = vsel %vm445, %v430, %v432
      %v473 = vsel %vm445, %v432, %v434
      %v474 = vsel %vm445, %v434, %v436
      %v475 = vsel %vm445, %v436, %v438
      %v476 = vsel %vm445, %v438, %v440
      %v477 = vsel %vm445, %v440, %v442
      %v478 = vsel %vm445, %v442, %v444
      %512 = vrot.lane.b32.xlu0 %v308, 126
      %v513 = vpop.permute.xlu0 %512
      %514 = vrot.lane.b32.xlu0 %v309, 126
      %v515 = vpop.permute.xlu0 %514
      %516 = vrot.lane.b32.xlu0 %v310, 126
      %v517 = vpop.permute.xlu0 %516
      %518 = vrot.lane.b32.xlu0 %v311, 126
      %v519 = vpop.permute.xlu0 %518
      %520 = vrot.lane.b32.xlu0 %v312, 126
      %v521 = vpop.permute.xlu0 %520
      %522 = vrot.lane.b32.xlu0 %v313, 126
      %v523 = vpop.permute.xlu0 %522
      %524 = vrot.lane.b32.xlu0 %v314, 126
      %v525 = vpop.permute.xlu0 %524
      %526 = vrot.lane.b32.xlu0 %v315, 126
      %v527 = vpop.permute.xlu0 %526
      %528 = vrot.lane.b32.xlu0 %v316, 126
      %v529 = vpop.permute.xlu0 %528
      %530 = vrot.lane.b32.xlu0 %v317, 126
      %v531 = vpop.permute.xlu0 %530
      %532 = vrot.lane.b32.xlu0 %v318, 126
      %v533 = vpop.permute.xlu0 %532
      %534 = vrot.lane.b32.xlu0 %v319, 126
      %v535 = vpop.permute.xlu0 %534
      %536 = vrot.lane.b32.xlu0 %v320, 126
      %v537 = vpop.permute.xlu0 %536
      %538 = vrot.lane.b32.xlu0 %v321, 126
      %v539 = vpop.permute.xlu0 %538
      %540 = vrot.lane.b32.xlu0 %v322, 126
      %v541 = vpop.permute.xlu0 %540
      %542 = vrot.lane.b32.xlu0 %v323, 126
      %v543 = vpop.permute.xlu0 %542
      %544 = vrot.lane.b32.xlu0 %v324, 126
      %v545 = vpop.permute.xlu0 %544
      %546 = vrot.lane.b32.xlu0 %v325, 126
      %v547 = vpop.permute.xlu0 %546
      %548 = vrot.lane.b32.xlu0 %v326, 126
      %v549 = vpop.permute.xlu0 %548
      %550 = vrot.lane.b32.xlu0 %v327, 126
      %v551 = vpop.permute.xlu0 %550
      %552 = vrot.lane.b32.xlu0 %v328, 126
      %v553 = vpop.permute.xlu0 %552
      %554 = vrot.lane.b32.xlu0 %v329, 126
      %v555 = vpop.permute.xlu0 %554
      %556 = vrot.lane.b32.xlu0 %v330, 126
      %v557 = vpop.permute.xlu0 %556
      %558 = vrot.lane.b32.xlu0 %v331, 126
      %v559 = vpop.permute.xlu0 %558
      %560 = vrot.lane.b32.xlu0 %v332, 126
      %v561 = vpop.permute.xlu0 %560
      %562 = vrot.lane.b32.xlu0 %v333, 126
      %v563 = vpop.permute.xlu0 %562
      %564 = vrot.lane.b32.xlu0 %v334, 126
      %v565 = vpop.permute.xlu0 %564
      %566 = vrot.lane.b32.xlu0 %v335, 126
      %v567 = vpop.permute.xlu0 %566
      %568 = vrot.lane.b32.xlu0 %v336, 126
      %v569 = vpop.permute.xlu0 %568
      %570 = vrot.lane.b32.xlu0 %v337, 126
      %v571 = vpop.permute.xlu0 %570
      %572 = vrot.lane.b32.xlu0 %v338, 126
      %v573 = vpop.permute.xlu0 %572
      %574 = vrot.lane.b32.xlu0 %v339, 126
      %v575 = vpop.permute.xlu0 %574
      %576 = vrot.lane.b32.xlu0 %v340, 126
      %v577 = vpop.permute.xlu0 %576
      %578 = vrot.lane.b32.xlu0 %v376, 126
      %v579 = vpop.permute.xlu0 %578
      %vm580 = vcmask 1031168
      %v581 = vsel %vm580, %v513, %v515
      %v582 = vsel %vm580, %v515, %v517
      %v583 = vsel %vm580, %v517, %v519
      %v584 = vsel %vm580, %v519, %v521
      %v585 = vsel %vm580, %v521, %v523
      %v586 = vsel %vm580, %v523, %v525
      %v587 = vsel %vm580, %v525, %v527
      %v588 = vsel %vm580, %v527, %v529
      %v589 = vsel %vm580, %v529, %v531
      %v590 = vsel %vm580, %v531, %v533
      %v591 = vsel %vm580, %v533, %v535
      %v592 = vsel %vm580, %v535, %v537
      %v593 = vsel %vm580, %v537, %v539
      %v594 = vsel %vm580, %v539, %v541
      %v595 = vsel %vm580, %v541, %v543
      %v596 = vsel %vm580, %v543, %v545
      %v597 = vsel %vm580, %v545, %v547
      %v598 = vsel %vm580, %v547, %v549
      %v599 = vsel %vm580, %v549, %v551
      %v600 = vsel %vm580, %v551, %v553
      %v601 = vsel %vm580, %v553, %v555
      %v602 = vsel %vm580, %v555, %v557
      %v603 = vsel %vm580, %v557, %v559
      %v604 = vsel %vm580, %v559, %v561
      %v605 = vsel %vm580, %v561, %v563
      %v606 = vsel %vm580, %v563, %v565
      %v607 = vsel %vm580, %v565, %v567
      %v608 = vsel %vm580, %v567, %v569
      %v609 = vsel %vm580, %v569, %v571
      %v610 = vsel %vm580, %v571, %v573
      %v611 = vsel %vm580, %v573, %v575
      %v612 = vsel %vm580, %v575, %v577
      %v613 = vsel %vm580, %v577, %v579
      %647 = vrot.lane.b32.xlu0 %v308, 62
      %v648 = vpop.permute.xlu0 %647
      %649 = vrot.lane.b32.xlu0 %v309, 62
      %v650 = vpop.permute.xlu0 %649
      %651 = vrot.lane.b32.xlu0 %v310, 62
      %v652 = vpop.permute.xlu0 %651
      %653 = vrot.lane.b32.xlu0 %v311, 62
      %v654 = vpop.permute.xlu0 %653
      %655 = vrot.lane.b32.xlu0 %v312, 62
      %v656 = vpop.permute.xlu0 %655
      %657 = vrot.lane.b32.xlu0 %v313, 62
      %v658 = vpop.permute.xlu0 %657
      %659 = vrot.lane.b32.xlu0 %v314, 62
      %v660 = vpop.permute.xlu0 %659
      %661 = vrot.lane.b32.xlu0 %v315, 62
      %v662 = vpop.permute.xlu0 %661
      %663 = vrot.lane.b32.xlu0 %v316, 62
      %v664 = vpop.permute.xlu0 %663
      %665 = vrot.lane.b32.xlu0 %v317, 62
      %v666 = vpop.permute.xlu0 %665
      %667 = vrot.lane.b32.xlu0 %v318, 62
      %v668 = vpop.permute.xlu0 %667
      %669 = vrot.lane.b32.xlu0 %v319, 62
      %v670 = vpop.permute.xlu0 %669
      %671 = vrot.lane.b32.xlu0 %v320, 62
      %v672 = vpop.permute.xlu0 %671
      %673 = vrot.lane.b32.xlu0 %v321, 62
      %v674 = vpop.permute.xlu0 %673
      %675 = vrot.lane.b32.xlu0 %v322, 62
      %v676 = vpop.permute.xlu0 %675
      %677 = vrot.lane.b32.xlu0 %v323, 62
      %v678 = vpop.permute.xlu0 %677
      %679 = vrot.lane.b32.xlu0 %v324, 62
      %v680 = vpop.permute.xlu0 %679
      %681 = vrot.lane.b32.xlu0 %v325, 62
      %v682 = vpop.permute.xlu0 %681
      %683 = vrot.lane.b32.xlu0 %v326, 62
      %v684 = vpop.permute.xlu0 %683
      %685 = vrot.lane.b32.xlu0 %v327, 62
      %v686 = vpop.permute.xlu0 %685
      %687 = vrot.lane.b32.xlu0 %v328, 62
      %v688 = vpop.permute.xlu0 %687
      %689 = vrot.lane.b32.xlu0 %v329, 62
      %v690 = vpop.permute.xlu0 %689
      %691 = vrot.lane.b32.xlu0 %v330, 62
      %v692 = vpop.permute.xlu0 %691
      %693 = vrot.lane.b32.xlu0 %v331, 62
      %v694 = vpop.permute.xlu0 %693
      %695 = vrot.lane.b32.xlu0 %v332, 62
      %v696 = vpop.permute.xlu0 %695
      %697 = vrot.lane.b32.xlu0 %v333, 62
      %v698 = vpop.permute.xlu0 %697
      %699 = vrot.lane.b32.xlu0 %v334, 62
      %v700 = vpop.permute.xlu0 %699
      %701 = vrot.lane.b32.xlu0 %v335, 62
      %v702 = vpop.permute.xlu0 %701
      %703 = vrot.lane.b32.xlu0 %v336, 62
      %v704 = vpop.permute.xlu0 %703
      %705 = vrot.lane.b32.xlu0 %v337, 62
      %v706 = vpop.permute.xlu0 %705
      %707 = vrot.lane.b32.xlu0 %v338, 62
      %v708 = vpop.permute.xlu0 %707
      %709 = vrot.lane.b32.xlu0 %v339, 62
      %v710 = vpop.permute.xlu0 %709
      %711 = vrot.lane.b32.xlu0 %v340, 62
      %v712 = vpop.permute.xlu0 %711
      %713 = vrot.lane.b32.xlu0 %v376, 62
      %v714 = vpop.permute.xlu0 %713
      %vm715 = vcmask 506880
      %v716 = vsel %vm715, %v648, %v650
      %v717 = vsel %vm715, %v650, %v652
      %v718 = vsel %vm715, %v652, %v654
      %v719 = vsel %vm715, %v654, %v656
      %v720 = vsel %vm715, %v656, %v658
      %v721 = vsel %vm715, %v658, %v660
      %v722 = vsel %vm715, %v660, %v662
      %v723 = vsel %vm715, %v662, %v664
      %v724 = vsel %vm715, %v664, %v666
      %v725 = vsel %vm715, %v666, %v668
      %v726 = vsel %vm715, %v668, %v670
      %v727 = vsel %vm715, %v670, %v672
      %v728 = vsel %vm715, %v672, %v674
      %v729 = vsel %vm715, %v674, %v676
      %v730 = vsel %vm715, %v676, %v678
      %v731 = vsel %vm715, %v678, %v680
      %v732 = vsel %vm715, %v680, %v682
      %v733 = vsel %vm715, %v682, %v684
      %v734 = vsel %vm715, %v684, %v686
      %v735 = vsel %vm715, %v686, %v688
      %v736 = vsel %vm715, %v688, %v690
      %v737 = vsel %vm715, %v690, %v692
      %v738 = vsel %vm715, %v692, %v694
      %v739 = vsel %vm715, %v694, %v696
      %v740 = vsel %vm715, %v696, %v698
      %v741 = vsel %vm715, %v698, %v700
      %v742 = vsel %vm715, %v700, %v702
      %v743 = vsel %vm715, %v702, %v704
      %v744 = vsel %vm715, %v704, %v706
      %v745 = vsel %vm715, %v706, %v708
      %v746 = vsel %vm715, %v708, %v710
      %v747 = vsel %vm715, %v710, %v712
      %v748 = vsel %vm715, %v712, %v714
      %782 = vrot.lane.b32.xlu0 %v308, 61
      %v783 = vpop.permute.xlu0 %782
      %784 = vrot.lane.b32.xlu0 %v309, 61
      %v785 = vpop.permute.xlu0 %784
      %786 = vrot.lane.b32.xlu0 %v310, 61
      %v787 = vpop.permute.xlu0 %786
      %788 = vrot.lane.b32.xlu0 %v311, 61
      %v789 = vpop.permute.xlu0 %788
      %790 = vrot.lane.b32.xlu0 %v312, 61
      %v791 = vpop.permute.xlu0 %790
      %792 = vrot.lane.b32.xlu0 %v313, 61
      %v793 = vpop.permute.xlu0 %792
      %794 = vrot.lane.b32.xlu0 %v314, 61
      %v795 = vpop.permute.xlu0 %794
      %796 = vrot.lane.b32.xlu0 %v315, 61
      %v797 = vpop.permute.xlu0 %796
      %798 = vrot.lane.b32.xlu0 %v316, 61
      %v799 = vpop.permute.xlu0 %798
      %800 = vrot.lane.b32.xlu0 %v317, 61
      %v801 = vpop.permute.xlu0 %800
      %802 = vrot.lane.b32.xlu0 %v318, 61
      %v803 = vpop.permute.xlu0 %802
      %804 = vrot.lane.b32.xlu0 %v319, 61
      %v805 = vpop.permute.xlu0 %804
      %806 = vrot.lane.b32.xlu0 %v320, 61
      %v807 = vpop.permute.xlu0 %806
      %808 = vrot.lane.b32.xlu0 %v321, 61
      %v809 = vpop.permute.xlu0 %808
      %810 = vrot.lane.b32.xlu0 %v322, 61
      %v811 = vpop.permute.xlu0 %810
      %812 = vrot.lane.b32.xlu0 %v323, 61
      %v813 = vpop.permute.xlu0 %812
      %814 = vrot.lane.b32.xlu0 %v324, 61
      %v815 = vpop.permute.xlu0 %814
      %816 = vrot.lane.b32.xlu0 %v325, 61
      %v817 = vpop.permute.xlu0 %816
      %818 = vrot.lane.b32.xlu0 %v326, 61
      %v819 = vpop.permute.xlu0 %818
      %820 = vrot.lane.b32.xlu0 %v327, 61
      %v821 = vpop.permute.xlu0 %820
      %822 = vrot.lane.b32.xlu0 %v328, 61
      %v823 = vpop.permute.xlu0 %822
      %824 = vrot.lane.b32.xlu0 %v329, 61
      %v825 = vpop.permute.xlu0 %824
      %826 = vrot.lane.b32.xlu0 %v330, 61
      %v827 = vpop.permute.xlu0 %826
      %828 = vrot.lane.b32.xlu0 %v331, 61
      %v829 = vpop.permute.xlu0 %828
      %830 = vrot.lane.b32.xlu0 %v332, 61
      %v831 = vpop.permute.xlu0 %830
      %832 = vrot.lane.b32.xlu0 %v333, 61
      %v833 = vpop.permute.xlu0 %832
      %834 = vrot.lane.b32.xlu0 %v334, 61
      %v835 = vpop.permute.xlu0 %834
      %836 = vrot.lane.b32.xlu0 %v335, 61
      %v837 = vpop.permute.xlu0 %836
      %838 = vrot.lane.b32.xlu0 %v336, 61
      %v839 = vpop.permute.xlu0 %838
      %840 = vrot.lane.b32.xlu0 %v337, 61
      %v841 = vpop.permute.xlu0 %840
      %842 = vrot.lane.b32.xlu0 %v338, 61
      %v843 = vpop.permute.xlu0 %842
      %844 = vrot.lane.b32.xlu0 %v339, 61
      %v845 = vpop.permute.xlu0 %844
      %846 = vrot.lane.b32.xlu0 %v340, 61
      %v847 = vpop.permute.xlu0 %846
      %848 = vrot.lane.b32.xlu0 %v376, 61
      %v849 = vpop.permute.xlu0 %848
      %vm850 = vcmask 498688
      %v851 = vsel %vm850, %v783, %v785
      %v852 = vsel %vm850, %v785, %v787
      %v853 = vsel %vm850, %v787, %v789
      %v854 = vsel %vm850, %v789, %v791
      %v855 = vsel %vm850, %v791, %v793
      %v856 = vsel %vm850, %v793, %v795
      %v857 = vsel %vm850, %v795, %v797
      %v858 = vsel %vm850, %v797, %v799
      %v859 = vsel %vm850, %v799, %v801
      %v860 = vsel %vm850, %v801, %v803
      %v861 = vsel %vm850, %v803, %v805
      %v862 = vsel %vm850, %v805, %v807
      %v863 = vsel %vm850, %v807, %v809
      %v864 = vsel %vm850, %v809, %v811
      %v865 = vsel %vm850, %v811, %v813
      %v866 = vsel %vm850, %v813, %v815
      %v867 = vsel %vm850, %v815, %v817
      %v868 = vsel %vm850, %v817, %v819
      %v869 = vsel %vm850, %v819, %v821
      %v870 = vsel %vm850, %v821, %v823
      %v871 = vsel %vm850, %v823, %v825
      %v872 = vsel %vm850, %v825, %v827
      %v873 = vsel %vm850, %v827, %v829
      %v874 = vsel %vm850, %v829, %v831
      %v875 = vsel %vm850, %v831, %v833
      %v876 = vsel %vm850, %v833, %v835
      %v877 = vsel %vm850, %v835, %v837
      %v878 = vsel %vm850, %v837, %v839
      %v879 = vsel %vm850, %v839, %v841
      %v880 = vsel %vm850, %v841, %v843
      %v881 = vsel %vm850, %v843, %v845
      %v882 = vsel %vm850, %v845, %v847
      %v883 = vsel %vm850, %v847, %v849
      %917 = vrot.lane.b32.xlu0 %v308, 60
      %v918 = vpop.permute.xlu0 %917
      %919 = vrot.lane.b32.xlu0 %v309, 60
      %v920 = vpop.permute.xlu0 %919
      %921 = vrot.lane.b32.xlu0 %v310, 60
      %v922 = vpop.permute.xlu0 %921
      %923 = vrot.lane.b32.xlu0 %v311, 60
      %v924 = vpop.permute.xlu0 %923
      %925 = vrot.lane.b32.xlu0 %v312, 60
      %v926 = vpop.permute.xlu0 %925
      %927 = vrot.lane.b32.xlu0 %v313, 60
      %v928 = vpop.permute.xlu0 %927
      %929 = vrot.lane.b32.xlu0 %v314, 60
      %v930 = vpop.permute.xlu0 %929
      %931 = vrot.lane.b32.xlu0 %v315, 60
      %v932 = vpop.permute.xlu0 %931
      %933 = vrot.lane.b32.xlu0 %v316, 60
      %v934 = vpop.permute.xlu0 %933
      %935 = vrot.lane.b32.xlu0 %v317, 60
      %v936 = vpop.permute.xlu0 %935
      %937 = vrot.lane.b32.xlu0 %v318, 60
      %v938 = vpop.permute.xlu0 %937
      %939 = vrot.lane.b32.xlu0 %v319, 60
      %v940 = vpop.permute.xlu0 %939
      %941 = vrot.lane.b32.xlu0 %v320, 60
      %v942 = vpop.permute.xlu0 %941
      %943 = vrot.lane.b32.xlu0 %v321, 60
      %v944 = vpop.permute.xlu0 %943
      %945 = vrot.lane.b32.xlu0 %v322, 60
      %v946 = vpop.permute.xlu0 %945
      %947 = vrot.lane.b32.xlu0 %v323, 60
      %v948 = vpop.permute.xlu0 %947
      %949 = vrot.lane.b32.xlu0 %v324, 60
      %v950 = vpop.permute.xlu0 %949
      %951 = vrot.lane.b32.xlu0 %v325, 60
      %v952 = vpop.permute.xlu0 %951
      %953 = vrot.lane.b32.xlu0 %v326, 60
      %v954 = vpop.permute.xlu0 %953
      %955 = vrot.lane.b32.xlu0 %v327, 60
      %v956 = vpop.permute.xlu0 %955
      %957 = vrot.lane.b32.xlu0 %v328, 60
      %v958 = vpop.permute.xlu0 %957
      %959 = vrot.lane.b32.xlu0 %v329, 60
      %v960 = vpop.permute.xlu0 %959
      %961 = vrot.lane.b32.xlu0 %v330, 60
      %v962 = vpop.permute.xlu0 %961
      %963 = vrot.lane.b32.xlu0 %v331, 60
      %v964 = vpop.permute.xlu0 %963
      %965 = vrot.lane.b32.xlu0 %v332, 60
      %v966 = vpop.permute.xlu0 %965
      %967 = vrot.lane.b32.xlu0 %v333, 60
      %v968 = vpop.permute.xlu0 %967
      %969 = vrot.lane.b32.xlu0 %v334, 60
      %v970 = vpop.permute.xlu0 %969
      %971 = vrot.lane.b32.xlu0 %v335, 60
      %v972 = vpop.permute.xlu0 %971
      %973 = vrot.lane.b32.xlu0 %v336, 60
      %v974 = vpop.permute.xlu0 %973
      %975 = vrot.lane.b32.xlu0 %v337, 60
      %v976 = vpop.permute.xlu0 %975
      %977 = vrot.lane.b32.xlu0 %v338, 60
      %v978 = vpop.permute.xlu0 %977
      %979 = vrot.lane.b32.xlu0 %v339, 60
      %v980 = vpop.permute.xlu0 %979
      %981 = vrot.lane.b32.xlu0 %v340, 60
      %v982 = vpop.permute.xlu0 %981
      %983 = vrot.lane.b32.xlu0 %v376, 60
      %v984 = vpop.permute.xlu0 %983
      %vm985 = vcmask 490496
      %v986 = vsel %vm985, %v918, %v920
      %v987 = vsel %vm985, %v920, %v922
      %v988 = vsel %vm985, %v922, %v924
      %v989 = vsel %vm985, %v924, %v926
      %v990 = vsel %vm985, %v926, %v928
      %v991 = vsel %vm985, %v928, %v930
      %v992 = vsel %vm985, %v930, %v932
      %v993 = vsel %vm985, %v932, %v934
      %v994 = vsel %vm985, %v934, %v936
      %v995 = vsel %vm985, %v936, %v938
      %v996 = vsel %vm985, %v938, %v940
      %v997 = vsel %vm985, %v940, %v942
      %v998 = vsel %vm985, %v942, %v944
      %v999 = vsel %vm985, %v944, %v946
      %v1000 = vsel %vm985, %v946, %v948
      %v1001 = vsel %vm985, %v948, %v950
      %v1002 = vsel %vm985, %v950, %v952
      %v1003 = vsel %vm985, %v952, %v954
      %v1004 = vsel %vm985, %v954, %v956
      %v1005 = vsel %vm985, %v956, %v958
      %v1006 = vsel %vm985, %v958, %v960
      %v1007 = vsel %vm985, %v960, %v962
      %v1008 = vsel %vm985, %v962, %v964
      %v1009 = vsel %vm985, %v964, %v966
      %v1010 = vsel %vm985, %v966, %v968
      %v1011 = vsel %vm985, %v968, %v970
      %v1012 = vsel %vm985, %v970, %v972
      %v1013 = vsel %vm985, %v972, %v974
      %v1014 = vsel %vm985, %v974, %v976
      %v1015 = vsel %vm985, %v976, %v978
      %v1016 = vsel %vm985, %v978, %v980
      %v1017 = vsel %vm985, %v980, %v982
      %v1018 = vsel %vm985, %v982, %v984
      %v1054 = vunpack.c.l.b16 %v189
      %v1055 = vunpack.c.l.b16 %v207
      %v1056 = vpack.c.b16 %v1055, %v1054
      %1057 = vrot.lane.b32.xlu0 %v309, 124
      %v1058 = vpop.permute.xlu0 %1057
      %1059 = vrot.lane.b32.xlu0 %v310, 124
      %v1060 = vpop.permute.xlu0 %1059
      %1061 = vrot.lane.b32.xlu0 %v311, 124
      %v1062 = vpop.permute.xlu0 %1061
      %1063 = vrot.lane.b32.xlu0 %v312, 124
      %v1064 = vpop.permute.xlu0 %1063
      %1065 = vrot.lane.b32.xlu0 %v313, 124
      %v1066 = vpop.permute.xlu0 %1065
      %1067 = vrot.lane.b32.xlu0 %v314, 124
      %v1068 = vpop.permute.xlu0 %1067
      %1069 = vrot.lane.b32.xlu0 %v315, 124
      %v1070 = vpop.permute.xlu0 %1069
      %1071 = vrot.lane.b32.xlu0 %v316, 124
      %v1072 = vpop.permute.xlu0 %1071
      %1073 = vrot.lane.b32.xlu0 %v317, 124
      %v1074 = vpop.permute.xlu0 %1073
      %1075 = vrot.lane.b32.xlu0 %v318, 124
      %v1076 = vpop.permute.xlu0 %1075
      %1077 = vrot.lane.b32.xlu0 %v319, 124
      %v1078 = vpop.permute.xlu0 %1077
      %1079 = vrot.lane.b32.xlu0 %v320, 124
      %v1080 = vpop.permute.xlu0 %1079
      %1081 = vrot.lane.b32.xlu0 %v321, 124
      %v1082 = vpop.permute.xlu0 %1081
      %1083 = vrot.lane.b32.xlu0 %v322, 124
      %v1084 = vpop.permute.xlu0 %1083
      %1085 = vrot.lane.b32.xlu0 %v323, 124
      %v1086 = vpop.permute.xlu0 %1085
      %1087 = vrot.lane.b32.xlu0 %v324, 124
      %v1088 = vpop.permute.xlu0 %1087
      %1089 = vrot.lane.b32.xlu0 %v325, 124
      %v1090 = vpop.permute.xlu0 %1089
      %1091 = vrot.lane.b32.xlu0 %v326, 124
      %v1092 = vpop.permute.xlu0 %1091
      %1093 = vrot.lane.b32.xlu0 %v327, 124
      %v1094 = vpop.permute.xlu0 %1093
      %1095 = vrot.lane.b32.xlu0 %v328, 124
      %v1096 = vpop.permute.xlu0 %1095
      %1097 = vrot.lane.b32.xlu0 %v329, 124
      %v1098 = vpop.permute.xlu0 %1097
      %1099 = vrot.lane.b32.xlu0 %v330, 124
      %v1100 = vpop.permute.xlu0 %1099
      %1101 = vrot.lane.b32.xlu0 %v331, 124
      %v1102 = vpop.permute.xlu0 %1101
      %1103 = vrot.lane.b32.xlu0 %v332, 124
      %v1104 = vpop.permute.xlu0 %1103
      %1105 = vrot.lane.b32.xlu0 %v333, 124
      %v1106 = vpop.permute.xlu0 %1105
      %1107 = vrot.lane.b32.xlu0 %v334, 124
      %v1108 = vpop.permute.xlu0 %1107
      %1109 = vrot.lane.b32.xlu0 %v335, 124
      %v1110 = vpop.permute.xlu0 %1109
      %1111 = vrot.lane.b32.xlu0 %v336, 124
      %v1112 = vpop.permute.xlu0 %1111
      %1113 = vrot.lane.b32.xlu0 %v337, 124
      %v1114 = vpop.permute.xlu0 %1113
      %1115 = vrot.lane.b32.xlu0 %v338, 124
      %v1116 = vpop.permute.xlu0 %1115
      %1117 = vrot.lane.b32.xlu0 %v339, 124
      %v1118 = vpop.permute.xlu0 %1117
      %1119 = vrot.lane.b32.xlu0 %v340, 124
      %v1120 = vpop.permute.xlu0 %1119
      %1121 = vrot.lane.b32.xlu0 %v376, 124
      %v1122 = vpop.permute.xlu0 %1121
      %1123 = vrot.lane.b32.xlu0 %v1056, 124
      %v1124 = vpop.permute.xlu0 %1123
      %vm1125 = vcmask 1014784
      %v1126 = vsel %vm1125, %v1058, %v1060
      %v1127 = vsel %vm1125, %v1060, %v1062
      %v1128 = vsel %vm1125, %v1062, %v1064
      %v1129 = vsel %vm1125, %v1064, %v1066
      %v1130 = vsel %vm1125, %v1066, %v1068
      %v1131 = vsel %vm1125, %v1068, %v1070
      %v1132 = vsel %vm1125, %v1070, %v1072
      %v1133 = vsel %vm1125, %v1072, %v1074
      %v1134 = vsel %vm1125, %v1074, %v1076
      %v1135 = vsel %vm1125, %v1076, %v1078
      %v1136 = vsel %vm1125, %v1078, %v1080
      %v1137 = vsel %vm1125, %v1080, %v1082
      %v1138 = vsel %vm1125, %v1082, %v1084
      %v1139 = vsel %vm1125, %v1084, %v1086
      %v1140 = vsel %vm1125, %v1086, %v1088
      %v1141 = vsel %vm1125, %v1088, %v1090
      %v1142 = vsel %vm1125, %v1090, %v1092
      %v1143 = vsel %vm1125, %v1092, %v1094
      %v1144 = vsel %vm1125, %v1094, %v1096
      %v1145 = vsel %vm1125, %v1096, %v1098
      %v1146 = vsel %vm1125, %v1098, %v1100
      %v1147 = vsel %vm1125, %v1100, %v1102
      %v1148 = vsel %vm1125, %v1102, %v1104
      %v1149 = vsel %vm1125, %v1104, %v1106
      %v1150 = vsel %vm1125, %v1106, %v1108
      %v1151 = vsel %vm1125, %v1108, %v1110
      %v1152 = vsel %vm1125, %v1110, %v1112
      %v1153 = vsel %vm1125, %v1112, %v1114
      %v1154 = vsel %vm1125, %v1114, %v1116
      %v1155 = vsel %vm1125, %v1116, %v1118
      %v1156 = vsel %vm1125, %v1118, %v1120
      %v1157 = vsel %vm1125, %v1120, %v1122
      %v1158 = vsel %vm1125, %v1122, %v1124
      %1192 = vrot.lane.b32.xlu0 %v309, 123
      %v1193 = vpop.permute.xlu0 %1192
      %1194 = vrot.lane.b32.xlu0 %v310, 123
      %v1195 = vpop.permute.xlu0 %1194
      %1196 = vrot.lane.b32.xlu0 %v311, 123
      %v1197 = vpop.permute.xlu0 %1196
      %1198 = vrot.lane.b32.xlu0 %v312, 123
      %v1199 = vpop.permute.xlu0 %1198
      %1200 = vrot.lane.b32.xlu0 %v313, 123
      %v1201 = vpop.permute.xlu0 %1200
      %1202 = vrot.lane.b32.xlu0 %v314, 123
      %v1203 = vpop.permute.xlu0 %1202
      %1204 = vrot.lane.b32.xlu0 %v315, 123
      %v1205 = vpop.permute.xlu0 %1204
      %1206 = vrot.lane.b32.xlu0 %v316, 123
      %v1207 = vpop.permute.xlu0 %1206
      %1208 = vrot.lane.b32.xlu0 %v317, 123
      %v1209 = vpop.permute.xlu0 %1208
      %1210 = vrot.lane.b32.xlu0 %v318, 123
      %v1211 = vpop.permute.xlu0 %1210
      %1212 = vrot.lane.b32.xlu0 %v319, 123
      %v1213 = vpop.permute.xlu0 %1212
      %1214 = vrot.lane.b32.xlu0 %v320, 123
      %v1215 = vpop.permute.xlu0 %1214
      %1216 = vrot.lane.b32.xlu0 %v321, 123
      %v1217 = vpop.permute.xlu0 %1216
      %1218 = vrot.lane.b32.xlu0 %v322, 123
      %v1219 = vpop.permute.xlu0 %1218
      %1220 = vrot.lane.b32.xlu0 %v323, 123
      %v1221 = vpop.permute.xlu0 %1220
      %1222 = vrot.lane.b32.xlu0 %v324, 123
      %v1223 = vpop.permute.xlu0 %1222
      %1224 = vrot.lane.b32.xlu0 %v325, 123
      %v1225 = vpop.permute.xlu0 %1224
      %1226 = vrot.lane.b32.xlu0 %v326, 123
      %v1227 = vpop.permute.xlu0 %1226
      %1228 = vrot.lane.b32.xlu0 %v327, 123
      %v1229 = vpop.permute.xlu0 %1228
      %1230 = vrot.lane.b32.xlu0 %v328, 123
      %v1231 = vpop.permute.xlu0 %1230
      %1232 = vrot.lane.b32.xlu0 %v329, 123
      %v1233 = vpop.permute.xlu0 %1232
      %1234 = vrot.lane.b32.xlu0 %v330, 123
      %v1235 = vpop.permute.xlu0 %1234
      %1236 = vrot.lane.b32.xlu0 %v331, 123
      %v1237 = vpop.permute.xlu0 %1236
      %1238 = vrot.lane.b32.xlu0 %v332, 123
      %v1239 = vpop.permute.xlu0 %1238
      %1240 = vrot.lane.b32.xlu0 %v333, 123
      %v1241 = vpop.permute.xlu0 %1240
      %1242 = vrot.lane.b32.xlu0 %v334, 123
      %v1243 = vpop.permute.xlu0 %1242
      %1244 = vrot.lane.b32.xlu0 %v335, 123
      %v1245 = vpop.permute.xlu0 %1244
      %1246 = vrot.lane.b32.xlu0 %v336, 123
      %v1247 = vpop.permute.xlu0 %1246
      %1248 = vrot.lane.b32.xlu0 %v337, 123
      %v1249 = vpop.permute.xlu0 %1248
      %1250 = vrot.lane.b32.xlu0 %v338, 123
      %v1251 = vpop.permute.xlu0 %1250
      %1252 = vrot.lane.b32.xlu0 %v339, 123
      %v1253 = vpop.permute.xlu0 %1252
      %1254 = vrot.lane.b32.xlu0 %v340, 123
      %v1255 = vpop.permute.xlu0 %1254
      %1256 = vrot.lane.b32.xlu0 %v376, 123
      %v1257 = vpop.permute.xlu0 %1256
      %1258 = vrot.lane.b32.xlu0 %v1056, 123
      %v1259 = vpop.permute.xlu0 %1258
      %vm1260 = vcmask 1006592
      %v1261 = vsel %vm1260, %v1193, %v1195
      %v1262 = vsel %vm1260, %v1195, %v1197
      %v1263 = vsel %vm1260, %v1197, %v1199
      %v1264 = vsel %vm1260, %v1199, %v1201
      %v1265 = vsel %vm1260, %v1201, %v1203
      %v1266 = vsel %vm1260, %v1203, %v1205
      %v1267 = vsel %vm1260, %v1205, %v1207
      %v1268 = vsel %vm1260, %v1207, %v1209
      %v1269 = vsel %vm1260, %v1209, %v1211
      %v1270 = vsel %vm1260, %v1211, %v1213
      %v1271 = vsel %vm1260, %v1213, %v1215
      %v1272 = vsel %vm1260, %v1215, %v1217
      %v1273 = vsel %vm1260, %v1217, %v1219
      %v1274 = vsel %vm1260, %v1219, %v1221
      %v1275 = vsel %vm1260, %v1221, %v1223
      %v1276 = vsel %vm1260, %v1223, %v1225
      %v1277 = vsel %vm1260, %v1225, %v1227
      %v1278 = vsel %vm1260, %v1227, %v1229
      %v1279 = vsel %vm1260, %v1229, %v1231
      %v1280 = vsel %vm1260, %v1231, %v1233
      %v1281 = vsel %vm1260, %v1233, %v1235
      %v1282 = vsel %vm1260, %v1235, %v1237
      %v1283 = vsel %vm1260, %v1237, %v1239
      %v1284 = vsel %vm1260, %v1239, %v1241
      %v1285 = vsel %vm1260, %v1241, %v1243
      %v1286 = vsel %vm1260, %v1243, %v1245
      %v1287 = vsel %vm1260, %v1245, %v1247
      %v1288 = vsel %vm1260, %v1247, %v1249
      %v1289 = vsel %vm1260, %v1249, %v1251
      %v1290 = vsel %vm1260, %v1251, %v1253
      %v1291 = vsel %vm1260, %v1253, %v1255
      %v1292 = vsel %vm1260, %v1255, %v1257
      %v1293 = vsel %vm1260, %v1257, %v1259
      %1327 = vrot.lane.b32.xlu0 %v309, 122
      %v1328 = vpop.permute.xlu0 %1327
      %1329 = vrot.lane.b32.xlu0 %v310, 122
      %v1330 = vpop.permute.xlu0 %1329
      %1331 = vrot.lane.b32.xlu0 %v311, 122
      %v1332 = vpop.permute.xlu0 %1331
      %1333 = vrot.lane.b32.xlu0 %v312, 122
      %v1334 = vpop.permute.xlu0 %1333
      %1335 = vrot.lane.b32.xlu0 %v313, 122
      %v1336 = vpop.permute.xlu0 %1335
      %1337 = vrot.lane.b32.xlu0 %v314, 122
      %v1338 = vpop.permute.xlu0 %1337
      %1339 = vrot.lane.b32.xlu0 %v315, 122
      %v1340 = vpop.permute.xlu0 %1339
      %1341 = vrot.lane.b32.xlu0 %v316, 122
      %v1342 = vpop.permute.xlu0 %1341
      %1343 = vrot.lane.b32.xlu0 %v317, 122
      %v1344 = vpop.permute.xlu0 %1343
      %1345 = vrot.lane.b32.xlu0 %v318, 122
      %v1346 = vpop.permute.xlu0 %1345
      %1347 = vrot.lane.b32.xlu0 %v319, 122
      %v1348 = vpop.permute.xlu0 %1347
      %1349 = vrot.lane.b32.xlu0 %v320, 122
      %v1350 = vpop.permute.xlu0 %1349
      %1351 = vrot.lane.b32.xlu0 %v321, 122
      %v1352 = vpop.permute.xlu0 %1351
      %1353 = vrot.lane.b32.xlu0 %v322, 122
      %v1354 = vpop.permute.xlu0 %1353
      %1355 = vrot.lane.b32.xlu0 %v323, 122
      %v1356 = vpop.permute.xlu0 %1355
      %1357 = vrot.lane.b32.xlu0 %v324, 122
      %v1358 = vpop.permute.xlu0 %1357
      %1359 = vrot.lane.b32.xlu0 %v325, 122
      %v1360 = vpop.permute.xlu0 %1359
      %1361 = vrot.lane.b32.xlu0 %v326, 122
      %v1362 = vpop.permute.xlu0 %1361
      %1363 = vrot.lane.b32.xlu0 %v327, 122
      %v1364 = vpop.permute.xlu0 %1363
      %1365 = vrot.lane.b32.xlu0 %v328, 122
      %v1366 = vpop.permute.xlu0 %1365
      %1367 = vrot.lane.b32.xlu0 %v329, 122
      %v1368 = vpop.permute.xlu0 %1367
      %1369 = vrot.lane.b32.xlu0 %v330, 122
      %v1370 = vpop.permute.xlu0 %1369
      %1371 = vrot.lane.b32.xlu0 %v331, 122
      %v1372 = vpop.permute.xlu0 %1371
      %1373 = vrot.lane.b32.xlu0 %v332, 122
      %v1374 = vpop.permute.xlu0 %1373
      %1375 = vrot.lane.b32.xlu0 %v333, 122
      %v1376 = vpop.permute.xlu0 %1375
      %1377 = vrot.lane.b32.xlu0 %v334, 122
      %v1378 = vpop.permute.xlu0 %1377
      %1379 = vrot.lane.b32.xlu0 %v335, 122
      %v1380 = vpop.permute.xlu0 %1379
      %1381 = vrot.lane.b32.xlu0 %v336, 122
      %v1382 = vpop.permute.xlu0 %1381
      %1383 = vrot.lane.b32.xlu0 %v337, 122
      %v1384 = vpop.permute.xlu0 %1383
      %1385 = vrot.lane.b32.xlu0 %v338, 122
      %v1386 = vpop.permute.xlu0 %1385
      %1387 = vrot.lane.b32.xlu0 %v339, 122
      %v1388 = vpop.permute.xlu0 %1387
      %1389 = vrot.lane.b32.xlu0 %v340, 122
      %v1390 = vpop.permute.xlu0 %1389
      %1391 = vrot.lane.b32.xlu0 %v376, 122
      %v1392 = vpop.permute.xlu0 %1391
      %1393 = vrot.lane.b32.xlu0 %v1056, 122
      %v1394 = vpop.permute.xlu0 %1393
      %vm1395 = vcmask 998400
      %v1396 = vsel %vm1395, %v1328, %v1330
      %v1397 = vsel %vm1395, %v1330, %v1332
      %v1398 = vsel %vm1395, %v1332, %v1334
      %v1399 = vsel %vm1395, %v1334, %v1336
      %v1400 = vsel %vm1395, %v1336, %v1338
      %v1401 = vsel %vm1395, %v1338, %v1340
      %v1402 = vsel %vm1395, %v1340, %v1342
      %v1403 = vsel %vm1395, %v1342, %v1344
      %v1404 = vsel %vm1395, %v1344, %v1346
      %v1405 = vsel %vm1395, %v1346, %v1348
      %v1406 = vsel %vm1395, %v1348, %v1350
      %v1407 = vsel %vm1395, %v1350, %v1352
      %v1408 = vsel %vm1395, %v1352, %v1354
      %v1409 = vsel %vm1395, %v1354, %v1356
      %v1410 = vsel %vm1395, %v1356, %v1358
      %v1411 = vsel %vm1395, %v1358, %v1360
      %v1412 = vsel %vm1395, %v1360, %v1362
      %v1413 = vsel %vm1395, %v1362, %v1364
      %v1414 = vsel %vm1395, %v1364, %v1366
      %v1415 = vsel %vm1395, %v1366, %v1368
      %v1416 = vsel %vm1395, %v1368, %v1370
      %v1417 = vsel %vm1395, %v1370, %v1372
      %v1418 = vsel %vm1395, %v1372, %v1374
      %v1419 = vsel %vm1395, %v1374, %v1376
      %v1420 = vsel %vm1395, %v1376, %v1378
      %v1421 = vsel %vm1395, %v1378, %v1380
      %v1422 = vsel %vm1395, %v1380, %v1382
      %v1423 = vsel %vm1395, %v1382, %v1384
      %v1424 = vsel %vm1395, %v1384, %v1386
      %v1425 = vsel %vm1395, %v1386, %v1388
      %v1426 = vsel %vm1395, %v1388, %v1390
      %v1427 = vsel %vm1395, %v1390, %v1392
      %v1428 = vsel %vm1395, %v1392, %v1394
      %v1462 = vld [vmem:[%s1] sm:$0xff]
      %v1463 = vld [vmem:[%s2] sm:$0xff]
      %1465 = vset.pattern.permute.xlu0 0
      %1466 = vperm.xlu0 %1465, %v1463
      %v1467 = vpop.permute.xlu0 %1466
      %v1470 = vunpack.c.l.b16 %v1462
      %v1471 = vunpack.c.h.b16 %v1462
      %v1472 = vpack.c.b16 %v1470, %v1470
      %v1473 = vpack.c.b16 %v1471, %v1471
      %vm1475 = vcmask 130048
      %v1477 = vsel %vm1475, %v1473, 0
      %1479 = vmatpush.bf16.msra.mxu0 %v1261
      %1480 = vmatpush.bf16.msra.mxu0 %v1126
      %1481 = vmatpush.bf16.msra.mxu0 %v986
      %1482 = vmatpush.bf16.msra.mxu0 %v851
      %1483 = vmatpush.bf16.msra.mxu0 %v716
      %1484 = vmatpush.bf16.msra.mxu0 %v581
      %1485 = vmatpush.bf16.msra.mxu0 %v446
      %1486 = vmatpush.bf16.msra.mxu0 %v308
      %1487 = vmatmul.bf16.gmra.mxu0 %v1472
      %v1488 = vpop.f32.mrf.mxu0
      %v1489 = vadd.f32 %v1467, %v1488
      %v1490 = vpop.f32.mrf.mxu0
      %1491 = vdwg.mxu0
      %1492 = vmatpush.bf16.msra.mxu0 0
      %1493 = vmatpush.bf16.msra.mxu0 0
      %1494 = vmatpush.bf16.msra.mxu0 0
      %1495 = vmatpush.bf16.msra.mxu0 0
      %1496 = vmatpush.bf16.msra.mxu0 0
      %1497 = vmatpush.bf16.msra.mxu0 0
      %1498 = vmatpush.bf16.msra.mxu0 0
      %1499 = vmatpush.bf16.msra.mxu0 %v1396
      %1500 = vmatmul.bf16.gmra.mxu0 %v1477
      %v1501 = vpop.f32.mrf.mxu0
      %v1502 = vadd.f32 %v1489, %v1501
      %v1503 = vpop.f32.mrf.mxu0
      %1504 = vdwg.mxu0
      %1505 = vmatpush.bf16.msra.mxu0 %v1262
      %1506 = vmatpush.bf16.msra.mxu0 %v1127
      %1507 = vmatpush.bf16.msra.mxu0 %v987
      %1508 = vmatpush.bf16.msra.mxu0 %v852
      %1509 = vmatpush.bf16.msra.mxu0 %v717
      %1510 = vmatpush.bf16.msra.mxu0 %v582
      %1511 = vmatpush.bf16.msra.mxu0 %v447
      %1512 = vmatpush.bf16.msra.mxu0 %v309
      %1513 = vmatmul.bf16.gmra.mxu0 %v1472
      %v1514 = vpop.f32.mrf.mxu0
      %v1515 = vadd.f32 %v1467, %v1514
      %v1516 = vpop.f32.mrf.mxu0
      %1517 = vdwg.mxu0
      %1518 = vmatpush.bf16.msra.mxu0 0
      %1519 = vmatpush.bf16.msra.mxu0 0
      %1520 = vmatpush.bf16.msra.mxu0 0
      %1521 = vmatpush.bf16.msra.mxu0 0
      %1522 = vmatpush.bf16.msra.mxu0 0
      %1523 = vmatpush.bf16.msra.mxu0 0
      %1524 = vmatpush.bf16.msra.mxu0 0
      %1525 = vmatpush.bf16.msra.mxu0 %v1397
      %1526 = vmatmul.bf16.gmra.mxu0 %v1477
      %v1527 = vpop.f32.mrf.mxu0
      %v1528 = vadd.f32 %v1515, %v1527
      %v1529 = vpop.f32.mrf.mxu0
      %1530 = vdwg.mxu0
      %1531 = vmatpush.bf16.msra.mxu0 %v1263
      %1532 = vmatpush.bf16.msra.mxu0 %v1128
      %1533 = vmatpush.bf16.msra.mxu0 %v988
      %1534 = vmatpush.bf16.msra.mxu0 %v853
      %1535 = vmatpush.bf16.msra.mxu0 %v718
      %1536 = vmatpush.bf16.msra.mxu0 %v583
      %1537 = vmatpush.bf16.msra.mxu0 %v448
      %1538 = vmatpush.bf16.msra.mxu0 %v310
      %1539 = vmatmul.bf16.gmra.mxu0 %v1472
      %v1540 = vpop.f32.mrf.mxu0
      %v1541 = vadd.f32 %v1467, %v1540
      %v1542 = vpop.f32.mrf.mxu0
      %1543 = vdwg.mxu0
      %1544 = vmatpush.bf16.msra.mxu0 0
      %1545 = vmatpush.bf16.msra.mxu0 0
      %1546 = vmatpush.bf16.msra.mxu0 0
      %1547 = vmatpush.bf16.msra.mxu0 0
      %1548 = vmatpush.bf16.msra.mxu0 0
      %1549 = vmatpush.bf16.msra.mxu0 0
      %1550 = vmatpush.bf16.msra.mxu0 0
      %1551 = vmatpush.bf16.msra.mxu0 %v1398
      %1552 = vmatmul.bf16.gmra.mxu0 %v1477
      %v1553 = vpop.f32.mrf.mxu0
      %v1554 = vadd.f32 %v1541, %v1553
      %v1555 = vpop.f32.mrf.mxu0
      %1556 = vdwg.mxu0
      %1557 = vmatpush.bf16.msra.mxu0 %v1264
      %1558 = vmatpush.bf16.msra.mxu0 %v1129
      %1559 = vmatpush.bf16.msra.mxu0 %v989
      %1560 = vmatpush.bf16.msra.mxu0 %v854
      %1561 = vmatpush.bf16.msra.mxu0 %v719
      %1562 = vmatpush.bf16.msra.mxu0 %v584
      %1563 = vmatpush.bf16.msra.mxu0 %v449
      %1564 = vmatpush.bf16.msra.mxu0 %v311
      %1565 = vmatmul.bf16.gmra.mxu0 %v1472
      %v1566 = vpop.f32.mrf.mxu0
      %v1567 = vadd.f32 %v1467, %v1566
      %v1568 = vpop.f32.mrf.mxu0
      %1569 = vdwg.mxu0
      %1570 = vmatpush.bf16.msra.mxu0 0
      %1571 = vmatpush.bf16.msra.mxu0 0
      %1572 = vmatpush.bf16.msra.mxu0 0
      %1573 = vmatpush.bf16.msra.mxu0 0
      %1574 = vmatpush.bf16.msra.mxu0 0
      %1575 = vmatpush.bf16.msra.mxu0 0
      %1576 = vmatpush.bf16.msra.mxu0 0
      %1577 = vmatpush.bf16.msra.mxu0 %v1399
      %1578 = vmatmul.bf16.gmra.mxu0 %v1477
      %v1579 = vpop.f32.mrf.mxu0
      %v1580 = vadd.f32 %v1567, %v1579
      %v1581 = vpop.f32.mrf.mxu0
      %1582 = vdwg.mxu0
      %1583 = vmatpush.bf16.msra.mxu0 %v1265
      %1584 = vmatpush.bf16.msra.mxu0 %v1130
      %1585 = vmatpush.bf16.msra.mxu0 %v990
      %1586 = vmatpush.bf16.msra.mxu0 %v855
      %1587 = vmatpush.bf16.msra.mxu0 %v720
      %1588 = vmatpush.bf16.msra.mxu0 %v585
      %1589 = vmatpush.bf16.msra.mxu0 %v450
      %1590 = vmatpush.bf16.msra.mxu0 %v312
      %1591 = vmatmul.bf16.gmra.mxu0 %v1472
      %v1592 = vpop.f32.mrf.mxu0
      %v1593 = vadd.f32 %v1467, %v1592
      %v1594 = vpop.f32.mrf.mxu0
      %1595 = vdwg.mxu0
      %1596 = vmatpush.bf16.msra.mxu0 0
      %1597 = vmatpush.bf16.msra.mxu0 0
      %1598 = vmatpush.bf16.msra.mxu0 0
      %1599 = vmatpush.bf16.msra.mxu0 0
      %1600 = vmatpush.bf16.msra.mxu0 0
      %1601 = vmatpush.bf16.msra.mxu0 0
      %1602 = vmatpush.bf16.msra.mxu0 0
      %1603 = vmatpush.bf16.msra.mxu0 %v1400
      %1604 = vmatmul.bf16.gmra.mxu0 %v1477
      %v1605 = vpop.f32.mrf.mxu0
      %v1606 = vadd.f32 %v1593, %v1605
      %v1607 = vpop.f32.mrf.mxu0
      %1608 = vdwg.mxu0
      %1609 = vmatpush.bf16.msra.mxu0 %v1266
      %1610 = vmatpush.bf16.msra.mxu0 %v1131
      %1611 = vmatpush.bf16.msra.mxu0 %v991
      %1612 = vmatpush.bf16.msra.mxu0 %v856
      %1613 = vmatpush.bf16.msra.mxu0 %v721
      %1614 = vmatpush.bf16.msra.mxu0 %v586
      %1615 = vmatpush.bf16.msra.mxu0 %v451
      %1616 = vmatpush.bf16.msra.mxu0 %v313
      %1617 = vmatmul.bf16.gmra.mxu0 %v1472
      %v1618 = vpop.f32.mrf.mxu0
      %v1619 = vadd.f32 %v1467, %v1618
      %v1620 = vpop.f32.mrf.mxu0
      %1621 = vdwg.mxu0
      %1622 = vmatpush.bf16.msra.mxu0 0
      %1623 = vmatpush.bf16.msra.mxu0 0
      %1624 = vmatpush.bf16.msra.mxu0 0
      %1625 = vmatpush.bf16.msra.mxu0 0
      %1626 = vmatpush.bf16.msra.mxu0 0
      %1627 = vmatpush.bf16.msra.mxu0 0
      %1628 = vmatpush.bf16.msra.mxu0 0
      %1629 = vmatpush.bf16.msra.mxu0 %v1401
      %1630 = vmatmul.bf16.gmra.mxu0 %v1477
      %v1631 = vpop.f32.mrf.mxu0
      %v1632 = vadd.f32 %v1619, %v1631
      %v1633 = vpop.f32.mrf.mxu0
      %1634 = vdwg.mxu0
      %1635 = vmatpush.bf16.msra.mxu0 %v1267
      %1636 = vmatpush.bf16.msra.mxu0 %v1132
      %1637 = vmatpush.bf16.msra.mxu0 %v992
      %1638 = vmatpush.bf16.msra.mxu0 %v857
      %1639 = vmatpush.bf16.msra.mxu0 %v722
      %1640 = vmatpush.bf16.msra.mxu0 %v587
      %1641 = vmatpush.bf16.msra.mxu0 %v452
      %1642 = vmatpush.bf16.msra.mxu0 %v314
      %1643 = vmatmul.bf16.gmra.mxu0 %v1472
      %v1644 = vpop.f32.mrf.mxu0
      %v1645 = vadd.f32 %v1467, %v1644
      %v1646 = vpop.f32.mrf.mxu0
      %1647 = vdwg.mxu0
      %1648 = vmatpush.bf16.msra.mxu0 0
      %1649 = vmatpush.bf16.msra.mxu0 0
      %1650 = vmatpush.bf16.msra.mxu0 0
      %1651 = vmatpush.bf16.msra.mxu0 0
      %1652 = vmatpush.bf16.msra.mxu0 0
      %1653 = vmatpush.bf16.msra.mxu0 0
      %1654 = vmatpush.bf16.msra.mxu0 0
      %1655 = vmatpush.bf16.msra.mxu0 %v1402
      %1656 = vmatmul.bf16.gmra.mxu0 %v1477
      %v1657 = vpop.f32.mrf.mxu0
      %v1658 = vadd.f32 %v1645, %v1657
      %v1659 = vpop.f32.mrf.mxu0
      %1660 = vdwg.mxu0
      %1661 = vmatpush.bf16.msra.mxu0 %v1268
      %1662 = vmatpush.bf16.msra.mxu0 %v1133
      %1663 = vmatpush.bf16.msra.mxu0 %v993
      %1664 = vmatpush.bf16.msra.mxu0 %v858
      %1665 = vmatpush.bf16.msra.mxu0 %v723
      %1666 = vmatpush.bf16.msra.mxu0 %v588
      %1667 = vmatpush.bf16.msra.mxu0 %v453
      %1668 = vmatpush.bf16.msra.mxu0 %v315
      %1669 = vmatmul.bf16.gmra.mxu0 %v1472
      %v1670 = vpop.f32.mrf.mxu0
      %v1671 = vadd.f32 %v1467, %v1670
      %v1672 = vpop.f32.mrf.mxu0
      %1673 = vdwg.mxu0
      %1674 = vmatpush.bf16.msra.mxu0 0
      %1675 = vmatpush.bf16.msra.mxu0 0
      %1676 = vmatpush.bf16.msra.mxu0 0
      %1677 = vmatpush.bf16.msra.mxu0 0
      %1678 = vmatpush.bf16.msra.mxu0 0
      %1679 = vmatpush.bf16.msra.mxu0 0
      %1680 = vmatpush.bf16.msra.mxu0 0
      %1681 = vmatpush.bf16.msra.mxu0 %v1403
      %1682 = vmatmul.bf16.gmra.mxu0 %v1477
      %v1683 = vpop.f32.mrf.mxu0
      %v1684 = vadd.f32 %v1671, %v1683
      %v1685 = vpop.f32.mrf.mxu0
      %1686 = vdwg.mxu0
      %1687 = vmatpush.bf16.msra.mxu0 %v1269
      %1688 = vmatpush.bf16.msra.mxu0 %v1134
      %1689 = vmatpush.bf16.msra.mxu0 %v994
      %1690 = vmatpush.bf16.msra.mxu0 %v859
      %1691 = vmatpush.bf16.msra.mxu0 %v724
      %1692 = vmatpush.bf16.msra.mxu0 %v589
      %1693 = vmatpush.bf16.msra.mxu0 %v454
      %1694 = vmatpush.bf16.msra.mxu0 %v316
      %1695 = vmatmul.bf16.gmra.mxu0 %v1472
      %v1696 = vpop.f32.mrf.mxu0
      %v1697 = vadd.f32 %v1467, %v1696
      %v1698 = vpop.f32.mrf.mxu0
      %1699 = vdwg.mxu0
      %1700 = vmatpush.bf16.msra.mxu0 0
      %1701 = vmatpush.bf16.msra.mxu0 0
      %1702 = vmatpush.bf16.msra.mxu0 0
      %1703 = vmatpush.bf16.msra.mxu0 0
      %1704 = vmatpush.bf16.msra.mxu0 0
      %1705 = vmatpush.bf16.msra.mxu0 0
      %1706 = vmatpush.bf16.msra.mxu0 0
      %1707 = vmatpush.bf16.msra.mxu0 %v1404
      %1708 = vmatmul.bf16.gmra.mxu0 %v1477
      %v1709 = vpop.f32.mrf.mxu0
      %v1710 = vadd.f32 %v1697, %v1709
      %v1711 = vpop.f32.mrf.mxu0
      %1712 = vdwg.mxu0
      %1713 = vmatpush.bf16.msra.mxu0 %v1270
      %1714 = vmatpush.bf16.msra.mxu0 %v1135
      %1715 = vmatpush.bf16.msra.mxu0 %v995
      %1716 = vmatpush.bf16.msra.mxu0 %v860
      %1717 = vmatpush.bf16.msra.mxu0 %v725
      %1718 = vmatpush.bf16.msra.mxu0 %v590
      %1719 = vmatpush.bf16.msra.mxu0 %v455
      %1720 = vmatpush.bf16.msra.mxu0 %v317
      %1721 = vmatmul.bf16.gmra.mxu0 %v1472
      %v1722 = vpop.f32.mrf.mxu0
      %v1723 = vadd.f32 %v1467, %v1722
      %v1724 = vpop.f32.mrf.mxu0
      %1725 = vdwg.mxu0
      %1726 = vmatpush.bf16.msra.mxu0 0
      %1727 = vmatpush.bf16.msra.mxu0 0
      %1728 = vmatpush.bf16.msra.mxu0 0
      %1729 = vmatpush.bf16.msra.mxu0 0
      %1730 = vmatpush.bf16.msra.mxu0 0
      %1731 = vmatpush.bf16.msra.mxu0 0
      %1732 = vmatpush.bf16.msra.mxu0 0
      %1733 = vmatpush.bf16.msra.mxu0 %v1405
      %1734 = vmatmul.bf16.gmra.mxu0 %v1477
      %v1735 = vpop.f32.mrf.mxu0
      %v1736 = vadd.f32 %v1723, %v1735
      %v1737 = vpop.f32.mrf.mxu0
      %1738 = vdwg.mxu0
      %1739 = vmatpush.bf16.msra.mxu0 %v1271
      %1740 = vmatpush.bf16.msra.mxu0 %v1136
      %1741 = vmatpush.bf16.msra.mxu0 %v996
      %1742 = vmatpush.bf16.msra.mxu0 %v861
      %1743 = vmatpush.bf16.msra.mxu0 %v726
      %1744 = vmatpush.bf16.msra.mxu0 %v591
      %1745 = vmatpush.bf16.msra.mxu0 %v456
      %1746 = vmatpush.bf16.msra.mxu0 %v318
      %1747 = vmatmul.bf16.gmra.mxu0 %v1472
      %v1748 = vpop.f32.mrf.mxu0
      %v1749 = vadd.f32 %v1467, %v1748
      %v1750 = vpop.f32.mrf.mxu0
      %1751 = vdwg.mxu0
      %1752 = vmatpush.bf16.msra.mxu0 0
      %1753 = vmatpush.bf16.msra.mxu0 0
      %1754 = vmatpush.bf16.msra.mxu0 0
      %1755 = vmatpush.bf16.msra.mxu0 0
      %1756 = vmatpush.bf16.msra.mxu0 0
      %1757 = vmatpush.bf16.msra.mxu0 0
      %1758 = vmatpush.bf16.msra.mxu0 0
      %1759 = vmatpush.bf16.msra.mxu0 %v1406
      %1760 = vmatmul.bf16.gmra.mxu0 %v1477
      %v1761 = vpop.f32.mrf.mxu0
      %v1762 = vadd.f32 %v1749, %v1761
      %v1763 = vpop.f32.mrf.mxu0
      %1764 = vdwg.mxu0
      %1765 = vmatpush.bf16.msra.mxu0 %v1272
      %1766 = vmatpush.bf16.msra.mxu0 %v1137
      %1767 = vmatpush.bf16.msra.mxu0 %v997
      %1768 = vmatpush.bf16.msra.mxu0 %v862
      %1769 = vmatpush.bf16.msra.mxu0 %v727
      %1770 = vmatpush.bf16.msra.mxu0 %v592
      %1771 = vmatpush.bf16.msra.mxu0 %v457
      %1772 = vmatpush.bf16.msra.mxu0 %v319
      %1773 = vmatmul.bf16.gmra.mxu0 %v1472
      %v1774 = vpop.f32.mrf.mxu0
      %v1775 = vadd.f32 %v1467, %v1774
      %v1776 = vpop.f32.mrf.mxu0
      %1777 = vdwg.mxu0
      %1778 = vmatpush.bf16.msra.mxu0 0
      %1779 = vmatpush.bf16.msra.mxu0 0
      %1780 = vmatpush.bf16.msra.mxu0 0
      %1781 = vmatpush.bf16.msra.mxu0 0
      %1782 = vmatpush.bf16.msra.mxu0 0
      %1783 = vmatpush.bf16.msra.mxu0 0
      %1784 = vmatpush.bf16.msra.mxu0 0
      %1785 = vmatpush.bf16.msra.mxu0 %v1407
      %1786 = vmatmul.bf16.gmra.mxu0 %v1477
      %v1787 = vpop.f32.mrf.mxu0
      %v1788 = vadd.f32 %v1775, %v1787
      %v1789 = vpop.f32.mrf.mxu0
      %1790 = vdwg.mxu0
      %1791 = vmatpush.bf16.msra.mxu0 %v1273
      %1792 = vmatpush.bf16.msra.mxu0 %v1138
      %1793 = vmatpush.bf16.msra.mxu0 %v998
      %1794 = vmatpush.bf16.msra.mxu0 %v863
      %1795 = vmatpush.bf16.msra.mxu0 %v728
      %1796 = vmatpush.bf16.msra.mxu0 %v593
      %1797 = vmatpush.bf16.msra.mxu0 %v458
      %1798 = vmatpush.bf16.msra.mxu0 %v320
      %1799 = vmatmul.bf16.gmra.mxu0 %v1472
      %v1800 = vpop.f32.mrf.mxu0
      %v1801 = vadd.f32 %v1467, %v1800
      %v1802 = vpop.f32.mrf.mxu0
      %1803 = vdwg.mxu0
      %1804 = vmatpush.bf16.msra.mxu0 0
      %1805 = vmatpush.bf16.msra.mxu0 0
      %1806 = vmatpush.bf16.msra.mxu0 0
      %1807 = vmatpush.bf16.msra.mxu0 0
      %1808 = vmatpush.bf16.msra.mxu0 0
      %1809 = vmatpush.bf16.msra.mxu0 0
      %1810 = vmatpush.bf16.msra.mxu0 0
      %1811 = vmatpush.bf16.msra.mxu0 %v1408
      %1812 = vmatmul.bf16.gmra.mxu0 %v1477
      %v1813 = vpop.f32.mrf.mxu0
      %v1814 = vadd.f32 %v1801, %v1813
      %v1815 = vpop.f32.mrf.mxu0
      %1816 = vdwg.mxu0
      %1817 = vmatpush.bf16.msra.mxu0 %v1274
      %1818 = vmatpush.bf16.msra.mxu0 %v1139
      %1819 = vmatpush.bf16.msra.mxu0 %v999
      %1820 = vmatpush.bf16.msra.mxu0 %v864
      %1821 = vmatpush.bf16.msra.mxu0 %v729
      %1822 = vmatpush.bf16.msra.mxu0 %v594
      %1823 = vmatpush.bf16.msra.mxu0 %v459
      %1824 = vmatpush.bf16.msra.mxu0 %v321
      %1825 = vmatmul.bf16.gmra.mxu0 %v1472
      %v1826 = vpop.f32.mrf.mxu0
      %v1827 = vadd.f32 %v1467, %v1826
      %v1828 = vpop.f32.mrf.mxu0
      %1829 = vdwg.mxu0
      %1830 = vmatpush.bf16.msra.mxu0 0
      %1831 = vmatpush.bf16.msra.mxu0 0
      %1832 = vmatpush.bf16.msra.mxu0 0
      %1833 = vmatpush.bf16.msra.mxu0 0
      %1834 = vmatpush.bf16.msra.mxu0 0
      %1835 = vmatpush.bf16.msra.mxu0 0
      %1836 = vmatpush.bf16.msra.mxu0 0
      %1837 = vmatpush.bf16.msra.mxu0 %v1409
      %1838 = vmatmul.bf16.gmra.mxu0 %v1477
      %v1839 = vpop.f32.mrf.mxu0
      %v1840 = vadd.f32 %v1827, %v1839
      %v1841 = vpop.f32.mrf.mxu0
      %1842 = vdwg.mxu0
      %1843 = vmatpush.bf16.msra.mxu0 %v1275
      %1844 = vmatpush.bf16.msra.mxu0 %v1140
      %1845 = vmatpush.bf16.msra.mxu0 %v1000
      %1846 = vmatpush.bf16.msra.mxu0 %v865
      %1847 = vmatpush.bf16.msra.mxu0 %v730
      %1848 = vmatpush.bf16.msra.mxu0 %v595
      %1849 = vmatpush.bf16.msra.mxu0 %v460
      %1850 = vmatpush.bf16.msra.mxu0 %v322
      %1851 = vmatmul.bf16.gmra.mxu0 %v1472
      %v1852 = vpop.f32.mrf.mxu0
      %v1853 = vadd.f32 %v1467, %v1852
      %v1854 = vpop.f32.mrf.mxu0
      %1855 = vdwg.mxu0
      %1856 = vmatpush.bf16.msra.mxu0 0
      %1857 = vmatpush.bf16.msra.mxu0 0
      %1858 = vmatpush.bf16.msra.mxu0 0
      %1859 = vmatpush.bf16.msra.mxu0 0
      %1860 = vmatpush.bf16.msra.mxu0 0
      %1861 = vmatpush.bf16.msra.mxu0 0
      %1862 = vmatpush.bf16.msra.mxu0 0
      %1863 = vmatpush.bf16.msra.mxu0 %v1410
      %1864 = vmatmul.bf16.gmra.mxu0 %v1477
      %v1865 = vpop.f32.mrf.mxu0
      %v1866 = vadd.f32 %v1853, %v1865
      %v1867 = vpop.f32.mrf.mxu0
      %1868 = vdwg.mxu0
      %1869 = vmatpush.bf16.msra.mxu0 %v1276
      %1870 = vmatpush.bf16.msra.mxu0 %v1141
      %1871 = vmatpush.bf16.msra.mxu0 %v1001
      %1872 = vmatpush.bf16.msra.mxu0 %v866
      %1873 = vmatpush.bf16.msra.mxu0 %v731
      %1874 = vmatpush.bf16.msra.mxu0 %v596
      %1875 = vmatpush.bf16.msra.mxu0 %v461
      %1876 = vmatpush.bf16.msra.mxu0 %v323
      %1877 = vmatmul.bf16.gmra.mxu0 %v1472
      %v1878 = vpop.f32.mrf.mxu0
      %v1879 = vadd.f32 %v1467, %v1878
      %v1880 = vpop.f32.mrf.mxu0
      %1881 = vdwg.mxu0
      %1882 = vmatpush.bf16.msra.mxu0 0
      %1883 = vmatpush.bf16.msra.mxu0 0
      %1884 = vmatpush.bf16.msra.mxu0 0
      %1885 = vmatpush.bf16.msra.mxu0 0
      %1886 = vmatpush.bf16.msra.mxu0 0
      %1887 = vmatpush.bf16.msra.mxu0 0
      %1888 = vmatpush.bf16.msra.mxu0 0
      %1889 = vmatpush.bf16.msra.mxu0 %v1411
      %1890 = vmatmul.bf16.gmra.mxu0 %v1477
      %v1891 = vpop.f32.mrf.mxu0
      %v1892 = vadd.f32 %v1879, %v1891
      %v1893 = vpop.f32.mrf.mxu0
      %1894 = vdwg.mxu0
      %1895 = vmatpush.bf16.msra.mxu0 %v1277
      %1896 = vmatpush.bf16.msra.mxu0 %v1142
      %1897 = vmatpush.bf16.msra.mxu0 %v1002
      %1898 = vmatpush.bf16.msra.mxu0 %v867
      %1899 = vmatpush.bf16.msra.mxu0 %v732
      %1900 = vmatpush.bf16.msra.mxu0 %v597
      %1901 = vmatpush.bf16.msra.mxu0 %v462
      %1902 = vmatpush.bf16.msra.mxu0 %v324
      %1903 = vmatmul.bf16.gmra.mxu0 %v1472
      %v1904 = vpop.f32.mrf.mxu0
      %v1905 = vadd.f32 %v1467, %v1904
      %v1906 = vpop.f32.mrf.mxu0
      %1907 = vdwg.mxu0
      %1908 = vmatpush.bf16.msra.mxu0 0
      %1909 = vmatpush.bf16.msra.mxu0 0
      %1910 = vmatpush.bf16.msra.mxu0 0
      %1911 = vmatpush.bf16.msra.mxu0 0
      %1912 = vmatpush.bf16.msra.mxu0 0
      %1913 = vmatpush.bf16.msra.mxu0 0
      %1914 = vmatpush.bf16.msra.mxu0 0
      %1915 = vmatpush.bf16.msra.mxu0 %v1412
      %1916 = vmatmul.bf16.gmra.mxu0 %v1477
      %v1917 = vpop.f32.mrf.mxu0
      %v1918 = vadd.f32 %v1905, %v1917
      %v1919 = vpop.f32.mrf.mxu0
      %1920 = vdwg.mxu0
      %1921 = vmatpush.bf16.msra.mxu0 %v1278
      %1922 = vmatpush.bf16.msra.mxu0 %v1143
      %1923 = vmatpush.bf16.msra.mxu0 %v1003
      %1924 = vmatpush.bf16.msra.mxu0 %v868
      %1925 = vmatpush.bf16.msra.mxu0 %v733
      %1926 = vmatpush.bf16.msra.mxu0 %v598
      %1927 = vmatpush.bf16.msra.mxu0 %v463
      %1928 = vmatpush.bf16.msra.mxu0 %v325
      %1929 = vmatmul.bf16.gmra.mxu0 %v1472
      %v1930 = vpop.f32.mrf.mxu0
      %v1931 = vadd.f32 %v1467, %v1930
      %v1932 = vpop.f32.mrf.mxu0
      %1933 = vdwg.mxu0
      %1934 = vmatpush.bf16.msra.mxu0 0
      %1935 = vmatpush.bf16.msra.mxu0 0
      %1936 = vmatpush.bf16.msra.mxu0 0
      %1937 = vmatpush.bf16.msra.mxu0 0
      %1938 = vmatpush.bf16.msra.mxu0 0
      %1939 = vmatpush.bf16.msra.mxu0 0
      %1940 = vmatpush.bf16.msra.mxu0 0
      %1941 = vmatpush.bf16.msra.mxu0 %v1413
      %1942 = vmatmul.bf16.gmra.mxu0 %v1477
      %v1943 = vpop.f32.mrf.mxu0
      %v1944 = vadd.f32 %v1931, %v1943
      %v1945 = vpop.f32.mrf.mxu0
      %1946 = vdwg.mxu0
      %1947 = vmatpush.bf16.msra.mxu0 %v1279
      %1948 = vmatpush.bf16.msra.mxu0 %v1144
      %1949 = vmatpush.bf16.msra.mxu0 %v1004
      %1950 = vmatpush.bf16.msra.mxu0 %v869
      %1951 = vmatpush.bf16.msra.mxu0 %v734
      %1952 = vmatpush.bf16.msra.mxu0 %v599
      %1953 = vmatpush.bf16.msra.mxu0 %v464
      %1954 = vmatpush.bf16.msra.mxu0 %v326
      %1955 = vmatmul.bf16.gmra.mxu0 %v1472
      %v1956 = vpop.f32.mrf.mxu0
      %v1957 = vadd.f32 %v1467, %v1956
      %v1958 = vpop.f32.mrf.mxu0
      %1959 = vdwg.mxu0
      %1960 = vmatpush.bf16.msra.mxu0 0
      %1961 = vmatpush.bf16.msra.mxu0 0
      %1962 = vmatpush.bf16.msra.mxu0 0
      %1963 = vmatpush.bf16.msra.mxu0 0
      %1964 = vmatpush.bf16.msra.mxu0 0
      %1965 = vmatpush.bf16.msra.mxu0 0
      %1966 = vmatpush.bf16.msra.mxu0 0
      %1967 = vmatpush.bf16.msra.mxu0 %v1414
      %1968 = vmatmul.bf16.gmra.mxu0 %v1477
      %v1969 = vpop.f32.mrf.mxu0
      %v1970 = vadd.f32 %v1957, %v1969
      %v1971 = vpop.f32.mrf.mxu0
      %1972 = vdwg.mxu0
      %1973 = vmatpush.bf16.msra.mxu0 %v1280
      %1974 = vmatpush.bf16.msra.mxu0 %v1145
      %1975 = vmatpush.bf16.msra.mxu0 %v1005
      %1976 = vmatpush.bf16.msra.mxu0 %v870
      %1977 = vmatpush.bf16.msra.mxu0 %v735
      %1978 = vmatpush.bf16.msra.mxu0 %v600
      %1979 = vmatpush.bf16.msra.mxu0 %v465
      %1980 = vmatpush.bf16.msra.mxu0 %v327
      %1981 = vmatmul.bf16.gmra.mxu0 %v1472
      %v1982 = vpop.f32.mrf.mxu0
      %v1983 = vadd.f32 %v1467, %v1982
      %v1984 = vpop.f32.mrf.mxu0
      %1985 = vdwg.mxu0
      %1986 = vmatpush.bf16.msra.mxu0 0
      %1987 = vmatpush.bf16.msra.mxu0 0
      %1988 = vmatpush.bf16.msra.mxu0 0
      %1989 = vmatpush.bf16.msra.mxu0 0
      %1990 = vmatpush.bf16.msra.mxu0 0
      %1991 = vmatpush.bf16.msra.mxu0 0
      %1992 = vmatpush.bf16.msra.mxu0 0
      %1993 = vmatpush.bf16.msra.mxu0 %v1415
      %1994 = vmatmul.bf16.gmra.mxu0 %v1477
      %v1995 = vpop.f32.mrf.mxu0
      %v1996 = vadd.f32 %v1983, %v1995
      %v1997 = vpop.f32.mrf.mxu0
      %1998 = vdwg.mxu0
      %1999 = vmatpush.bf16.msra.mxu0 %v1281
      %2000 = vmatpush.bf16.msra.mxu0 %v1146
      %2001 = vmatpush.bf16.msra.mxu0 %v1006
      %2002 = vmatpush.bf16.msra.mxu0 %v871
      %2003 = vmatpush.bf16.msra.mxu0 %v736
      %2004 = vmatpush.bf16.msra.mxu0 %v601
      %2005 = vmatpush.bf16.msra.mxu0 %v466
      %2006 = vmatpush.bf16.msra.mxu0 %v328
      %2007 = vmatmul.bf16.gmra.mxu0 %v1472
      %v2008 = vpop.f32.mrf.mxu0
      %v2009 = vadd.f32 %v1467, %v2008
      %v2010 = vpop.f32.mrf.mxu0
      %2011 = vdwg.mxu0
      %2012 = vmatpush.bf16.msra.mxu0 0
      %2013 = vmatpush.bf16.msra.mxu0 0
      %2014 = vmatpush.bf16.msra.mxu0 0
      %2015 = vmatpush.bf16.msra.mxu0 0
      %2016 = vmatpush.bf16.msra.mxu0 0
      %2017 = vmatpush.bf16.msra.mxu0 0
      %2018 = vmatpush.bf16.msra.mxu0 0
      %2019 = vmatpush.bf16.msra.mxu0 %v1416
      %2020 = vmatmul.bf16.gmra.mxu0 %v1477
      %v2021 = vpop.f32.mrf.mxu0
      %v2022 = vadd.f32 %v2009, %v2021
      %v2023 = vpop.f32.mrf.mxu0
      %2024 = vdwg.mxu0
      %2025 = vmatpush.bf16.msra.mxu0 %v1282
      %2026 = vmatpush.bf16.msra.mxu0 %v1147
      %2027 = vmatpush.bf16.msra.mxu0 %v1007
      %2028 = vmatpush.bf16.msra.mxu0 %v872
      %2029 = vmatpush.bf16.msra.mxu0 %v737
      %2030 = vmatpush.bf16.msra.mxu0 %v602
      %2031 = vmatpush.bf16.msra.mxu0 %v467
      %2032 = vmatpush.bf16.msra.mxu0 %v329
      %2033 = vmatmul.bf16.gmra.mxu0 %v1472
      %v2034 = vpop.f32.mrf.mxu0
      %v2035 = vadd.f32 %v1467, %v2034
      %v2036 = vpop.f32.mrf.mxu0
      %2037 = vdwg.mxu0
      %2038 = vmatpush.bf16.msra.mxu0 0
      %2039 = vmatpush.bf16.msra.mxu0 0
      %2040 = vmatpush.bf16.msra.mxu0 0
      %2041 = vmatpush.bf16.msra.mxu0 0
      %2042 = vmatpush.bf16.msra.mxu0 0
      %2043 = vmatpush.bf16.msra.mxu0 0
      %2044 = vmatpush.bf16.msra.mxu0 0
      %2045 = vmatpush.bf16.msra.mxu0 %v1417
      %2046 = vmatmul.bf16.gmra.mxu0 %v1477
      %v2047 = vpop.f32.mrf.mxu0
      %v2048 = vadd.f32 %v2035, %v2047
      %v2049 = vpop.f32.mrf.mxu0
      %2050 = vdwg.mxu0
      %2051 = vmatpush.bf16.msra.mxu0 %v1283
      %2052 = vmatpush.bf16.msra.mxu0 %v1148
      %2053 = vmatpush.bf16.msra.mxu0 %v1008
      %2054 = vmatpush.bf16.msra.mxu0 %v873
      %2055 = vmatpush.bf16.msra.mxu0 %v738
      %2056 = vmatpush.bf16.msra.mxu0 %v603
      %2057 = vmatpush.bf16.msra.mxu0 %v468
      %2058 = vmatpush.bf16.msra.mxu0 %v330
      %2059 = vmatmul.bf16.gmra.mxu0 %v1472
      %v2060 = vpop.f32.mrf.mxu0
      %v2061 = vadd.f32 %v1467, %v2060
      %v2062 = vpop.f32.mrf.mxu0
      %2063 = vdwg.mxu0
      %2064 = vmatpush.bf16.msra.mxu0 0
      %2065 = vmatpush.bf16.msra.mxu0 0
      %2066 = vmatpush.bf16.msra.mxu0 0
      %2067 = vmatpush.bf16.msra.mxu0 0
      %2068 = vmatpush.bf16.msra.mxu0 0
      %2069 = vmatpush.bf16.msra.mxu0 0
      %2070 = vmatpush.bf16.msra.mxu0 0
      %2071 = vmatpush.bf16.msra.mxu0 %v1418
      %2072 = vmatmul.bf16.gmra.mxu0 %v1477
      %v2073 = vpop.f32.mrf.mxu0
      %v2074 = vadd.f32 %v2061, %v2073
      %v2075 = vpop.f32.mrf.mxu0
      %2076 = vdwg.mxu0
      %2077 = vmatpush.bf16.msra.mxu0 %v1284
      %2078 = vmatpush.bf16.msra.mxu0 %v1149
      %2079 = vmatpush.bf16.msra.mxu0 %v1009
      %2080 = vmatpush.bf16.msra.mxu0 %v874
      %2081 = vmatpush.bf16.msra.mxu0 %v739
      %2082 = vmatpush.bf16.msra.mxu0 %v604
      %2083 = vmatpush.bf16.msra.mxu0 %v469
      %2084 = vmatpush.bf16.msra.mxu0 %v331
      %2085 = vmatmul.bf16.gmra.mxu0 %v1472
      %v2086 = vpop.f32.mrf.mxu0
      %v2087 = vadd.f32 %v1467, %v2086
      %v2088 = vpop.f32.mrf.mxu0
      %2089 = vdwg.mxu0
      %2090 = vmatpush.bf16.msra.mxu0 0
      %2091 = vmatpush.bf16.msra.mxu0 0
      %2092 = vmatpush.bf16.msra.mxu0 0
      %2093 = vmatpush.bf16.msra.mxu0 0
      %2094 = vmatpush.bf16.msra.mxu0 0
      %2095 = vmatpush.bf16.msra.mxu0 0
      %2096 = vmatpush.bf16.msra.mxu0 0
      %2097 = vmatpush.bf16.msra.mxu0 %v1419
      %2098 = vmatmul.bf16.gmra.mxu0 %v1477
      %v2099 = vpop.f32.mrf.mxu0
      %v2100 = vadd.f32 %v2087, %v2099
      %v2101 = vpop.f32.mrf.mxu0
      %2102 = vdwg.mxu0
      %2103 = vmatpush.bf16.msra.mxu0 %v1285
      %2104 = vmatpush.bf16.msra.mxu0 %v1150
      %2105 = vmatpush.bf16.msra.mxu0 %v1010
      %2106 = vmatpush.bf16.msra.mxu0 %v875
      %2107 = vmatpush.bf16.msra.mxu0 %v740
      %2108 = vmatpush.bf16.msra.mxu0 %v605
      %2109 = vmatpush.bf16.msra.mxu0 %v470
      %2110 = vmatpush.bf16.msra.mxu0 %v332
      %2111 = vmatmul.bf16.gmra.mxu0 %v1472
      %v2112 = vpop.f32.mrf.mxu0
      %v2113 = vadd.f32 %v1467, %v2112
      %v2114 = vpop.f32.mrf.mxu0
      %2115 = vdwg.mxu0
      %2116 = vmatpush.bf16.msra.mxu0 0
      %2117 = vmatpush.bf16.msra.mxu0 0
      %2118 = vmatpush.bf16.msra.mxu0 0
      %2119 = vmatpush.bf16.msra.mxu0 0
      %2120 = vmatpush.bf16.msra.mxu0 0
      %2121 = vmatpush.bf16.msra.mxu0 0
      %2122 = vmatpush.bf16.msra.mxu0 0
      %2123 = vmatpush.bf16.msra.mxu0 %v1420
      %2124 = vmatmul.bf16.gmra.mxu0 %v1477
      %v2125 = vpop.f32.mrf.mxu0
      %v2126 = vadd.f32 %v2113, %v2125
      %v2127 = vpop.f32.mrf.mxu0
      %2128 = vdwg.mxu0
      %2129 = vmatpush.bf16.msra.mxu0 %v1286
      %2130 = vmatpush.bf16.msra.mxu0 %v1151
      %2131 = vmatpush.bf16.msra.mxu0 %v1011
      %2132 = vmatpush.bf16.msra.mxu0 %v876
      %2133 = vmatpush.bf16.msra.mxu0 %v741
      %2134 = vmatpush.bf16.msra.mxu0 %v606
      %2135 = vmatpush.bf16.msra.mxu0 %v471
      %2136 = vmatpush.bf16.msra.mxu0 %v333
      %2137 = vmatmul.bf16.gmra.mxu0 %v1472
      %v2138 = vpop.f32.mrf.mxu0
      %v2139 = vadd.f32 %v1467, %v2138
      %v2140 = vpop.f32.mrf.mxu0
      %2141 = vdwg.mxu0
      %2142 = vmatpush.bf16.msra.mxu0 0
      %2143 = vmatpush.bf16.msra.mxu0 0
      %2144 = vmatpush.bf16.msra.mxu0 0
      %2145 = vmatpush.bf16.msra.mxu0 0
      %2146 = vmatpush.bf16.msra.mxu0 0
      %2147 = vmatpush.bf16.msra.mxu0 0
      %2148 = vmatpush.bf16.msra.mxu0 0
      %2149 = vmatpush.bf16.msra.mxu0 %v1421
      %2150 = vmatmul.bf16.gmra.mxu0 %v1477
      %v2151 = vpop.f32.mrf.mxu0
      %v2152 = vadd.f32 %v2139, %v2151
      %v2153 = vpop.f32.mrf.mxu0
      %2154 = vdwg.mxu0
      %2155 = vmatpush.bf16.msra.mxu0 %v1287
      %2156 = vmatpush.bf16.msra.mxu0 %v1152
      %2157 = vmatpush.bf16.msra.mxu0 %v1012
      %2158 = vmatpush.bf16.msra.mxu0 %v877
      %2159 = vmatpush.bf16.msra.mxu0 %v742
      %2160 = vmatpush.bf16.msra.mxu0 %v607
      %2161 = vmatpush.bf16.msra.mxu0 %v472
      %2162 = vmatpush.bf16.msra.mxu0 %v334
      %2163 = vmatmul.bf16.gmra.mxu0 %v1472
      %v2164 = vpop.f32.mrf.mxu0
      %v2165 = vadd.f32 %v1467, %v2164
      %v2166 = vpop.f32.mrf.mxu0
      %2167 = vdwg.mxu0
      %2168 = vmatpush.bf16.msra.mxu0 0
      %2169 = vmatpush.bf16.msra.mxu0 0
      %2170 = vmatpush.bf16.msra.mxu0 0
      %2171 = vmatpush.bf16.msra.mxu0 0
      %2172 = vmatpush.bf16.msra.mxu0 0
      %2173 = vmatpush.bf16.msra.mxu0 0
      %2174 = vmatpush.bf16.msra.mxu0 0
      %2175 = vmatpush.bf16.msra.mxu0 %v1422
      %2176 = vmatmul.bf16.gmra.mxu0 %v1477
      %v2177 = vpop.f32.mrf.mxu0
      %v2178 = vadd.f32 %v2165, %v2177
      %v2179 = vpop.f32.mrf.mxu0
      %2180 = vdwg.mxu0
      %2181 = vmatpush.bf16.msra.mxu0 %v1288
      %2182 = vmatpush.bf16.msra.mxu0 %v1153
      %2183 = vmatpush.bf16.msra.mxu0 %v1013
      %2184 = vmatpush.bf16.msra.mxu0 %v878
      %2185 = vmatpush.bf16.msra.mxu0 %v743
      %2186 = vmatpush.bf16.msra.mxu0 %v608
      %2187 = vmatpush.bf16.msra.mxu0 %v473
      %2188 = vmatpush.bf16.msra.mxu0 %v335
      %2189 = vmatmul.bf16.gmra.mxu0 %v1472
      %v2190 = vpop.f32.mrf.mxu0
      %v2191 = vadd.f32 %v1467, %v2190
      %v2192 = vpop.f32.mrf.mxu0
      %2193 = vdwg.mxu0
      %2194 = vmatpush.bf16.msra.mxu0 0
      %2195 = vmatpush.bf16.msra.mxu0 0
      %2196 = vmatpush.bf16.msra.mxu0 0
      %2197 = vmatpush.bf16.msra.mxu0 0
      %2198 = vmatpush.bf16.msra.mxu0 0
      %2199 = vmatpush.bf16.msra.mxu0 0
      %2200 = vmatpush.bf16.msra.mxu0 0
      %2201 = vmatpush.bf16.msra.mxu0 %v1423
      %2202 = vmatmul.bf16.gmra.mxu0 %v1477
      %v2203 = vpop.f32.mrf.mxu0
      %v2204 = vadd.f32 %v2191, %v2203
      %v2205 = vpop.f32.mrf.mxu0
      %2206 = vdwg.mxu0
      %2207 = vmatpush.bf16.msra.mxu0 %v1289
      %2208 = vmatpush.bf16.msra.mxu0 %v1154
      %2209 = vmatpush.bf16.msra.mxu0 %v1014
      %2210 = vmatpush.bf16.msra.mxu0 %v879
      %2211 = vmatpush.bf16.msra.mxu0 %v744
      %2212 = vmatpush.bf16.msra.mxu0 %v609
      %2213 = vmatpush.bf16.msra.mxu0 %v474
      %2214 = vmatpush.bf16.msra.mxu0 %v336
      %2215 = vmatmul.bf16.gmra.mxu0 %v1472
      %v2216 = vpop.f32.mrf.mxu0
      %v2217 = vadd.f32 %v1467, %v2216
      %v2218 = vpop.f32.mrf.mxu0
      %2219 = vdwg.mxu0
      %2220 = vmatpush.bf16.msra.mxu0 0
      %2221 = vmatpush.bf16.msra.mxu0 0
      %2222 = vmatpush.bf16.msra.mxu0 0
      %2223 = vmatpush.bf16.msra.mxu0 0
      %2224 = vmatpush.bf16.msra.mxu0 0
      %2225 = vmatpush.bf16.msra.mxu0 0
      %2226 = vmatpush.bf16.msra.mxu0 0
      %2227 = vmatpush.bf16.msra.mxu0 %v1424
      %2228 = vmatmul.bf16.gmra.mxu0 %v1477
      %v2229 = vpop.f32.mrf.mxu0
      %v2230 = vadd.f32 %v2217, %v2229
      %v2231 = vpop.f32.mrf.mxu0
      %2232 = vdwg.mxu0
      %2233 = vmatpush.bf16.msra.mxu0 %v1290
      %2234 = vmatpush.bf16.msra.mxu0 %v1155
      %2235 = vmatpush.bf16.msra.mxu0 %v1015
      %2236 = vmatpush.bf16.msra.mxu0 %v880
      %2237 = vmatpush.bf16.msra.mxu0 %v745
      %2238 = vmatpush.bf16.msra.mxu0 %v610
      %2239 = vmatpush.bf16.msra.mxu0 %v475
      %2240 = vmatpush.bf16.msra.mxu0 %v337
      %2241 = vmatmul.bf16.gmra.mxu0 %v1472
      %v2242 = vpop.f32.mrf.mxu0
      %v2243 = vadd.f32 %v1467, %v2242
      %v2244 = vpop.f32.mrf.mxu0
      %2245 = vdwg.mxu0
      %2246 = vmatpush.bf16.msra.mxu0 0
      %2247 = vmatpush.bf16.msra.mxu0 0
      %2248 = vmatpush.bf16.msra.mxu0 0
      %2249 = vmatpush.bf16.msra.mxu0 0
      %2250 = vmatpush.bf16.msra.mxu0 0
      %2251 = vmatpush.bf16.msra.mxu0 0
      %2252 = vmatpush.bf16.msra.mxu0 0
      %2253 = vmatpush.bf16.msra.mxu0 %v1425
      %2254 = vmatmul.bf16.gmra.mxu0 %v1477
      %v2255 = vpop.f32.mrf.mxu0
      %v2256 = vadd.f32 %v2243, %v2255
      %v2257 = vpop.f32.mrf.mxu0
      %2258 = vdwg.mxu0
      %2259 = vmatpush.bf16.msra.mxu0 %v1291
      %2260 = vmatpush.bf16.msra.mxu0 %v1156
      %2261 = vmatpush.bf16.msra.mxu0 %v1016
      %2262 = vmatpush.bf16.msra.mxu0 %v881
      %2263 = vmatpush.bf16.msra.mxu0 %v746
      %2264 = vmatpush.bf16.msra.mxu0 %v611
      %2265 = vmatpush.bf16.msra.mxu0 %v476
      %2266 = vmatpush.bf16.msra.mxu0 %v338
      %2267 = vmatmul.bf16.gmra.mxu0 %v1472
      %v2268 = vpop.f32.mrf.mxu0
      %v2269 = vadd.f32 %v1467, %v2268
      %v2270 = vpop.f32.mrf.mxu0
      %2271 = vdwg.mxu0
      %2272 = vmatpush.bf16.msra.mxu0 0
      %2273 = vmatpush.bf16.msra.mxu0 0
      %2274 = vmatpush.bf16.msra.mxu0 0
      %2275 = vmatpush.bf16.msra.mxu0 0
      %2276 = vmatpush.bf16.msra.mxu0 0
      %2277 = vmatpush.bf16.msra.mxu0 0
      %2278 = vmatpush.bf16.msra.mxu0 0
      %2279 = vmatpush.bf16.msra.mxu0 %v1426
      %2280 = vmatmul.bf16.gmra.mxu0 %v1477
      %v2281 = vpop.f32.mrf.mxu0
      %v2282 = vadd.f32 %v2269, %v2281
      %v2283 = vpop.f32.mrf.mxu0
      %2284 = vdwg.mxu0
      %2285 = vmatpush.bf16.msra.mxu0 %v1292
      %2286 = vmatpush.bf16.msra.mxu0 %v1157
      %2287 = vmatpush.bf16.msra.mxu0 %v1017
      %2288 = vmatpush.bf16.msra.mxu0 %v882
      %2289 = vmatpush.bf16.msra.mxu0 %v747
      %2290 = vmatpush.bf16.msra.mxu0 %v612
      %2291 = vmatpush.bf16.msra.mxu0 %v477
      %2292 = vmatpush.bf16.msra.mxu0 %v339
      %2293 = vmatmul.bf16.gmra.mxu0 %v1472
      %v2294 = vpop.f32.mrf.mxu0
      %v2295 = vadd.f32 %v1467, %v2294
      %v2296 = vpop.f32.mrf.mxu0
      %2297 = vdwg.mxu0
      %2298 = vmatpush.bf16.msra.mxu0 0
      %2299 = vmatpush.bf16.msra.mxu0 0
      %2300 = vmatpush.bf16.msra.mxu0 0
      %2301 = vmatpush.bf16.msra.mxu0 0
      %2302 = vmatpush.bf16.msra.mxu0 0
      %2303 = vmatpush.bf16.msra.mxu0 0
      %2304 = vmatpush.bf16.msra.mxu0 0
      %2305 = vmatpush.bf16.msra.mxu0 %v1427
      %2306 = vmatmul.bf16.gmra.mxu0 %v1477
      %v2307 = vpop.f32.mrf.mxu0
      %v2308 = vadd.f32 %v2295, %v2307
      %v2309 = vpop.f32.mrf.mxu0
      %2310 = vdwg.mxu0
      %2311 = vmatpush.bf16.msra.mxu0 %v1293
      %2312 = vmatpush.bf16.msra.mxu0 %v1158
      %2313 = vmatpush.bf16.msra.mxu0 %v1018
      %2314 = vmatpush.bf16.msra.mxu0 %v883
      %2315 = vmatpush.bf16.msra.mxu0 %v748
      %2316 = vmatpush.bf16.msra.mxu0 %v613
      %2317 = vmatpush.bf16.msra.mxu0 %v478
      %2318 = vmatpush.bf16.msra.mxu0 %v340
      %2319 = vmatmul.bf16.gmra.mxu0 %v1472
      %v2320 = vpop.f32.mrf.mxu0
      %v2321 = vadd.f32 %v1467, %v2320
      %v2322 = vpop.f32.mrf.mxu0
      %2323 = vdwg.mxu0
      %2324 = vmatpush.bf16.msra.mxu0 0
      %2325 = vmatpush.bf16.msra.mxu0 0
      %2326 = vmatpush.bf16.msra.mxu0 0
      %2327 = vmatpush.bf16.msra.mxu0 0
      %2328 = vmatpush.bf16.msra.mxu0 0
      %2329 = vmatpush.bf16.msra.mxu0 0
      %2330 = vmatpush.bf16.msra.mxu0 0
      %2331 = vmatpush.bf16.msra.mxu0 %v1428
      %2332 = vmatmul.bf16.gmra.mxu0 %v1477
      %v2333 = vpop.f32.mrf.mxu0
      %v2334 = vadd.f32 %v2321, %v2333
      %v2335 = vpop.f32.mrf.mxu0
      %2336 = vdwg.mxu0
      %v2337 = vxor.u32 %v1502, 2147483648
      %v2338 = vxor.u32 %v1528, 2147483648
      %v2339 = vxor.u32 %v1554, 2147483648
      %v2340 = vxor.u32 %v1580, 2147483648
      %v2341 = vxor.u32 %v1606, 2147483648
      %v2342 = vxor.u32 %v1632, 2147483648
      %v2343 = vxor.u32 %v1658, 2147483648
      %v2344 = vxor.u32 %v1684, 2147483648
      %v2345 = vxor.u32 %v1710, 2147483648
      %v2346 = vxor.u32 %v1736, 2147483648
      %v2347 = vxor.u32 %v1762, 2147483648
      %v2348 = vxor.u32 %v1788, 2147483648
      %v2349 = vxor.u32 %v1814, 2147483648
      %v2350 = vxor.u32 %v1840, 2147483648
      %v2351 = vxor.u32 %v1866, 2147483648
      %v2352 = vxor.u32 %v1892, 2147483648
      %v2353 = vxor.u32 %v1918, 2147483648
      %v2354 = vxor.u32 %v1944, 2147483648
      %v2355 = vxor.u32 %v1970, 2147483648
      %v2356 = vxor.u32 %v1996, 2147483648
      %v2357 = vxor.u32 %v2022, 2147483648
      %v2358 = vxor.u32 %v2048, 2147483648
      %v2359 = vxor.u32 %v2074, 2147483648
      %v2360 = vxor.u32 %v2100, 2147483648
      %v2361 = vxor.u32 %v2126, 2147483648
      %v2362 = vxor.u32 %v2152, 2147483648
      %v2363 = vxor.u32 %v2178, 2147483648
      %v2364 = vxor.u32 %v2204, 2147483648
      %v2365 = vxor.u32 %v2230, 2147483648
      %v2366 = vxor.u32 %v2256, 2147483648
      %v2367 = vxor.u32 %v2282, 2147483648
      %v2368 = vxor.u32 %v2308, 2147483648
      %v2369 = vxor.u32 %v2334, 2147483648
      %v2370 = vmul.f32 %v2337, 1.442695
      %v2371 = vpow.pop %v2370
      %v2372 = vmul.f32 %v2338, 1.442695
      %v2373 = vpow.pop %v2372
      %v2374 = vmul.f32 %v2339, 1.442695
      %v2375 = vpow.pop %v2374
      %v2376 = vmul.f32 %v2340, 1.442695
      %v2377 = vpow.pop %v2376
      %v2378 = vmul.f32 %v2341, 1.442695
      %v2379 = vpow.pop %v2378
      %v2380 = vmul.f32 %v2342, 1.442695
      %v2381 = vpow.pop %v2380
      %v2382 = vmul.f32 %v2343, 1.442695
      %v2383 = vpow.pop %v2382
      %v2384 = vmul.f32 %v2344, 1.442695
      %v2385 = vpow.pop %v2384
      %v2386 = vmul.f32 %v2345, 1.442695
      %v2387 = vpow.pop %v2386
      %v2388 = vmul.f32 %v2346, 1.442695
      %v2389 = vpow.pop %v2388
      %v2390 = vmul.f32 %v2347, 1.442695
      %v2391 = vpow.pop %v2390
      %v2392 = vmul.f32 %v2348, 1.442695
      %v2393 = vpow.pop %v2392
      %v2394 = vmul.f32 %v2349, 1.442695
      %v2395 = vpow.pop %v2394
      %v2396 = vmul.f32 %v2350, 1.442695
      %v2397 = vpow.pop %v2396
      %v2398 = vmul.f32 %v2351, 1.442695
      %v2399 = vpow.pop %v2398
      %v2400 = vmul.f32 %v2352, 1.442695
      %v2401 = vpow.pop %v2400
      %v2402 = vmul.f32 %v2353, 1.442695
      %v2403 = vpow.pop %v2402
      %v2404 = vmul.f32 %v2354, 1.442695
      %v2405 = vpow.pop %v2404
      %v2406 = vmul.f32 %v2355, 1.442695
      %v2407 = vpow.pop %v2406
      %v2408 = vmul.f32 %v2356, 1.442695
      %v2409 = vpow.pop %v2408
      %v2410 = vmul.f32 %v2357, 1.442695
      %v2411 = vpow.pop %v2410
      %v2412 = vmul.f32 %v2358, 1.442695
      %v2413 = vpow.pop %v2412
      %v2414 = vmul.f32 %v2359, 1.442695
      %v2415 = vpow.pop %v2414
      %v2416 = vmul.f32 %v2360, 1.442695
      %v2417 = vpow.pop %v2416
      %v2418 = vmul.f32 %v2361, 1.442695
      %v2419 = vpow.pop %v2418
      %v2420 = vmul.f32 %v2362, 1.442695
      %v2421 = vpow.pop %v2420
      %v2422 = vmul.f32 %v2363, 1.442695
      %v2423 = vpow.pop %v2422
      %v2424 = vmul.f32 %v2364, 1.442695
      %v2425 = vpow.pop %v2424
      %v2426 = vmul.f32 %v2365, 1.442695
      %v2427 = vpow.pop %v2426
      %v2428 = vmul.f32 %v2366, 1.442695
      %v2429 = vpow.pop %v2428
      %v2430 = vmul.f32 %v2367, 1.442695
      %v2431 = vpow.pop %v2430
      %v2432 = vmul.f32 %v2368, 1.442695
      %v2433 = vpow.pop %v2432
      %v2434 = vmul.f32 %v2369, 1.442695
      %v2435 = vpow.pop %v2434
      %v2436 = vadd.f32 %v2371, 1.0
      %v2437 = vadd.f32 %v2373, 1.0
      %v2438 = vadd.f32 %v2375, 1.0
      %v2439 = vadd.f32 %v2377, 1.0
      %v2440 = vadd.f32 %v2379, 1.0
      %v2441 = vadd.f32 %v2381, 1.0
      %v2442 = vadd.f32 %v2383, 1.0
      %v2443 = vadd.f32 %v2385, 1.0
      %v2444 = vadd.f32 %v2387, 1.0
      %v2445 = vadd.f32 %v2389, 1.0
      %v2446 = vadd.f32 %v2391, 1.0
      %v2447 = vadd.f32 %v2393, 1.0
      %v2448 = vadd.f32 %v2395, 1.0
      %v2449 = vadd.f32 %v2397, 1.0
      %v2450 = vadd.f32 %v2399, 1.0
      %v2451 = vadd.f32 %v2401, 1.0
      %v2452 = vadd.f32 %v2403, 1.0
      %v2453 = vadd.f32 %v2405, 1.0
      %v2454 = vadd.f32 %v2407, 1.0
      %v2455 = vadd.f32 %v2409, 1.0
      %v2456 = vadd.f32 %v2411, 1.0
      %v2457 = vadd.f32 %v2413, 1.0
      %v2458 = vadd.f32 %v2415, 1.0
      %v2459 = vadd.f32 %v2417, 1.0
      %v2460 = vadd.f32 %v2419, 1.0
      %v2461 = vadd.f32 %v2421, 1.0
      %v2462 = vadd.f32 %v2423, 1.0
      %v2463 = vadd.f32 %v2425, 1.0
      %v2464 = vadd.f32 %v2427, 1.0
      %v2465 = vadd.f32 %v2429, 1.0
      %v2466 = vadd.f32 %v2431, 1.0
      %v2467 = vadd.f32 %v2433, 1.0
      %v2468 = vadd.f32 %v2435, 1.0
      %v2469 = vrcp.pop %v2436
      %v2470 = vmul.f32 %v2436, %v2469
      %v2471 = vsub.f32 1.0, %v2470
      %v2472 = vmul.f32 %v2469, %v2471
      %v2473 = vadd.f32 %v2469, %v2472
      %vm2474 = vweird.f32 %v2436
      %vm2475 = vweird.f32 %v2469
      %vm2476 = vmor %vm2474, %vm2475
      %v2477 = vsel %vm2476, %v2469, %v2473
      %v2478 = vand.u32 2147483647, %v2436
      %vm2479 = vcmp.eq.f32.partialorder %v2478, 8.507059e+37
      %v2480 = vand.u32 %v2436, 2147483648
      %v2481 = vor.u32 1.1754944e-38, %v2480
      %v2482 = vsel %vm2479, %v2481, %v2477
      %v2483 = vmul.f32 1.0, %v2482
      %v2484 = vrcp.pop %v2437
      %v2485 = vmul.f32 %v2437, %v2484
      %v2486 = vsub.f32 1.0, %v2485
      %v2487 = vmul.f32 %v2484, %v2486
      %v2488 = vadd.f32 %v2484, %v2487
      %vm2489 = vweird.f32 %v2437
      %vm2490 = vweird.f32 %v2484
      %vm2491 = vmor %vm2489, %vm2490
      %v2492 = vsel %vm2491, %v2484, %v2488
      %v2493 = vand.u32 2147483647, %v2437
      %vm2494 = vcmp.eq.f32.partialorder %v2493, 8.507059e+37
      %v2495 = vand.u32 %v2437, 2147483648
      %v2496 = vor.u32 1.1754944e-38, %v2495
      %v2497 = vsel %vm2494, %v2496, %v2492
      %v2498 = vmul.f32 1.0, %v2497
      %v2499 = vrcp.pop %v2438
      %v2500 = vmul.f32 %v2438, %v2499
      %v2501 = vsub.f32 1.0, %v2500
      %v2502 = vmul.f32 %v2499, %v2501
      %v2503 = vadd.f32 %v2499, %v2502
      %vm2504 = vweird.f32 %v2438
      %vm2505 = vweird.f32 %v2499
      %vm2506 = vmor %vm2504, %vm2505
      %v2507 = vsel %vm2506, %v2499, %v2503
      %v2508 = vand.u32 2147483647, %v2438
      %vm2509 = vcmp.eq.f32.partialorder %v2508, 8.507059e+37
      %v2510 = vand.u32 %v2438, 2147483648
      %v2511 = vor.u32 1.1754944e-38, %v2510
      %v2512 = vsel %vm2509, %v2511, %v2507
      %v2513 = vmul.f32 1.0, %v2512
      %v2514 = vrcp.pop %v2439
      %v2515 = vmul.f32 %v2439, %v2514
      %v2516 = vsub.f32 1.0, %v2515
      %v2517 = vmul.f32 %v2514, %v2516
      %v2518 = vadd.f32 %v2514, %v2517
      %vm2519 = vweird.f32 %v2439
      %vm2520 = vweird.f32 %v2514
      %vm2521 = vmor %vm2519, %vm2520
      %v2522 = vsel %vm2521, %v2514, %v2518
      %v2523 = vand.u32 2147483647, %v2439
      %vm2524 = vcmp.eq.f32.partialorder %v2523, 8.507059e+37
      %v2525 = vand.u32 %v2439, 2147483648
      %v2526 = vor.u32 1.1754944e-38, %v2525
      %v2527 = vsel %vm2524, %v2526, %v2522
      %v2528 = vmul.f32 1.0, %v2527
      %v2529 = vrcp.pop %v2440
      %v2530 = vmul.f32 %v2440, %v2529
      %v2531 = vsub.f32 1.0, %v2530
      %v2532 = vmul.f32 %v2529, %v2531
      %v2533 = vadd.f32 %v2529, %v2532
      %vm2534 = vweird.f32 %v2440
      %vm2535 = vweird.f32 %v2529
      %vm2536 = vmor %vm2534, %vm2535
      %v2537 = vsel %vm2536, %v2529, %v2533
      %v2538 = vand.u32 2147483647, %v2440
      %vm2539 = vcmp.eq.f32.partialorder %v2538, 8.507059e+37
      %v2540 = vand.u32 %v2440, 2147483648
      %v2541 = vor.u32 1.1754944e-38, %v2540
      %v2542 = vsel %vm2539, %v2541, %v2537
      %v2543 = vmul.f32 1.0, %v2542
      %v2544 = vrcp.pop %v2441
      %v2545 = vmul.f32 %v2441, %v2544
      %v2546 = vsub.f32 1.0, %v2545
      %v2547 = vmul.f32 %v2544, %v2546
      %v2548 = vadd.f32 %v2544, %v2547
      %vm2549 = vweird.f32 %v2441
      %vm2550 = vweird.f32 %v2544
      %vm2551 = vmor %vm2549, %vm2550
      %v2552 = vsel %vm2551, %v2544, %v2548
      %v2553 = vand.u32 2147483647, %v2441
      %vm2554 = vcmp.eq.f32.partialorder %v2553, 8.507059e+37
      %v2555 = vand.u32 %v2441, 2147483648
      %v2556 = vor.u32 1.1754944e-38, %v2555
      %v2557 = vsel %vm2554, %v2556, %v2552
      %v2558 = vmul.f32 1.0, %v2557
      %v2559 = vrcp.pop %v2442
      %v2560 = vmul.f32 %v2442, %v2559
      %v2561 = vsub.f32 1.0, %v2560
      %v2562 = vmul.f32 %v2559, %v2561
      %v2563 = vadd.f32 %v2559, %v2562
      %vm2564 = vweird.f32 %v2442
      %vm2565 = vweird.f32 %v2559
      %vm2566 = vmor %vm2564, %vm2565
      %v2567 = vsel %vm2566, %v2559, %v2563
      %v2568 = vand.u32 2147483647, %v2442
      %vm2569 = vcmp.eq.f32.partialorder %v2568, 8.507059e+37
      %v2570 = vand.u32 %v2442, 2147483648
      %v2571 = vor.u32 1.1754944e-38, %v2570
      %v2572 = vsel %vm2569, %v2571, %v2567
      %v2573 = vmul.f32 1.0, %v2572
      %v2574 = vrcp.pop %v2443
      %v2575 = vmul.f32 %v2443, %v2574
      %v2576 = vsub.f32 1.0, %v2575
      %v2577 = vmul.f32 %v2574, %v2576
      %v2578 = vadd.f32 %v2574, %v2577
      %vm2579 = vweird.f32 %v2443
      %vm2580 = vweird.f32 %v2574
      %vm2581 = vmor %vm2579, %vm2580
      %v2582 = vsel %vm2581, %v2574, %v2578
      %v2583 = vand.u32 2147483647, %v2443
      %vm2584 = vcmp.eq.f32.partialorder %v2583, 8.507059e+37
      %v2585 = vand.u32 %v2443, 2147483648
      %v2586 = vor.u32 1.1754944e-38, %v2585
      %v2587 = vsel %vm2584, %v2586, %v2582
      %v2588 = vmul.f32 1.0, %v2587
      %v2589 = vrcp.pop %v2444
      %v2590 = vmul.f32 %v2444, %v2589
      %v2591 = vsub.f32 1.0, %v2590
      %v2592 = vmul.f32 %v2589, %v2591
      %v2593 = vadd.f32 %v2589, %v2592
      %vm2594 = vweird.f32 %v2444
      %vm2595 = vweird.f32 %v2589
      %vm2596 = vmor %vm2594, %vm2595
      %v2597 = vsel %vm2596, %v2589, %v2593
      %v2598 = vand.u32 2147483647, %v2444
      %vm2599 = vcmp.eq.f32.partialorder %v2598, 8.507059e+37
      %v2600 = vand.u32 %v2444, 2147483648
      %v2601 = vor.u32 1.1754944e-38, %v2600
      %v2602 = vsel %vm2599, %v2601, %v2597
      %v2603 = vmul.f32 1.0, %v2602
      %v2604 = vrcp.pop %v2445
      %v2605 = vmul.f32 %v2445, %v2604
      %v2606 = vsub.f32 1.0, %v2605
      %v2607 = vmul.f32 %v2604, %v2606
      %v2608 = vadd.f32 %v2604, %v2607
      %vm2609 = vweird.f32 %v2445
      %vm2610 = vweird.f32 %v2604
      %vm2611 = vmor %vm2609, %vm2610
      %v2612 = vsel %vm2611, %v2604, %v2608
      %v2613 = vand.u32 2147483647, %v2445
      %vm2614 = vcmp.eq.f32.partialorder %v2613, 8.507059e+37
      %v2615 = vand.u32 %v2445, 2147483648
      %v2616 = vor.u32 1.1754944e-38, %v2615
      %v2617 = vsel %vm2614, %v2616, %v2612
      %v2618 = vmul.f32 1.0, %v2617
      %v2619 = vrcp.pop %v2446
      %v2620 = vmul.f32 %v2446, %v2619
      %v2621 = vsub.f32 1.0, %v2620
      %v2622 = vmul.f32 %v2619, %v2621
      %v2623 = vadd.f32 %v2619, %v2622
      %vm2624 = vweird.f32 %v2446
      %vm2625 = vweird.f32 %v2619
      %vm2626 = vmor %vm2624, %vm2625
      %v2627 = vsel %vm2626, %v2619, %v2623
      %v2628 = vand.u32 2147483647, %v2446
      %vm2629 = vcmp.eq.f32.partialorder %v2628, 8.507059e+37
      %v2630 = vand.u32 %v2446, 2147483648
      %v2631 = vor.u32 1.1754944e-38, %v2630
      %v2632 = vsel %vm2629, %v2631, %v2627
      %v2633 = vmul.f32 1.0, %v2632
      %v2634 = vrcp.pop %v2447
      %v2635 = vmul.f32 %v2447, %v2634
      %v2636 = vsub.f32 1.0, %v2635
      %v2637 = vmul.f32 %v2634, %v2636
      %v2638 = vadd.f32 %v2634, %v2637
      %vm2639 = vweird.f32 %v2447
      %vm2640 = vweird.f32 %v2634
      %vm2641 = vmor %vm2639, %vm2640
      %v2642 = vsel %vm2641, %v2634, %v2638
      %v2643 = vand.u32 2147483647, %v2447
      %vm2644 = vcmp.eq.f32.partialorder %v2643, 8.507059e+37
      %v2645 = vand.u32 %v2447, 2147483648
      %v2646 = vor.u32 1.1754944e-38, %v2645
      %v2647 = vsel %vm2644, %v2646, %v2642
      %v2648 = vmul.f32 1.0, %v2647
      %v2649 = vrcp.pop %v2448
      %v2650 = vmul.f32 %v2448, %v2649
      %v2651 = vsub.f32 1.0, %v2650
      %v2652 = vmul.f32 %v2649, %v2651
      %v2653 = vadd.f32 %v2649, %v2652
      %vm2654 = vweird.f32 %v2448
      %vm2655 = vweird.f32 %v2649
      %vm2656 = vmor %vm2654, %vm2655
      %v2657 = vsel %vm2656, %v2649, %v2653
      %v2658 = vand.u32 2147483647, %v2448
      %vm2659 = vcmp.eq.f32.partialorder %v2658, 8.507059e+37
      %v2660 = vand.u32 %v2448, 2147483648
      %v2661 = vor.u32 1.1754944e-38, %v2660
      %v2662 = vsel %vm2659, %v2661, %v2657
      %v2663 = vmul.f32 1.0, %v2662
      %v2664 = vrcp.pop %v2449
      %v2665 = vmul.f32 %v2449, %v2664
      %v2666 = vsub.f32 1.0, %v2665
      %v2667 = vmul.f32 %v2664, %v2666
      %v2668 = vadd.f32 %v2664, %v2667
      %vm2669 = vweird.f32 %v2449
      %vm2670 = vweird.f32 %v2664
      %vm2671 = vmor %vm2669, %vm2670
      %v2672 = vsel %vm2671, %v2664, %v2668
      %v2673 = vand.u32 2147483647, %v2449
      %vm2674 = vcmp.eq.f32.partialorder %v2673, 8.507059e+37
      %v2675 = vand.u32 %v2449, 2147483648
      %v2676 = vor.u32 1.1754944e-38, %v2675
      %v2677 = vsel %vm2674, %v2676, %v2672
      %v2678 = vmul.f32 1.0, %v2677
      %v2679 = vrcp.pop %v2450
      %v2680 = vmul.f32 %v2450, %v2679
      %v2681 = vsub.f32 1.0, %v2680
      %v2682 = vmul.f32 %v2679, %v2681
      %v2683 = vadd.f32 %v2679, %v2682
      %vm2684 = vweird.f32 %v2450
      %vm2685 = vweird.f32 %v2679
      %vm2686 = vmor %vm2684, %vm2685
      %v2687 = vsel %vm2686, %v2679, %v2683
      %v2688 = vand.u32 2147483647, %v2450
      %vm2689 = vcmp.eq.f32.partialorder %v2688, 8.507059e+37
      %v2690 = vand.u32 %v2450, 2147483648
      %v2691 = vor.u32 1.1754944e-38, %v2690
      %v2692 = vsel %vm2689, %v2691, %v2687
      %v2693 = vmul.f32 1.0, %v2692
      %v2694 = vrcp.pop %v2451
      %v2695 = vmul.f32 %v2451, %v2694
      %v2696 = vsub.f32 1.0, %v2695
      %v2697 = vmul.f32 %v2694, %v2696
      %v2698 = vadd.f32 %v2694, %v2697
      %vm2699 = vweird.f32 %v2451
      %vm2700 = vweird.f32 %v2694
      %vm2701 = vmor %vm2699, %vm2700
      %v2702 = vsel %vm2701, %v2694, %v2698
      %v2703 = vand.u32 2147483647, %v2451
      %vm2704 = vcmp.eq.f32.partialorder %v2703, 8.507059e+37
      %v2705 = vand.u32 %v2451, 2147483648
      %v2706 = vor.u32 1.1754944e-38, %v2705
      %v2707 = vsel %vm2704, %v2706, %v2702
      %v2708 = vmul.f32 1.0, %v2707
      %v2709 = vrcp.pop %v2452
      %v2710 = vmul.f32 %v2452, %v2709
      %v2711 = vsub.f32 1.0, %v2710
      %v2712 = vmul.f32 %v2709, %v2711
      %v2713 = vadd.f32 %v2709, %v2712
      %vm2714 = vweird.f32 %v2452
      %vm2715 = vweird.f32 %v2709
      %vm2716 = vmor %vm2714, %vm2715
      %v2717 = vsel %vm2716, %v2709, %v2713
      %v2718 = vand.u32 2147483647, %v2452
      %vm2719 = vcmp.eq.f32.partialorder %v2718, 8.507059e+37
      %v2720 = vand.u32 %v2452, 2147483648
      %v2721 = vor.u32 1.1754944e-38, %v2720
      %v2722 = vsel %vm2719, %v2721, %v2717
      %v2723 = vmul.f32 1.0, %v2722
      %v2724 = vrcp.pop %v2453
      %v2725 = vmul.f32 %v2453, %v2724
      %v2726 = vsub.f32 1.0, %v2725
      %v2727 = vmul.f32 %v2724, %v2726
      %v2728 = vadd.f32 %v2724, %v2727
      %vm2729 = vweird.f32 %v2453
      %vm2730 = vweird.f32 %v2724
      %vm2731 = vmor %vm2729, %vm2730
      %v2732 = vsel %vm2731, %v2724, %v2728
      %v2733 = vand.u32 2147483647, %v2453
      %vm2734 = vcmp.eq.f32.partialorder %v2733, 8.507059e+37
      %v2735 = vand.u32 %v2453, 2147483648
      %v2736 = vor.u32 1.1754944e-38, %v2735
      %v2737 = vsel %vm2734, %v2736, %v2732
      %v2738 = vmul.f32 1.0, %v2737
      %v2739 = vrcp.pop %v2454
      %v2740 = vmul.f32 %v2454, %v2739
      %v2741 = vsub.f32 1.0, %v2740
      %v2742 = vmul.f32 %v2739, %v2741
      %v2743 = vadd.f32 %v2739, %v2742
      %vm2744 = vweird.f32 %v2454
      %vm2745 = vweird.f32 %v2739
      %vm2746 = vmor %vm2744, %vm2745
      %v2747 = vsel %vm2746, %v2739, %v2743
      %v2748 = vand.u32 2147483647, %v2454
      %vm2749 = vcmp.eq.f32.partialorder %v2748, 8.507059e+37
      %v2750 = vand.u32 %v2454, 2147483648
      %v2751 = vor.u32 1.1754944e-38, %v2750
      %v2752 = vsel %vm2749, %v2751, %v2747
      %v2753 = vmul.f32 1.0, %v2752
      %v2754 = vrcp.pop %v2455
      %v2755 = vmul.f32 %v2455, %v2754
      %v2756 = vsub.f32 1.0, %v2755
      %v2757 = vmul.f32 %v2754, %v2756
      %v2758 = vadd.f32 %v2754, %v2757
      %vm2759 = vweird.f32 %v2455
      %vm2760 = vweird.f32 %v2754
      %vm2761 = vmor %vm2759, %vm2760
      %v2762 = vsel %vm2761, %v2754, %v2758
      %v2763 = vand.u32 2147483647, %v2455
      %vm2764 = vcmp.eq.f32.partialorder %v2763, 8.507059e+37
      %v2765 = vand.u32 %v2455, 2147483648
      %v2766 = vor.u32 1.1754944e-38, %v2765
      %v2767 = vsel %vm2764, %v2766, %v2762
      %v2768 = vmul.f32 1.0, %v2767
      %v2769 = vrcp.pop %v2456
      %v2770 = vmul.f32 %v2456, %v2769
      %v2771 = vsub.f32 1.0, %v2770
      %v2772 = vmul.f32 %v2769, %v2771
      %v2773 = vadd.f32 %v2769, %v2772
      %vm2774 = vweird.f32 %v2456
      %vm2775 = vweird.f32 %v2769
      %vm2776 = vmor %vm2774, %vm2775
      %v2777 = vsel %vm2776, %v2769, %v2773
      %v2778 = vand.u32 2147483647, %v2456
      %vm2779 = vcmp.eq.f32.partialorder %v2778, 8.507059e+37
      %v2780 = vand.u32 %v2456, 2147483648
      %v2781 = vor.u32 1.1754944e-38, %v2780
      %v2782 = vsel %vm2779, %v2781, %v2777
      %v2783 = vmul.f32 1.0, %v2782
      %v2784 = vrcp.pop %v2457
      %v2785 = vmul.f32 %v2457, %v2784
      %v2786 = vsub.f32 1.0, %v2785
      %v2787 = vmul.f32 %v2784, %v2786
      %v2788 = vadd.f32 %v2784, %v2787
      %vm2789 = vweird.f32 %v2457
      %vm2790 = vweird.f32 %v2784
      %vm2791 = vmor %vm2789, %vm2790
      %v2792 = vsel %vm2791, %v2784, %v2788
      %v2793 = vand.u32 2147483647, %v2457
      %vm2794 = vcmp.eq.f32.partialorder %v2793, 8.507059e+37
      %v2795 = vand.u32 %v2457, 2147483648
      %v2796 = vor.u32 1.1754944e-38, %v2795
      %v2797 = vsel %vm2794, %v2796, %v2792
      %v2798 = vmul.f32 1.0, %v2797
      %v2799 = vrcp.pop %v2458
      %v2800 = vmul.f32 %v2458, %v2799
      %v2801 = vsub.f32 1.0, %v2800
      %v2802 = vmul.f32 %v2799, %v2801
      %v2803 = vadd.f32 %v2799, %v2802
      %vm2804 = vweird.f32 %v2458
      %vm2805 = vweird.f32 %v2799
      %vm2806 = vmor %vm2804, %vm2805
      %v2807 = vsel %vm2806, %v2799, %v2803
      %v2808 = vand.u32 2147483647, %v2458
      %vm2809 = vcmp.eq.f32.partialorder %v2808, 8.507059e+37
      %v2810 = vand.u32 %v2458, 2147483648
      %v2811 = vor.u32 1.1754944e-38, %v2810
      %v2812 = vsel %vm2809, %v2811, %v2807
      %v2813 = vmul.f32 1.0, %v2812
      %v2814 = vrcp.pop %v2459
      %v2815 = vmul.f32 %v2459, %v2814
      %v2816 = vsub.f32 1.0, %v2815
      %v2817 = vmul.f32 %v2814, %v2816
      %v2818 = vadd.f32 %v2814, %v2817
      %vm2819 = vweird.f32 %v2459
      %vm2820 = vweird.f32 %v2814
      %vm2821 = vmor %vm2819, %vm2820
      %v2822 = vsel %vm2821, %v2814, %v2818
      %v2823 = vand.u32 2147483647, %v2459
      %vm2824 = vcmp.eq.f32.partialorder %v2823, 8.507059e+37
      %v2825 = vand.u32 %v2459, 2147483648
      %v2826 = vor.u32 1.1754944e-38, %v2825
      %v2827 = vsel %vm2824, %v2826, %v2822
      %v2828 = vmul.f32 1.0, %v2827
      %v2829 = vrcp.pop %v2460
      %v2830 = vmul.f32 %v2460, %v2829
      %v2831 = vsub.f32 1.0, %v2830
      %v2832 = vmul.f32 %v2829, %v2831
      %v2833 = vadd.f32 %v2829, %v2832
      %vm2834 = vweird.f32 %v2460
      %vm2835 = vweird.f32 %v2829
      %vm2836 = vmor %vm2834, %vm2835
      %v2837 = vsel %vm2836, %v2829, %v2833
      %v2838 = vand.u32 2147483647, %v2460
      %vm2839 = vcmp.eq.f32.partialorder %v2838, 8.507059e+37
      %v2840 = vand.u32 %v2460, 2147483648
      %v2841 = vor.u32 1.1754944e-38, %v2840
      %v2842 = vsel %vm2839, %v2841, %v2837
      %v2843 = vmul.f32 1.0, %v2842
      %v2844 = vrcp.pop %v2461
      %v2845 = vmul.f32 %v2461, %v2844
      %v2846 = vsub.f32 1.0, %v2845
      %v2847 = vmul.f32 %v2844, %v2846
      %v2848 = vadd.f32 %v2844, %v2847
      %vm2849 = vweird.f32 %v2461
      %vm2850 = vweird.f32 %v2844
      %vm2851 = vmor %vm2849, %vm2850
      %v2852 = vsel %vm2851, %v2844, %v2848
      %v2853 = vand.u32 2147483647, %v2461
      %vm2854 = vcmp.eq.f32.partialorder %v2853, 8.507059e+37
      %v2855 = vand.u32 %v2461, 2147483648
      %v2856 = vor.u32 1.1754944e-38, %v2855
      %v2857 = vsel %vm2854, %v2856, %v2852
      %v2858 = vmul.f32 1.0, %v2857
      %v2859 = vrcp.pop %v2462
      %v2860 = vmul.f32 %v2462, %v2859
      %v2861 = vsub.f32 1.0, %v2860
      %v2862 = vmul.f32 %v2859, %v2861
      %v2863 = vadd.f32 %v2859, %v2862
      %vm2864 = vweird.f32 %v2462
      %vm2865 = vweird.f32 %v2859
      %vm2866 = vmor %vm2864, %vm2865
      %v2867 = vsel %vm2866, %v2859, %v2863
      %v2868 = vand.u32 2147483647, %v2462
      %vm2869 = vcmp.eq.f32.partialorder %v2868, 8.507059e+37
      %v2870 = vand.u32 %v2462, 2147483648
      %v2871 = vor.u32 1.1754944e-38, %v2870
      %v2872 = vsel %vm2869, %v2871, %v2867
      %v2873 = vmul.f32 1.0, %v2872
      %v2874 = vrcp.pop %v2463
      %v2875 = vmul.f32 %v2463, %v2874
      %v2876 = vsub.f32 1.0, %v2875
      %v2877 = vmul.f32 %v2874, %v2876
      %v2878 = vadd.f32 %v2874, %v2877
      %vm2879 = vweird.f32 %v2463
      %vm2880 = vweird.f32 %v2874
      %vm2881 = vmor %vm2879, %vm2880
      %v2882 = vsel %vm2881, %v2874, %v2878
      %v2883 = vand.u32 2147483647, %v2463
      %vm2884 = vcmp.eq.f32.partialorder %v2883, 8.507059e+37
      %v2885 = vand.u32 %v2463, 2147483648
      %v2886 = vor.u32 1.1754944e-38, %v2885
      %v2887 = vsel %vm2884, %v2886, %v2882
      %v2888 = vmul.f32 1.0, %v2887
      %v2889 = vrcp.pop %v2464
      %v2890 = vmul.f32 %v2464, %v2889
      %v2891 = vsub.f32 1.0, %v2890
      %v2892 = vmul.f32 %v2889, %v2891
      %v2893 = vadd.f32 %v2889, %v2892
      %vm2894 = vweird.f32 %v2464
      %vm2895 = vweird.f32 %v2889
      %vm2896 = vmor %vm2894, %vm2895
      %v2897 = vsel %vm2896, %v2889, %v2893
      %v2898 = vand.u32 2147483647, %v2464
      %vm2899 = vcmp.eq.f32.partialorder %v2898, 8.507059e+37
      %v2900 = vand.u32 %v2464, 2147483648
      %v2901 = vor.u32 1.1754944e-38, %v2900
      %v2902 = vsel %vm2899, %v2901, %v2897
      %v2903 = vmul.f32 1.0, %v2902
      %v2904 = vrcp.pop %v2465
      %v2905 = vmul.f32 %v2465, %v2904
      %v2906 = vsub.f32 1.0, %v2905
      %v2907 = vmul.f32 %v2904, %v2906
      %v2908 = vadd.f32 %v2904, %v2907
      %vm2909 = vweird.f32 %v2465
      %vm2910 = vweird.f32 %v2904
      %vm2911 = vmor %vm2909, %vm2910
      %v2912 = vsel %vm2911, %v2904, %v2908
      %v2913 = vand.u32 2147483647, %v2465
      %vm2914 = vcmp.eq.f32.partialorder %v2913, 8.507059e+37
      %v2915 = vand.u32 %v2465, 2147483648
      %v2916 = vor.u32 1.1754944e-38, %v2915
      %v2917 = vsel %vm2914, %v2916, %v2912
      %v2918 = vmul.f32 1.0, %v2917
      %v2919 = vrcp.pop %v2466
      %v2920 = vmul.f32 %v2466, %v2919
      %v2921 = vsub.f32 1.0, %v2920
      %v2922 = vmul.f32 %v2919, %v2921
      %v2923 = vadd.f32 %v2919, %v2922
      %vm2924 = vweird.f32 %v2466
      %vm2925 = vweird.f32 %v2919
      %vm2926 = vmor %vm2924, %vm2925
      %v2927 = vsel %vm2926, %v2919, %v2923
      %v2928 = vand.u32 2147483647, %v2466
      %vm2929 = vcmp.eq.f32.partialorder %v2928, 8.507059e+37
      %v2930 = vand.u32 %v2466, 2147483648
      %v2931 = vor.u32 1.1754944e-38, %v2930
      %v2932 = vsel %vm2929, %v2931, %v2927
      %v2933 = vmul.f32 1.0, %v2932
      %v2934 = vrcp.pop %v2467
      %v2935 = vmul.f32 %v2467, %v2934
      %v2936 = vsub.f32 1.0, %v2935
      %v2937 = vmul.f32 %v2934, %v2936
      %v2938 = vadd.f32 %v2934, %v2937
      %vm2939 = vweird.f32 %v2467
      %vm2940 = vweird.f32 %v2934
      %vm2941 = vmor %vm2939, %vm2940
      %v2942 = vsel %vm2941, %v2934, %v2938
      %v2943 = vand.u32 2147483647, %v2467
      %vm2944 = vcmp.eq.f32.partialorder %v2943, 8.507059e+37
      %v2945 = vand.u32 %v2467, 2147483648
      %v2946 = vor.u32 1.1754944e-38, %v2945
      %v2947 = vsel %vm2944, %v2946, %v2942
      %v2948 = vmul.f32 1.0, %v2947
      %v2949 = vrcp.pop %v2468
      %v2950 = vmul.f32 %v2468, %v2949
      %v2951 = vsub.f32 1.0, %v2950
      %v2952 = vmul.f32 %v2949, %v2951
      %v2953 = vadd.f32 %v2949, %v2952
      %vm2954 = vweird.f32 %v2468
      %vm2955 = vweird.f32 %v2949
      %vm2956 = vmor %vm2954, %vm2955
      %v2957 = vsel %vm2956, %v2949, %v2953
      %v2958 = vand.u32 2147483647, %v2468
      %vm2959 = vcmp.eq.f32.partialorder %v2958, 8.507059e+37
      %v2960 = vand.u32 %v2468, 2147483648
      %v2961 = vor.u32 1.1754944e-38, %v2960
      %v2962 = vsel %vm2959, %v2961, %v2957
      %v2963 = vmul.f32 1.0, %v2962
      %2964 = vst [vmem:[%s170] sm:$0xff] %v2483
      %2965 = vst [vmem:[%s170 + $0x8] sm:$0xff] %v2498
      %2966 = vst [vmem:[%s170 + $0x10] sm:$0xff] %v2513
      %2967 = vst [vmem:[%s170 + $0x18] sm:$0xff] %v2528
      %2968 = vst [vmem:[%s170 + $0x20] sm:$0xff] %v2543
      %2969 = vst [vmem:[%s170 + $0x28] sm:$0xff] %v2558
      %2970 = vst [vmem:[%s170 + $0x30] sm:$0xff] %v2573
      %2971 = vst [vmem:[%s170 + $0x38] sm:$0xff] %v2588
      %2972 = vst [vmem:[%s170 + $0x40] sm:$0xff] %v2603
      %2973 = vst [vmem:[%s170 + $0x48] sm:$0xff] %v2618
      %2974 = vst [vmem:[%s170 + $0x50] sm:$0xff] %v2633
      %2975 = vst [vmem:[%s170 + $0x58] sm:$0xff] %v2648
      %2976 = vst [vmem:[%s170 + $0x60] sm:$0xff] %v2663
      %2977 = vst [vmem:[%s170 + $0x68] sm:$0xff] %v2678
      %2978 = vst [vmem:[%s170 + $0x70] sm:$0xff] %v2693
      %2979 = vst [vmem:[%s170 + $0x78] sm:$0xff] %v2708
      %2980 = vst [vmem:[%s170 + $0x80] sm:$0xff] %v2723
      %2981 = vst [vmem:[%s170 + $0x88] sm:$0xff] %v2738
      %2982 = vst [vmem:[%s170 + $0x90] sm:$0xff] %v2753
      %2983 = vst [vmem:[%s170 + $0x98] sm:$0xff] %v2768
      %2984 = vst [vmem:[%s170 + $0xa0] sm:$0xff] %v2783
      %2985 = vst [vmem:[%s170 + $0xa8] sm:$0xff] %v2798
      %2986 = vst [vmem:[%s170 + $0xb0] sm:$0xff] %v2813
      %2987 = vst [vmem:[%s170 + $0xb8] sm:$0xff] %v2828
      %2988 = vst [vmem:[%s170 + $0xc0] sm:$0xff] %v2843
      %2989 = vst [vmem:[%s170 + $0xc8] sm:$0xff] %v2858
      %2990 = vst [vmem:[%s170 + $0xd0] sm:$0xff] %v2873
      %2991 = vst [vmem:[%s170 + $0xd8] sm:$0xff] %v2888
      %2992 = vst [vmem:[%s170 + $0xe0] sm:$0xff] %v2903
      %2993 = vst [vmem:[%s170 + $0xe8] sm:$0xff] %v2918
      %2994 = vst [vmem:[%s170 + $0xf0] sm:$0xff] %v2933
      %2995 = vst [vmem:[%s170 + $0xf8] sm:$0xff] %v2948
      %2996 = vst [vmem:[%s170 + $0x100] sm:$0xff] %v2963
      %p2997 = scmp.lt.s32.totalorder %s14, 1
      %s2998 = scalar_select %p2997, %s14, 1
      %s2999 = smul.addr %s2998, 33
      %s3000 = smul.addr %s2999, 8
      %s3001 = scalar_lea.vmem %s3, %s3000
      // Predicated region
      $region33: #{dec_subpix_branch_forward.9} parent=31 // pred_check
        %p3002 = pneg %p100
      $region34: #{dec_subpix_branch_forward.9} parent=31 // pred_check_branch
        %3004 = sbr.rel (%p3002) target = $region36
      $region35: #{dec_subpix_branch_forward.9} parent=31 // pred_region
        _
      $region36: #{dec_subpix_branch_forward.9} parent=31 // pred_fallthru
        _
    $region32: #{dec_subpix_branch_forward.9} parent=5 // pred_fallthru
      _
    %p3005 = scmp.le.s32.totalorder 2, %s9
    // Predicated region
    $region37: #{dec_subpix_branch_forward.9} parent=5 // pred_check
      %p3006 = pneg %p3005
    $region38: #{dec_subpix_branch_forward.9} parent=5 // pred_check_branch
      %3008 = sbr.rel (%p3006) target = $region40
    $region39: #{dec_subpix_branch_forward.9} parent=5 // pred_region
      %s3009 = ssub.s32 %s9, 2
      // Predicated region
      $region41: #{dec_subpix_branch_forward.9} parent=39 // pred_check
        %p3010 = pneg %p106
      $region42: #{dec_subpix_branch_forward.9} parent=39 // pred_check_branch
        %3012 = sbr.rel (%p3010) target = $region44
      $region43: #{dec_subpix_branch_forward.9} parent=39 // pred_region
        %p3013 = scmp.lt.s32.totalorder %s15, 1
        %s3014 = scalar_select %p3013, %s15, 1
        %s3015 = smul.addr %s3014, 33
        %s3016 = smul.addr %s3015, 8
        %s3017 = scalar_lea.vmem %s3, %s3016
      $region44: #{dec_subpix_branch_forward.9} parent=39 // pred_fallthru
        _
    $region40: #{dec_subpix_branch_forward.9} parent=5 // pred_fallthru
      _
  $region6: #{dec_subpix_branch_forward.9} parent=0 // loop_footer
    %s13 = sadd.s32 1, %s9
  $region7: #{dec_subpix_branch_forward.9} parent=0 // loop_footer_branch
    %8 = sbr.rel target = $region3
  $region8: #{dec_subpix_branch_forward.9} parent=0 // loop_exit
    _

</llo_original>
